<compile_context>
chip_gen: v6e
topology: v6e:2x2x1
jax: 0.10.0
libtpu: 0.0.40
codegen_flags: <defaults>
</compile_context>

<pallas_src>
import functools
import math

import numpy as np
import jax
import jax.numpy as jnp
from jax.experimental import pallas as pl
from jax.experimental.pallas import tpu as pltpu

# ---------------- small hyper-parameters ----------------
D_MODEL = 32
D_FEATURE = 8
D_FF = 64
N_HEADS = 4
N_LAYERS = 2
MAX_LENGTH = 16
BATCH = 2
SEQ = 8
EPS = 1e-5            # torch nn.LayerNorm default eps
LEAKY_SLOPE = 0.1     # LeakyReLU(0.1)
HD = N_HEADS * D_FEATURE      # 32 (== D_MODEL here)
M = BATCH * SEQ               # 16 rows (2 f32 sublane tiles)

# ---------------- weight-slab layout (rows x 128 lanes, f32) ----------------
# Per layer block of LAYER_ROWS rows:
#   rows  0:32  cols  0:96   wqkv  = [Wq | Wk | Wv]           (32, 96)
#   rows  0:32  cols 96:128  w0                                (32, 32)
#   rows 32:64  cols  0:64   w1                                (32, 64)
#   rows 32:96  cols 96:128  w2                                (64, 32)
#   row  64     cols  0:96   bqkv
#   row  65     cols  0:32   b0
#   row  66     cols  0:64   b1
#   row  67     cols  0:32   b2
#   rows 68:71  cols  0:32   LayerNorm gammas (norm1, norm2, norm3)
#   rows 71:74  cols  0:32   LayerNorm betas
# Shared region:
#   rows 192:224 cols 0:128  [Wk_l0 | Wv_l0 | Wk_l1 | Wv_l1]  (enc K/V, hoisted)
#   row  224     cols 0:128  [bk_l0 | bv_l0 | bk_l1 | bv_l1]
#   row  225     cols 0:32   pe[SEQ] (PositionEncoding quirk row)
#   rows 226:242 cols 0:16   block-diagonal batch mask (0 / -1e30)
LAYER_ROWS = 96
B_ROW = 64
LN_G_ROW = 68
LN_B_ROW = 71
ENC_W_ROW = N_LAYERS * LAYER_ROWS      # 192
ENC_B_ROW = ENC_W_ROW + D_MODEL        # 224
PE_ROW = ENC_B_ROW + 1                 # 225
MASK_ROW = PE_ROW + 1                  # 226
SLAB_ROWS = 248                        # 242 rounded up to a sublane multiple


# ---------------- fused Pallas kernel (whole decoder stack) ----------------
def _decoders_kernel(x_ref, enc_ref, w_ref, o_ref):
    f32 = jnp.float32
    scale = 1.0 / math.sqrt(D_FEATURE)

    # ---- loop-invariant constants (hoisted) ----
    pe_row = w_ref[PE_ROW:PE_ROW + 1, 0:D_MODEL]              # (1, 32)
    batch_mask = w_ref[MASK_ROW:MASK_ROW + M, 0:M]            # (16, 16) 0 / -1e30

    # PositionEncoding quirk: the SINGLE row pe[seq_len] is added everywhere.
    x = x_ref[...].astype(f32) + pe_row                       # (M, 32)
    enc = enc_ref[...].astype(f32)                            # (M, 32)

    def layer_norm(y, g, b):
        mu = jnp.mean(y, axis=-1, keepdims=True)
        var = jnp.mean((y - mu) ** 2, axis=-1, keepdims=True)
        return (y - mu) * jax.lax.rsqrt(var + EPS) * g + b

    def to_heads(t, off):
        # (M, >=off+HD) -> (H, M, Dh): the one head relayout per tensor.
        return jnp.stack(
            [t[:, off + h * D_FEATURE: off + (h + 1) * D_FEATURE]
             for h in range(N_HEADS)], axis=0)

    def attention(q_hm, k_hm, v_hm, w0_hm, b0):
        # ScaleDotProduct quirk: scores = K @ Q^T / sqrt(d_k).
        # All heads batched; batches separated by the additive block-diag mask.
        s = jnp.einsum('hkd,hqd->hkq', k_hm, q_hm,
                       preferred_element_type=f32) * scale    # (H, M, M)
        s = s + batch_mask
        s = s - jnp.max(s, axis=-1, keepdims=True)
        p = jnp.exp(s)                                        # masked entries -> 0
        p = p * pl.reciprocal(jnp.sum(p, axis=-1, keepdims=True), approx=True)
        ctx = jnp.einsum('hkq,hqd->hkd', p, v_hm,
                         preferred_element_type=f32)          # (H, M, Dh)
        # concat-heads @ W0  ==  sum_h ctx_h @ W0[h*Dh:(h+1)*Dh, :]
        out = jnp.einsum('hkd,hdo->hko', ctx, w0_hm,
                         preferred_element_type=f32)          # (H, M, D)
        return jnp.sum(out, axis=0) + b0                      # (M, D)

    # ---- hoisted encoder K/V projection for BOTH layers (loop-invariant):
    #      one lane-dense (16,32) @ (32,128) matmul. ----
    enc_w = w_ref[ENC_W_ROW:ENC_W_ROW + D_MODEL, :]           # (32, 128)
    enc_b = w_ref[ENC_B_ROW:ENC_B_ROW + 1, :]                 # (1, 128)
    enc_kv = jnp.dot(enc, enc_w, preferred_element_type=f32) + enc_b
    enc_k = [to_heads(enc_kv, l * 2 * HD) for l in range(N_LAYERS)]
    enc_v = [to_heads(enc_kv, l * 2 * HD + HD) for l in range(N_LAYERS)]

    for l in range(N_LAYERS):                                 # static unroll
        r = l * LAYER_ROWS
        wqkv = w_ref[r:r + D_MODEL, 0:3 * HD]                 # (32, 96)
        bqkv = w_ref[r + B_ROW:r + B_ROW + 1, 0:3 * HD]       # (1, 96)
        # (HD, D) -> (H, Dh, D): leading-dim split at a sublane-tile boundary.
        w0_hm = w_ref[r:r + HD, 96:128].reshape(N_HEADS, D_FEATURE, D_MODEL)
        b0 = w_ref[r + B_ROW + 1:r + B_ROW + 2, 0:D_MODEL]
        w1 = w_ref[r + 32:r + 64, 0:D_FF]                     # (32, 64)
        b1 = w_ref[r + B_ROW + 2:r + B_ROW + 3, 0:D_FF]
        w2 = w_ref[r + 32:r + 96, 96:128]                     # (64, 32)
        b2 = w_ref[r + B_ROW + 3:r + B_ROW + 4, 0:D_MODEL]

        def ln_g(i, _r=r):
            return w_ref[_r + LN_G_ROW + i:_r + LN_G_ROW + i + 1, 0:D_MODEL]

        def ln_b(i, _r=r):
            return w_ref[_r + LN_B_ROW + i:_r + LN_B_ROW + i + 1, 0:D_MODEL]

        # ---- self-attention: x = x + LN1(MHA(x, x, x)) ----
        qkv = jnp.dot(x, wqkv, preferred_element_type=f32) + bqkv   # (16, 96)
        a1 = attention(to_heads(qkv, 0), to_heads(qkv, HD),
                       to_heads(qkv, 2 * HD), w0_hm, b0)
        x = x + layer_norm(a1, ln_g(0), ln_b(0))

        # ---- cross-attention (SAME MHA weights): x = x + LN2(MHA(x, enc, enc))
        #      only the Q projection is on the critical path; enc K/V hoisted.
        wq = w_ref[r:r + D_MODEL, 0:HD]
        bq = w_ref[r + B_ROW:r + B_ROW + 1, 0:HD]
        q = jnp.dot(x, wq, preferred_element_type=f32) + bq          # (16, 32)
        a2 = attention(to_heads(q, 0), enc_k[l], enc_v[l], w0_hm, b0)
        x = x + layer_norm(a2, ln_g(1), ln_b(1))

        # ---- feed-forward; PyTorch overwrites x, so residual is ff + LN3(ff)
        hdn = jnp.dot(x, w1, preferred_element_type=f32) + b1
        hdn = jnp.where(hdn >= 0, hdn, LEAKY_SLOPE * hdn)
        ff = jnp.dot(hdn, w2, preferred_element_type=f32) + b2
        x = ff + layer_norm(ff, ln_g(2), ln_b(2))

    o_ref[...] = x.astype(o_ref.dtype)


def decoders_forward(slab, output_encoder, x):
    B, S, D = x.shape
    x2 = x.reshape(B * S, D)
    enc2 = output_encoder.reshape(B * S, D)
    vmem = pl.BlockSpec(memory_space=pltpu.MemorySpace.VMEM)
    out = pl.pallas_call(
        _decoders_kernel,
        out_shape=jax.ShapeDtypeStruct((B * S, D), x.dtype),
        in_specs=[vmem, vmem, vmem],
        out_specs=vmem,
        # No grid: single invocation, everything VMEM-resident (~130 KB total),
        # no revolving-buffer / pipeline bookkeeping for a 1-step grid.
    )(x2, enc2, slab)
    return out.reshape(B, S, D)


# ---------------- pure-JAX reference (mirrors the PyTorch module) ----------------
def reference_forward(params, pe, output_encoder, x):
    B, S, D = x.shape
    x = x + pe[S][None, None, :]
    for l in range(N_LAYERS):
        wqkv = params["wqkv"][l]; bqkv = params["bqkv"][l]
        w0 = params["w0"][l]; b0 = params["b0"][l]
        lng = params["ln_g"][l]; lnb = params["ln_b"][l]
        w1 = params["w1"][l]; b1 = params["b1"][l]
        w2 = params["w2"][l]; b2 = params["b2"][l]

        def ln(y, g, b):
            m = jnp.mean(y, axis=-1, keepdims=True)
            v = jnp.mean((y - m) ** 2, axis=-1, keepdims=True)
            return (y - m) / jnp.sqrt(v + EPS) * g + b

        def mha(xq, xkv):
            q = xq @ wqkv[:, :HD] + bqkv[:HD]
            k = xkv @ wqkv[:, HD:2 * HD] + bqkv[HD:2 * HD]
            v = xkv @ wqkv[:, 2 * HD:] + bqkv[2 * HD:]
            outs = []
            for h in range(N_HEADS):
                sl = slice(h * D_FEATURE, (h + 1) * D_FEATURE)
                qh, kh, vh = q[..., sl], k[..., sl], v[..., sl]
                s = jnp.einsum('bkd,bqd->bkq', kh, qh) / math.sqrt(D_FEATURE)
                p = jax.nn.softmax(s, axis=-1)
                outs.append(jnp.einsum('bkq,bqd->bkd', p, vh))
            o = jnp.concatenate(outs, axis=-1)
            return o @ w0 + b0

        a1 = mha(x, x)
        x = x + ln(a1, lng[0], lnb[0])
        a2 = mha(x, output_encoder)
        x = x + ln(a2, lng[1], lnb[1])
        hdn = x @ w1 + b1
        hdn = jnp.where(hdn >= 0, hdn, LEAKY_SLOPE * hdn)
        ff = hdn @ w2 + b2
        x = ff + ln(ff, lng[2], lnb[2])
    return x


# ---------------- deterministic parameter init, PE table, packing ----------------
def make_position_encoding():
    pe = np.zeros((MAX_LENGTH, D_MODEL), dtype=np.float32)
    for pos in range(MAX_LENGTH):
        for idx in range(0, D_MODEL, 2):
            w_k = 1.0 / 10000 ** (idx / D_MODEL)
            pe[pos, idx] = math.sin(w_k * pos)
            pe[pos, idx + 1] = math.cos(w_k * pos)
    return jnp.asarray(pe)


def make_batch_mask():
    rid = np.arange(M) // SEQ
    return np.where(rid[:, None] == rid[None, :], 0.0, -1e30).astype(np.float32)


def init_params(key):
    # wqkv columns = [Wq | Wk | Wv] (per-head PyTorch Linear weights would be
    # concatenated into these slabs when porting real checkpoints).
    s = 0.05
    ks = jax.random.split(key, 10)
    n = lambda k, shp, sc: sc * jax.random.normal(k, shp, jnp.float32)
    return {
        "wqkv": n(ks[0], (N_LAYERS, D_MODEL, 3 * HD), s),
        "bqkv": n(ks[1], (N_LAYERS, 3 * HD), 0.02),
        "w0":   n(ks[2], (N_LAYERS, HD, D_MODEL), s),
        "b0":   n(ks[3], (N_LAYERS, D_MODEL), 0.02),
        "ln_g": 1.0 + n(ks[4], (N_LAYERS, 3, D_MODEL), 0.05),
        "ln_b": n(ks[5], (N_LAYERS, 3, D_MODEL), 0.02),
        "w1":   n(ks[6], (N_LAYERS, D_MODEL, D_FF), s),
        "b1":   n(ks[7], (N_LAYERS, D_FF), 0.02),
        "w2":   n(ks[8], (N_LAYERS, D_FF, D_MODEL), s),
        "b2":   n(ks[9], (N_LAYERS, D_MODEL), 0.02),
    }


def pack_params(params, pe_row, batch_mask):
    p = {k: np.asarray(v) for k, v in params.items()}
    slab = np.zeros((SLAB_ROWS, 128), np.float32)
    for l in range(N_LAYERS):
        r = l * LAYER_ROWS
        slab[r:r + D_MODEL, 0:3 * HD] = p["wqkv"][l]
        slab[r:r + HD, 96:128] = p["w0"][l]
        slab[r + 32:r + 64, 0:D_FF] = p["w1"][l]
        slab[r + 32:r + 96, 96:128] = p["w2"][l]
        slab[r + B_ROW, 0:3 * HD] = p["bqkv"][l]
        slab[r + B_ROW + 1, 0:D_MODEL] = p["b0"][l]
        slab[r + B_ROW + 2, 0:D_FF] = p["b1"][l]
        slab[r + B_ROW + 3, 0:D_MODEL] = p["b2"][l]
        slab[r + LN_G_ROW:r + LN_G_ROW + 3, 0:D_MODEL] = p["ln_g"][l]
        slab[r + LN_B_ROW:r + LN_B_ROW + 3, 0:D_MODEL] = p["ln_b"][l]
        # duplicated [Wk | Wv] (+ biases) for the hoisted, lane-dense encoder
        # K/V projection of both layers (one 128-wide matmul in-kernel).
        slab[ENC_W_ROW:ENC_W_ROW + D_MODEL, l * 2 * HD:(l + 1) * 2 * HD] = \
            p["wqkv"][l][:, HD:3 * HD]
        slab[ENC_B_ROW, l * 2 * HD:(l + 1) * 2 * HD] = p["bqkv"][l][HD:3 * HD]
    slab[PE_ROW, 0:D_MODEL] = np.asarray(pe_row).reshape(-1)
    slab[MASK_ROW:MASK_ROW + M, 0:M] = np.asarray(batch_mask)
    return jnp.asarray(slab)


if __name__ == "__main__":
    root = jax.random.PRNGKey(0)
    k_param, k_x, k_enc = jax.random.split(root, 3)

    params = init_params(k_param)
    pe = make_position_encoding()
    pe_row = pe[SEQ]                     # PositionEncoding quirk: single row

    slab = pack_params(params, pe_row, make_batch_mask())

    x = jax.random.normal(k_x, (BATCH, SEQ, D_MODEL), jnp.float32)
    output_encoder = jax.random.normal(k_enc, (BATCH, SEQ, D_MODEL), jnp.float32)

    fwd = jax.jit(functools.partial(decoders_forward, slab))
    out = jax.block_until_ready(fwd(output_encoder, x))

    assert out.shape == (BATCH, SEQ, D_MODEL)
    assert bool(jnp.all(jnp.isfinite(out)))

    with jax.default_matmul_precision("highest"):
        ref = reference_forward(params, pe, output_encoder, x)
    err = float(jnp.max(jnp.abs(out - ref)))
    assert bool(jnp.allclose(out, ref, atol=1e-2, rtol=1e-2)), (
        "max abs diff = %f" % err)

    print("KERNEL_OK")
</pallas_src>

<mosaic_0001>
module attributes {stable_mosaic.version = 11 : i64} {
  func.func @_decoders_kernel(%arg0: memref<16x32xf32, #tpu.memory_space<vmem>>, %arg1: memref<16x32xf32, #tpu.memory_space<vmem>>, %arg2: memref<248x128xf32, #tpu.memory_space<vmem>>, %arg3: memref<16x32xf32, #tpu.memory_space<vmem>>) attributes {dimension_semantics = [], scalar_prefetch = 0 : i64, scratch_operands = 0 : i64, tpu.core_type = #tpu.core_type<tc>} {
    %c225 = arith.constant 225 : index
    %c0 = arith.constant 0 : index
    %0 = vector.load %arg2[%c225, %c0] : memref<248x128xf32, #tpu.memory_space<vmem>>, vector<1x32xf32>
    %c226 = arith.constant 226 : index
    %c0_0 = arith.constant 0 : index
    %1 = vector.load %arg2[%c226, %c0_0] : memref<248x128xf32, #tpu.memory_space<vmem>>, vector<16x16xf32>
    %c0_1 = arith.constant 0 : index
    %c0_2 = arith.constant 0 : index
    %2 = vector.load %arg0[%c0_1, %c0_2] : memref<16x32xf32, #tpu.memory_space<vmem>>, vector<16x32xf32>
    %3 = vector.broadcast %0 : vector<1x32xf32> to vector<16x32xf32>
    %4 = arith.addf %2, %3 : vector<16x32xf32>
    %c0_3 = arith.constant 0 : index
    %c0_4 = arith.constant 0 : index
    %5 = vector.load %arg1[%c0_3, %c0_4] : memref<16x32xf32, #tpu.memory_space<vmem>>, vector<16x32xf32>
    %c192 = arith.constant 192 : index
    %c0_5 = arith.constant 0 : index
    %6 = vector.load %arg2[%c192, %c0_5] : memref<248x128xf32, #tpu.memory_space<vmem>>, vector<32x128xf32>
    %c224 = arith.constant 224 : index
    %c0_6 = arith.constant 0 : index
    %7 = vector.load %arg2[%c224, %c0_6] : memref<248x128xf32, #tpu.memory_space<vmem>>, vector<1x128xf32>
    %cst = arith.constant dense<0.000000e+00> : vector<16x128xf32>
    %8 = tpu.matmul %5, %6, %cst {dimension_numbers = #tpu.dot_dimension_numbers<[1], [0], [0], [1], [0, 0, 1, 1], [], []>} : vector<16x32xf32>, vector<32x128xf32>, vector<16x128xf32> -> vector<16x128xf32>
    %9 = vector.broadcast %7 : vector<1x128xf32> to vector<16x128xf32>
    %10 = arith.addf %8, %9 : vector<16x128xf32>
    %11 = vector.extract_strided_slice %10 {offsets = [0, 0], sizes = [16, 8], strides = [1, 1]} : vector<16x128xf32> to vector<16x8xf32>
    %12 = vector.extract_strided_slice %10 {offsets = [0, 8], sizes = [16, 8], strides = [1, 1]} : vector<16x128xf32> to vector<16x8xf32>
    %13 = vector.extract_strided_slice %10 {offsets = [0, 16], sizes = [16, 8], strides = [1, 1]} : vector<16x128xf32> to vector<16x8xf32>
    %14 = vector.extract_strided_slice %10 {offsets = [0, 24], sizes = [16, 8], strides = [1, 1]} : vector<16x128xf32> to vector<16x8xf32>
    %15 = vector.shape_cast %11 : vector<16x8xf32> to vector<1x16x8xf32>
    %16 = vector.shape_cast %12 : vector<16x8xf32> to vector<1x16x8xf32>
    %17 = vector.shape_cast %13 : vector<16x8xf32> to vector<1x16x8xf32>
    %18 = vector.shape_cast %14 : vector<16x8xf32> to vector<1x16x8xf32>
    %19 = tpu.concatenate %15, %16, %17, %18 in 0 : vector<1x16x8xf32>, vector<1x16x8xf32>, vector<1x16x8xf32>, vector<1x16x8xf32> -> vector<4x16x8xf32>
    %20 = vector.extract_strided_slice %10 {offsets = [0, 64], sizes = [16, 8], strides = [1, 1]} : vector<16x128xf32> to vector<16x8xf32>
    %21 = vector.extract_strided_slice %10 {offsets = [0, 72], sizes = [16, 8], strides = [1, 1]} : vector<16x128xf32> to vector<16x8xf32>
    %22 = vector.extract_strided_slice %10 {offsets = [0, 80], sizes = [16, 8], strides = [1, 1]} : vector<16x128xf32> to vector<16x8xf32>
    %23 = vector.extract_strided_slice %10 {offsets = [0, 88], sizes = [16, 8], strides = [1, 1]} : vector<16x128xf32> to vector<16x8xf32>
    %24 = vector.shape_cast %20 : vector<16x8xf32> to vector<1x16x8xf32>
    %25 = vector.shape_cast %21 : vector<16x8xf32> to vector<1x16x8xf32>
    %26 = vector.shape_cast %22 : vector<16x8xf32> to vector<1x16x8xf32>
    %27 = vector.shape_cast %23 : vector<16x8xf32> to vector<1x16x8xf32>
    %28 = tpu.concatenate %24, %25, %26, %27 in 0 : vector<1x16x8xf32>, vector<1x16x8xf32>, vector<1x16x8xf32>, vector<1x16x8xf32> -> vector<4x16x8xf32>
    %29 = vector.extract_strided_slice %10 {offsets = [0, 32], sizes = [16, 8], strides = [1, 1]} : vector<16x128xf32> to vector<16x8xf32>
    %30 = vector.extract_strided_slice %10 {offsets = [0, 40], sizes = [16, 8], strides = [1, 1]} : vector<16x128xf32> to vector<16x8xf32>
    %31 = vector.extract_strided_slice %10 {offsets = [0, 48], sizes = [16, 8], strides = [1, 1]} : vector<16x128xf32> to vector<16x8xf32>
    %32 = vector.extract_strided_slice %10 {offsets = [0, 56], sizes = [16, 8], strides = [1, 1]} : vector<16x128xf32> to vector<16x8xf32>
    %33 = vector.shape_cast %29 : vector<16x8xf32> to vector<1x16x8xf32>
    %34 = vector.shape_cast %30 : vector<16x8xf32> to vector<1x16x8xf32>
    %35 = vector.shape_cast %31 : vector<16x8xf32> to vector<1x16x8xf32>
    %36 = vector.shape_cast %32 : vector<16x8xf32> to vector<1x16x8xf32>
    %37 = tpu.concatenate %33, %34, %35, %36 in 0 : vector<1x16x8xf32>, vector<1x16x8xf32>, vector<1x16x8xf32>, vector<1x16x8xf32> -> vector<4x16x8xf32>
    %38 = vector.extract_strided_slice %10 {offsets = [0, 96], sizes = [16, 8], strides = [1, 1]} : vector<16x128xf32> to vector<16x8xf32>
    %39 = vector.extract_strided_slice %10 {offsets = [0, 104], sizes = [16, 8], strides = [1, 1]} : vector<16x128xf32> to vector<16x8xf32>
    %40 = vector.extract_strided_slice %10 {offsets = [0, 112], sizes = [16, 8], strides = [1, 1]} : vector<16x128xf32> to vector<16x8xf32>
    %41 = vector.extract_strided_slice %10 {offsets = [0, 120], sizes = [16, 8], strides = [1, 1]} : vector<16x128xf32> to vector<16x8xf32>
    %42 = vector.shape_cast %38 : vector<16x8xf32> to vector<1x16x8xf32>
    %43 = vector.shape_cast %39 : vector<16x8xf32> to vector<1x16x8xf32>
    %44 = vector.shape_cast %40 : vector<16x8xf32> to vector<1x16x8xf32>
    %45 = vector.shape_cast %41 : vector<16x8xf32> to vector<1x16x8xf32>
    %46 = tpu.concatenate %42, %43, %44, %45 in 0 : vector<1x16x8xf32>, vector<1x16x8xf32>, vector<1x16x8xf32>, vector<1x16x8xf32> -> vector<4x16x8xf32>
    %c0_7 = arith.constant 0 : index
    %c0_8 = arith.constant 0 : index
    %47 = vector.load %arg2[%c0_7, %c0_8] : memref<248x128xf32, #tpu.memory_space<vmem>>, vector<32x96xf32>
    %c64 = arith.constant 64 : index
    %c0_9 = arith.constant 0 : index
    %48 = vector.load %arg2[%c64, %c0_9] : memref<248x128xf32, #tpu.memory_space<vmem>>, vector<1x96xf32>
    %c0_10 = arith.constant 0 : index
    %c96 = arith.constant 96 : index
    %49 = vector.load %arg2[%c0_10, %c96] : memref<248x128xf32, #tpu.memory_space<vmem>>, vector<32x32xf32>
    %50 = vector.shape_cast %49 : vector<32x32xf32> to vector<4x8x32xf32>
    %c65 = arith.constant 65 : index
    %c0_11 = arith.constant 0 : index
    %51 = vector.load %arg2[%c65, %c0_11] : memref<248x128xf32, #tpu.memory_space<vmem>>, vector<1x32xf32>
    %c32 = arith.constant 32 : index
    %c0_12 = arith.constant 0 : index
    %52 = vector.load %arg2[%c32, %c0_12] : memref<248x128xf32, #tpu.memory_space<vmem>>, vector<32x64xf32>
    %c66 = arith.constant 66 : index
    %c0_13 = arith.constant 0 : index
    %53 = vector.load %arg2[%c66, %c0_13] : memref<248x128xf32, #tpu.memory_space<vmem>>, vector<1x64xf32>
    %c32_14 = arith.constant 32 : index
    %c96_15 = arith.constant 96 : index
    %54 = vector.load %arg2[%c32_14, %c96_15] : memref<248x128xf32, #tpu.memory_space<vmem>>, vector<64x32xf32>
    %c67 = arith.constant 67 : index
    %c0_16 = arith.constant 0 : index
    %55 = vector.load %arg2[%c67, %c0_16] : memref<248x128xf32, #tpu.memory_space<vmem>>, vector<1x32xf32>
    %cst_17 = arith.constant dense<0.000000e+00> : vector<16x96xf32>
    %56 = tpu.matmul %4, %47, %cst_17 {dimension_numbers = #tpu.dot_dimension_numbers<[1], [0], [0], [1], [0, 0, 1, 1], [], []>} : vector<16x32xf32>, vector<32x96xf32>, vector<16x96xf32> -> vector<16x96xf32>
    %57 = vector.broadcast %48 : vector<1x96xf32> to vector<16x96xf32>
    %58 = arith.addf %56, %57 : vector<16x96xf32>
    %59 = vector.extract_strided_slice %58 {offsets = [0, 0], sizes = [16, 8], strides = [1, 1]} : vector<16x96xf32> to vector<16x8xf32>
    %60 = vector.extract_strided_slice %58 {offsets = [0, 8], sizes = [16, 8], strides = [1, 1]} : vector<16x96xf32> to vector<16x8xf32>
    %61 = vector.extract_strided_slice %58 {offsets = [0, 16], sizes = [16, 8], strides = [1, 1]} : vector<16x96xf32> to vector<16x8xf32>
    %62 = vector.extract_strided_slice %58 {offsets = [0, 24], sizes = [16, 8], strides = [1, 1]} : vector<16x96xf32> to vector<16x8xf32>
    %63 = vector.shape_cast %59 : vector<16x8xf32> to vector<1x16x8xf32>
    %64 = vector.shape_cast %60 : vector<16x8xf32> to vector<1x16x8xf32>
    %65 = vector.shape_cast %61 : vector<16x8xf32> to vector<1x16x8xf32>
    %66 = vector.shape_cast %62 : vector<16x8xf32> to vector<1x16x8xf32>
    %67 = tpu.concatenate %63, %64, %65, %66 in 0 : vector<1x16x8xf32>, vector<1x16x8xf32>, vector<1x16x8xf32>, vector<1x16x8xf32> -> vector<4x16x8xf32>
    %68 = vector.extract_strided_slice %58 {offsets = [0, 32], sizes = [16, 8], strides = [1, 1]} : vector<16x96xf32> to vector<16x8xf32>
    %69 = vector.extract_strided_slice %58 {offsets = [0, 40], sizes = [16, 8], strides = [1, 1]} : vector<16x96xf32> to vector<16x8xf32>
    %70 = vector.extract_strided_slice %58 {offsets = [0, 48], sizes = [16, 8], strides = [1, 1]} : vector<16x96xf32> to vector<16x8xf32>
    %71 = vector.extract_strided_slice %58 {offsets = [0, 56], sizes = [16, 8], strides = [1, 1]} : vector<16x96xf32> to vector<16x8xf32>
    %72 = vector.shape_cast %68 : vector<16x8xf32> to vector<1x16x8xf32>
    %73 = vector.shape_cast %69 : vector<16x8xf32> to vector<1x16x8xf32>
    %74 = vector.shape_cast %70 : vector<16x8xf32> to vector<1x16x8xf32>
    %75 = vector.shape_cast %71 : vector<16x8xf32> to vector<1x16x8xf32>
    %76 = tpu.concatenate %72, %73, %74, %75 in 0 : vector<1x16x8xf32>, vector<1x16x8xf32>, vector<1x16x8xf32>, vector<1x16x8xf32> -> vector<4x16x8xf32>
    %77 = vector.extract_strided_slice %58 {offsets = [0, 64], sizes = [16, 8], strides = [1, 1]} : vector<16x96xf32> to vector<16x8xf32>
    %78 = vector.extract_strided_slice %58 {offsets = [0, 72], sizes = [16, 8], strides = [1, 1]} : vector<16x96xf32> to vector<16x8xf32>
    %79 = vector.extract_strided_slice %58 {offsets = [0, 80], sizes = [16, 8], strides = [1, 1]} : vector<16x96xf32> to vector<16x8xf32>
    %80 = vector.extract_strided_slice %58 {offsets = [0, 88], sizes = [16, 8], strides = [1, 1]} : vector<16x96xf32> to vector<16x8xf32>
    %81 = vector.shape_cast %77 : vector<16x8xf32> to vector<1x16x8xf32>
    %82 = vector.shape_cast %78 : vector<16x8xf32> to vector<1x16x8xf32>
    %83 = vector.shape_cast %79 : vector<16x8xf32> to vector<1x16x8xf32>
    %84 = vector.shape_cast %80 : vector<16x8xf32> to vector<1x16x8xf32>
    %85 = tpu.concatenate %81, %82, %83, %84 in 0 : vector<1x16x8xf32>, vector<1x16x8xf32>, vector<1x16x8xf32>, vector<1x16x8xf32> -> vector<4x16x8xf32>
    "tpu.trace_start"() <{level = 10 : i32, message = "hkd,hqd->hkq"}> : () -> ()
    %cst_18 = arith.constant dense<0.000000e+00> : vector<4x16x16xf32>
    %86 = tpu.matmul %76, %67, %cst_18 {dimension_numbers = #tpu.dot_dimension_numbers<[2], [2], [1], [1], [0, 0, 0, 1, 1, 1], [0], [0]>} : vector<4x16x8xf32>, vector<4x16x8xf32>, vector<4x16x16xf32> -> vector<4x16x16xf32>
    "tpu.trace_stop"() : () -> ()
    %cst_19 = arith.constant 0.353553385 : f32
    %87 = vector.broadcast %cst_19 : f32 to vector<4x16x16xf32>
    %88 = arith.mulf %86, %87 : vector<4x16x16xf32>
    %89 = vector.shape_cast %1 : vector<16x16xf32> to vector<1x16x16xf32>
    %90 = vector.broadcast %89 : vector<1x16x16xf32> to vector<4x16x16xf32>
    %91 = arith.addf %88, %90 : vector<4x16x16xf32>
    %cst_20 = arith.constant dense<0xFF800000> : vector<4x16xf32>
    %92 = vector.multi_reduction <maximumf>, %91, %cst_20 [2] : vector<4x16x16xf32> to vector<4x16xf32>
    %93 = vector.shape_cast %92 : vector<4x16xf32> to vector<4x16x1xf32>
    %94 = vector.broadcast %93 : vector<4x16x1xf32> to vector<4x16x16xf32>
    %95 = arith.subf %91, %94 : vector<4x16x16xf32>
    %96 = math.exp %95 : vector<4x16x16xf32>
    %cst_21 = arith.constant dense<0.000000e+00> : vector<4x16xf32>
    %97 = vector.multi_reduction <add>, %96, %cst_21 [2] : vector<4x16x16xf32> to vector<4x16xf32>
    %98 = vector.shape_cast %97 : vector<4x16xf32> to vector<4x16x1xf32>
    %99 = tpu.reciprocal %98 {approx = true} : vector<4x16x1xf32> -> vector<4x16x1xf32>
    %100 = vector.broadcast %99 : vector<4x16x1xf32> to vector<4x16x16xf32>
    %101 = arith.mulf %96, %100 : vector<4x16x16xf32>
    "tpu.trace_start"() <{level = 10 : i32, message = "hkq,hqd->hkd"}> : () -> ()
    %cst_22 = arith.constant dense<0.000000e+00> : vector<4x16x8xf32>
    %102 = tpu.matmul %101, %85, %cst_22 {dimension_numbers = #tpu.dot_dimension_numbers<[2], [1], [1], [2], [0, 0, 0, 1, 1, 2], [0], [0]>} : vector<4x16x16xf32>, vector<4x16x8xf32>, vector<4x16x8xf32> -> vector<4x16x8xf32>
    "tpu.trace_stop"() : () -> ()
    "tpu.trace_start"() <{level = 10 : i32, message = "hkd,hdo->hko"}> : () -> ()
    %cst_23 = arith.constant dense<0.000000e+00> : vector<4x16x32xf32>
    %103 = tpu.matmul %102, %50, %cst_23 {dimension_numbers = #tpu.dot_dimension_numbers<[2], [1], [1], [2], [0, 0, 0, 1, 1, 2], [0], [0]>} : vector<4x16x8xf32>, vector<4x8x32xf32>, vector<4x16x32xf32> -> vector<4x16x32xf32>
    "tpu.trace_stop"() : () -> ()
    %cst_24 = arith.constant dense<0.000000e+00> : vector<16x32xf32>
    %104 = vector.multi_reduction <add>, %103, %cst_24 [0] : vector<4x16x32xf32> to vector<16x32xf32>
    %105 = vector.broadcast %51 : vector<1x32xf32> to vector<16x32xf32>
    %106 = arith.addf %104, %105 : vector<16x32xf32>
    %c68 = arith.constant 68 : index
    %c0_25 = arith.constant 0 : index
    %107 = vector.load %arg2[%c68, %c0_25] : memref<248x128xf32, #tpu.memory_space<vmem>>, vector<1x32xf32>
    %c71 = arith.constant 71 : index
    %c0_26 = arith.constant 0 : index
    %108 = vector.load %arg2[%c71, %c0_26] : memref<248x128xf32, #tpu.memory_space<vmem>>, vector<1x32xf32>
    %cst_27 = arith.constant dense<0.000000e+00> : vector<16xf32>
    %109 = vector.multi_reduction <add>, %106, %cst_27 [1] : vector<16x32xf32> to vector<16xf32>
    %110 = vector.shape_cast %109 : vector<16xf32> to vector<16x1xf32>
    %cst_28 = arith.constant 3.200000e+01 : f32
    %111 = vector.broadcast %cst_28 : f32 to vector<16x1xf32>
    %112 = arith.divf %110, %111 : vector<16x1xf32>
    %113 = vector.broadcast %112 : vector<16x1xf32> to vector<16x32xf32>
    %114 = arith.subf %106, %113 : vector<16x32xf32>
    %115 = arith.mulf %114, %114 : vector<16x32xf32>
    %cst_29 = arith.constant dense<0.000000e+00> : vector<16xf32>
    %116 = vector.multi_reduction <add>, %115, %cst_29 [1] : vector<16x32xf32> to vector<16xf32>
    %117 = vector.shape_cast %116 : vector<16xf32> to vector<16x1xf32>
    %cst_30 = arith.constant 3.200000e+01 : f32
    %118 = vector.broadcast %cst_30 : f32 to vector<16x1xf32>
    %119 = arith.divf %117, %118 : vector<16x1xf32>
    %120 = vector.broadcast %112 : vector<16x1xf32> to vector<16x32xf32>
    %121 = arith.subf %106, %120 : vector<16x32xf32>
    %cst_31 = arith.constant 9.99999974E-6 : f32
    %122 = vector.broadcast %cst_31 : f32 to vector<16x1xf32>
    %123 = arith.addf %119, %122 : vector<16x1xf32>
    %124 = math.rsqrt %123 : vector<16x1xf32>
    %125 = vector.broadcast %124 : vector<16x1xf32> to vector<16x32xf32>
    %126 = arith.mulf %121, %125 : vector<16x32xf32>
    %127 = vector.broadcast %107 : vector<1x32xf32> to vector<16x32xf32>
    %128 = arith.mulf %126, %127 : vector<16x32xf32>
    %129 = vector.broadcast %108 : vector<1x32xf32> to vector<16x32xf32>
    %130 = arith.addf %128, %129 : vector<16x32xf32>
    %131 = arith.addf %4, %130 : vector<16x32xf32>
    %c0_32 = arith.constant 0 : index
    %c0_33 = arith.constant 0 : index
    %132 = vector.load %arg2[%c0_32, %c0_33] : memref<248x128xf32, #tpu.memory_space<vmem>>, vector<32x32xf32>
    %c64_34 = arith.constant 64 : index
    %c0_35 = arith.constant 0 : index
    %133 = vector.load %arg2[%c64_34, %c0_35] : memref<248x128xf32, #tpu.memory_space<vmem>>, vector<1x32xf32>
    %cst_36 = arith.constant dense<0.000000e+00> : vector<16x32xf32>
    %134 = tpu.matmul %131, %132, %cst_36 {dimension_numbers = #tpu.dot_dimension_numbers<[1], [0], [0], [1], [0, 0, 1, 1], [], []>} : vector<16x32xf32>, vector<32x32xf32>, vector<16x32xf32> -> vector<16x32xf32>
    %135 = vector.broadcast %133 : vector<1x32xf32> to vector<16x32xf32>
    %136 = arith.addf %134, %135 : vector<16x32xf32>
    %137 = vector.extract_strided_slice %136 {offsets = [0, 0], sizes = [16, 8], strides = [1, 1]} : vector<16x32xf32> to vector<16x8xf32>
    %138 = vector.extract_strided_slice %136 {offsets = [0, 8], sizes = [16, 8], strides = [1, 1]} : vector<16x32xf32> to vector<16x8xf32>
    %139 = vector.extract_strided_slice %136 {offsets = [0, 16], sizes = [16, 8], strides = [1, 1]} : vector<16x32xf32> to vector<16x8xf32>
    %140 = vector.extract_strided_slice %136 {offsets = [0, 24], sizes = [16, 8], strides = [1, 1]} : vector<16x32xf32> to vector<16x8xf32>
    %141 = vector.shape_cast %137 : vector<16x8xf32> to vector<1x16x8xf32>
    %142 = vector.shape_cast %138 : vector<16x8xf32> to vector<1x16x8xf32>
    %143 = vector.shape_cast %139 : vector<16x8xf32> to vector<1x16x8xf32>
    %144 = vector.shape_cast %140 : vector<16x8xf32> to vector<1x16x8xf32>
    %145 = tpu.concatenate %141, %142, %143, %144 in 0 : vector<1x16x8xf32>, vector<1x16x8xf32>, vector<1x16x8xf32>, vector<1x16x8xf32> -> vector<4x16x8xf32>
    "tpu.trace_start"() <{level = 10 : i32, message = "hkd,hqd->hkq"}> : () -> ()
    %cst_37 = arith.constant dense<0.000000e+00> : vector<4x16x16xf32>
    %146 = tpu.matmul %19, %145, %cst_37 {dimension_numbers = #tpu.dot_dimension_numbers<[2], [2], [1], [1], [0, 0, 0, 1, 1, 1], [0], [0]>} : vector<4x16x8xf32>, vector<4x16x8xf32>, vector<4x16x16xf32> -> vector<4x16x16xf32>
    "tpu.trace_stop"() : () -> ()
    %cst_38 = arith.constant 0.353553385 : f32
    %147 = vector.broadcast %cst_38 : f32 to vector<4x16x16xf32>
    %148 = arith.mulf %146, %147 : vector<4x16x16xf32>
    %149 = vector.shape_cast %1 : vector<16x16xf32> to vector<1x16x16xf32>
    %150 = vector.broadcast %149 : vector<1x16x16xf32> to vector<4x16x16xf32>
    %151 = arith.addf %148, %150 : vector<4x16x16xf32>
    %cst_39 = arith.constant dense<0xFF800000> : vector<4x16xf32>
    %152 = vector.multi_reduction <maximumf>, %151, %cst_39 [2] : vector<4x16x16xf32> to vector<4x16xf32>
    %153 = vector.shape_cast %152 : vector<4x16xf32> to vector<4x16x1xf32>
    %154 = vector.broadcast %153 : vector<4x16x1xf32> to vector<4x16x16xf32>
    %155 = arith.subf %151, %154 : vector<4x16x16xf32>
    %156 = math.exp %155 : vector<4x16x16xf32>
    %cst_40 = arith.constant dense<0.000000e+00> : vector<4x16xf32>
    %157 = vector.multi_reduction <add>, %156, %cst_40 [2] : vector<4x16x16xf32> to vector<4x16xf32>
    %158 = vector.shape_cast %157 : vector<4x16xf32> to vector<4x16x1xf32>
    %159 = tpu.reciprocal %158 {approx = true} : vector<4x16x1xf32> -> vector<4x16x1xf32>
    %160 = vector.broadcast %159 : vector<4x16x1xf32> to vector<4x16x16xf32>
    %161 = arith.mulf %156, %160 : vector<4x16x16xf32>
    "tpu.trace_start"() <{level = 10 : i32, message = "hkq,hqd->hkd"}> : () -> ()
    %cst_41 = arith.constant dense<0.000000e+00> : vector<4x16x8xf32>
    %162 = tpu.matmul %161, %37, %cst_41 {dimension_numbers = #tpu.dot_dimension_numbers<[2], [1], [1], [2], [0, 0, 0, 1, 1, 2], [0], [0]>} : vector<4x16x16xf32>, vector<4x16x8xf32>, vector<4x16x8xf32> -> vector<4x16x8xf32>
    "tpu.trace_stop"() : () -> ()
    "tpu.trace_start"() <{level = 10 : i32, message = "hkd,hdo->hko"}> : () -> ()
    %cst_42 = arith.constant dense<0.000000e+00> : vector<4x16x32xf32>
    %163 = tpu.matmul %162, %50, %cst_42 {dimension_numbers = #tpu.dot_dimension_numbers<[2], [1], [1], [2], [0, 0, 0, 1, 1, 2], [0], [0]>} : vector<4x16x8xf32>, vector<4x8x32xf32>, vector<4x16x32xf32> -> vector<4x16x32xf32>
    "tpu.trace_stop"() : () -> ()
    %cst_43 = arith.constant dense<0.000000e+00> : vector<16x32xf32>
    %164 = vector.multi_reduction <add>, %163, %cst_43 [0] : vector<4x16x32xf32> to vector<16x32xf32>
    %165 = vector.broadcast %51 : vector<1x32xf32> to vector<16x32xf32>
    %166 = arith.addf %164, %165 : vector<16x32xf32>
    %c69 = arith.constant 69 : index
    %c0_44 = arith.constant 0 : index
    %167 = vector.load %arg2[%c69, %c0_44] : memref<248x128xf32, #tpu.memory_space<vmem>>, vector<1x32xf32>
    %c72 = arith.constant 72 : index
    %c0_45 = arith.constant 0 : index
    %168 = vector.load %arg2[%c72, %c0_45] : memref<248x128xf32, #tpu.memory_space<vmem>>, vector<1x32xf32>
    %cst_46 = arith.constant dense<0.000000e+00> : vector<16xf32>
    %169 = vector.multi_reduction <add>, %166, %cst_46 [1] : vector<16x32xf32> to vector<16xf32>
    %170 = vector.shape_cast %169 : vector<16xf32> to vector<16x1xf32>
    %cst_47 = arith.constant 3.200000e+01 : f32
    %171 = vector.broadcast %cst_47 : f32 to vector<16x1xf32>
    %172 = arith.divf %170, %171 : vector<16x1xf32>
    %173 = vector.broadcast %172 : vector<16x1xf32> to vector<16x32xf32>
    %174 = arith.subf %166, %173 : vector<16x32xf32>
    %175 = arith.mulf %174, %174 : vector<16x32xf32>
    %cst_48 = arith.constant dense<0.000000e+00> : vector<16xf32>
    %176 = vector.multi_reduction <add>, %175, %cst_48 [1] : vector<16x32xf32> to vector<16xf32>
    %177 = vector.shape_cast %176 : vector<16xf32> to vector<16x1xf32>
    %cst_49 = arith.constant 3.200000e+01 : f32
    %178 = vector.broadcast %cst_49 : f32 to vector<16x1xf32>
    %179 = arith.divf %177, %178 : vector<16x1xf32>
    %180 = vector.broadcast %172 : vector<16x1xf32> to vector<16x32xf32>
    %181 = arith.subf %166, %180 : vector<16x32xf32>
    %cst_50 = arith.constant 9.99999974E-6 : f32
    %182 = vector.broadcast %cst_50 : f32 to vector<16x1xf32>
    %183 = arith.addf %179, %182 : vector<16x1xf32>
    %184 = math.rsqrt %183 : vector<16x1xf32>
    %185 = vector.broadcast %184 : vector<16x1xf32> to vector<16x32xf32>
    %186 = arith.mulf %181, %185 : vector<16x32xf32>
    %187 = vector.broadcast %167 : vector<1x32xf32> to vector<16x32xf32>
    %188 = arith.mulf %186, %187 : vector<16x32xf32>
    %189 = vector.broadcast %168 : vector<1x32xf32> to vector<16x32xf32>
    %190 = arith.addf %188, %189 : vector<16x32xf32>
    %191 = arith.addf %131, %190 : vector<16x32xf32>
    %cst_51 = arith.constant dense<0.000000e+00> : vector<16x64xf32>
    %192 = tpu.matmul %191, %52, %cst_51 {dimension_numbers = #tpu.dot_dimension_numbers<[1], [0], [0], [1], [0, 0, 1, 1], [], []>} : vector<16x32xf32>, vector<32x64xf32>, vector<16x64xf32> -> vector<16x64xf32>
    %193 = vector.broadcast %53 : vector<1x64xf32> to vector<16x64xf32>
    %194 = arith.addf %192, %193 : vector<16x64xf32>
    %cst_52 = arith.constant 0.000000e+00 : f32
    %195 = vector.broadcast %cst_52 : f32 to vector<16x64xf32>
    %196 = arith.cmpf oge, %194, %195 : vector<16x64xf32>
    %cst_53 = arith.constant 1.000000e-01 : f32
    %197 = vector.broadcast %cst_53 : f32 to vector<16x64xf32>
    %198 = arith.mulf %197, %194 : vector<16x64xf32>
    %199 = arith.select %196, %194, %198 : vector<16x64xi1>, vector<16x64xf32>
    %cst_54 = arith.constant dense<0.000000e+00> : vector<16x32xf32>
    %200 = tpu.matmul %199, %54, %cst_54 {dimension_numbers = #tpu.dot_dimension_numbers<[1], [0], [0], [1], [0, 0, 1, 1], [], []>} : vector<16x64xf32>, vector<64x32xf32>, vector<16x32xf32> -> vector<16x32xf32>
    %201 = vector.broadcast %55 : vector<1x32xf32> to vector<16x32xf32>
    %202 = arith.addf %200, %201 : vector<16x32xf32>
    %c70 = arith.constant 70 : index
    %c0_55 = arith.constant 0 : index
    %203 = vector.load %arg2[%c70, %c0_55] : memref<248x128xf32, #tpu.memory_space<vmem>>, vector<1x32xf32>
    %c73 = arith.constant 73 : index
    %c0_56 = arith.constant 0 : index
    %204 = vector.load %arg2[%c73, %c0_56] : memref<248x128xf32, #tpu.memory_space<vmem>>, vector<1x32xf32>
    %cst_57 = arith.constant dense<0.000000e+00> : vector<16xf32>
    %205 = vector.multi_reduction <add>, %202, %cst_57 [1] : vector<16x32xf32> to vector<16xf32>
    %206 = vector.shape_cast %205 : vector<16xf32> to vector<16x1xf32>
    %cst_58 = arith.constant 3.200000e+01 : f32
    %207 = vector.broadcast %cst_58 : f32 to vector<16x1xf32>
    %208 = arith.divf %206, %207 : vector<16x1xf32>
    %209 = vector.broadcast %208 : vector<16x1xf32> to vector<16x32xf32>
    %210 = arith.subf %202, %209 : vector<16x32xf32>
    %211 = arith.mulf %210, %210 : vector<16x32xf32>
    %cst_59 = arith.constant dense<0.000000e+00> : vector<16xf32>
    %212 = vector.multi_reduction <add>, %211, %cst_59 [1] : vector<16x32xf32> to vector<16xf32>
    %213 = vector.shape_cast %212 : vector<16xf32> to vector<16x1xf32>
    %cst_60 = arith.constant 3.200000e+01 : f32
    %214 = vector.broadcast %cst_60 : f32 to vector<16x1xf32>
    %215 = arith.divf %213, %214 : vector<16x1xf32>
    %216 = vector.broadcast %208 : vector<16x1xf32> to vector<16x32xf32>
    %217 = arith.subf %202, %216 : vector<16x32xf32>
    %cst_61 = arith.constant 9.99999974E-6 : f32
    %218 = vector.broadcast %cst_61 : f32 to vector<16x1xf32>
    %219 = arith.addf %215, %218 : vector<16x1xf32>
    %220 = math.rsqrt %219 : vector<16x1xf32>
    %221 = vector.broadcast %220 : vector<16x1xf32> to vector<16x32xf32>
    %222 = arith.mulf %217, %221 : vector<16x32xf32>
    %223 = vector.broadcast %203 : vector<1x32xf32> to vector<16x32xf32>
    %224 = arith.mulf %222, %223 : vector<16x32xf32>
    %225 = vector.broadcast %204 : vector<1x32xf32> to vector<16x32xf32>
    %226 = arith.addf %224, %225 : vector<16x32xf32>
    %227 = arith.addf %202, %226 : vector<16x32xf32>
    %c96_62 = arith.constant 96 : index
    %c0_63 = arith.constant 0 : index
    %228 = vector.load %arg2[%c96_62, %c0_63] : memref<248x128xf32, #tpu.memory_space<vmem>>, vector<32x96xf32>
    %c160 = arith.constant 160 : index
    %c0_64 = arith.constant 0 : index
    %229 = vector.load %arg2[%c160, %c0_64] : memref<248x128xf32, #tpu.memory_space<vmem>>, vector<1x96xf32>
    %c96_65 = arith.constant 96 : index
    %c96_66 = arith.constant 96 : index
    %230 = vector.load %arg2[%c96_65, %c96_66] : memref<248x128xf32, #tpu.memory_space<vmem>>, vector<32x32xf32>
    %231 = vector.shape_cast %230 : vector<32x32xf32> to vector<4x8x32xf32>
    %c161 = arith.constant 161 : index
    %c0_67 = arith.constant 0 : index
    %232 = vector.load %arg2[%c161, %c0_67] : memref<248x128xf32, #tpu.memory_space<vmem>>, vector<1x32xf32>
    %c128 = arith.constant 128 : index
    %c0_68 = arith.constant 0 : index
    %233 = vector.load %arg2[%c128, %c0_68] : memref<248x128xf32, #tpu.memory_space<vmem>>, vector<32x64xf32>
    %c162 = arith.constant 162 : index
    %c0_69 = arith.constant 0 : index
    %234 = vector.load %arg2[%c162, %c0_69] : memref<248x128xf32, #tpu.memory_space<vmem>>, vector<1x64xf32>
    %c128_70 = arith.constant 128 : index
    %c96_71 = arith.constant 96 : index
    %235 = vector.load %arg2[%c128_70, %c96_71] : memref<248x128xf32, #tpu.memory_space<vmem>>, vector<64x32xf32>
    %c163 = arith.constant 163 : index
    %c0_72 = arith.constant 0 : index
    %236 = vector.load %arg2[%c163, %c0_72] : memref<248x128xf32, #tpu.memory_space<vmem>>, vector<1x32xf32>
    %cst_73 = arith.constant dense<0.000000e+00> : vector<16x96xf32>
    %237 = tpu.matmul %227, %228, %cst_73 {dimension_numbers = #tpu.dot_dimension_numbers<[1], [0], [0], [1], [0, 0, 1, 1], [], []>} : vector<16x32xf32>, vector<32x96xf32>, vector<16x96xf32> -> vector<16x96xf32>
    %238 = vector.broadcast %229 : vector<1x96xf32> to vector<16x96xf32>
    %239 = arith.addf %237, %238 : vector<16x96xf32>
    %240 = vector.extract_strided_slice %239 {offsets = [0, 0], sizes = [16, 8], strides = [1, 1]} : vector<16x96xf32> to vector<16x8xf32>
    %241 = vector.extract_strided_slice %239 {offsets = [0, 8], sizes = [16, 8], strides = [1, 1]} : vector<16x96xf32> to vector<16x8xf32>
    %242 = vector.extract_strided_slice %239 {offsets = [0, 16], sizes = [16, 8], strides = [1, 1]} : vector<16x96xf32> to vector<16x8xf32>
    %243 = vector.extract_strided_slice %239 {offsets = [0, 24], sizes = [16, 8], strides = [1, 1]} : vector<16x96xf32> to vector<16x8xf32>
    %244 = vector.shape_cast %240 : vector<16x8xf32> to vector<1x16x8xf32>
    %245 = vector.shape_cast %241 : vector<16x8xf32> to vector<1x16x8xf32>
    %246 = vector.shape_cast %242 : vector<16x8xf32> to vector<1x16x8xf32>
    %247 = vector.shape_cast %243 : vector<16x8xf32> to vector<1x16x8xf32>
    %248 = tpu.concatenate %244, %245, %246, %247 in 0 : vector<1x16x8xf32>, vector<1x16x8xf32>, vector<1x16x8xf32>, vector<1x16x8xf32> -> vector<4x16x8xf32>
    %249 = vector.extract_strided_slice %239 {offsets = [0, 32], sizes = [16, 8], strides = [1, 1]} : vector<16x96xf32> to vector<16x8xf32>
    %250 = vector.extract_strided_slice %239 {offsets = [0, 40], sizes = [16, 8], strides = [1, 1]} : vector<16x96xf32> to vector<16x8xf32>
    %251 = vector.extract_strided_slice %239 {offsets = [0, 48], sizes = [16, 8], strides = [1, 1]} : vector<16x96xf32> to vector<16x8xf32>
    %252 = vector.extract_strided_slice %239 {offsets = [0, 56], sizes = [16, 8], strides = [1, 1]} : vector<16x96xf32> to vector<16x8xf32>
    %253 = vector.shape_cast %249 : vector<16x8xf32> to vector<1x16x8xf32>
    %254 = vector.shape_cast %250 : vector<16x8xf32> to vector<1x16x8xf32>
    %255 = vector.shape_cast %251 : vector<16x8xf32> to vector<1x16x8xf32>
    %256 = vector.shape_cast %252 : vector<16x8xf32> to vector<1x16x8xf32>
    %257 = tpu.concatenate %253, %254, %255, %256 in 0 : vector<1x16x8xf32>, vector<1x16x8xf32>, vector<1x16x8xf32>, vector<1x16x8xf32> -> vector<4x16x8xf32>
    %258 = vector.extract_strided_slice %239 {offsets = [0, 64], sizes = [16, 8], strides = [1, 1]} : vector<16x96xf32> to vector<16x8xf32>
    %259 = vector.extract_strided_slice %239 {offsets = [0, 72], sizes = [16, 8], strides = [1, 1]} : vector<16x96xf32> to vector<16x8xf32>
    %260 = vector.extract_strided_slice %239 {offsets = [0, 80], sizes = [16, 8], strides = [1, 1]} : vector<16x96xf32> to vector<16x8xf32>
    %261 = vector.extract_strided_slice %239 {offsets = [0, 88], sizes = [16, 8], strides = [1, 1]} : vector<16x96xf32> to vector<16x8xf32>
    %262 = vector.shape_cast %258 : vector<16x8xf32> to vector<1x16x8xf32>
    %263 = vector.shape_cast %259 : vector<16x8xf32> to vector<1x16x8xf32>
    %264 = vector.shape_cast %260 : vector<16x8xf32> to vector<1x16x8xf32>
    %265 = vector.shape_cast %261 : vector<16x8xf32> to vector<1x16x8xf32>
    %266 = tpu.concatenate %262, %263, %264, %265 in 0 : vector<1x16x8xf32>, vector<1x16x8xf32>, vector<1x16x8xf32>, vector<1x16x8xf32> -> vector<4x16x8xf32>
    "tpu.trace_start"() <{level = 10 : i32, message = "hkd,hqd->hkq"}> : () -> ()
    %cst_74 = arith.constant dense<0.000000e+00> : vector<4x16x16xf32>
    %267 = tpu.matmul %257, %248, %cst_74 {dimension_numbers = #tpu.dot_dimension_numbers<[2], [2], [1], [1], [0, 0, 0, 1, 1, 1], [0], [0]>} : vector<4x16x8xf32>, vector<4x16x8xf32>, vector<4x16x16xf32> -> vector<4x16x16xf32>
    "tpu.trace_stop"() : () -> ()
    %cst_75 = arith.constant 0.353553385 : f32
    %268 = vector.broadcast %cst_75 : f32 to vector<4x16x16xf32>
    %269 = arith.mulf %267, %268 : vector<4x16x16xf32>
    %270 = vector.shape_cast %1 : vector<16x16xf32> to vector<1x16x16xf32>
    %271 = vector.broadcast %270 : vector<1x16x16xf32> to vector<4x16x16xf32>
    %272 = arith.addf %269, %271 : vector<4x16x16xf32>
    %cst_76 = arith.constant dense<0xFF800000> : vector<4x16xf32>
    %273 = vector.multi_reduction <maximumf>, %272, %cst_76 [2] : vector<4x16x16xf32> to vector<4x16xf32>
    %274 = vector.shape_cast %273 : vector<4x16xf32> to vector<4x16x1xf32>
    %275 = vector.broadcast %274 : vector<4x16x1xf32> to vector<4x16x16xf32>
    %276 = arith.subf %272, %275 : vector<4x16x16xf32>
    %277 = math.exp %276 : vector<4x16x16xf32>
    %cst_77 = arith.constant dense<0.000000e+00> : vector<4x16xf32>
    %278 = vector.multi_reduction <add>, %277, %cst_77 [2] : vector<4x16x16xf32> to vector<4x16xf32>
    %279 = vector.shape_cast %278 : vector<4x16xf32> to vector<4x16x1xf32>
    %280 = tpu.reciprocal %279 {approx = true} : vector<4x16x1xf32> -> vector<4x16x1xf32>
    %281 = vector.broadcast %280 : vector<4x16x1xf32> to vector<4x16x16xf32>
    %282 = arith.mulf %277, %281 : vector<4x16x16xf32>
    "tpu.trace_start"() <{level = 10 : i32, message = "hkq,hqd->hkd"}> : () -> ()
    %cst_78 = arith.constant dense<0.000000e+00> : vector<4x16x8xf32>
    %283 = tpu.matmul %282, %266, %cst_78 {dimension_numbers = #tpu.dot_dimension_numbers<[2], [1], [1], [2], [0, 0, 0, 1, 1, 2], [0], [0]>} : vector<4x16x16xf32>, vector<4x16x8xf32>, vector<4x16x8xf32> -> vector<4x16x8xf32>
    "tpu.trace_stop"() : () -> ()
    "tpu.trace_start"() <{level = 10 : i32, message = "hkd,hdo->hko"}> : () -> ()
    %cst_79 = arith.constant dense<0.000000e+00> : vector<4x16x32xf32>
    %284 = tpu.matmul %283, %231, %cst_79 {dimension_numbers = #tpu.dot_dimension_numbers<[2], [1], [1], [2], [0, 0, 0, 1, 1, 2], [0], [0]>} : vector<4x16x8xf32>, vector<4x8x32xf32>, vector<4x16x32xf32> -> vector<4x16x32xf32>
    "tpu.trace_stop"() : () -> ()
    %cst_80 = arith.constant dense<0.000000e+00> : vector<16x32xf32>
    %285 = vector.multi_reduction <add>, %284, %cst_80 [0] : vector<4x16x32xf32> to vector<16x32xf32>
    %286 = vector.broadcast %232 : vector<1x32xf32> to vector<16x32xf32>
    %287 = arith.addf %285, %286 : vector<16x32xf32>
    %c164 = arith.constant 164 : index
    %c0_81 = arith.constant 0 : index
    %288 = vector.load %arg2[%c164, %c0_81] : memref<248x128xf32, #tpu.memory_space<vmem>>, vector<1x32xf32>
    %c167 = arith.constant 167 : index
    %c0_82 = arith.constant 0 : index
    %289 = vector.load %arg2[%c167, %c0_82] : memref<248x128xf32, #tpu.memory_space<vmem>>, vector<1x32xf32>
    %cst_83 = arith.constant dense<0.000000e+00> : vector<16xf32>
    %290 = vector.multi_reduction <add>, %287, %cst_83 [1] : vector<16x32xf32> to vector<16xf32>
    %291 = vector.shape_cast %290 : vector<16xf32> to vector<16x1xf32>
    %cst_84 = arith.constant 3.200000e+01 : f32
    %292 = vector.broadcast %cst_84 : f32 to vector<16x1xf32>
    %293 = arith.divf %291, %292 : vector<16x1xf32>
    %294 = vector.broadcast %293 : vector<16x1xf32> to vector<16x32xf32>
    %295 = arith.subf %287, %294 : vector<16x32xf32>
    %296 = arith.mulf %295, %295 : vector<16x32xf32>
    %cst_85 = arith.constant dense<0.000000e+00> : vector<16xf32>
    %297 = vector.multi_reduction <add>, %296, %cst_85 [1] : vector<16x32xf32> to vector<16xf32>
    %298 = vector.shape_cast %297 : vector<16xf32> to vector<16x1xf32>
    %cst_86 = arith.constant 3.200000e+01 : f32
    %299 = vector.broadcast %cst_86 : f32 to vector<16x1xf32>
    %300 = arith.divf %298, %299 : vector<16x1xf32>
    %301 = vector.broadcast %293 : vector<16x1xf32> to vector<16x32xf32>
    %302 = arith.subf %287, %301 : vector<16x32xf32>
    %cst_87 = arith.constant 9.99999974E-6 : f32
    %303 = vector.broadcast %cst_87 : f32 to vector<16x1xf32>
    %304 = arith.addf %300, %303 : vector<16x1xf32>
    %305 = math.rsqrt %304 : vector<16x1xf32>
    %306 = vector.broadcast %305 : vector<16x1xf32> to vector<16x32xf32>
    %307 = arith.mulf %302, %306 : vector<16x32xf32>
    %308 = vector.broadcast %288 : vector<1x32xf32> to vector<16x32xf32>
    %309 = arith.mulf %307, %308 : vector<16x32xf32>
    %310 = vector.broadcast %289 : vector<1x32xf32> to vector<16x32xf32>
    %311 = arith.addf %309, %310 : vector<16x32xf32>
    %312 = arith.addf %227, %311 : vector<16x32xf32>
    %c96_88 = arith.constant 96 : index
    %c0_89 = arith.constant 0 : index
    %313 = vector.load %arg2[%c96_88, %c0_89] : memref<248x128xf32, #tpu.memory_space<vmem>>, vector<32x32xf32>
    %c160_90 = arith.constant 160 : index
    %c0_91 = arith.constant 0 : index
    %314 = vector.load %arg2[%c160_90, %c0_91] : memref<248x128xf32, #tpu.memory_space<vmem>>, vector<1x32xf32>
    %cst_92 = arith.constant dense<0.000000e+00> : vector<16x32xf32>
    %315 = tpu.matmul %312, %313, %cst_92 {dimension_numbers = #tpu.dot_dimension_numbers<[1], [0], [0], [1], [0, 0, 1, 1], [], []>} : vector<16x32xf32>, vector<32x32xf32>, vector<16x32xf32> -> vector<16x32xf32>
    %316 = vector.broadcast %314 : vector<1x32xf32> to vector<16x32xf32>
    %317 = arith.addf %315, %316 : vector<16x32xf32>
    %318 = vector.extract_strided_slice %317 {offsets = [0, 0], sizes = [16, 8], strides = [1, 1]} : vector<16x32xf32> to vector<16x8xf32>
    %319 = vector.extract_strided_slice %317 {offsets = [0, 8], sizes = [16, 8], strides = [1, 1]} : vector<16x32xf32> to vector<16x8xf32>
    %320 = vector.extract_strided_slice %317 {offsets = [0, 16], sizes = [16, 8], strides = [1, 1]} : vector<16x32xf32> to vector<16x8xf32>
    %321 = vector.extract_strided_slice %317 {offsets = [0, 24], sizes = [16, 8], strides = [1, 1]} : vector<16x32xf32> to vector<16x8xf32>
    %322 = vector.shape_cast %318 : vector<16x8xf32> to vector<1x16x8xf32>
    %323 = vector.shape_cast %319 : vector<16x8xf32> to vector<1x16x8xf32>
    %324 = vector.shape_cast %320 : vector<16x8xf32> to vector<1x16x8xf32>
    %325 = vector.shape_cast %321 : vector<16x8xf32> to vector<1x16x8xf32>
    %326 = tpu.concatenate %322, %323, %324, %325 in 0 : vector<1x16x8xf32>, vector<1x16x8xf32>, vector<1x16x8xf32>, vector<1x16x8xf32> -> vector<4x16x8xf32>
    "tpu.trace_start"() <{level = 10 : i32, message = "hkd,hqd->hkq"}> : () -> ()
    %cst_93 = arith.constant dense<0.000000e+00> : vector<4x16x16xf32>
    %327 = tpu.matmul %28, %326, %cst_93 {dimension_numbers = #tpu.dot_dimension_numbers<[2], [2], [1], [1], [0, 0, 0, 1, 1, 1], [0], [0]>} : vector<4x16x8xf32>, vector<4x16x8xf32>, vector<4x16x16xf32> -> vector<4x16x16xf32>
    "tpu.trace_stop"() : () -> ()
    %cst_94 = arith.constant 0.353553385 : f32
    %328 = vector.broadcast %cst_94 : f32 to vector<4x16x16xf32>
    %329 = arith.mulf %327, %328 : vector<4x16x16xf32>
    %330 = vector.shape_cast %1 : vector<16x16xf32> to vector<1x16x16xf32>
    %331 = vector.broadcast %330 : vector<1x16x16xf32> to vector<4x16x16xf32>
    %332 = arith.addf %329, %331 : vector<4x16x16xf32>
    %cst_95 = arith.constant dense<0xFF800000> : vector<4x16xf32>
    %333 = vector.multi_reduction <maximumf>, %332, %cst_95 [2] : vector<4x16x16xf32> to vector<4x16xf32>
    %334 = vector.shape_cast %333 : vector<4x16xf32> to vector<4x16x1xf32>
    %335 = vector.broadcast %334 : vector<4x16x1xf32> to vector<4x16x16xf32>
    %336 = arith.subf %332, %335 : vector<4x16x16xf32>
    %337 = math.exp %336 : vector<4x16x16xf32>
    %cst_96 = arith.constant dense<0.000000e+00> : vector<4x16xf32>
    %338 = vector.multi_reduction <add>, %337, %cst_96 [2] : vector<4x16x16xf32> to vector<4x16xf32>
    %339 = vector.shape_cast %338 : vector<4x16xf32> to vector<4x16x1xf32>
    %340 = tpu.reciprocal %339 {approx = true} : vector<4x16x1xf32> -> vector<4x16x1xf32>
    %341 = vector.broadcast %340 : vector<4x16x1xf32> to vector<4x16x16xf32>
    %342 = arith.mulf %337, %341 : vector<4x16x16xf32>
    "tpu.trace_start"() <{level = 10 : i32, message = "hkq,hqd->hkd"}> : () -> ()
    %cst_97 = arith.constant dense<0.000000e+00> : vector<4x16x8xf32>
    %343 = tpu.matmul %342, %46, %cst_97 {dimension_numbers = #tpu.dot_dimension_numbers<[2], [1], [1], [2], [0, 0, 0, 1, 1, 2], [0], [0]>} : vector<4x16x16xf32>, vector<4x16x8xf32>, vector<4x16x8xf32> -> vector<4x16x8xf32>
    "tpu.trace_stop"() : () -> ()
    "tpu.trace_start"() <{level = 10 : i32, message = "hkd,hdo->hko"}> : () -> ()
    %cst_98 = arith.constant dense<0.000000e+00> : vector<4x16x32xf32>
    %344 = tpu.matmul %343, %231, %cst_98 {dimension_numbers = #tpu.dot_dimension_numbers<[2], [1], [1], [2], [0, 0, 0, 1, 1, 2], [0], [0]>} : vector<4x16x8xf32>, vector<4x8x32xf32>, vector<4x16x32xf32> -> vector<4x16x32xf32>
    "tpu.trace_stop"() : () -> ()
    %cst_99 = arith.constant dense<0.000000e+00> : vector<16x32xf32>
    %345 = vector.multi_reduction <add>, %344, %cst_99 [0] : vector<4x16x32xf32> to vector<16x32xf32>
    %346 = vector.broadcast %232 : vector<1x32xf32> to vector<16x32xf32>
    %347 = arith.addf %345, %346 : vector<16x32xf32>
    %c165 = arith.constant 165 : index
    %c0_100 = arith.constant 0 : index
    %348 = vector.load %arg2[%c165, %c0_100] : memref<248x128xf32, #tpu.memory_space<vmem>>, vector<1x32xf32>
    %c168 = arith.constant 168 : index
    %c0_101 = arith.constant 0 : index
    %349 = vector.load %arg2[%c168, %c0_101] : memref<248x128xf32, #tpu.memory_space<vmem>>, vector<1x32xf32>
    %cst_102 = arith.constant dense<0.000000e+00> : vector<16xf32>
    %350 = vector.multi_reduction <add>, %347, %cst_102 [1] : vector<16x32xf32> to vector<16xf32>
    %351 = vector.shape_cast %350 : vector<16xf32> to vector<16x1xf32>
    %cst_103 = arith.constant 3.200000e+01 : f32
    %352 = vector.broadcast %cst_103 : f32 to vector<16x1xf32>
    %353 = arith.divf %351, %352 : vector<16x1xf32>
    %354 = vector.broadcast %353 : vector<16x1xf32> to vector<16x32xf32>
    %355 = arith.subf %347, %354 : vector<16x32xf32>
    %356 = arith.mulf %355, %355 : vector<16x32xf32>
    %cst_104 = arith.constant dense<0.000000e+00> : vector<16xf32>
    %357 = vector.multi_reduction <add>, %356, %cst_104 [1] : vector<16x32xf32> to vector<16xf32>
    %358 = vector.shape_cast %357 : vector<16xf32> to vector<16x1xf32>
    %cst_105 = arith.constant 3.200000e+01 : f32
    %359 = vector.broadcast %cst_105 : f32 to vector<16x1xf32>
    %360 = arith.divf %358, %359 : vector<16x1xf32>
    %361 = vector.broadcast %353 : vector<16x1xf32> to vector<16x32xf32>
    %362 = arith.subf %347, %361 : vector<16x32xf32>
    %cst_106 = arith.constant 9.99999974E-6 : f32
    %363 = vector.broadcast %cst_106 : f32 to vector<16x1xf32>
    %364 = arith.addf %360, %363 : vector<16x1xf32>
    %365 = math.rsqrt %364 : vector<16x1xf32>
    %366 = vector.broadcast %365 : vector<16x1xf32> to vector<16x32xf32>
    %367 = arith.mulf %362, %366 : vector<16x32xf32>
    %368 = vector.broadcast %348 : vector<1x32xf32> to vector<16x32xf32>
    %369 = arith.mulf %367, %368 : vector<16x32xf32>
    %370 = vector.broadcast %349 : vector<1x32xf32> to vector<16x32xf32>
    %371 = arith.addf %369, %370 : vector<16x32xf32>
    %372 = arith.addf %312, %371 : vector<16x32xf32>
    %cst_107 = arith.constant dense<0.000000e+00> : vector<16x64xf32>
    %373 = tpu.matmul %372, %233, %cst_107 {dimension_numbers = #tpu.dot_dimension_numbers<[1], [0], [0], [1], [0, 0, 1, 1], [], []>} : vector<16x32xf32>, vector<32x64xf32>, vector<16x64xf32> -> vector<16x64xf32>
    %374 = vector.broadcast %234 : vector<1x64xf32> to vector<16x64xf32>
    %375 = arith.addf %373, %374 : vector<16x64xf32>
    %cst_108 = arith.constant 0.000000e+00 : f32
    %376 = vector.broadcast %cst_108 : f32 to vector<16x64xf32>
    %377 = arith.cmpf oge, %375, %376 : vector<16x64xf32>
    %cst_109 = arith.constant 1.000000e-01 : f32
    %378 = vector.broadcast %cst_109 : f32 to vector<16x64xf32>
    %379 = arith.mulf %378, %375 : vector<16x64xf32>
    %380 = arith.select %377, %375, %379 : vector<16x64xi1>, vector<16x64xf32>
    %cst_110 = arith.constant dense<0.000000e+00> : vector<16x32xf32>
    %381 = tpu.matmul %380, %235, %cst_110 {dimension_numbers = #tpu.dot_dimension_numbers<[1], [0], [0], [1], [0, 0, 1, 1], [], []>} : vector<16x64xf32>, vector<64x32xf32>, vector<16x32xf32> -> vector<16x32xf32>
    %382 = vector.broadcast %236 : vector<1x32xf32> to vector<16x32xf32>
    %383 = arith.addf %381, %382 : vector<16x32xf32>
    %c166 = arith.constant 166 : index
    %c0_111 = arith.constant 0 : index
    %384 = vector.load %arg2[%c166, %c0_111] : memref<248x128xf32, #tpu.memory_space<vmem>>, vector<1x32xf32>
    %c169 = arith.constant 169 : index
    %c0_112 = arith.constant 0 : index
    %385 = vector.load %arg2[%c169, %c0_112] : memref<248x128xf32, #tpu.memory_space<vmem>>, vector<1x32xf32>
    %cst_113 = arith.constant dense<0.000000e+00> : vector<16xf32>
    %386 = vector.multi_reduction <add>, %383, %cst_113 [1] : vector<16x32xf32> to vector<16xf32>
    %387 = vector.shape_cast %386 : vector<16xf32> to vector<16x1xf32>
    %cst_114 = arith.constant 3.200000e+01 : f32
    %388 = vector.broadcast %cst_114 : f32 to vector<16x1xf32>
    %389 = arith.divf %387, %388 : vector<16x1xf32>
    %390 = vector.broadcast %389 : vector<16x1xf32> to vector<16x32xf32>
    %391 = arith.subf %383, %390 : vector<16x32xf32>
    %392 = arith.mulf %391, %391 : vector<16x32xf32>
    %cst_115 = arith.constant dense<0.000000e+00> : vector<16xf32>
    %393 = vector.multi_reduction <add>, %392, %cst_115 [1] : vector<16x32xf32> to vector<16xf32>
    %394 = vector.shape_cast %393 : vector<16xf32> to vector<16x1xf32>
    %cst_116 = arith.constant 3.200000e+01 : f32
    %395 = vector.broadcast %cst_116 : f32 to vector<16x1xf32>
    %396 = arith.divf %394, %395 : vector<16x1xf32>
    %397 = vector.broadcast %389 : vector<16x1xf32> to vector<16x32xf32>
    %398 = arith.subf %383, %397 : vector<16x32xf32>
    %cst_117 = arith.constant 9.99999974E-6 : f32
    %399 = vector.broadcast %cst_117 : f32 to vector<16x1xf32>
    %400 = arith.addf %396, %399 : vector<16x1xf32>
    %401 = math.rsqrt %400 : vector<16x1xf32>
    %402 = vector.broadcast %401 : vector<16x1xf32> to vector<16x32xf32>
    %403 = arith.mulf %398, %402 : vector<16x32xf32>
    %404 = vector.broadcast %384 : vector<1x32xf32> to vector<16x32xf32>
    %405 = arith.mulf %403, %404 : vector<16x32xf32>
    %406 = vector.broadcast %385 : vector<1x32xf32> to vector<16x32xf32>
    %407 = arith.addf %405, %406 : vector<16x32xf32>
    %408 = arith.addf %383, %407 : vector<16x32xf32>
    %c0_118 = arith.constant 0 : index
    %c0_119 = arith.constant 0 : index
    %409 = vector.load %arg3[%c0_118, %c0_119] : memref<16x32xf32, #tpu.memory_space<vmem>>, vector<16x32xf32>
    tpu.vector_store %arg3[%c0_118, %c0_119], %408 {strides = array<i32>} : memref<16x32xf32, #tpu.memory_space<vmem>>, vector<16x32xf32>,
    return
  }
}

</mosaic_0001>

<llo_original>
// kernel: decoders_forward.1
$region0: #{decoders_forward.1}
  #allocation0 [shape = 'u32[]', space=smem, size = 0x4, offset = 0x4, fixed_abs, tag = 'smem constant byte address 0x4 - core index']
  #allocation1 [shape = 'u32[144,128]{1,0:T(1,128)}', space=vmem, size = 0x12000, scoped, tag = 'internal scratch']
  %s0 = inlined_call_operand.hbm [shape: f32[16,32], index: 0, kind: input, shape index: {}]
  %s1 = inlined_call_operand.hbm [shape: f32[16,32], index: 1, kind: input, shape index: {}]
  %s2 = inlined_call_operand.hbm [shape: f32[248,128], index: 2, kind: input, shape index: {}]
  %s3 = inlined_call_operand.hbm [shape: f32[16,32], index: 3, kind: output, shape index: {}]
  %s4 = sld [smem:[#allocation0]]
  $region34: #{decoders_forward.1} parent=0
    _
  %s6 = ssub.s32 1, %s4
  %s7 = scalar_select 0, %s6, %s4
  $region1: #{decoders_forward.1} parent=0
    #allocation2 [shape = 'u8[8192]{0}', space=vmem, size = 0x2000, scoped, tag = 'input window, operand 0, single buffered']
    #allocation3 [shape = 's32[1]{0}', space=sflag, size = 0x4, scoped, tag = 'scoped memory for decoders_forward.1']
    #allocation4 [shape = 's32[1]{0}', space=sflag, size = 0x4, scoped, tag = 'scoped memory for decoders_forward.1']
    #allocation5 [shape = 'u8[8192]{0}', space=vmem, size = 0x2000, scoped, tag = 'input window, operand 1, single buffered']
    #allocation6 [shape = 's32[1]{0}', space=sflag, size = 0x4, scoped, tag = 'scoped memory for decoders_forward.1']
    #allocation7 [shape = 'u8[126976]{0}', space=vmem, size = 0x1f000, scoped, tag = 'input window, operand 2, single buffered']
    #allocation8 [shape = 'u8[8192]{0}', space=vmem, size = 0x2000, scoped, tag = 'output window, operand 0, single buffered']
    %8 = vsyncpa [#allocation3], 0
    %9 = vsyncpa [#allocation6], 0
    %10 = vsyncpa [#allocation4], 0
    // Predicated region
    $region2: #{decoders_forward.1} parent=1 // pred_check
      _
    $region3: #{decoders_forward.1} parent=1 // pred_check_branch
      %12 = sbr.rel (0) target = $region5
    $region4: #{decoders_forward.1} parent=1 // pred_region
      %s14 = ssub.s32 256, 256
      %15 = vsyncadd [#allocation3], %s14
      %s16 = sshll.u32 [#allocation2], 4
      %s17 = int_to_ptr.vmem [resolvable:$true] %s16
      %22 = dma.hbm_to_vmem [thread:$0]  %s0, 256, %s17, [#allocation3], 128, 128, 8
    $region5: #{decoders_forward.1} parent=1 // pred_fallthru
      _
    // Predicated region
    $region6: #{decoders_forward.1} parent=1 // pred_check
      _
    $region7: #{decoders_forward.1} parent=1 // pred_check_branch
      %24 = sbr.rel (0) target = $region9
    $region8: #{decoders_forward.1} parent=1 // pred_region
      %s26 = ssub.s32 256, 256
      %27 = vsyncadd [#allocation6], %s26
      %s28 = sshll.u32 [#allocation5], 4
      %s29 = int_to_ptr.vmem [resolvable:$true] %s28
      %34 = dma.hbm_to_vmem [thread:$0]  %s1, 256, %s29, [#allocation6], 128, 128, 8
    $region9: #{decoders_forward.1} parent=1 // pred_fallthru
      _
    // Predicated region
    $region10: #{decoders_forward.1} parent=1 // pred_check
      _
    $region11: #{decoders_forward.1} parent=1 // pred_check_branch
      %36 = sbr.rel (0) target = $region13
    $region12: #{decoders_forward.1} parent=1 // pred_region
      %s38 = ssub.s32 3968, 3968
      %39 = vsyncadd [#allocation6], %s38
      %s40 = sshll.u32 [#allocation7], 4
      %s41 = int_to_ptr.vmem [resolvable:$true] %s40
      %46 = dma.hbm_to_vmem [thread:$0]  %s2, 3968, %s41, [#allocation6], 128, 128, 8
    $region13: #{decoders_forward.1} parent=1 // pred_fallthru
      _
    // Predicated region
    $region14: #{decoders_forward.1} parent=1 // pred_check
      _
    $region15: #{decoders_forward.1} parent=1 // pred_check_branch
      %48 = sbr.rel (0) target = $region17
    $region16: #{decoders_forward.1} parent=1 // pred_region
      %49 = dma.done [#allocation3], 256
    $region17: #{decoders_forward.1} parent=1 // pred_fallthru
      _
    // Predicated region
    $region18: #{decoders_forward.1} parent=1 // pred_check
      _
    $region19: #{decoders_forward.1} parent=1 // pred_check_branch
      %51 = sbr.rel (0) target = $region21
    $region20: #{decoders_forward.1} parent=1 // pred_region
      %52 = dma.done [#allocation6], 256
    $region21: #{decoders_forward.1} parent=1 // pred_fallthru
      _
    // Predicated region
    $region22: #{decoders_forward.1} parent=1 // pred_check
      _
    $region23: #{decoders_forward.1} parent=1 // pred_check_branch
      %54 = sbr.rel (0) target = $region25
    $region24: #{decoders_forward.1} parent=1 // pred_region
      %55 = dma.done [#allocation6], 3968
    $region25: #{decoders_forward.1} parent=1 // pred_fallthru
      _
    %v56 = vld [vmem:[#allocation7 + $0xe1] sm:$0x1]
    %v57 = vld [vmem:[#allocation7 + $0xe2] sm:$0xff]
    %v58 = vld [vmem:[#allocation7 + $0xea] sm:$0xff]
    %v59 = vld [vmem:[#allocation2] sm:$0xff]
    %v60 = vld [vmem:[#allocation2 + $0x8] sm:$0xff]
    %v61 = vlaneseq
    %v62 = vshrl.u32 %v61, 7
    %v63 = vsub.s32 0, %v62
    %v64 = vrot.slane %v56, %v63
    %v65 = vadd.f32 %v59, %v64
    %v66 = vadd.f32 %v60, %v64
    %v67 = vld [vmem:[#allocation5] sm:$0xff]
    %v68 = vld [vmem:[#allocation5 + $0x8] sm:$0xff]
    %v69 = vld [vmem:[#allocation7 + $0xc0] sm:$0xff]
    %v70 = vld [vmem:[#allocation7 + $0xc8] sm:$0xff]
    %v71 = vld [vmem:[#allocation7 + $0xd0] sm:$0xff]
    %v72 = vld [vmem:[#allocation7 + $0xd8] sm:$0xff]
    %v73 = vld [vmem:[#allocation7 + $0xe0] sm:$0x1]
    %v74 = vlaneseq
    %v75 = vshrl.u32 %v74, 7
    %v76 = vsub.s32 0, %v75
    %v77 = vrot.slane %v73, %v76
    %vm78 = vcmask 261120
    %v80 = vsel %vm78, %v67, 0
    %v83 = vsel %vm78, %v68, 0
    %85 = vmatprep.subr.mxu0 0.0
    %86 = vmatpush1.msra.mxu0 0.0
    %87 = vmatprep.subr.mxu0 0.0
    %88 = vmatpush1.msra.mxu0 0.0
    %89 = vmatprep.subr.mxu0 0.0
    %90 = vmatpush1.msra.mxu0 0.0
    %91 = vmatprep.subr.mxu0 0.0
    %92 = vmatpush1.msra.mxu0 0.0
    %93 = vmatprep.subr.mxu0 0.0
    %94 = vmatpush1.msra.mxu0 0.0
    %95 = vmatprep.subr.mxu0 0.0
    %96 = vmatpush1.msra.mxu0 0.0
    %97 = vmatprep.subr.mxu0 0.0
    %98 = vmatpush1.msra.mxu0 0.0
    %99 = vmatprep.subr.mxu0 0.0
    %100 = vmatpush1.msra.mxu0 0.0
    %101 = vmatprep.subr.mxu0 0.0
    %102 = vmatpush1.msra.mxu0 0.0
    %103 = vmatprep.subr.mxu0 0.0
    %104 = vmatpush1.msra.mxu0 0.0
    %105 = vmatprep.subr.mxu0 0.0
    %106 = vmatpush1.msra.mxu0 0.0
    %107 = vmatprep.subr.mxu0 0.0
    %108 = vmatpush1.msra.mxu0 0.0
    %109 = vmatprep.subr.mxu0 0.0
    %110 = vmatpush1.msra.mxu0 %v72
    %111 = vmatprep.subr.mxu0 0.0
    %112 = vmatpush1.msra.mxu0 %v71
    %113 = vmatprep.subr.mxu0 0.0
    %114 = vmatpush1.msra.mxu0 %v70
    %115 = vmatprep.subr.mxu0 0.0
    %116 = vmatpush1.msra.mxu0 %v69
    %117 = vmatprep.subr.mxu0 0.0
    %118 = vmatpush2.msra.mxu0 0.0
    %119 = vmatprep.subr.mxu0 0.0
    %120 = vmatpush2.msra.mxu0 0.0
    %121 = vmatprep.subr.mxu0 0.0
    %122 = vmatpush2.msra.mxu0 0.0
    %123 = vmatprep.subr.mxu0 0.0
    %124 = vmatpush2.msra.mxu0 0.0
    %125 = vmatprep.subr.mxu0 0.0
    %126 = vmatpush2.msra.mxu0 0.0
    %127 = vmatprep.subr.mxu0 0.0
    %128 = vmatpush2.msra.mxu0 0.0
    %129 = vmatprep.subr.mxu0 0.0
    %130 = vmatpush2.msra.mxu0 0.0
    %131 = vmatprep.subr.mxu0 0.0
    %132 = vmatpush2.msra.mxu0 0.0
    %133 = vmatprep.subr.mxu0 0.0
    %134 = vmatpush2.msra.mxu0 0.0
    %135 = vmatprep.subr.mxu0 0.0
    %136 = vmatpush2.msra.mxu0 0.0
    %137 = vmatprep.subr.mxu0 0.0
    %138 = vmatpush2.msra.mxu0 0.0
    %139 = vmatprep.subr.mxu0 0.0
    %140 = vmatpush2.msra.mxu0 0.0
    %141 = vmatprep.subr.mxu0 0.0
    %142 = vmatpush2.msra.mxu0 0.0
    %143 = vmatprep.subr.mxu0 0.0
    %144 = vmatpush2.msra.mxu0 0.0
    %145 = vmatprep.subr.mxu0 0.0
    %146 = vmatpush2.msra.mxu0 0.0
    %147 = vmatprep.subr.mxu0 0.0
    %148 = vmatpush2.msra.mxu0 0.0
    %149 = vmatprep.mubr.f32.mxu0 0.0
    %150 = vmatmul.mubr.f32.gmra.mxu0 %v80
    %v151 = vpop.f32.mrf.mxu0
    %v152 = vadd.f32 %v77, %v151
    %v153 = vpop.f32.mrf.mxu0
    %154 = vmatprep.mubr.f32.mxu0 0.0
    %155 = vmatmul.mubr.f32.gmra.mxu0 %v83
    %v156 = vpop.f32.mrf.mxu0
    %v157 = vadd.f32 %v77, %v156
    %v158 = vpop.f32.mrf.mxu0
    %159 = vdwg.mxu0
    %162 = vrot.lane.b32.xlu0 %v152, 120
    %v163 = vpop.permute.xlu0 %162
    %164 = vrot.lane.b32.xlu0 %v157, 120
    %v165 = vpop.permute.xlu0 %164
    %166 = vrot.lane.b32.xlu0 %v152, 112
    %v167 = vpop.permute.xlu0 %166
    %168 = vrot.lane.b32.xlu0 %v157, 112
    %v169 = vpop.permute.xlu0 %168
    %170 = vrot.lane.b32.xlu0 %v152, 104
    %v171 = vpop.permute.xlu0 %170
    %172 = vrot.lane.b32.xlu0 %v157, 104
    %v173 = vpop.permute.xlu0 %172
    %v174 = vld [vmem:[#allocation7] sm:$0xff]
    %v175 = vld [vmem:[#allocation7 + $0x8] sm:$0xff]
    %v176 = vld [vmem:[#allocation7 + $0x10] sm:$0xff]
    %v177 = vld [vmem:[#allocation7 + $0x18] sm:$0xff]
    %v178 = vld [vmem:[#allocation7 + $0x40] sm:$0x1]
    %v179 = vld [vmem:[#allocation7 + $0x41] sm:$0x1]
    %v180 = vld [vmem:[#allocation7 + $0x20] sm:$0xff]
    %v181 = vld [vmem:[#allocation7 + $0x28] sm:$0xff]
    %v182 = vld [vmem:[#allocation7 + $0x30] sm:$0xff]
    %v183 = vld [vmem:[#allocation7 + $0x38] sm:$0xff]
    %v184 = vld [vmem:[#allocation7 + $0x42] sm:$0x1]
    %v185 = vld [vmem:[#allocation7 + $0x40] sm:$0xff]
    %v186 = vld [vmem:[#allocation7 + $0x48] sm:$0xff]
    %v187 = vld [vmem:[#allocation7 + $0x50] sm:$0xff]
    %v188 = vld [vmem:[#allocation7 + $0x58] sm:$0xff]
    %v189 = vld [vmem:[#allocation7 + $0x43] sm:$0x1]
    %v190 = vlaneseq
    %v191 = vshrl.u32 %v190, 7
    %v192 = vsub.s32 0, %v191
    %v193 = vrot.slane %v178, %v192
    %v195 = vsel %vm78, %v65, 0
    %v198 = vsel %vm78, %v66, 0
    %200 = vmatprep.subr.mxu0 0.0
    %201 = vmatpush1.msra.mxu0 0.0
    %202 = vmatprep.subr.mxu0 0.0
    %203 = vmatpush1.msra.mxu0 0.0
    %204 = vmatprep.subr.mxu0 0.0
    %205 = vmatpush1.msra.mxu0 0.0
    %206 = vmatprep.subr.mxu0 0.0
    %207 = vmatpush1.msra.mxu0 0.0
    %208 = vmatprep.subr.mxu0 0.0
    %209 = vmatpush1.msra.mxu0 0.0
    %210 = vmatprep.subr.mxu0 0.0
    %211 = vmatpush1.msra.mxu0 0.0
    %212 = vmatprep.subr.mxu0 0.0
    %213 = vmatpush1.msra.mxu0 0.0
    %214 = vmatprep.subr.mxu0 0.0
    %215 = vmatpush1.msra.mxu0 0.0
    %216 = vmatprep.subr.mxu0 0.0
    %217 = vmatpush1.msra.mxu0 0.0
    %218 = vmatprep.subr.mxu0 0.0
    %219 = vmatpush1.msra.mxu0 0.0
    %220 = vmatprep.subr.mxu0 0.0
    %221 = vmatpush1.msra.mxu0 0.0
    %222 = vmatprep.subr.mxu0 0.0
    %223 = vmatpush1.msra.mxu0 0.0
    %224 = vmatprep.subr.mxu0 0.0
    %225 = vmatpush1.msra.mxu0 %v177
    %226 = vmatprep.subr.mxu0 0.0
    %227 = vmatpush1.msra.mxu0 %v176
    %228 = vmatprep.subr.mxu0 0.0
    %229 = vmatpush1.msra.mxu0 %v175
    %230 = vmatprep.subr.mxu0 0.0
    %231 = vmatpush1.msra.mxu0 %v174
    %232 = vmatprep.subr.mxu0 0.0
    %233 = vmatpush2.msra.mxu0 0.0
    %234 = vmatprep.subr.mxu0 0.0
    %235 = vmatpush2.msra.mxu0 0.0
    %236 = vmatprep.subr.mxu0 0.0
    %237 = vmatpush2.msra.mxu0 0.0
    %238 = vmatprep.subr.mxu0 0.0
    %239 = vmatpush2.msra.mxu0 0.0
    %240 = vmatprep.subr.mxu0 0.0
    %241 = vmatpush2.msra.mxu0 0.0
    %242 = vmatprep.subr.mxu0 0.0
    %243 = vmatpush2.msra.mxu0 0.0
    %244 = vmatprep.subr.mxu0 0.0
    %245 = vmatpush2.msra.mxu0 0.0
    %246 = vmatprep.subr.mxu0 0.0
    %247 = vmatpush2.msra.mxu0 0.0
    %248 = vmatprep.subr.mxu0 0.0
    %249 = vmatpush2.msra.mxu0 0.0
    %250 = vmatprep.subr.mxu0 0.0
    %251 = vmatpush2.msra.mxu0 0.0
    %252 = vmatprep.subr.mxu0 0.0
    %253 = vmatpush2.msra.mxu0 0.0
    %254 = vmatprep.subr.mxu0 0.0
    %255 = vmatpush2.msra.mxu0 0.0
    %256 = vmatprep.subr.mxu0 0.0
    %257 = vmatpush2.msra.mxu0 0.0
    %258 = vmatprep.subr.mxu0 0.0
    %259 = vmatpush2.msra.mxu0 0.0
    %260 = vmatprep.subr.mxu0 0.0
    %261 = vmatpush2.msra.mxu0 0.0
    %262 = vmatprep.subr.mxu0 0.0
    %263 = vmatpush2.msra.mxu0 0.0
    %264 = vmatprep.mubr.f32.mxu0 0.0
    %265 = vmatmul.mubr.f32.gmra.mxu0 %v195
    %v266 = vpop.f32.mrf.mxu0
    %v267 = vadd.f32 %v193, %v266
    %v268 = vpop.f32.mrf.mxu0
    %269 = vmatprep.mubr.f32.mxu0 0.0
    %270 = vmatmul.mubr.f32.gmra.mxu0 %v198
    %v271 = vpop.f32.mrf.mxu0
    %v272 = vadd.f32 %v193, %v271
    %v273 = vpop.f32.mrf.mxu0
    %274 = vdwg.mxu0
    %277 = vrot.lane.b32.xlu0 %v267, 120
    %v278 = vpop.permute.xlu0 %277
    %279 = vrot.lane.b32.xlu0 %v272, 120
    %v280 = vpop.permute.xlu0 %279
    %281 = vrot.lane.b32.xlu0 %v267, 112
    %v282 = vpop.permute.xlu0 %281
    %283 = vrot.lane.b32.xlu0 %v272, 112
    %v284 = vpop.permute.xlu0 %283
    %285 = vrot.lane.b32.xlu0 %v267, 104
    %v286 = vpop.permute.xlu0 %285
    %287 = vrot.lane.b32.xlu0 %v272, 104
    %v288 = vpop.permute.xlu0 %287
    %289 = vrot.lane.b32.xlu0 %v267, 96
    %v290 = vpop.permute.xlu0 %289
    %291 = vrot.lane.b32.xlu0 %v272, 96
    %v292 = vpop.permute.xlu0 %291
    %vm293 = vcmask 64512
    %v294 = vsel %vm293, %v290, 0
    %v296 = vsel %vm293, %v292, 0
    %v298 = vsel %vm293, %v267, 0
    %v300 = vsel %vm293, %v272, 0
    %302 = vmatprep.subr.mxu0 0.0
    %303 = vmatpush1.xpose.msra.mxu0 0.0
    %304 = vmatprep.subr.mxu0 0.0
    %305 = vmatpush1.xpose.msra.mxu0 0.0
    %306 = vmatprep.subr.mxu0 0.0
    %307 = vmatpush1.xpose.msra.mxu0 0.0
    %308 = vmatprep.subr.mxu0 0.0
    %309 = vmatpush1.xpose.msra.mxu0 0.0
    %310 = vmatprep.subr.mxu0 0.0
    %311 = vmatpush1.xpose.msra.mxu0 0.0
    %312 = vmatprep.subr.mxu0 0.0
    %313 = vmatpush1.xpose.msra.mxu0 0.0
    %314 = vmatprep.subr.mxu0 0.0
    %315 = vmatpush1.xpose.msra.mxu0 0.0
    %316 = vmatprep.subr.mxu0 0.0
    %317 = vmatpush1.xpose.msra.mxu0 0.0
    %318 = vmatprep.subr.mxu0 0.0
    %319 = vmatpush1.xpose.msra.mxu0 0.0
    %320 = vmatprep.subr.mxu0 0.0
    %321 = vmatpush1.xpose.msra.mxu0 0.0
    %322 = vmatprep.subr.mxu0 0.0
    %323 = vmatpush1.xpose.msra.mxu0 0.0
    %324 = vmatprep.subr.mxu0 0.0
    %325 = vmatpush1.xpose.msra.mxu0 0.0
    %326 = vmatprep.subr.mxu0 0.0
    %327 = vmatpush1.xpose.msra.mxu0 0.0
    %328 = vmatprep.subr.mxu0 0.0
    %329 = vmatpush1.xpose.msra.mxu0 0.0
    %330 = vmatprep.subr.mxu0 0.0
    %331 = vmatpush1.xpose.msra.mxu0 %v300
    %332 = vmatprep.subr.mxu0 0.0
    %333 = vmatpush1.xpose.msra.mxu0 %v298
    %334 = vmatprep.subr.mxu0 0.0
    %335 = vmatpush2.xpose.msra.mxu0 0.0
    %336 = vmatprep.subr.mxu0 0.0
    %337 = vmatpush2.xpose.msra.mxu0 0.0
    %338 = vmatprep.subr.mxu0 0.0
    %339 = vmatpush2.xpose.msra.mxu0 0.0
    %340 = vmatprep.subr.mxu0 0.0
    %341 = vmatpush2.xpose.msra.mxu0 0.0
    %342 = vmatprep.subr.mxu0 0.0
    %343 = vmatpush2.xpose.msra.mxu0 0.0
    %344 = vmatprep.subr.mxu0 0.0
    %345 = vmatpush2.xpose.msra.mxu0 0.0
    %346 = vmatprep.subr.mxu0 0.0
    %347 = vmatpush2.xpose.msra.mxu0 0.0
    %348 = vmatprep.subr.mxu0 0.0
    %349 = vmatpush2.xpose.msra.mxu0 0.0
    %350 = vmatprep.subr.mxu0 0.0
    %351 = vmatpush2.xpose.msra.mxu0 0.0
    %352 = vmatprep.subr.mxu0 0.0
    %353 = vmatpush2.xpose.msra.mxu0 0.0
    %354 = vmatprep.subr.mxu0 0.0
    %355 = vmatpush2.xpose.msra.mxu0 0.0
    %356 = vmatprep.subr.mxu0 0.0
    %357 = vmatpush2.xpose.msra.mxu0 0.0
    %358 = vmatprep.subr.mxu0 0.0
    %359 = vmatpush2.xpose.msra.mxu0 0.0
    %360 = vmatprep.subr.mxu0 0.0
    %361 = vmatpush2.xpose.msra.mxu0 0.0
    %362 = vmatprep.subr.mxu0 0.0
    %363 = vmatpush2.xpose.msra.mxu0 0.0
    %364 = vmatprep.subr.mxu0 0.0
    %365 = vmatpush2.xpose.msra.mxu0 0.0
    %366 = vmatprep.mubr.f32.mxu0 0.0
    %367 = vmatmul.mubr.f32.gmra.mxu0 %v294
    %v368 = vpop.f32.mrf.mxu0
    %v369 = vadd.f32 0.0, %v368
    %v370 = vpop.f32.mrf.mxu0
    %371 = vmatprep.mubr.f32.mxu0 0.0
    %372 = vmatmul.mubr.f32.gmra.mxu0 %v296
    %v373 = vpop.f32.mrf.mxu0
    %v374 = vadd.f32 0.0, %v373
    %v375 = vpop.f32.mrf.mxu0
    %376 = vdwg.mxu0
    %377 = vrot.lane.b32.xlu0 %v278, 96
    %v378 = vpop.permute.xlu0 %377
    %379 = vrot.lane.b32.xlu0 %v280, 96
    %v380 = vpop.permute.xlu0 %379
    %v381 = vsel %vm293, %v378, 0
    %v383 = vsel %vm293, %v380, 0
    %v385 = vsel %vm293, %v278, 0
    %v387 = vsel %vm293, %v280, 0
    %389 = vmatprep.subr.mxu0 0.0
    %390 = vmatpush1.xpose.msra.mxu0 0.0
    %391 = vmatprep.subr.mxu0 0.0
    %392 = vmatpush1.xpose.msra.mxu0 0.0
    %393 = vmatprep.subr.mxu0 0.0
    %394 = vmatpush1.xpose.msra.mxu0 0.0
    %395 = vmatprep.subr.mxu0 0.0
    %396 = vmatpush1.xpose.msra.mxu0 0.0
    %397 = vmatprep.subr.mxu0 0.0
    %398 = vmatpush1.xpose.msra.mxu0 0.0
    %399 = vmatprep.subr.mxu0 0.0
    %400 = vmatpush1.xpose.msra.mxu0 0.0
    %401 = vmatprep.subr.mxu0 0.0
    %402 = vmatpush1.xpose.msra.mxu0 0.0
    %403 = vmatprep.subr.mxu0 0.0
    %404 = vmatpush1.xpose.msra.mxu0 0.0
    %405 = vmatprep.subr.mxu0 0.0
    %406 = vmatpush1.xpose.msra.mxu0 0.0
    %407 = vmatprep.subr.mxu0 0.0
    %408 = vmatpush1.xpose.msra.mxu0 0.0
    %409 = vmatprep.subr.mxu0 0.0
    %410 = vmatpush1.xpose.msra.mxu0 0.0
    %411 = vmatprep.subr.mxu0 0.0
    %412 = vmatpush1.xpose.msra.mxu0 0.0
    %413 = vmatprep.subr.mxu0 0.0
    %414 = vmatpush1.xpose.msra.mxu0 0.0
    %415 = vmatprep.subr.mxu0 0.0
    %416 = vmatpush1.xpose.msra.mxu0 0.0
    %417 = vmatprep.subr.mxu0 0.0
    %418 = vmatpush1.xpose.msra.mxu0 %v387
    %419 = vmatprep.subr.mxu0 0.0
    %420 = vmatpush1.xpose.msra.mxu0 %v385
    %421 = vmatprep.subr.mxu0 0.0
    %422 = vmatpush2.xpose.msra.mxu0 0.0
    %423 = vmatprep.subr.mxu0 0.0
    %424 = vmatpush2.xpose.msra.mxu0 0.0
    %425 = vmatprep.subr.mxu0 0.0
    %426 = vmatpush2.xpose.msra.mxu0 0.0
    %427 = vmatprep.subr.mxu0 0.0
    %428 = vmatpush2.xpose.msra.mxu0 0.0
    %429 = vmatprep.subr.mxu0 0.0
    %430 = vmatpush2.xpose.msra.mxu0 0.0
    %431 = vmatprep.subr.mxu0 0.0
    %432 = vmatpush2.xpose.msra.mxu0 0.0
    %433 = vmatprep.subr.mxu0 0.0
    %434 = vmatpush2.xpose.msra.mxu0 0.0
    %435 = vmatprep.subr.mxu0 0.0
    %436 = vmatpush2.xpose.msra.mxu0 0.0
    %437 = vmatprep.subr.mxu0 0.0
    %438 = vmatpush2.xpose.msra.mxu0 0.0
    %439 = vmatprep.subr.mxu0 0.0
    %440 = vmatpush2.xpose.msra.mxu0 0.0
    %441 = vmatprep.subr.mxu0 0.0
    %442 = vmatpush2.xpose.msra.mxu0 0.0
    %443 = vmatprep.subr.mxu0 0.0
    %444 = vmatpush2.xpose.msra.mxu0 0.0
    %445 = vmatprep.subr.mxu0 0.0
    %446 = vmatpush2.xpose.msra.mxu0 0.0
    %447 = vmatprep.subr.mxu0 0.0
    %448 = vmatpush2.xpose.msra.mxu0 0.0
    %449 = vmatprep.subr.mxu0 0.0
    %450 = vmatpush2.xpose.msra.mxu0 0.0
    %451 = vmatprep.subr.mxu0 0.0
    %452 = vmatpush2.xpose.msra.mxu0 0.0
    %453 = vmatprep.mubr.f32.mxu0 0.0
    %454 = vmatmul.mubr.f32.gmra.mxu0 %v381
    %v455 = vpop.f32.mrf.mxu0
    %v456 = vadd.f32 0.0, %v455
    %v457 = vpop.f32.mrf.mxu0
    %458 = vmatprep.mubr.f32.mxu0 0.0
    %459 = vmatmul.mubr.f32.gmra.mxu0 %v383
    %v460 = vpop.f32.mrf.mxu0
    %v461 = vadd.f32 0.0, %v460
    %v462 = vpop.f32.mrf.mxu0
    %463 = vdwg.mxu0
    %464 = vrot.lane.b32.xlu0 %v282, 96
    %v465 = vpop.permute.xlu0 %464
    %466 = vrot.lane.b32.xlu0 %v284, 96
    %v467 = vpop.permute.xlu0 %466
    %v468 = vsel %vm293, %v465, 0
    %v470 = vsel %vm293, %v467, 0
    %v472 = vsel %vm293, %v282, 0
    %v474 = vsel %vm293, %v284, 0
    %476 = vmatprep.subr.mxu0 0.0
    %477 = vmatpush1.xpose.msra.mxu0 0.0
    %478 = vmatprep.subr.mxu0 0.0
    %479 = vmatpush1.xpose.msra.mxu0 0.0
    %480 = vmatprep.subr.mxu0 0.0
    %481 = vmatpush1.xpose.msra.mxu0 0.0
    %482 = vmatprep.subr.mxu0 0.0
    %483 = vmatpush1.xpose.msra.mxu0 0.0
    %484 = vmatprep.subr.mxu0 0.0
    %485 = vmatpush1.xpose.msra.mxu0 0.0
    %486 = vmatprep.subr.mxu0 0.0
    %487 = vmatpush1.xpose.msra.mxu0 0.0
    %488 = vmatprep.subr.mxu0 0.0
    %489 = vmatpush1.xpose.msra.mxu0 0.0
    %490 = vmatprep.subr.mxu0 0.0
    %491 = vmatpush1.xpose.msra.mxu0 0.0
    %492 = vmatprep.subr.mxu0 0.0
    %493 = vmatpush1.xpose.msra.mxu0 0.0
    %494 = vmatprep.subr.mxu0 0.0
    %495 = vmatpush1.xpose.msra.mxu0 0.0
    %496 = vmatprep.subr.mxu0 0.0
    %497 = vmatpush1.xpose.msra.mxu0 0.0
    %498 = vmatprep.subr.mxu0 0.0
    %499 = vmatpush1.xpose.msra.mxu0 0.0
    %500 = vmatprep.subr.mxu0 0.0
    %501 = vmatpush1.xpose.msra.mxu0 0.0
    %502 = vmatprep.subr.mxu0 0.0
    %503 = vmatpush1.xpose.msra.mxu0 0.0
    %504 = vmatprep.subr.mxu0 0.0
    %505 = vmatpush1.xpose.msra.mxu0 %v474
    %506 = vmatprep.subr.mxu0 0.0
    %507 = vmatpush1.xpose.msra.mxu0 %v472
    %508 = vmatprep.subr.mxu0 0.0
    %509 = vmatpush2.xpose.msra.mxu0 0.0
    %510 = vmatprep.subr.mxu0 0.0
    %511 = vmatpush2.xpose.msra.mxu0 0.0
    %512 = vmatprep.subr.mxu0 0.0
    %513 = vmatpush2.xpose.msra.mxu0 0.0
    %514 = vmatprep.subr.mxu0 0.0
    %515 = vmatpush2.xpose.msra.mxu0 0.0
    %516 = vmatprep.subr.mxu0 0.0
    %517 = vmatpush2.xpose.msra.mxu0 0.0
    %518 = vmatprep.subr.mxu0 0.0
    %519 = vmatpush2.xpose.msra.mxu0 0.0
    %520 = vmatprep.subr.mxu0 0.0
    %521 = vmatpush2.xpose.msra.mxu0 0.0
    %522 = vmatprep.subr.mxu0 0.0
    %523 = vmatpush2.xpose.msra.mxu0 0.0
    %524 = vmatprep.subr.mxu0 0.0
    %525 = vmatpush2.xpose.msra.mxu0 0.0
    %526 = vmatprep.subr.mxu0 0.0
    %527 = vmatpush2.xpose.msra.mxu0 0.0
    %528 = vmatprep.subr.mxu0 0.0
    %529 = vmatpush2.xpose.msra.mxu0 0.0
    %530 = vmatprep.subr.mxu0 0.0
    %531 = vmatpush2.xpose.msra.mxu0 0.0
    %532 = vmatprep.subr.mxu0 0.0
    %533 = vmatpush2.xpose.msra.mxu0 0.0
    %534 = vmatprep.subr.mxu0 0.0
    %535 = vmatpush2.xpose.msra.mxu0 0.0
    %536 = vmatprep.subr.mxu0 0.0
    %537 = vmatpush2.xpose.msra.mxu0 0.0
    %538 = vmatprep.subr.mxu0 0.0
    %539 = vmatpush2.xpose.msra.mxu0 0.0
    %540 = vmatprep.mubr.f32.mxu0 0.0
    %541 = vmatmul.mubr.f32.gmra.mxu0 %v468
    %v542 = vpop.f32.mrf.mxu0
    %v543 = vadd.f32 0.0, %v542
    %v544 = vpop.f32.mrf.mxu0
    %545 = vmatprep.mubr.f32.mxu0 0.0
    %546 = vmatmul.mubr.f32.gmra.mxu0 %v470
    %v547 = vpop.f32.mrf.mxu0
    %v548 = vadd.f32 0.0, %v547
    %v549 = vpop.f32.mrf.mxu0
    %550 = vdwg.mxu0
    %551 = vrot.lane.b32.xlu0 %v286, 96
    %v552 = vpop.permute.xlu0 %551
    %553 = vrot.lane.b32.xlu0 %v288, 96
    %v554 = vpop.permute.xlu0 %553
    %v555 = vsel %vm293, %v552, 0
    %v557 = vsel %vm293, %v554, 0
    %v559 = vsel %vm293, %v286, 0
    %v561 = vsel %vm293, %v288, 0
    %563 = vmatprep.subr.mxu0 0.0
    %564 = vmatpush1.xpose.msra.mxu0 0.0
    %565 = vmatprep.subr.mxu0 0.0
    %566 = vmatpush1.xpose.msra.mxu0 0.0
    %567 = vmatprep.subr.mxu0 0.0
    %568 = vmatpush1.xpose.msra.mxu0 0.0
    %569 = vmatprep.subr.mxu0 0.0
    %570 = vmatpush1.xpose.msra.mxu0 0.0
    %571 = vmatprep.subr.mxu0 0.0
    %572 = vmatpush1.xpose.msra.mxu0 0.0
    %573 = vmatprep.subr.mxu0 0.0
    %574 = vmatpush1.xpose.msra.mxu0 0.0
    %575 = vmatprep.subr.mxu0 0.0
    %576 = vmatpush1.xpose.msra.mxu0 0.0
    %577 = vmatprep.subr.mxu0 0.0
    %578 = vmatpush1.xpose.msra.mxu0 0.0
    %579 = vmatprep.subr.mxu0 0.0
    %580 = vmatpush1.xpose.msra.mxu0 0.0
    %581 = vmatprep.subr.mxu0 0.0
    %582 = vmatpush1.xpose.msra.mxu0 0.0
    %583 = vmatprep.subr.mxu0 0.0
    %584 = vmatpush1.xpose.msra.mxu0 0.0
    %585 = vmatprep.subr.mxu0 0.0
    %586 = vmatpush1.xpose.msra.mxu0 0.0
    %587 = vmatprep.subr.mxu0 0.0
    %588 = vmatpush1.xpose.msra.mxu0 0.0
    %589 = vmatprep.subr.mxu0 0.0
    %590 = vmatpush1.xpose.msra.mxu0 0.0
    %591 = vmatprep.subr.mxu0 0.0
    %592 = vmatpush1.xpose.msra.mxu0 %v561
    %593 = vmatprep.subr.mxu0 0.0
    %594 = vmatpush1.xpose.msra.mxu0 %v559
    %595 = vmatprep.subr.mxu0 0.0
    %596 = vmatpush2.xpose.msra.mxu0 0.0
    %597 = vmatprep.subr.mxu0 0.0
    %598 = vmatpush2.xpose.msra.mxu0 0.0
    %599 = vmatprep.subr.mxu0 0.0
    %600 = vmatpush2.xpose.msra.mxu0 0.0
    %601 = vmatprep.subr.mxu0 0.0
    %602 = vmatpush2.xpose.msra.mxu0 0.0
    %603 = vmatprep.subr.mxu0 0.0
    %604 = vmatpush2.xpose.msra.mxu0 0.0
    %605 = vmatprep.subr.mxu0 0.0
    %606 = vmatpush2.xpose.msra.mxu0 0.0
    %607 = vmatprep.subr.mxu0 0.0
    %608 = vmatpush2.xpose.msra.mxu0 0.0
    %609 = vmatprep.subr.mxu0 0.0
    %610 = vmatpush2.xpose.msra.mxu0 0.0
    %611 = vmatprep.subr.mxu0 0.0
    %612 = vmatpush2.xpose.msra.mxu0 0.0
    %613 = vmatprep.subr.mxu0 0.0
    %614 = vmatpush2.xpose.msra.mxu0 0.0
    %615 = vmatprep.subr.mxu0 0.0
    %616 = vmatpush2.xpose.msra.mxu0 0.0
    %617 = vmatprep.subr.mxu0 0.0
    %618 = vmatpush2.xpose.msra.mxu0 0.0
    %619 = vmatprep.subr.mxu0 0.0
    %620 = vmatpush2.xpose.msra.mxu0 0.0
    %621 = vmatprep.subr.mxu0 0.0
    %622 = vmatpush2.xpose.msra.mxu0 0.0
    %623 = vmatprep.subr.mxu0 0.0
    %624 = vmatpush2.xpose.msra.mxu0 0.0
    %625 = vmatprep.subr.mxu0 0.0
    %626 = vmatpush2.xpose.msra.mxu0 0.0
    %627 = vmatprep.mubr.f32.mxu0 0.0
    %628 = vmatmul.mubr.f32.gmra.mxu0 %v555
    %v629 = vpop.f32.mrf.mxu0
    %v630 = vadd.f32 0.0, %v629
    %v631 = vpop.f32.mrf.mxu0
    %632 = vmatprep.mubr.f32.mxu0 0.0
    %633 = vmatmul.mubr.f32.gmra.mxu0 %v557
    %v634 = vpop.f32.mrf.mxu0
    %v635 = vadd.f32 0.0, %v634
    %v636 = vpop.f32.mrf.mxu0
    %637 = vdwg.mxu0
    %v638 = vmul.f32 %v369, 0.35355338
    %v639 = vmul.f32 %v374, 0.35355338
    %v640 = vmul.f32 %v456, 0.35355338
    %v641 = vmul.f32 %v461, 0.35355338
    %v642 = vmul.f32 %v543, 0.35355338
    %v643 = vmul.f32 %v548, 0.35355338
    %v644 = vmul.f32 %v630, 0.35355338
    %v645 = vmul.f32 %v635, 0.35355338
    %v646 = vadd.f32 %v638, %v57
    %v647 = vadd.f32 %v639, %v58
    %v648 = vadd.f32 %v640, %v57
    %v649 = vadd.f32 %v641, %v58
    %v650 = vadd.f32 %v642, %v57
    %v651 = vadd.f32 %v643, %v58
    %v652 = vadd.f32 %v644, %v57
    %v653 = vadd.f32 %v645, %v58
    %vm654 = vcmask 130048
    %v655 = vsel %vm654, %v646, -inf
    %656 = vmax.xlane.f32.xlu0 %v655
    %v657 = vpop.xlane.xlu0 %656
    %v658 = vsel %vm654, %v647, -inf
    %659 = vmax.xlane.f32.xlu0 %v658
    %v660 = vpop.xlane.xlu0 %659
    %v661 = vsel %vm654, %v648, -inf
    %662 = vmax.xlane.f32.xlu0 %v661
    %v663 = vpop.xlane.xlu0 %662
    %v664 = vsel %vm654, %v649, -inf
    %665 = vmax.xlane.f32.xlu0 %v664
    %v666 = vpop.xlane.xlu0 %665
    %v667 = vsel %vm654, %v650, -inf
    %668 = vmax.xlane.f32.xlu0 %v667
    %v669 = vpop.xlane.xlu0 %668
    %v670 = vsel %vm654, %v651, -inf
    %671 = vmax.xlane.f32.xlu0 %v670
    %v672 = vpop.xlane.xlu0 %671
    %v673 = vsel %vm654, %v652, -inf
    %674 = vmax.xlane.f32.xlu0 %v673
    %v675 = vpop.xlane.xlu0 %674
    %v676 = vsel %vm654, %v653, -inf
    %677 = vmax.xlane.f32.xlu0 %v676
    %v678 = vpop.xlane.xlu0 %677
    %v679 = vsub.f32 %v646, %v657
    %v680 = vsub.f32 %v647, %v660
    %v681 = vsub.f32 %v648, %v663
    %v682 = vsub.f32 %v649, %v666
    %v683 = vsub.f32 %v650, %v669
    %v684 = vsub.f32 %v651, %v672
    %v685 = vsub.f32 %v652, %v675
    %v686 = vsub.f32 %v653, %v678
    %v687 = vmul.f32 %v679, 1.442695
    %v688 = vpow.pop %v687
    %v689 = vmul.f32 %v680, 1.442695
    %v690 = vpow.pop %v689
    %v691 = vmul.f32 %v681, 1.442695
    %v692 = vpow.pop %v691
    %v693 = vmul.f32 %v682, 1.442695
    %v694 = vpow.pop %v693
    %v695 = vmul.f32 %v683, 1.442695
    %v696 = vpow.pop %v695
    %v697 = vmul.f32 %v684, 1.442695
    %v698 = vpow.pop %v697
    %v699 = vmul.f32 %v685, 1.442695
    %v700 = vpow.pop %v699
    %v701 = vmul.f32 %v686, 1.442695
    %v702 = vpow.pop %v701
    %v703 = vsel %vm654, %v688, 0.0
    %704 = vadd.xlane.f32.xlu0 %v703
    %v705 = vpop.xlane.xlu0 %704
    %v706 = vsel %vm654, %v690, 0.0
    %707 = vadd.xlane.f32.xlu0 %v706
    %v708 = vpop.xlane.xlu0 %707
    %v709 = vsel %vm654, %v692, 0.0
    %710 = vadd.xlane.f32.xlu0 %v709
    %v711 = vpop.xlane.xlu0 %710
    %v712 = vsel %vm654, %v694, 0.0
    %713 = vadd.xlane.f32.xlu0 %v712
    %v714 = vpop.xlane.xlu0 %713
    %v715 = vsel %vm654, %v696, 0.0
    %716 = vadd.xlane.f32.xlu0 %v715
    %v717 = vpop.xlane.xlu0 %716
    %v718 = vsel %vm654, %v698, 0.0
    %719 = vadd.xlane.f32.xlu0 %v718
    %v720 = vpop.xlane.xlu0 %719
    %v721 = vsel %vm654, %v700, 0.0
    %722 = vadd.xlane.f32.xlu0 %v721
    %v723 = vpop.xlane.xlu0 %722
    %v724 = vsel %vm654, %v702, 0.0
    %725 = vadd.xlane.f32.xlu0 %v724
    %v726 = vpop.xlane.xlu0 %725
    %v727 = vrcp.pop %v705
    %v728 = vrcp.pop %v708
    %v729 = vrcp.pop %v711
    %v730 = vrcp.pop %v714
    %v731 = vrcp.pop %v717
    %v732 = vrcp.pop %v720
    %v733 = vrcp.pop %v723
    %v734 = vrcp.pop %v726
    %v735 = vmul.f32 %v688, %v727
    %v736 = vmul.f32 %v690, %v728
    %v737 = vmul.f32 %v692, %v729
    %v738 = vmul.f32 %v694, %v730
    %v739 = vmul.f32 %v696, %v731
    %v740 = vmul.f32 %v698, %v732
    %v741 = vmul.f32 %v700, %v733
    %v742 = vmul.f32 %v702, %v734
    %743 = vrot.lane.b32.xlu0 %v267, 64
    %v744 = vpop.permute.xlu0 %743
    %745 = vrot.lane.b32.xlu0 %v272, 64
    %v746 = vpop.permute.xlu0 %745
    %v750 = vsel %vm654, %v735, 0
    %v753 = vsel %vm654, %v736, 0
    %755 = vmatprep.subr.mxu0 0.0
    %756 = vmatpush1.msra.mxu0 0.0
    %757 = vmatprep.subr.mxu0 0.0
    %758 = vmatpush1.msra.mxu0 0.0
    %759 = vmatprep.subr.mxu0 0.0
    %760 = vmatpush1.msra.mxu0 0.0
    %761 = vmatprep.subr.mxu0 0.0
    %762 = vmatpush1.msra.mxu0 0.0
    %763 = vmatprep.subr.mxu0 0.0
    %764 = vmatpush1.msra.mxu0 0.0
    %765 = vmatprep.subr.mxu0 0.0
    %766 = vmatpush1.msra.mxu0 0.0
    %767 = vmatprep.subr.mxu0 0.0
    %768 = vmatpush1.msra.mxu0 0.0
    %769 = vmatprep.subr.mxu0 0.0
    %770 = vmatpush1.msra.mxu0 0.0
    %771 = vmatprep.subr.mxu0 0.0
    %772 = vmatpush1.msra.mxu0 0.0
    %773 = vmatprep.subr.mxu0 0.0
    %774 = vmatpush1.msra.mxu0 0.0
    %775 = vmatprep.subr.mxu0 0.0
    %776 = vmatpush1.msra.mxu0 0.0
    %777 = vmatprep.subr.mxu0 0.0
    %778 = vmatpush1.msra.mxu0 0.0
    %779 = vmatprep.subr.mxu0 0.0
    %780 = vmatpush1.msra.mxu0 0.0
    %781 = vmatprep.subr.mxu0 0.0
    %782 = vmatpush1.msra.mxu0 0.0
    %783 = vmatprep.subr.mxu0 0.0
    %784 = vmatpush1.msra.mxu0 %v746
    %785 = vmatprep.subr.mxu0 0.0
    %786 = vmatpush1.msra.mxu0 %v744
    %787 = vmatprep.subr.mxu0 0.0
    %788 = vmatpush2.msra.mxu0 0.0
    %789 = vmatprep.subr.mxu0 0.0
    %790 = vmatpush2.msra.mxu0 0.0
    %791 = vmatprep.subr.mxu0 0.0
    %792 = vmatpush2.msra.mxu0 0.0
    %793 = vmatprep.subr.mxu0 0.0
    %794 = vmatpush2.msra.mxu0 0.0
    %795 = vmatprep.subr.mxu0 0.0
    %796 = vmatpush2.msra.mxu0 0.0
    %797 = vmatprep.subr.mxu0 0.0
    %798 = vmatpush2.msra.mxu0 0.0
    %799 = vmatprep.subr.mxu0 0.0
    %800 = vmatpush2.msra.mxu0 0.0
    %801 = vmatprep.subr.mxu0 0.0
    %802 = vmatpush2.msra.mxu0 0.0
    %803 = vmatprep.subr.mxu0 0.0
    %804 = vmatpush2.msra.mxu0 0.0
    %805 = vmatprep.subr.mxu0 0.0
    %806 = vmatpush2.msra.mxu0 0.0
    %807 = vmatprep.subr.mxu0 0.0
    %808 = vmatpush2.msra.mxu0 0.0
    %809 = vmatprep.subr.mxu0 0.0
    %810 = vmatpush2.msra.mxu0 0.0
    %811 = vmatprep.subr.mxu0 0.0
    %812 = vmatpush2.msra.mxu0 0.0
    %813 = vmatprep.subr.mxu0 0.0
    %814 = vmatpush2.msra.mxu0 0.0
    %815 = vmatprep.subr.mxu0 0.0
    %816 = vmatpush2.msra.mxu0 0.0
    %817 = vmatprep.subr.mxu0 0.0
    %818 = vmatpush2.msra.mxu0 0.0
    %819 = vmatprep.mubr.f32.mxu0 0.0
    %820 = vmatmul.mubr.f32.gmra.mxu0 %v750
    %v821 = vpop.f32.mrf.mxu0
    %v822 = vadd.f32 0.0, %v821
    %v823 = vpop.f32.mrf.mxu0
    %824 = vmatprep.mubr.f32.mxu0 0.0
    %825 = vmatmul.mubr.f32.gmra.mxu0 %v753
    %v826 = vpop.f32.mrf.mxu0
    %v827 = vadd.f32 0.0, %v826
    %v828 = vpop.f32.mrf.mxu0
    %829 = vdwg.mxu0
    %830 = vrot.lane.b32.xlu0 %v278, 64
    %v831 = vpop.permute.xlu0 %830
    %832 = vrot.lane.b32.xlu0 %v280, 64
    %v833 = vpop.permute.xlu0 %832
    %v837 = vsel %vm654, %v737, 0
    %v840 = vsel %vm654, %v738, 0
    %842 = vmatprep.subr.mxu0 0.0
    %843 = vmatpush1.msra.mxu0 0.0
    %844 = vmatprep.subr.mxu0 0.0
    %845 = vmatpush1.msra.mxu0 0.0
    %846 = vmatprep.subr.mxu0 0.0
    %847 = vmatpush1.msra.mxu0 0.0
    %848 = vmatprep.subr.mxu0 0.0
    %849 = vmatpush1.msra.mxu0 0.0
    %850 = vmatprep.subr.mxu0 0.0
    %851 = vmatpush1.msra.mxu0 0.0
    %852 = vmatprep.subr.mxu0 0.0
    %853 = vmatpush1.msra.mxu0 0.0
    %854 = vmatprep.subr.mxu0 0.0
    %855 = vmatpush1.msra.mxu0 0.0
    %856 = vmatprep.subr.mxu0 0.0
    %857 = vmatpush1.msra.mxu0 0.0
    %858 = vmatprep.subr.mxu0 0.0
    %859 = vmatpush1.msra.mxu0 0.0
    %860 = vmatprep.subr.mxu0 0.0
    %861 = vmatpush1.msra.mxu0 0.0
    %862 = vmatprep.subr.mxu0 0.0
    %863 = vmatpush1.msra.mxu0 0.0
    %864 = vmatprep.subr.mxu0 0.0
    %865 = vmatpush1.msra.mxu0 0.0
    %866 = vmatprep.subr.mxu0 0.0
    %867 = vmatpush1.msra.mxu0 0.0
    %868 = vmatprep.subr.mxu0 0.0
    %869 = vmatpush1.msra.mxu0 0.0
    %870 = vmatprep.subr.mxu0 0.0
    %871 = vmatpush1.msra.mxu0 %v833
    %872 = vmatprep.subr.mxu0 0.0
    %873 = vmatpush1.msra.mxu0 %v831
    %874 = vmatprep.subr.mxu0 0.0
    %875 = vmatpush2.msra.mxu0 0.0
    %876 = vmatprep.subr.mxu0 0.0
    %877 = vmatpush2.msra.mxu0 0.0
    %878 = vmatprep.subr.mxu0 0.0
    %879 = vmatpush2.msra.mxu0 0.0
    %880 = vmatprep.subr.mxu0 0.0
    %881 = vmatpush2.msra.mxu0 0.0
    %882 = vmatprep.subr.mxu0 0.0
    %883 = vmatpush2.msra.mxu0 0.0
    %884 = vmatprep.subr.mxu0 0.0
    %885 = vmatpush2.msra.mxu0 0.0
    %886 = vmatprep.subr.mxu0 0.0
    %887 = vmatpush2.msra.mxu0 0.0
    %888 = vmatprep.subr.mxu0 0.0
    %889 = vmatpush2.msra.mxu0 0.0
    %890 = vmatprep.subr.mxu0 0.0
    %891 = vmatpush2.msra.mxu0 0.0
    %892 = vmatprep.subr.mxu0 0.0
    %893 = vmatpush2.msra.mxu0 0.0
    %894 = vmatprep.subr.mxu0 0.0
    %895 = vmatpush2.msra.mxu0 0.0
    %896 = vmatprep.subr.mxu0 0.0
    %897 = vmatpush2.msra.mxu0 0.0
    %898 = vmatprep.subr.mxu0 0.0
    %899 = vmatpush2.msra.mxu0 0.0
    %900 = vmatprep.subr.mxu0 0.0
    %901 = vmatpush2.msra.mxu0 0.0
    %902 = vmatprep.subr.mxu0 0.0
    %903 = vmatpush2.msra.mxu0 0.0
    %904 = vmatprep.subr.mxu0 0.0
    %905 = vmatpush2.msra.mxu0 0.0
    %906 = vmatprep.mubr.f32.mxu0 0.0
    %907 = vmatmul.mubr.f32.gmra.mxu0 %v837
    %v908 = vpop.f32.mrf.mxu0
    %v909 = vadd.f32 0.0, %v908
    %v910 = vpop.f32.mrf.mxu0
    %911 = vmatprep.mubr.f32.mxu0 0.0
    %912 = vmatmul.mubr.f32.gmra.mxu0 %v840
    %v913 = vpop.f32.mrf.mxu0
    %v914 = vadd.f32 0.0, %v913
    %v915 = vpop.f32.mrf.mxu0
    %916 = vdwg.mxu0
    %917 = vrot.lane.b32.xlu0 %v282, 64
    %v918 = vpop.permute.xlu0 %917
    %919 = vrot.lane.b32.xlu0 %v284, 64
    %v920 = vpop.permute.xlu0 %919
    %v924 = vsel %vm654, %v739, 0
    %v927 = vsel %vm654, %v740, 0
    %929 = vmatprep.subr.mxu0 0.0
    %930 = vmatpush1.msra.mxu0 0.0
    %931 = vmatprep.subr.mxu0 0.0
    %932 = vmatpush1.msra.mxu0 0.0
    %933 = vmatprep.subr.mxu0 0.0
    %934 = vmatpush1.msra.mxu0 0.0
    %935 = vmatprep.subr.mxu0 0.0
    %936 = vmatpush1.msra.mxu0 0.0
    %937 = vmatprep.subr.mxu0 0.0
    %938 = vmatpush1.msra.mxu0 0.0
    %939 = vmatprep.subr.mxu0 0.0
    %940 = vmatpush1.msra.mxu0 0.0
    %941 = vmatprep.subr.mxu0 0.0
    %942 = vmatpush1.msra.mxu0 0.0
    %943 = vmatprep.subr.mxu0 0.0
    %944 = vmatpush1.msra.mxu0 0.0
    %945 = vmatprep.subr.mxu0 0.0
    %946 = vmatpush1.msra.mxu0 0.0
    %947 = vmatprep.subr.mxu0 0.0
    %948 = vmatpush1.msra.mxu0 0.0
    %949 = vmatprep.subr.mxu0 0.0
    %950 = vmatpush1.msra.mxu0 0.0
    %951 = vmatprep.subr.mxu0 0.0
    %952 = vmatpush1.msra.mxu0 0.0
    %953 = vmatprep.subr.mxu0 0.0
    %954 = vmatpush1.msra.mxu0 0.0
    %955 = vmatprep.subr.mxu0 0.0
    %956 = vmatpush1.msra.mxu0 0.0
    %957 = vmatprep.subr.mxu0 0.0
    %958 = vmatpush1.msra.mxu0 %v920
    %959 = vmatprep.subr.mxu0 0.0
    %960 = vmatpush1.msra.mxu0 %v918
    %961 = vmatprep.subr.mxu0 0.0
    %962 = vmatpush2.msra.mxu0 0.0
    %963 = vmatprep.subr.mxu0 0.0
    %964 = vmatpush2.msra.mxu0 0.0
    %965 = vmatprep.subr.mxu0 0.0
    %966 = vmatpush2.msra.mxu0 0.0
    %967 = vmatprep.subr.mxu0 0.0
    %968 = vmatpush2.msra.mxu0 0.0
    %969 = vmatprep.subr.mxu0 0.0
    %970 = vmatpush2.msra.mxu0 0.0
    %971 = vmatprep.subr.mxu0 0.0
    %972 = vmatpush2.msra.mxu0 0.0
    %973 = vmatprep.subr.mxu0 0.0
    %974 = vmatpush2.msra.mxu0 0.0
    %975 = vmatprep.subr.mxu0 0.0
    %976 = vmatpush2.msra.mxu0 0.0
    %977 = vmatprep.subr.mxu0 0.0
    %978 = vmatpush2.msra.mxu0 0.0
    %979 = vmatprep.subr.mxu0 0.0
    %980 = vmatpush2.msra.mxu0 0.0
    %981 = vmatprep.subr.mxu0 0.0
    %982 = vmatpush2.msra.mxu0 0.0
    %983 = vmatprep.subr.mxu0 0.0
    %984 = vmatpush2.msra.mxu0 0.0
    %985 = vmatprep.subr.mxu0 0.0
    %986 = vmatpush2.msra.mxu0 0.0
    %987 = vmatprep.subr.mxu0 0.0
    %988 = vmatpush2.msra.mxu0 0.0
    %989 = vmatprep.subr.mxu0 0.0
    %990 = vmatpush2.msra.mxu0 0.0
    %991 = vmatprep.subr.mxu0 0.0
    %992 = vmatpush2.msra.mxu0 0.0
    %993 = vmatprep.mubr.f32.mxu0 0.0
    %994 = vmatmul.mubr.f32.gmra.mxu0 %v924
    %v995 = vpop.f32.mrf.mxu0
    %v996 = vadd.f32 0.0, %v995
    %v997 = vpop.f32.mrf.mxu0
    %998 = vmatprep.mubr.f32.mxu0 0.0
    %999 = vmatmul.mubr.f32.gmra.mxu0 %v927
    %v1000 = vpop.f32.mrf.mxu0
    %v1001 = vadd.f32 0.0, %v1000
    %v1002 = vpop.f32.mrf.mxu0
    %1003 = vdwg.mxu0
    %1004 = vrot.lane.b32.xlu0 %v286, 64
    %v1005 = vpop.permute.xlu0 %1004
    %1006 = vrot.lane.b32.xlu0 %v288, 64
    %v1007 = vpop.permute.xlu0 %1006
    %v1011 = vsel %vm654, %v741, 0
    %v1014 = vsel %vm654, %v742, 0
    %1016 = vmatprep.subr.mxu0 0.0
    %1017 = vmatpush1.msra.mxu0 0.0
    %1018 = vmatprep.subr.mxu0 0.0
    %1019 = vmatpush1.msra.mxu0 0.0
    %1020 = vmatprep.subr.mxu0 0.0
    %1021 = vmatpush1.msra.mxu0 0.0
    %1022 = vmatprep.subr.mxu0 0.0
    %1023 = vmatpush1.msra.mxu0 0.0
    %1024 = vmatprep.subr.mxu0 0.0
    %1025 = vmatpush1.msra.mxu0 0.0
    %1026 = vmatprep.subr.mxu0 0.0
    %1027 = vmatpush1.msra.mxu0 0.0
    %1028 = vmatprep.subr.mxu0 0.0
    %1029 = vmatpush1.msra.mxu0 0.0
    %1030 = vmatprep.subr.mxu0 0.0
    %1031 = vmatpush1.msra.mxu0 0.0
    %1032 = vmatprep.subr.mxu0 0.0
    %1033 = vmatpush1.msra.mxu0 0.0
    %1034 = vmatprep.subr.mxu0 0.0
    %1035 = vmatpush1.msra.mxu0 0.0
    %1036 = vmatprep.subr.mxu0 0.0
    %1037 = vmatpush1.msra.mxu0 0.0
    %1038 = vmatprep.subr.mxu0 0.0
    %1039 = vmatpush1.msra.mxu0 0.0
    %1040 = vmatprep.subr.mxu0 0.0
    %1041 = vmatpush1.msra.mxu0 0.0
    %1042 = vmatprep.subr.mxu0 0.0
    %1043 = vmatpush1.msra.mxu0 0.0
    %1044 = vmatprep.subr.mxu0 0.0
    %1045 = vmatpush1.msra.mxu0 %v1007
    %1046 = vmatprep.subr.mxu0 0.0
    %1047 = vmatpush1.msra.mxu0 %v1005
    %1048 = vmatprep.subr.mxu0 0.0
    %1049 = vmatpush2.msra.mxu0 0.0
    %1050 = vmatprep.subr.mxu0 0.0
    %1051 = vmatpush2.msra.mxu0 0.0
    %1052 = vmatprep.subr.mxu0 0.0
    %1053 = vmatpush2.msra.mxu0 0.0
    %1054 = vmatprep.subr.mxu0 0.0
    %1055 = vmatpush2.msra.mxu0 0.0
    %1056 = vmatprep.subr.mxu0 0.0
    %1057 = vmatpush2.msra.mxu0 0.0
    %1058 = vmatprep.subr.mxu0 0.0
    %1059 = vmatpush2.msra.mxu0 0.0
    %1060 = vmatprep.subr.mxu0 0.0
    %1061 = vmatpush2.msra.mxu0 0.0
    %1062 = vmatprep.subr.mxu0 0.0
    %1063 = vmatpush2.msra.mxu0 0.0
    %1064 = vmatprep.subr.mxu0 0.0
    %1065 = vmatpush2.msra.mxu0 0.0
    %1066 = vmatprep.subr.mxu0 0.0
    %1067 = vmatpush2.msra.mxu0 0.0
    %1068 = vmatprep.subr.mxu0 0.0
    %1069 = vmatpush2.msra.mxu0 0.0
    %1070 = vmatprep.subr.mxu0 0.0
    %1071 = vmatpush2.msra.mxu0 0.0
    %1072 = vmatprep.subr.mxu0 0.0
    %1073 = vmatpush2.msra.mxu0 0.0
    %1074 = vmatprep.subr.mxu0 0.0
    %1075 = vmatpush2.msra.mxu0 0.0
    %1076 = vmatprep.subr.mxu0 0.0
    %1077 = vmatpush2.msra.mxu0 0.0
    %1078 = vmatprep.subr.mxu0 0.0
    %1079 = vmatpush2.msra.mxu0 0.0
    %1080 = vmatprep.mubr.f32.mxu0 0.0
    %1081 = vmatmul.mubr.f32.gmra.mxu0 %v1011
    %v1082 = vpop.f32.mrf.mxu0
    %v1083 = vadd.f32 0.0, %v1082
    %v1084 = vpop.f32.mrf.mxu0
    %1085 = vmatprep.mubr.f32.mxu0 0.0
    %1086 = vmatmul.mubr.f32.gmra.mxu0 %v1014
    %v1087 = vpop.f32.mrf.mxu0
    %v1088 = vadd.f32 0.0, %v1087
    %v1089 = vpop.f32.mrf.mxu0
    %1090 = vdwg.mxu0
    %1092 = vrot.lane.b32.xlu0 %v174, 32
    %v1093 = vpop.permute.xlu0 %1092
    %v1096 = vsel %vm293, %v822, 0
    %v1099 = vsel %vm293, %v827, 0
    %1101 = vmatprep.subr.mxu0 0.0
    %1102 = vmatpush1.msra.mxu0 0.0
    %1103 = vmatprep.subr.mxu0 0.0
    %1104 = vmatpush1.msra.mxu0 0.0
    %1105 = vmatprep.subr.mxu0 0.0
    %1106 = vmatpush1.msra.mxu0 0.0
    %1107 = vmatprep.subr.mxu0 0.0
    %1108 = vmatpush1.msra.mxu0 0.0
    %1109 = vmatprep.subr.mxu0 0.0
    %1110 = vmatpush1.msra.mxu0 0.0
    %1111 = vmatprep.subr.mxu0 0.0
    %1112 = vmatpush1.msra.mxu0 0.0
    %1113 = vmatprep.subr.mxu0 0.0
    %1114 = vmatpush1.msra.mxu0 0.0
    %1115 = vmatprep.subr.mxu0 0.0
    %1116 = vmatpush1.msra.mxu0 0.0
    %1117 = vmatprep.subr.mxu0 0.0
    %1118 = vmatpush1.msra.mxu0 0.0
    %1119 = vmatprep.subr.mxu0 0.0
    %1120 = vmatpush1.msra.mxu0 0.0
    %1121 = vmatprep.subr.mxu0 0.0
    %1122 = vmatpush1.msra.mxu0 0.0
    %1123 = vmatprep.subr.mxu0 0.0
    %1124 = vmatpush1.msra.mxu0 0.0
    %1125 = vmatprep.subr.mxu0 0.0
    %1126 = vmatpush1.msra.mxu0 0.0
    %1127 = vmatprep.subr.mxu0 0.0
    %1128 = vmatpush1.msra.mxu0 0.0
    %1129 = vmatprep.subr.mxu0 0.0
    %1130 = vmatpush1.msra.mxu0 0.0
    %1131 = vmatprep.subr.mxu0 0.0
    %1132 = vmatpush1.msra.mxu0 %v1093
    %1133 = vmatprep.subr.mxu0 0.0
    %1134 = vmatpush2.msra.mxu0 0.0
    %1135 = vmatprep.subr.mxu0 0.0
    %1136 = vmatpush2.msra.mxu0 0.0
    %1137 = vmatprep.subr.mxu0 0.0
    %1138 = vmatpush2.msra.mxu0 0.0
    %1139 = vmatprep.subr.mxu0 0.0
    %1140 = vmatpush2.msra.mxu0 0.0
    %1141 = vmatprep.subr.mxu0 0.0
    %1142 = vmatpush2.msra.mxu0 0.0
    %1143 = vmatprep.subr.mxu0 0.0
    %1144 = vmatpush2.msra.mxu0 0.0
    %1145 = vmatprep.subr.mxu0 0.0
    %1146 = vmatpush2.msra.mxu0 0.0
    %1147 = vmatprep.subr.mxu0 0.0
    %1148 = vmatpush2.msra.mxu0 0.0
    %1149 = vmatprep.subr.mxu0 0.0
    %1150 = vmatpush2.msra.mxu0 0.0
    %1151 = vmatprep.subr.mxu0 0.0
    %1152 = vmatpush2.msra.mxu0 0.0
    %1153 = vmatprep.subr.mxu0 0.0
    %1154 = vmatpush2.msra.mxu0 0.0
    %1155 = vmatprep.subr.mxu0 0.0
    %1156 = vmatpush2.msra.mxu0 0.0
    %1157 = vmatprep.subr.mxu0 0.0
    %1158 = vmatpush2.msra.mxu0 0.0
    %1159 = vmatprep.subr.mxu0 0.0
    %1160 = vmatpush2.msra.mxu0 0.0
    %1161 = vmatprep.subr.mxu0 0.0
    %1162 = vmatpush2.msra.mxu0 0.0
    %1163 = vmatprep.subr.mxu0 0.0
    %1164 = vmatpush2.msra.mxu0 0.0
    %1165 = vmatprep.mubr.f32.mxu0 0.0
    %1166 = vmatmul.mubr.f32.gmra.mxu0 %v1096
    %v1167 = vpop.f32.mrf.mxu0
    %v1168 = vadd.f32 0.0, %v1167
    %v1169 = vpop.f32.mrf.mxu0
    %1170 = vmatprep.mubr.f32.mxu0 0.0
    %1171 = vmatmul.mubr.f32.gmra.mxu0 %v1099
    %v1172 = vpop.f32.mrf.mxu0
    %v1173 = vadd.f32 0.0, %v1172
    %v1174 = vpop.f32.mrf.mxu0
    %1175 = vdwg.mxu0
    %1177 = vrot.lane.b32.xlu0 %v175, 32
    %v1178 = vpop.permute.xlu0 %1177
    %v1181 = vsel %vm293, %v909, 0
    %v1184 = vsel %vm293, %v914, 0
    %1186 = vmatprep.subr.mxu0 0.0
    %1187 = vmatpush1.msra.mxu0 0.0
    %1188 = vmatprep.subr.mxu0 0.0
    %1189 = vmatpush1.msra.mxu0 0.0
    %1190 = vmatprep.subr.mxu0 0.0
    %1191 = vmatpush1.msra.mxu0 0.0
    %1192 = vmatprep.subr.mxu0 0.0
    %1193 = vmatpush1.msra.mxu0 0.0
    %1194 = vmatprep.subr.mxu0 0.0
    %1195 = vmatpush1.msra.mxu0 0.0
    %1196 = vmatprep.subr.mxu0 0.0
    %1197 = vmatpush1.msra.mxu0 0.0
    %1198 = vmatprep.subr.mxu0 0.0
    %1199 = vmatpush1.msra.mxu0 0.0
    %1200 = vmatprep.subr.mxu0 0.0
    %1201 = vmatpush1.msra.mxu0 0.0
    %1202 = vmatprep.subr.mxu0 0.0
    %1203 = vmatpush1.msra.mxu0 0.0
    %1204 = vmatprep.subr.mxu0 0.0
    %1205 = vmatpush1.msra.mxu0 0.0
    %1206 = vmatprep.subr.mxu0 0.0
    %1207 = vmatpush1.msra.mxu0 0.0
    %1208 = vmatprep.subr.mxu0 0.0
    %1209 = vmatpush1.msra.mxu0 0.0
    %1210 = vmatprep.subr.mxu0 0.0
    %1211 = vmatpush1.msra.mxu0 0.0
    %1212 = vmatprep.subr.mxu0 0.0
    %1213 = vmatpush1.msra.mxu0 0.0
    %1214 = vmatprep.subr.mxu0 0.0
    %1215 = vmatpush1.msra.mxu0 0.0
    %1216 = vmatprep.subr.mxu0 0.0
    %1217 = vmatpush1.msra.mxu0 %v1178
    %1218 = vmatprep.subr.mxu0 0.0
    %1219 = vmatpush2.msra.mxu0 0.0
    %1220 = vmatprep.subr.mxu0 0.0
    %1221 = vmatpush2.msra.mxu0 0.0
    %1222 = vmatprep.subr.mxu0 0.0
    %1223 = vmatpush2.msra.mxu0 0.0
    %1224 = vmatprep.subr.mxu0 0.0
    %1225 = vmatpush2.msra.mxu0 0.0
    %1226 = vmatprep.subr.mxu0 0.0
    %1227 = vmatpush2.msra.mxu0 0.0
    %1228 = vmatprep.subr.mxu0 0.0
    %1229 = vmatpush2.msra.mxu0 0.0
    %1230 = vmatprep.subr.mxu0 0.0
    %1231 = vmatpush2.msra.mxu0 0.0
    %1232 = vmatprep.subr.mxu0 0.0
    %1233 = vmatpush2.msra.mxu0 0.0
    %1234 = vmatprep.subr.mxu0 0.0
    %1235 = vmatpush2.msra.mxu0 0.0
    %1236 = vmatprep.subr.mxu0 0.0
    %1237 = vmatpush2.msra.mxu0 0.0
    %1238 = vmatprep.subr.mxu0 0.0
    %1239 = vmatpush2.msra.mxu0 0.0
    %1240 = vmatprep.subr.mxu0 0.0
    %1241 = vmatpush2.msra.mxu0 0.0
    %1242 = vmatprep.subr.mxu0 0.0
    %1243 = vmatpush2.msra.mxu0 0.0
    %1244 = vmatprep.subr.mxu0 0.0
    %1245 = vmatpush2.msra.mxu0 0.0
    %1246 = vmatprep.subr.mxu0 0.0
    %1247 = vmatpush2.msra.mxu0 0.0
    %1248 = vmatprep.subr.mxu0 0.0
    %1249 = vmatpush2.msra.mxu0 0.0
    %1250 = vmatprep.mubr.f32.mxu0 0.0
    %1251 = vmatmul.mubr.f32.gmra.mxu0 %v1181
    %v1252 = vpop.f32.mrf.mxu0
    %v1253 = vadd.f32 0.0, %v1252
    %v1254 = vpop.f32.mrf.mxu0
    %1255 = vmatprep.mubr.f32.mxu0 0.0
    %1256 = vmatmul.mubr.f32.gmra.mxu0 %v1184
    %v1257 = vpop.f32.mrf.mxu0
    %v1258 = vadd.f32 0.0, %v1257
    %v1259 = vpop.f32.mrf.mxu0
    %1260 = vdwg.mxu0
    %1262 = vrot.lane.b32.xlu0 %v176, 32
    %v1263 = vpop.permute.xlu0 %1262
    %v1266 = vsel %vm293, %v996, 0
    %v1269 = vsel %vm293, %v1001, 0
    %1271 = vmatprep.subr.mxu0 0.0
    %1272 = vmatpush1.msra.mxu0 0.0
    %1273 = vmatprep.subr.mxu0 0.0
    %1274 = vmatpush1.msra.mxu0 0.0
    %1275 = vmatprep.subr.mxu0 0.0
    %1276 = vmatpush1.msra.mxu0 0.0
    %1277 = vmatprep.subr.mxu0 0.0
    %1278 = vmatpush1.msra.mxu0 0.0
    %1279 = vmatprep.subr.mxu0 0.0
    %1280 = vmatpush1.msra.mxu0 0.0
    %1281 = vmatprep.subr.mxu0 0.0
    %1282 = vmatpush1.msra.mxu0 0.0
    %1283 = vmatprep.subr.mxu0 0.0
    %1284 = vmatpush1.msra.mxu0 0.0
    %1285 = vmatprep.subr.mxu0 0.0
    %1286 = vmatpush1.msra.mxu0 0.0
    %1287 = vmatprep.subr.mxu0 0.0
    %1288 = vmatpush1.msra.mxu0 0.0
    %1289 = vmatprep.subr.mxu0 0.0
    %1290 = vmatpush1.msra.mxu0 0.0
    %1291 = vmatprep.subr.mxu0 0.0
    %1292 = vmatpush1.msra.mxu0 0.0
    %1293 = vmatprep.subr.mxu0 0.0
    %1294 = vmatpush1.msra.mxu0 0.0
    %1295 = vmatprep.subr.mxu0 0.0
    %1296 = vmatpush1.msra.mxu0 0.0
    %1297 = vmatprep.subr.mxu0 0.0
    %1298 = vmatpush1.msra.mxu0 0.0
    %1299 = vmatprep.subr.mxu0 0.0
    %1300 = vmatpush1.msra.mxu0 0.0
    %1301 = vmatprep.subr.mxu0 0.0
    %1302 = vmatpush1.msra.mxu0 %v1263
    %1303 = vmatprep.subr.mxu0 0.0
    %1304 = vmatpush2.msra.mxu0 0.0
    %1305 = vmatprep.subr.mxu0 0.0
    %1306 = vmatpush2.msra.mxu0 0.0
    %1307 = vmatprep.subr.mxu0 0.0
    %1308 = vmatpush2.msra.mxu0 0.0
    %1309 = vmatprep.subr.mxu0 0.0
    %1310 = vmatpush2.msra.mxu0 0.0
    %1311 = vmatprep.subr.mxu0 0.0
    %1312 = vmatpush2.msra.mxu0 0.0
    %1313 = vmatprep.subr.mxu0 0.0
    %1314 = vmatpush2.msra.mxu0 0.0
    %1315 = vmatprep.subr.mxu0 0.0
    %1316 = vmatpush2.msra.mxu0 0.0
    %1317 = vmatprep.subr.mxu0 0.0
    %1318 = vmatpush2.msra.mxu0 0.0
    %1319 = vmatprep.subr.mxu0 0.0
    %1320 = vmatpush2.msra.mxu0 0.0
    %1321 = vmatprep.subr.mxu0 0.0
    %1322 = vmatpush2.msra.mxu0 0.0
    %1323 = vmatprep.subr.mxu0 0.0
    %1324 = vmatpush2.msra.mxu0 0.0
    %1325 = vmatprep.subr.mxu0 0.0
    %1326 = vmatpush2.msra.mxu0 0.0
    %1327 = vmatprep.subr.mxu0 0.0
    %1328 = vmatpush2.msra.mxu0 0.0
    %1329 = vmatprep.subr.mxu0 0.0
    %1330 = vmatpush2.msra.mxu0 0.0
    %1331 = vmatprep.subr.mxu0 0.0
    %1332 = vmatpush2.msra.mxu0 0.0
    %1333 = vmatprep.subr.mxu0 0.0
    %1334 = vmatpush2.msra.mxu0 0.0
    %1335 = vmatprep.mubr.f32.mxu0 0.0
    %1336 = vmatmul.mubr.f32.gmra.mxu0 %v1266
    %v1337 = vpop.f32.mrf.mxu0
    %v1338 = vadd.f32 0.0, %v1337
    %v1339 = vpop.f32.mrf.mxu0
    %1340 = vmatprep.mubr.f32.mxu0 0.0
    %1341 = vmatmul.mubr.f32.gmra.mxu0 %v1269
    %v1342 = vpop.f32.mrf.mxu0
    %v1343 = vadd.f32 0.0, %v1342
    %v1344 = vpop.f32.mrf.mxu0
    %1345 = vdwg.mxu0
    %1347 = vrot.lane.b32.xlu0 %v177, 32
    %v1348 = vpop.permute.xlu0 %1347
    %v1351 = vsel %vm293, %v1083, 0
    %v1354 = vsel %vm293, %v1088, 0
    %1356 = vmatprep.subr.mxu0 0.0
    %1357 = vmatpush1.msra.mxu0 0.0
    %1358 = vmatprep.subr.mxu0 0.0
    %1359 = vmatpush1.msra.mxu0 0.0
    %1360 = vmatprep.subr.mxu0 0.0
    %1361 = vmatpush1.msra.mxu0 0.0
    %1362 = vmatprep.subr.mxu0 0.0
    %1363 = vmatpush1.msra.mxu0 0.0
    %1364 = vmatprep.subr.mxu0 0.0
    %1365 = vmatpush1.msra.mxu0 0.0
    %1366 = vmatprep.subr.mxu0 0.0
    %1367 = vmatpush1.msra.mxu0 0.0
    %1368 = vmatprep.subr.mxu0 0.0
    %1369 = vmatpush1.msra.mxu0 0.0
    %1370 = vmatprep.subr.mxu0 0.0
    %1371 = vmatpush1.msra.mxu0 0.0
    %1372 = vmatprep.subr.mxu0 0.0
    %1373 = vmatpush1.msra.mxu0 0.0
    %1374 = vmatprep.subr.mxu0 0.0
    %1375 = vmatpush1.msra.mxu0 0.0
    %1376 = vmatprep.subr.mxu0 0.0
    %1377 = vmatpush1.msra.mxu0 0.0
    %1378 = vmatprep.subr.mxu0 0.0
    %1379 = vmatpush1.msra.mxu0 0.0
    %1380 = vmatprep.subr.mxu0 0.0
    %1381 = vmatpush1.msra.mxu0 0.0
    %1382 = vmatprep.subr.mxu0 0.0
    %1383 = vmatpush1.msra.mxu0 0.0
    %1384 = vmatprep.subr.mxu0 0.0
    %1385 = vmatpush1.msra.mxu0 0.0
    %1386 = vmatprep.subr.mxu0 0.0
    %1387 = vmatpush1.msra.mxu0 %v1348
    %1388 = vmatprep.subr.mxu0 0.0
    %1389 = vmatpush2.msra.mxu0 0.0
    %1390 = vmatprep.subr.mxu0 0.0
    %1391 = vmatpush2.msra.mxu0 0.0
    %1392 = vmatprep.subr.mxu0 0.0
    %1393 = vmatpush2.msra.mxu0 0.0
    %1394 = vmatprep.subr.mxu0 0.0
    %1395 = vmatpush2.msra.mxu0 0.0
    %1396 = vmatprep.subr.mxu0 0.0
    %1397 = vmatpush2.msra.mxu0 0.0
    %1398 = vmatprep.subr.mxu0 0.0
    %1399 = vmatpush2.msra.mxu0 0.0
    %1400 = vmatprep.subr.mxu0 0.0
    %1401 = vmatpush2.msra.mxu0 0.0
    %1402 = vmatprep.subr.mxu0 0.0
    %1403 = vmatpush2.msra.mxu0 0.0
    %1404 = vmatprep.subr.mxu0 0.0
    %1405 = vmatpush2.msra.mxu0 0.0
    %1406 = vmatprep.subr.mxu0 0.0
    %1407 = vmatpush2.msra.mxu0 0.0
    %1408 = vmatprep.subr.mxu0 0.0
    %1409 = vmatpush2.msra.mxu0 0.0
    %1410 = vmatprep.subr.mxu0 0.0
    %1411 = vmatpush2.msra.mxu0 0.0
    %1412 = vmatprep.subr.mxu0 0.0
    %1413 = vmatpush2.msra.mxu0 0.0
    %1414 = vmatprep.subr.mxu0 0.0
    %1415 = vmatpush2.msra.mxu0 0.0
    %1416 = vmatprep.subr.mxu0 0.0
    %1417 = vmatpush2.msra.mxu0 0.0
    %1418 = vmatprep.subr.mxu0 0.0
    %1419 = vmatpush2.msra.mxu0 0.0
    %1420 = vmatprep.mubr.f32.mxu0 0.0
    %1421 = vmatmul.mubr.f32.gmra.mxu0 %v1351
    %v1422 = vpop.f32.mrf.mxu0
    %v1423 = vadd.f32 0.0, %v1422
    %v1424 = vpop.f32.mrf.mxu0
    %1425 = vmatprep.mubr.f32.mxu0 0.0
    %1426 = vmatmul.mubr.f32.gmra.mxu0 %v1354
    %v1427 = vpop.f32.mrf.mxu0
    %v1428 = vadd.f32 0.0, %v1427
    %v1429 = vpop.f32.mrf.mxu0
    %1430 = vdwg.mxu0
    %v1431 = vsel %vm78, %v1168, 0.0
    %v1432 = vsel %vm78, %v1253, 0.0
    %v1433 = vadd.f32 %v1431, %v1432
    %v1434 = vsel %vm78, %v1338, 0.0
    %v1435 = vadd.f32 %v1433, %v1434
    %v1436 = vsel %vm78, %v1423, 0.0
    %v1437 = vadd.f32 %v1435, %v1436
    %v1438 = vsel %vm78, %v1173, 0.0
    %v1439 = vsel %vm78, %v1258, 0.0
    %v1440 = vadd.f32 %v1438, %v1439
    %v1441 = vsel %vm78, %v1343, 0.0
    %v1442 = vadd.f32 %v1440, %v1441
    %v1443 = vsel %vm78, %v1428, 0.0
    %v1444 = vadd.f32 %v1442, %v1443
    %v1445 = vlaneseq
    %v1446 = vshrl.u32 %v1445, 7
    %v1447 = vsub.s32 0, %v1446
    %v1448 = vrot.slane %v179, %v1447
    %v1449 = vadd.f32 %v1437, %v1448
    %v1450 = vadd.f32 %v1444, %v1448
    %v1451 = vld [vmem:[#allocation7 + $0x44] sm:$0x1]
    %v1452 = vld [vmem:[#allocation7 + $0x47] sm:$0x1]
    %v1453 = vsel %vm78, %v1449, 0.0
    %1454 = vadd.xlane.f32.xlu0 %v1453
    %v1455 = vpop.xlane.xlu0 %1454
    %v1456 = vsel %vm78, %v1450, 0.0
    %1457 = vadd.xlane.f32.xlu0 %v1456
    %v1458 = vpop.xlane.xlu0 %1457
    %v1459 = vrcp.pop 32.0
    %v1460 = vmul.f32 %v1455, %v1459
    %v1461 = vmul.f32 %v1458, %v1459
    %v1462 = vsub.f32 %v1449, %v1460
    %v1463 = vsub.f32 %v1450, %v1461
    %v1464 = vmul.f32 %v1462, %v1462
    %v1465 = vmul.f32 %v1463, %v1463
    %v1466 = vsel %vm78, %v1464, 0.0
    %1467 = vadd.xlane.f32.xlu0 %v1466
    %v1468 = vpop.xlane.xlu0 %1467
    %v1469 = vsel %vm78, %v1465, 0.0
    %1470 = vadd.xlane.f32.xlu0 %v1469
    %v1471 = vpop.xlane.xlu0 %1470
    %v1472 = vmul.f32 %v1468, %v1459
    %v1473 = vmul.f32 %v1471, %v1459
    %v1474 = vadd.f32 %v1472, 1e-05
    %v1475 = vadd.f32 %v1473, 1e-05
    %v1476 = vrsqrt.pop %v1474
    %v1477 = vrsqrt.pop %v1475
    %v1478 = vmul.f32 %v1462, %v1476
    %v1479 = vmul.f32 %v1463, %v1477
    %v1480 = vlaneseq
    %v1481 = vshrl.u32 %v1480, 7
    %v1482 = vsub.s32 0, %v1481
    %v1483 = vrot.slane %v1451, %v1482
    %v1484 = vmul.f32 %v1478, %v1483
    %v1485 = vmul.f32 %v1479, %v1483
    %v1486 = vlaneseq
    %v1487 = vshrl.u32 %v1486, 7
    %v1488 = vsub.s32 0, %v1487
    %v1489 = vrot.slane %v1452, %v1488
    %v1490 = vadd.f32 %v1484, %v1489
    %v1491 = vadd.f32 %v1485, %v1489
    %v1492 = vadd.f32 %v65, %v1490
    %v1493 = vadd.f32 %v66, %v1491
    %v1494 = vld [vmem:[#allocation7] sm:$0xff]
    %v1495 = vld [vmem:[#allocation7 + $0x8] sm:$0xff]
    %v1496 = vld [vmem:[#allocation7 + $0x10] sm:$0xff]
    %v1497 = vld [vmem:[#allocation7 + $0x18] sm:$0xff]
    %v1498 = vld [vmem:[#allocation7 + $0x40] sm:$0x1]
    %v1499 = vlaneseq
    %v1500 = vshrl.u32 %v1499, 7
    %v1501 = vsub.s32 0, %v1500
    %v1502 = vrot.slane %v1498, %v1501
    %v1504 = vsel %vm78, %v1492, 0
    %v1507 = vsel %vm78, %v1493, 0
    %1509 = vmatprep.subr.mxu0 0.0
    %1510 = vmatpush1.msra.mxu0 0.0
    %1511 = vmatprep.subr.mxu0 0.0
    %1512 = vmatpush1.msra.mxu0 0.0
    %1513 = vmatprep.subr.mxu0 0.0
    %1514 = vmatpush1.msra.mxu0 0.0
    %1515 = vmatprep.subr.mxu0 0.0
    %1516 = vmatpush1.msra.mxu0 0.0
    %1517 = vmatprep.subr.mxu0 0.0
    %1518 = vmatpush1.msra.mxu0 0.0
    %1519 = vmatprep.subr.mxu0 0.0
    %1520 = vmatpush1.msra.mxu0 0.0
    %1521 = vmatprep.subr.mxu0 0.0
    %1522 = vmatpush1.msra.mxu0 0.0
    %1523 = vmatprep.subr.mxu0 0.0
    %1524 = vmatpush1.msra.mxu0 0.0
    %1525 = vmatprep.subr.mxu0 0.0
    %1526 = vmatpush1.msra.mxu0 0.0
    %1527 = vmatprep.subr.mxu0 0.0
    %1528 = vmatpush1.msra.mxu0 0.0
    %1529 = vmatprep.subr.mxu0 0.0
    %1530 = vmatpush1.msra.mxu0 0.0
    %1531 = vmatprep.subr.mxu0 0.0
    %1532 = vmatpush1.msra.mxu0 0.0
    %1533 = vmatprep.subr.mxu0 0.0
    %1534 = vmatpush1.msra.mxu0 %v1497
    %1535 = vmatprep.subr.mxu0 0.0
    %1536 = vmatpush1.msra.mxu0 %v1496
    %1537 = vmatprep.subr.mxu0 0.0
    %1538 = vmatpush1.msra.mxu0 %v1495
    %1539 = vmatprep.subr.mxu0 0.0
    %1540 = vmatpush1.msra.mxu0 %v1494
    %1541 = vmatprep.subr.mxu0 0.0
    %1542 = vmatpush2.msra.mxu0 0.0
    %1543 = vmatprep.subr.mxu0 0.0
    %1544 = vmatpush2.msra.mxu0 0.0
    %1545 = vmatprep.subr.mxu0 0.0
    %1546 = vmatpush2.msra.mxu0 0.0
    %1547 = vmatprep.subr.mxu0 0.0
    %1548 = vmatpush2.msra.mxu0 0.0
    %1549 = vmatprep.subr.mxu0 0.0
    %1550 = vmatpush2.msra.mxu0 0.0
    %1551 = vmatprep.subr.mxu0 0.0
    %1552 = vmatpush2.msra.mxu0 0.0
    %1553 = vmatprep.subr.mxu0 0.0
    %1554 = vmatpush2.msra.mxu0 0.0
    %1555 = vmatprep.subr.mxu0 0.0
    %1556 = vmatpush2.msra.mxu0 0.0
    %1557 = vmatprep.subr.mxu0 0.0
    %1558 = vmatpush2.msra.mxu0 0.0
    %1559 = vmatprep.subr.mxu0 0.0
    %1560 = vmatpush2.msra.mxu0 0.0
    %1561 = vmatprep.subr.mxu0 0.0
    %1562 = vmatpush2.msra.mxu0 0.0
    %1563 = vmatprep.subr.mxu0 0.0
    %1564 = vmatpush2.msra.mxu0 0.0
    %1565 = vmatprep.subr.mxu0 0.0
    %1566 = vmatpush2.msra.mxu0 0.0
    %1567 = vmatprep.subr.mxu0 0.0
    %1568 = vmatpush2.msra.mxu0 0.0
    %1569 = vmatprep.subr.mxu0 0.0
    %1570 = vmatpush2.msra.mxu0 0.0
    %1571 = vmatprep.subr.mxu0 0.0
    %1572 = vmatpush2.msra.mxu0 0.0
    %1573 = vmatprep.mubr.f32.mxu0 0.0
    %1574 = vmatmul.mubr.f32.gmra.mxu0 %v1504
    %v1575 = vpop.f32.mrf.mxu0
    %v1576 = vadd.f32 %v1502, %v1575
    %v1577 = vpop.f32.mrf.mxu0
    %1578 = vmatprep.mubr.f32.mxu0 0.0
    %1579 = vmatmul.mubr.f32.gmra.mxu0 %v1507
    %v1580 = vpop.f32.mrf.mxu0
    %v1581 = vadd.f32 %v1502, %v1580
    %v1582 = vpop.f32.mrf.mxu0
    %1583 = vdwg.mxu0
    %1586 = vrot.lane.b32.xlu0 %v1576, 120
    %v1587 = vpop.permute.xlu0 %1586
    %1588 = vrot.lane.b32.xlu0 %v1581, 120
    %v1589 = vpop.permute.xlu0 %1588
    %1590 = vrot.lane.b32.xlu0 %v1576, 112
    %v1591 = vpop.permute.xlu0 %1590
    %1592 = vrot.lane.b32.xlu0 %v1581, 112
    %v1593 = vpop.permute.xlu0 %1592
    %1594 = vrot.lane.b32.xlu0 %v1576, 104
    %v1595 = vpop.permute.xlu0 %1594
    %1596 = vrot.lane.b32.xlu0 %v1581, 104
    %v1597 = vpop.permute.xlu0 %1596
    %v1598 = vsel %vm293, %v152, 0
    %v1600 = vsel %vm293, %v157, 0
    %v1602 = vsel %vm293, %v1576, 0
    %v1604 = vsel %vm293, %v1581, 0
    %1606 = vmatprep.subr.mxu0 0.0
    %1607 = vmatpush1.xpose.msra.mxu0 0.0
    %1608 = vmatprep.subr.mxu0 0.0
    %1609 = vmatpush1.xpose.msra.mxu0 0.0
    %1610 = vmatprep.subr.mxu0 0.0
    %1611 = vmatpush1.xpose.msra.mxu0 0.0
    %1612 = vmatprep.subr.mxu0 0.0
    %1613 = vmatpush1.xpose.msra.mxu0 0.0
    %1614 = vmatprep.subr.mxu0 0.0
    %1615 = vmatpush1.xpose.msra.mxu0 0.0
    %1616 = vmatprep.subr.mxu0 0.0
    %1617 = vmatpush1.xpose.msra.mxu0 0.0
    %1618 = vmatprep.subr.mxu0 0.0
    %1619 = vmatpush1.xpose.msra.mxu0 0.0
    %1620 = vmatprep.subr.mxu0 0.0
    %1621 = vmatpush1.xpose.msra.mxu0 0.0
    %1622 = vmatprep.subr.mxu0 0.0
    %1623 = vmatpush1.xpose.msra.mxu0 0.0
    %1624 = vmatprep.subr.mxu0 0.0
    %1625 = vmatpush1.xpose.msra.mxu0 0.0
    %1626 = vmatprep.subr.mxu0 0.0
    %1627 = vmatpush1.xpose.msra.mxu0 0.0
    %1628 = vmatprep.subr.mxu0 0.0
    %1629 = vmatpush1.xpose.msra.mxu0 0.0
    %1630 = vmatprep.subr.mxu0 0.0
    %1631 = vmatpush1.xpose.msra.mxu0 0.0
    %1632 = vmatprep.subr.mxu0 0.0
    %1633 = vmatpush1.xpose.msra.mxu0 0.0
    %1634 = vmatprep.subr.mxu0 0.0
    %1635 = vmatpush1.xpose.msra.mxu0 %v1604
    %1636 = vmatprep.subr.mxu0 0.0
    %1637 = vmatpush1.xpose.msra.mxu0 %v1602
    %1638 = vmatprep.subr.mxu0 0.0
    %1639 = vmatpush2.xpose.msra.mxu0 0.0
    %1640 = vmatprep.subr.mxu0 0.0
    %1641 = vmatpush2.xpose.msra.mxu0 0.0
    %1642 = vmatprep.subr.mxu0 0.0
    %1643 = vmatpush2.xpose.msra.mxu0 0.0
    %1644 = vmatprep.subr.mxu0 0.0
    %1645 = vmatpush2.xpose.msra.mxu0 0.0
    %1646 = vmatprep.subr.mxu0 0.0
    %1647 = vmatpush2.xpose.msra.mxu0 0.0
    %1648 = vmatprep.subr.mxu0 0.0
    %1649 = vmatpush2.xpose.msra.mxu0 0.0
    %1650 = vmatprep.subr.mxu0 0.0
    %1651 = vmatpush2.xpose.msra.mxu0 0.0
    %1652 = vmatprep.subr.mxu0 0.0
    %1653 = vmatpush2.xpose.msra.mxu0 0.0
    %1654 = vmatprep.subr.mxu0 0.0
    %1655 = vmatpush2.xpose.msra.mxu0 0.0
    %1656 = vmatprep.subr.mxu0 0.0
    %1657 = vmatpush2.xpose.msra.mxu0 0.0
    %1658 = vmatprep.subr.mxu0 0.0
    %1659 = vmatpush2.xpose.msra.mxu0 0.0
    %1660 = vmatprep.subr.mxu0 0.0
    %1661 = vmatpush2.xpose.msra.mxu0 0.0
    %1662 = vmatprep.subr.mxu0 0.0
    %1663 = vmatpush2.xpose.msra.mxu0 0.0
    %1664 = vmatprep.subr.mxu0 0.0
    %1665 = vmatpush2.xpose.msra.mxu0 0.0
    %1666 = vmatprep.subr.mxu0 0.0
    %1667 = vmatpush2.xpose.msra.mxu0 0.0
    %1668 = vmatprep.subr.mxu0 0.0
    %1669 = vmatpush2.xpose.msra.mxu0 0.0
    %1670 = vmatprep.mubr.f32.mxu0 0.0
    %1671 = vmatmul.mubr.f32.gmra.mxu0 %v1598
    %v1672 = vpop.f32.mrf.mxu0
    %v1673 = vadd.f32 0.0, %v1672
    %v1674 = vpop.f32.mrf.mxu0
    %1675 = vmatprep.mubr.f32.mxu0 0.0
    %1676 = vmatmul.mubr.f32.gmra.mxu0 %v1600
    %v1677 = vpop.f32.mrf.mxu0
    %v1678 = vadd.f32 0.0, %v1677
    %v1679 = vpop.f32.mrf.mxu0
    %1680 = vdwg.mxu0
    %v1681 = vsel %vm293, %v163, 0
    %v1683 = vsel %vm293, %v165, 0
    %v1685 = vsel %vm293, %v1587, 0
    %v1687 = vsel %vm293, %v1589, 0
    %1689 = vmatprep.subr.mxu0 0.0
    %1690 = vmatpush1.xpose.msra.mxu0 0.0
    %1691 = vmatprep.subr.mxu0 0.0
    %1692 = vmatpush1.xpose.msra.mxu0 0.0
    %1693 = vmatprep.subr.mxu0 0.0
    %1694 = vmatpush1.xpose.msra.mxu0 0.0
    %1695 = vmatprep.subr.mxu0 0.0
    %1696 = vmatpush1.xpose.msra.mxu0 0.0
    %1697 = vmatprep.subr.mxu0 0.0
    %1698 = vmatpush1.xpose.msra.mxu0 0.0
    %1699 = vmatprep.subr.mxu0 0.0
    %1700 = vmatpush1.xpose.msra.mxu0 0.0
    %1701 = vmatprep.subr.mxu0 0.0
    %1702 = vmatpush1.xpose.msra.mxu0 0.0
    %1703 = vmatprep.subr.mxu0 0.0
    %1704 = vmatpush1.xpose.msra.mxu0 0.0
    %1705 = vmatprep.subr.mxu0 0.0
    %1706 = vmatpush1.xpose.msra.mxu0 0.0
    %1707 = vmatprep.subr.mxu0 0.0
    %1708 = vmatpush1.xpose.msra.mxu0 0.0
    %1709 = vmatprep.subr.mxu0 0.0
    %1710 = vmatpush1.xpose.msra.mxu0 0.0
    %1711 = vmatprep.subr.mxu0 0.0
    %1712 = vmatpush1.xpose.msra.mxu0 0.0
    %1713 = vmatprep.subr.mxu0 0.0
    %1714 = vmatpush1.xpose.msra.mxu0 0.0
    %1715 = vmatprep.subr.mxu0 0.0
    %1716 = vmatpush1.xpose.msra.mxu0 0.0
    %1717 = vmatprep.subr.mxu0 0.0
    %1718 = vmatpush1.xpose.msra.mxu0 %v1687
    %1719 = vmatprep.subr.mxu0 0.0
    %1720 = vmatpush1.xpose.msra.mxu0 %v1685
    %1721 = vmatprep.subr.mxu0 0.0
    %1722 = vmatpush2.xpose.msra.mxu0 0.0
    %1723 = vmatprep.subr.mxu0 0.0
    %1724 = vmatpush2.xpose.msra.mxu0 0.0
    %1725 = vmatprep.subr.mxu0 0.0
    %1726 = vmatpush2.xpose.msra.mxu0 0.0
    %1727 = vmatprep.subr.mxu0 0.0
    %1728 = vmatpush2.xpose.msra.mxu0 0.0
    %1729 = vmatprep.subr.mxu0 0.0
    %1730 = vmatpush2.xpose.msra.mxu0 0.0
    %1731 = vmatprep.subr.mxu0 0.0
    %1732 = vmatpush2.xpose.msra.mxu0 0.0
    %1733 = vmatprep.subr.mxu0 0.0
    %1734 = vmatpush2.xpose.msra.mxu0 0.0
    %1735 = vmatprep.subr.mxu0 0.0
    %1736 = vmatpush2.xpose.msra.mxu0 0.0
    %1737 = vmatprep.subr.mxu0 0.0
    %1738 = vmatpush2.xpose.msra.mxu0 0.0
    %1739 = vmatprep.subr.mxu0 0.0
    %1740 = vmatpush2.xpose.msra.mxu0 0.0
    %1741 = vmatprep.subr.mxu0 0.0
    %1742 = vmatpush2.xpose.msra.mxu0 0.0
    %1743 = vmatprep.subr.mxu0 0.0
    %1744 = vmatpush2.xpose.msra.mxu0 0.0
    %1745 = vmatprep.subr.mxu0 0.0
    %1746 = vmatpush2.xpose.msra.mxu0 0.0
    %1747 = vmatprep.subr.mxu0 0.0
    %1748 = vmatpush2.xpose.msra.mxu0 0.0
    %1749 = vmatprep.subr.mxu0 0.0
    %1750 = vmatpush2.xpose.msra.mxu0 0.0
    %1751 = vmatprep.subr.mxu0 0.0
    %1752 = vmatpush2.xpose.msra.mxu0 0.0
    %1753 = vmatprep.mubr.f32.mxu0 0.0
    %1754 = vmatmul.mubr.f32.gmra.mxu0 %v1681
    %v1755 = vpop.f32.mrf.mxu0
    %v1756 = vadd.f32 0.0, %v1755
    %v1757 = vpop.f32.mrf.mxu0
    %1758 = vmatprep.mubr.f32.mxu0 0.0
    %1759 = vmatmul.mubr.f32.gmra.mxu0 %v1683
    %v1760 = vpop.f32.mrf.mxu0
    %v1761 = vadd.f32 0.0, %v1760
    %v1762 = vpop.f32.mrf.mxu0
    %1763 = vdwg.mxu0
    %v1764 = vsel %vm293, %v167, 0
    %v1766 = vsel %vm293, %v169, 0
    %v1768 = vsel %vm293, %v1591, 0
    %v1770 = vsel %vm293, %v1593, 0
    %1772 = vmatprep.subr.mxu0 0.0
    %1773 = vmatpush1.xpose.msra.mxu0 0.0
    %1774 = vmatprep.subr.mxu0 0.0
    %1775 = vmatpush1.xpose.msra.mxu0 0.0
    %1776 = vmatprep.subr.mxu0 0.0
    %1777 = vmatpush1.xpose.msra.mxu0 0.0
    %1778 = vmatprep.subr.mxu0 0.0
    %1779 = vmatpush1.xpose.msra.mxu0 0.0
    %1780 = vmatprep.subr.mxu0 0.0
    %1781 = vmatpush1.xpose.msra.mxu0 0.0
    %1782 = vmatprep.subr.mxu0 0.0
    %1783 = vmatpush1.xpose.msra.mxu0 0.0
    %1784 = vmatprep.subr.mxu0 0.0
    %1785 = vmatpush1.xpose.msra.mxu0 0.0
    %1786 = vmatprep.subr.mxu0 0.0
    %1787 = vmatpush1.xpose.msra.mxu0 0.0
    %1788 = vmatprep.subr.mxu0 0.0
    %1789 = vmatpush1.xpose.msra.mxu0 0.0
    %1790 = vmatprep.subr.mxu0 0.0
    %1791 = vmatpush1.xpose.msra.mxu0 0.0
    %1792 = vmatprep.subr.mxu0 0.0
    %1793 = vmatpush1.xpose.msra.mxu0 0.0
    %1794 = vmatprep.subr.mxu0 0.0
    %1795 = vmatpush1.xpose.msra.mxu0 0.0
    %1796 = vmatprep.subr.mxu0 0.0
    %1797 = vmatpush1.xpose.msra.mxu0 0.0
    %1798 = vmatprep.subr.mxu0 0.0
    %1799 = vmatpush1.xpose.msra.mxu0 0.0
    %1800 = vmatprep.subr.mxu0 0.0
    %1801 = vmatpush1.xpose.msra.mxu0 %v1770
    %1802 = vmatprep.subr.mxu0 0.0
    %1803 = vmatpush1.xpose.msra.mxu0 %v1768
    %1804 = vmatprep.subr.mxu0 0.0
    %1805 = vmatpush2.xpose.msra.mxu0 0.0
    %1806 = vmatprep.subr.mxu0 0.0
    %1807 = vmatpush2.xpose.msra.mxu0 0.0
    %1808 = vmatprep.subr.mxu0 0.0
    %1809 = vmatpush2.xpose.msra.mxu0 0.0
    %1810 = vmatprep.subr.mxu0 0.0
    %1811 = vmatpush2.xpose.msra.mxu0 0.0
    %1812 = vmatprep.subr.mxu0 0.0
    %1813 = vmatpush2.xpose.msra.mxu0 0.0
    %1814 = vmatprep.subr.mxu0 0.0
    %1815 = vmatpush2.xpose.msra.mxu0 0.0
    %1816 = vmatprep.subr.mxu0 0.0
    %1817 = vmatpush2.xpose.msra.mxu0 0.0
    %1818 = vmatprep.subr.mxu0 0.0
    %1819 = vmatpush2.xpose.msra.mxu0 0.0
    %1820 = vmatprep.subr.mxu0 0.0
    %1821 = vmatpush2.xpose.msra.mxu0 0.0
    %1822 = vmatprep.subr.mxu0 0.0
    %1823 = vmatpush2.xpose.msra.mxu0 0.0
    %1824 = vmatprep.subr.mxu0 0.0
    %1825 = vmatpush2.xpose.msra.mxu0 0.0
    %1826 = vmatprep.subr.mxu0 0.0
    %1827 = vmatpush2.xpose.msra.mxu0 0.0
    %1828 = vmatprep.subr.mxu0 0.0
    %1829 = vmatpush2.xpose.msra.mxu0 0.0
    %1830 = vmatprep.subr.mxu0 0.0
    %1831 = vmatpush2.xpose.msra.mxu0 0.0
    %1832 = vmatprep.subr.mxu0 0.0
    %1833 = vmatpush2.xpose.msra.mxu0 0.0
    %1834 = vmatprep.subr.mxu0 0.0
    %1835 = vmatpush2.xpose.msra.mxu0 0.0
    %1836 = vmatprep.mubr.f32.mxu0 0.0
    %1837 = vmatmul.mubr.f32.gmra.mxu0 %v1764
    %v1838 = vpop.f32.mrf.mxu0
    %v1839 = vadd.f32 0.0, %v1838
    %v1840 = vpop.f32.mrf.mxu0
    %1841 = vmatprep.mubr.f32.mxu0 0.0
    %1842 = vmatmul.mubr.f32.gmra.mxu0 %v1766
    %v1843 = vpop.f32.mrf.mxu0
    %v1844 = vadd.f32 0.0, %v1843
    %v1845 = vpop.f32.mrf.mxu0
    %1846 = vdwg.mxu0
    %v1847 = vsel %vm293, %v171, 0
    %v1849 = vsel %vm293, %v173, 0
    %v1851 = vsel %vm293, %v1595, 0
    %v1853 = vsel %vm293, %v1597, 0
    %1855 = vmatprep.subr.mxu0 0.0
    %1856 = vmatpush1.xpose.msra.mxu0 0.0
    %1857 = vmatprep.subr.mxu0 0.0
    %1858 = vmatpush1.xpose.msra.mxu0 0.0
    %1859 = vmatprep.subr.mxu0 0.0
    %1860 = vmatpush1.xpose.msra.mxu0 0.0
    %1861 = vmatprep.subr.mxu0 0.0
    %1862 = vmatpush1.xpose.msra.mxu0 0.0
    %1863 = vmatprep.subr.mxu0 0.0
    %1864 = vmatpush1.xpose.msra.mxu0 0.0
    %1865 = vmatprep.subr.mxu0 0.0
    %1866 = vmatpush1.xpose.msra.mxu0 0.0
    %1867 = vmatprep.subr.mxu0 0.0
    %1868 = vmatpush1.xpose.msra.mxu0 0.0
    %1869 = vmatprep.subr.mxu0 0.0
    %1870 = vmatpush1.xpose.msra.mxu0 0.0
    %1871 = vmatprep.subr.mxu0 0.0
    %1872 = vmatpush1.xpose.msra.mxu0 0.0
    %1873 = vmatprep.subr.mxu0 0.0
    %1874 = vmatpush1.xpose.msra.mxu0 0.0
    %1875 = vmatprep.subr.mxu0 0.0
    %1876 = vmatpush1.xpose.msra.mxu0 0.0
    %1877 = vmatprep.subr.mxu0 0.0
    %1878 = vmatpush1.xpose.msra.mxu0 0.0
    %1879 = vmatprep.subr.mxu0 0.0
    %1880 = vmatpush1.xpose.msra.mxu0 0.0
    %1881 = vmatprep.subr.mxu0 0.0
    %1882 = vmatpush1.xpose.msra.mxu0 0.0
    %1883 = vmatprep.subr.mxu0 0.0
    %1884 = vmatpush1.xpose.msra.mxu0 %v1853
    %1885 = vmatprep.subr.mxu0 0.0
    %1886 = vmatpush1.xpose.msra.mxu0 %v1851
    %1887 = vmatprep.subr.mxu0 0.0
    %1888 = vmatpush2.xpose.msra.mxu0 0.0
    %1889 = vmatprep.subr.mxu0 0.0
    %1890 = vmatpush2.xpose.msra.mxu0 0.0
    %1891 = vmatprep.subr.mxu0 0.0
    %1892 = vmatpush2.xpose.msra.mxu0 0.0
    %1893 = vmatprep.subr.mxu0 0.0
    %1894 = vmatpush2.xpose.msra.mxu0 0.0
    %1895 = vmatprep.subr.mxu0 0.0
    %1896 = vmatpush2.xpose.msra.mxu0 0.0
    %1897 = vmatprep.subr.mxu0 0.0
    %1898 = vmatpush2.xpose.msra.mxu0 0.0
    %1899 = vmatprep.subr.mxu0 0.0
    %1900 = vmatpush2.xpose.msra.mxu0 0.0
    %1901 = vmatprep.subr.mxu0 0.0
    %1902 = vmatpush2.xpose.msra.mxu0 0.0
    %1903 = vmatprep.subr.mxu0 0.0
    %1904 = vmatpush2.xpose.msra.mxu0 0.0
    %1905 = vmatprep.subr.mxu0 0.0
    %1906 = vmatpush2.xpose.msra.mxu0 0.0
    %1907 = vmatprep.subr.mxu0 0.0
    %1908 = vmatpush2.xpose.msra.mxu0 0.0
    %1909 = vmatprep.subr.mxu0 0.0
    %1910 = vmatpush2.xpose.msra.mxu0 0.0
    %1911 = vmatprep.subr.mxu0 0.0
    %1912 = vmatpush2.xpose.msra.mxu0 0.0
    %1913 = vmatprep.subr.mxu0 0.0
    %1914 = vmatpush2.xpose.msra.mxu0 0.0
    %1915 = vmatprep.subr.mxu0 0.0
    %1916 = vmatpush2.xpose.msra.mxu0 0.0
    %1917 = vmatprep.subr.mxu0 0.0
    %1918 = vmatpush2.xpose.msra.mxu0 0.0
    %1919 = vmatprep.mubr.f32.mxu0 0.0
    %1920 = vmatmul.mubr.f32.gmra.mxu0 %v1847
    %v1921 = vpop.f32.mrf.mxu0
    %v1922 = vadd.f32 0.0, %v1921
    %v1923 = vpop.f32.mrf.mxu0
    %1924 = vmatprep.mubr.f32.mxu0 0.0
    %1925 = vmatmul.mubr.f32.gmra.mxu0 %v1849
    %v1926 = vpop.f32.mrf.mxu0
    %v1927 = vadd.f32 0.0, %v1926
    %v1928 = vpop.f32.mrf.mxu0
    %1929 = vdwg.mxu0
    %v1930 = vmul.f32 %v1673, 0.35355338
    %v1931 = vmul.f32 %v1678, 0.35355338
    %v1932 = vmul.f32 %v1756, 0.35355338
    %v1933 = vmul.f32 %v1761, 0.35355338
    %v1934 = vmul.f32 %v1839, 0.35355338
    %v1935 = vmul.f32 %v1844, 0.35355338
    %v1936 = vmul.f32 %v1922, 0.35355338
    %v1937 = vmul.f32 %v1927, 0.35355338
    %v1938 = vadd.f32 %v1930, %v57
    %v1939 = vadd.f32 %v1931, %v58
    %v1940 = vadd.f32 %v1932, %v57
    %v1941 = vadd.f32 %v1933, %v58
    %v1942 = vadd.f32 %v1934, %v57
    %v1943 = vadd.f32 %v1935, %v58
    %v1944 = vadd.f32 %v1936, %v57
    %v1945 = vadd.f32 %v1937, %v58
    %v1946 = vsel %vm654, %v1938, -inf
    %1947 = vmax.xlane.f32.xlu0 %v1946
    %v1948 = vpop.xlane.xlu0 %1947
    %v1949 = vsel %vm654, %v1939, -inf
    %1950 = vmax.xlane.f32.xlu0 %v1949
    %v1951 = vpop.xlane.xlu0 %1950
    %v1952 = vsel %vm654, %v1940, -inf
    %1953 = vmax.xlane.f32.xlu0 %v1952
    %v1954 = vpop.xlane.xlu0 %1953
    %v1955 = vsel %vm654, %v1941, -inf
    %1956 = vmax.xlane.f32.xlu0 %v1955
    %v1957 = vpop.xlane.xlu0 %1956
    %v1958 = vsel %vm654, %v1942, -inf
    %1959 = vmax.xlane.f32.xlu0 %v1958
    %v1960 = vpop.xlane.xlu0 %1959
    %v1961 = vsel %vm654, %v1943, -inf
    %1962 = vmax.xlane.f32.xlu0 %v1961
    %v1963 = vpop.xlane.xlu0 %1962
    %v1964 = vsel %vm654, %v1944, -inf
    %1965 = vmax.xlane.f32.xlu0 %v1964
    %v1966 = vpop.xlane.xlu0 %1965
    %v1967 = vsel %vm654, %v1945, -inf
    %1968 = vmax.xlane.f32.xlu0 %v1967
    %v1969 = vpop.xlane.xlu0 %1968
    %v1970 = vsub.f32 %v1938, %v1948
    %v1971 = vsub.f32 %v1939, %v1951
    %v1972 = vsub.f32 %v1940, %v1954
    %v1973 = vsub.f32 %v1941, %v1957
    %v1974 = vsub.f32 %v1942, %v1960
    %v1975 = vsub.f32 %v1943, %v1963
    %v1976 = vsub.f32 %v1944, %v1966
    %v1977 = vsub.f32 %v1945, %v1969
    %v1978 = vmul.f32 %v1970, 1.442695
    %v1979 = vpow.pop %v1978
    %v1980 = vmul.f32 %v1971, 1.442695
    %v1981 = vpow.pop %v1980
    %v1982 = vmul.f32 %v1972, 1.442695
    %v1983 = vpow.pop %v1982
    %v1984 = vmul.f32 %v1973, 1.442695
    %v1985 = vpow.pop %v1984
    %v1986 = vmul.f32 %v1974, 1.442695
    %v1987 = vpow.pop %v1986
    %v1988 = vmul.f32 %v1975, 1.442695
    %v1989 = vpow.pop %v1988
    %v1990 = vmul.f32 %v1976, 1.442695
    %v1991 = vpow.pop %v1990
    %v1992 = vmul.f32 %v1977, 1.442695
    %v1993 = vpow.pop %v1992
    %v1994 = vsel %vm654, %v1979, 0.0
    %1995 = vadd.xlane.f32.xlu0 %v1994
    %v1996 = vpop.xlane.xlu0 %1995
    %v1997 = vsel %vm654, %v1981, 0.0
    %1998 = vadd.xlane.f32.xlu0 %v1997
    %v1999 = vpop.xlane.xlu0 %1998
    %v2000 = vsel %vm654, %v1983, 0.0
    %2001 = vadd.xlane.f32.xlu0 %v2000
    %v2002 = vpop.xlane.xlu0 %2001
    %v2003 = vsel %vm654, %v1985, 0.0
    %2004 = vadd.xlane.f32.xlu0 %v2003
    %v2005 = vpop.xlane.xlu0 %2004
    %v2006 = vsel %vm654, %v1987, 0.0
    %2007 = vadd.xlane.f32.xlu0 %v2006
    %v2008 = vpop.xlane.xlu0 %2007
    %v2009 = vsel %vm654, %v1989, 0.0
    %2010 = vadd.xlane.f32.xlu0 %v2009
    %v2011 = vpop.xlane.xlu0 %2010
    %v2012 = vsel %vm654, %v1991, 0.0
    %2013 = vadd.xlane.f32.xlu0 %v2012
    %v2014 = vpop.xlane.xlu0 %2013
    %v2015 = vsel %vm654, %v1993, 0.0
    %2016 = vadd.xlane.f32.xlu0 %v2015
    %v2017 = vpop.xlane.xlu0 %2016
    %v2018 = vrcp.pop %v1996
    %v2019 = vrcp.pop %v1999
    %v2020 = vrcp.pop %v2002
    %v2021 = vrcp.pop %v2005
    %v2022 = vrcp.pop %v2008
    %v2023 = vrcp.pop %v2011
    %v2024 = vrcp.pop %v2014
    %v2025 = vrcp.pop %v2017
    %v2026 = vmul.f32 %v1979, %v2018
    %v2027 = vmul.f32 %v1981, %v2019
    %v2028 = vmul.f32 %v1983, %v2020
    %v2029 = vmul.f32 %v1985, %v2021
    %v2030 = vmul.f32 %v1987, %v2022
    %v2031 = vmul.f32 %v1989, %v2023
    %v2032 = vmul.f32 %v1991, %v2024
    %v2033 = vmul.f32 %v1993, %v2025
    %2034 = vrot.lane.b32.xlu0 %v152, 96
    %v2035 = vpop.permute.xlu0 %2034
    %2036 = vrot.lane.b32.xlu0 %v157, 96
    %v2037 = vpop.permute.xlu0 %2036
    %v2041 = vsel %vm654, %v2026, 0
    %v2044 = vsel %vm654, %v2027, 0
    %2046 = vmatprep.subr.mxu0 0.0
    %2047 = vmatpush1.msra.mxu0 0.0
    %2048 = vmatprep.subr.mxu0 0.0
    %2049 = vmatpush1.msra.mxu0 0.0
    %2050 = vmatprep.subr.mxu0 0.0
    %2051 = vmatpush1.msra.mxu0 0.0
    %2052 = vmatprep.subr.mxu0 0.0
    %2053 = vmatpush1.msra.mxu0 0.0
    %2054 = vmatprep.subr.mxu0 0.0
    %2055 = vmatpush1.msra.mxu0 0.0
    %2056 = vmatprep.subr.mxu0 0.0
    %2057 = vmatpush1.msra.mxu0 0.0
    %2058 = vmatprep.subr.mxu0 0.0
    %2059 = vmatpush1.msra.mxu0 0.0
    %2060 = vmatprep.subr.mxu0 0.0
    %2061 = vmatpush1.msra.mxu0 0.0
    %2062 = vmatprep.subr.mxu0 0.0
    %2063 = vmatpush1.msra.mxu0 0.0
    %2064 = vmatprep.subr.mxu0 0.0
    %2065 = vmatpush1.msra.mxu0 0.0
    %2066 = vmatprep.subr.mxu0 0.0
    %2067 = vmatpush1.msra.mxu0 0.0
    %2068 = vmatprep.subr.mxu0 0.0
    %2069 = vmatpush1.msra.mxu0 0.0
    %2070 = vmatprep.subr.mxu0 0.0
    %2071 = vmatpush1.msra.mxu0 0.0
    %2072 = vmatprep.subr.mxu0 0.0
    %2073 = vmatpush1.msra.mxu0 0.0
    %2074 = vmatprep.subr.mxu0 0.0
    %2075 = vmatpush1.msra.mxu0 %v2037
    %2076 = vmatprep.subr.mxu0 0.0
    %2077 = vmatpush1.msra.mxu0 %v2035
    %2078 = vmatprep.subr.mxu0 0.0
    %2079 = vmatpush2.msra.mxu0 0.0
    %2080 = vmatprep.subr.mxu0 0.0
    %2081 = vmatpush2.msra.mxu0 0.0
    %2082 = vmatprep.subr.mxu0 0.0
    %2083 = vmatpush2.msra.mxu0 0.0
    %2084 = vmatprep.subr.mxu0 0.0
    %2085 = vmatpush2.msra.mxu0 0.0
    %2086 = vmatprep.subr.mxu0 0.0
    %2087 = vmatpush2.msra.mxu0 0.0
    %2088 = vmatprep.subr.mxu0 0.0
    %2089 = vmatpush2.msra.mxu0 0.0
    %2090 = vmatprep.subr.mxu0 0.0
    %2091 = vmatpush2.msra.mxu0 0.0
    %2092 = vmatprep.subr.mxu0 0.0
    %2093 = vmatpush2.msra.mxu0 0.0
    %2094 = vmatprep.subr.mxu0 0.0
    %2095 = vmatpush2.msra.mxu0 0.0
    %2096 = vmatprep.subr.mxu0 0.0
    %2097 = vmatpush2.msra.mxu0 0.0
    %2098 = vmatprep.subr.mxu0 0.0
    %2099 = vmatpush2.msra.mxu0 0.0
    %2100 = vmatprep.subr.mxu0 0.0
    %2101 = vmatpush2.msra.mxu0 0.0
    %2102 = vmatprep.subr.mxu0 0.0
    %2103 = vmatpush2.msra.mxu0 0.0
    %2104 = vmatprep.subr.mxu0 0.0
    %2105 = vmatpush2.msra.mxu0 0.0
    %2106 = vmatprep.subr.mxu0 0.0
    %2107 = vmatpush2.msra.mxu0 0.0
    %2108 = vmatprep.subr.mxu0 0.0
    %2109 = vmatpush2.msra.mxu0 0.0
    %2110 = vmatprep.mubr.f32.mxu0 0.0
    %2111 = vmatmul.mubr.f32.gmra.mxu0 %v2041
    %v2112 = vpop.f32.mrf.mxu0
    %v2113 = vadd.f32 0.0, %v2112
    %v2114 = vpop.f32.mrf.mxu0
    %2115 = vmatprep.mubr.f32.mxu0 0.0
    %2116 = vmatmul.mubr.f32.gmra.mxu0 %v2044
    %v2117 = vpop.f32.mrf.mxu0
    %v2118 = vadd.f32 0.0, %v2117
    %v2119 = vpop.f32.mrf.mxu0
    %2120 = vdwg.mxu0
    %2121 = vrot.lane.b32.xlu0 %v163, 96
    %v2122 = vpop.permute.xlu0 %2121
    %2123 = vrot.lane.b32.xlu0 %v165, 96
    %v2124 = vpop.permute.xlu0 %2123
    %v2128 = vsel %vm654, %v2028, 0
    %v2131 = vsel %vm654, %v2029, 0
    %2133 = vmatprep.subr.mxu0 0.0
    %2134 = vmatpush1.msra.mxu0 0.0
    %2135 = vmatprep.subr.mxu0 0.0
    %2136 = vmatpush1.msra.mxu0 0.0
    %2137 = vmatprep.subr.mxu0 0.0
    %2138 = vmatpush1.msra.mxu0 0.0
    %2139 = vmatprep.subr.mxu0 0.0
    %2140 = vmatpush1.msra.mxu0 0.0
    %2141 = vmatprep.subr.mxu0 0.0
    %2142 = vmatpush1.msra.mxu0 0.0
    %2143 = vmatprep.subr.mxu0 0.0
    %2144 = vmatpush1.msra.mxu0 0.0
    %2145 = vmatprep.subr.mxu0 0.0
    %2146 = vmatpush1.msra.mxu0 0.0
    %2147 = vmatprep.subr.mxu0 0.0
    %2148 = vmatpush1.msra.mxu0 0.0
    %2149 = vmatprep.subr.mxu0 0.0
    %2150 = vmatpush1.msra.mxu0 0.0
    %2151 = vmatprep.subr.mxu0 0.0
    %2152 = vmatpush1.msra.mxu0 0.0
    %2153 = vmatprep.subr.mxu0 0.0
    %2154 = vmatpush1.msra.mxu0 0.0
    %2155 = vmatprep.subr.mxu0 0.0
    %2156 = vmatpush1.msra.mxu0 0.0
    %2157 = vmatprep.subr.mxu0 0.0
    %2158 = vmatpush1.msra.mxu0 0.0
    %2159 = vmatprep.subr.mxu0 0.0
    %2160 = vmatpush1.msra.mxu0 0.0
    %2161 = vmatprep.subr.mxu0 0.0
    %2162 = vmatpush1.msra.mxu0 %v2124
    %2163 = vmatprep.subr.mxu0 0.0
    %2164 = vmatpush1.msra.mxu0 %v2122
    %2165 = vmatprep.subr.mxu0 0.0
    %2166 = vmatpush2.msra.mxu0 0.0
    %2167 = vmatprep.subr.mxu0 0.0
    %2168 = vmatpush2.msra.mxu0 0.0
    %2169 = vmatprep.subr.mxu0 0.0
    %2170 = vmatpush2.msra.mxu0 0.0
    %2171 = vmatprep.subr.mxu0 0.0
    %2172 = vmatpush2.msra.mxu0 0.0
    %2173 = vmatprep.subr.mxu0 0.0
    %2174 = vmatpush2.msra.mxu0 0.0
    %2175 = vmatprep.subr.mxu0 0.0
    %2176 = vmatpush2.msra.mxu0 0.0
    %2177 = vmatprep.subr.mxu0 0.0
    %2178 = vmatpush2.msra.mxu0 0.0
    %2179 = vmatprep.subr.mxu0 0.0
    %2180 = vmatpush2.msra.mxu0 0.0
    %2181 = vmatprep.subr.mxu0 0.0
    %2182 = vmatpush2.msra.mxu0 0.0
    %2183 = vmatprep.subr.mxu0 0.0
    %2184 = vmatpush2.msra.mxu0 0.0
    %2185 = vmatprep.subr.mxu0 0.0
    %2186 = vmatpush2.msra.mxu0 0.0
    %2187 = vmatprep.subr.mxu0 0.0
    %2188 = vmatpush2.msra.mxu0 0.0
    %2189 = vmatprep.subr.mxu0 0.0
    %2190 = vmatpush2.msra.mxu0 0.0
    %2191 = vmatprep.subr.mxu0 0.0
    %2192 = vmatpush2.msra.mxu0 0.0
    %2193 = vmatprep.subr.mxu0 0.0
    %2194 = vmatpush2.msra.mxu0 0.0
    %2195 = vmatprep.subr.mxu0 0.0
    %2196 = vmatpush2.msra.mxu0 0.0
    %2197 = vmatprep.mubr.f32.mxu0 0.0
    %2198 = vmatmul.mubr.f32.gmra.mxu0 %v2128
    %v2199 = vpop.f32.mrf.mxu0
    %v2200 = vadd.f32 0.0, %v2199
    %v2201 = vpop.f32.mrf.mxu0
    %2202 = vmatprep.mubr.f32.mxu0 0.0
    %2203 = vmatmul.mubr.f32.gmra.mxu0 %v2131
    %v2204 = vpop.f32.mrf.mxu0
    %v2205 = vadd.f32 0.0, %v2204
    %v2206 = vpop.f32.mrf.mxu0
    %2207 = vdwg.mxu0
    %2208 = vrot.lane.b32.xlu0 %v167, 96
    %v2209 = vpop.permute.xlu0 %2208
    %2210 = vrot.lane.b32.xlu0 %v169, 96
    %v2211 = vpop.permute.xlu0 %2210
    %v2215 = vsel %vm654, %v2030, 0
    %v2218 = vsel %vm654, %v2031, 0
    %2220 = vmatprep.subr.mxu0 0.0
    %2221 = vmatpush1.msra.mxu0 0.0
    %2222 = vmatprep.subr.mxu0 0.0
    %2223 = vmatpush1.msra.mxu0 0.0
    %2224 = vmatprep.subr.mxu0 0.0
    %2225 = vmatpush1.msra.mxu0 0.0
    %2226 = vmatprep.subr.mxu0 0.0
    %2227 = vmatpush1.msra.mxu0 0.0
    %2228 = vmatprep.subr.mxu0 0.0
    %2229 = vmatpush1.msra.mxu0 0.0
    %2230 = vmatprep.subr.mxu0 0.0
    %2231 = vmatpush1.msra.mxu0 0.0
    %2232 = vmatprep.subr.mxu0 0.0
    %2233 = vmatpush1.msra.mxu0 0.0
    %2234 = vmatprep.subr.mxu0 0.0
    %2235 = vmatpush1.msra.mxu0 0.0
    %2236 = vmatprep.subr.mxu0 0.0
    %2237 = vmatpush1.msra.mxu0 0.0
    %2238 = vmatprep.subr.mxu0 0.0
    %2239 = vmatpush1.msra.mxu0 0.0
    %2240 = vmatprep.subr.mxu0 0.0
    %2241 = vmatpush1.msra.mxu0 0.0
    %2242 = vmatprep.subr.mxu0 0.0
    %2243 = vmatpush1.msra.mxu0 0.0
    %2244 = vmatprep.subr.mxu0 0.0
    %2245 = vmatpush1.msra.mxu0 0.0
    %2246 = vmatprep.subr.mxu0 0.0
    %2247 = vmatpush1.msra.mxu0 0.0
    %2248 = vmatprep.subr.mxu0 0.0
    %2249 = vmatpush1.msra.mxu0 %v2211
    %2250 = vmatprep.subr.mxu0 0.0
    %2251 = vmatpush1.msra.mxu0 %v2209
    %2252 = vmatprep.subr.mxu0 0.0
    %2253 = vmatpush2.msra.mxu0 0.0
    %2254 = vmatprep.subr.mxu0 0.0
    %2255 = vmatpush2.msra.mxu0 0.0
    %2256 = vmatprep.subr.mxu0 0.0
    %2257 = vmatpush2.msra.mxu0 0.0
    %2258 = vmatprep.subr.mxu0 0.0
    %2259 = vmatpush2.msra.mxu0 0.0
    %2260 = vmatprep.subr.mxu0 0.0
    %2261 = vmatpush2.msra.mxu0 0.0
    %2262 = vmatprep.subr.mxu0 0.0
    %2263 = vmatpush2.msra.mxu0 0.0
    %2264 = vmatprep.subr.mxu0 0.0
    %2265 = vmatpush2.msra.mxu0 0.0
    %2266 = vmatprep.subr.mxu0 0.0
    %2267 = vmatpush2.msra.mxu0 0.0
    %2268 = vmatprep.subr.mxu0 0.0
    %2269 = vmatpush2.msra.mxu0 0.0
    %2270 = vmatprep.subr.mxu0 0.0
    %2271 = vmatpush2.msra.mxu0 0.0
    %2272 = vmatprep.subr.mxu0 0.0
    %2273 = vmatpush2.msra.mxu0 0.0
    %2274 = vmatprep.subr.mxu0 0.0
    %2275 = vmatpush2.msra.mxu0 0.0
    %2276 = vmatprep.subr.mxu0 0.0
    %2277 = vmatpush2.msra.mxu0 0.0
    %2278 = vmatprep.subr.mxu0 0.0
    %2279 = vmatpush2.msra.mxu0 0.0
    %2280 = vmatprep.subr.mxu0 0.0
    %2281 = vmatpush2.msra.mxu0 0.0
    %2282 = vmatprep.subr.mxu0 0.0
    %2283 = vmatpush2.msra.mxu0 0.0
    %2284 = vmatprep.mubr.f32.mxu0 0.0
    %2285 = vmatmul.mubr.f32.gmra.mxu0 %v2215
    %v2286 = vpop.f32.mrf.mxu0
    %v2287 = vadd.f32 0.0, %v2286
    %v2288 = vpop.f32.mrf.mxu0
    %2289 = vmatprep.mubr.f32.mxu0 0.0
    %2290 = vmatmul.mubr.f32.gmra.mxu0 %v2218
    %v2291 = vpop.f32.mrf.mxu0
    %v2292 = vadd.f32 0.0, %v2291
    %v2293 = vpop.f32.mrf.mxu0
    %2294 = vdwg.mxu0
    %2295 = vrot.lane.b32.xlu0 %v171, 96
    %v2296 = vpop.permute.xlu0 %2295
    %2297 = vrot.lane.b32.xlu0 %v173, 96
    %v2298 = vpop.permute.xlu0 %2297
    %v2302 = vsel %vm654, %v2032, 0
    %v2305 = vsel %vm654, %v2033, 0
    %2307 = vmatprep.subr.mxu0 0.0
    %2308 = vmatpush1.msra.mxu0 0.0
    %2309 = vmatprep.subr.mxu0 0.0
    %2310 = vmatpush1.msra.mxu0 0.0
    %2311 = vmatprep.subr.mxu0 0.0
    %2312 = vmatpush1.msra.mxu0 0.0
    %2313 = vmatprep.subr.mxu0 0.0
    %2314 = vmatpush1.msra.mxu0 0.0
    %2315 = vmatprep.subr.mxu0 0.0
    %2316 = vmatpush1.msra.mxu0 0.0
    %2317 = vmatprep.subr.mxu0 0.0
    %2318 = vmatpush1.msra.mxu0 0.0
    %2319 = vmatprep.subr.mxu0 0.0
    %2320 = vmatpush1.msra.mxu0 0.0
    %2321 = vmatprep.subr.mxu0 0.0
    %2322 = vmatpush1.msra.mxu0 0.0
    %2323 = vmatprep.subr.mxu0 0.0
    %2324 = vmatpush1.msra.mxu0 0.0
    %2325 = vmatprep.subr.mxu0 0.0
    %2326 = vmatpush1.msra.mxu0 0.0
    %2327 = vmatprep.subr.mxu0 0.0
    %2328 = vmatpush1.msra.mxu0 0.0
    %2329 = vmatprep.subr.mxu0 0.0
    %2330 = vmatpush1.msra.mxu0 0.0
    %2331 = vmatprep.subr.mxu0 0.0
    %2332 = vmatpush1.msra.mxu0 0.0
    %2333 = vmatprep.subr.mxu0 0.0
    %2334 = vmatpush1.msra.mxu0 0.0
    %2335 = vmatprep.subr.mxu0 0.0
    %2336 = vmatpush1.msra.mxu0 %v2298
    %2337 = vmatprep.subr.mxu0 0.0
    %2338 = vmatpush1.msra.mxu0 %v2296
    %2339 = vmatprep.subr.mxu0 0.0
    %2340 = vmatpush2.msra.mxu0 0.0
    %2341 = vmatprep.subr.mxu0 0.0
    %2342 = vmatpush2.msra.mxu0 0.0
    %2343 = vmatprep.subr.mxu0 0.0
    %2344 = vmatpush2.msra.mxu0 0.0
    %2345 = vmatprep.subr.mxu0 0.0
    %2346 = vmatpush2.msra.mxu0 0.0
    %2347 = vmatprep.subr.mxu0 0.0
    %2348 = vmatpush2.msra.mxu0 0.0
    %2349 = vmatprep.subr.mxu0 0.0
    %2350 = vmatpush2.msra.mxu0 0.0
    %2351 = vmatprep.subr.mxu0 0.0
    %2352 = vmatpush2.msra.mxu0 0.0
    %2353 = vmatprep.subr.mxu0 0.0
    %2354 = vmatpush2.msra.mxu0 0.0
    %2355 = vmatprep.subr.mxu0 0.0
    %2356 = vmatpush2.msra.mxu0 0.0
    %2357 = vmatprep.subr.mxu0 0.0
    %2358 = vmatpush2.msra.mxu0 0.0
    %2359 = vmatprep.subr.mxu0 0.0
    %2360 = vmatpush2.msra.mxu0 0.0
    %2361 = vmatprep.subr.mxu0 0.0
    %2362 = vmatpush2.msra.mxu0 0.0
    %2363 = vmatprep.subr.mxu0 0.0
    %2364 = vmatpush2.msra.mxu0 0.0
    %2365 = vmatprep.subr.mxu0 0.0
    %2366 = vmatpush2.msra.mxu0 0.0
    %2367 = vmatprep.subr.mxu0 0.0
    %2368 = vmatpush2.msra.mxu0 0.0
    %2369 = vmatprep.subr.mxu0 0.0
    %2370 = vmatpush2.msra.mxu0 0.0
    %2371 = vmatprep.mubr.f32.mxu0 0.0
    %2372 = vmatmul.mubr.f32.gmra.mxu0 %v2302
    %v2373 = vpop.f32.mrf.mxu0
    %v2374 = vadd.f32 0.0, %v2373
    %v2375 = vpop.f32.mrf.mxu0
    %2376 = vmatprep.mubr.f32.mxu0 0.0
    %2377 = vmatmul.mubr.f32.gmra.mxu0 %v2305
    %v2378 = vpop.f32.mrf.mxu0
    %v2379 = vadd.f32 0.0, %v2378
    %v2380 = vpop.f32.mrf.mxu0
    %2381 = vdwg.mxu0
    %v2383 = vsel %vm293, %v2113, 0
    %v2386 = vsel %vm293, %v2118, 0
    %2388 = vmatprep.subr.mxu0 0.0
    %2389 = vmatpush1.msra.mxu0 0.0
    %2390 = vmatprep.subr.mxu0 0.0
    %2391 = vmatpush1.msra.mxu0 0.0
    %2392 = vmatprep.subr.mxu0 0.0
    %2393 = vmatpush1.msra.mxu0 0.0
    %2394 = vmatprep.subr.mxu0 0.0
    %2395 = vmatpush1.msra.mxu0 0.0
    %2396 = vmatprep.subr.mxu0 0.0
    %2397 = vmatpush1.msra.mxu0 0.0
    %2398 = vmatprep.subr.mxu0 0.0
    %2399 = vmatpush1.msra.mxu0 0.0
    %2400 = vmatprep.subr.mxu0 0.0
    %2401 = vmatpush1.msra.mxu0 0.0
    %2402 = vmatprep.subr.mxu0 0.0
    %2403 = vmatpush1.msra.mxu0 0.0
    %2404 = vmatprep.subr.mxu0 0.0
    %2405 = vmatpush1.msra.mxu0 0.0
    %2406 = vmatprep.subr.mxu0 0.0
    %2407 = vmatpush1.msra.mxu0 0.0
    %2408 = vmatprep.subr.mxu0 0.0
    %2409 = vmatpush1.msra.mxu0 0.0
    %2410 = vmatprep.subr.mxu0 0.0
    %2411 = vmatpush1.msra.mxu0 0.0
    %2412 = vmatprep.subr.mxu0 0.0
    %2413 = vmatpush1.msra.mxu0 0.0
    %2414 = vmatprep.subr.mxu0 0.0
    %2415 = vmatpush1.msra.mxu0 0.0
    %2416 = vmatprep.subr.mxu0 0.0
    %2417 = vmatpush1.msra.mxu0 0.0
    %2418 = vmatprep.subr.mxu0 0.0
    %2419 = vmatpush1.msra.mxu0 %v1093
    %2420 = vmatprep.subr.mxu0 0.0
    %2421 = vmatpush2.msra.mxu0 0.0
    %2422 = vmatprep.subr.mxu0 0.0
    %2423 = vmatpush2.msra.mxu0 0.0
    %2424 = vmatprep.subr.mxu0 0.0
    %2425 = vmatpush2.msra.mxu0 0.0
    %2426 = vmatprep.subr.mxu0 0.0
    %2427 = vmatpush2.msra.mxu0 0.0
    %2428 = vmatprep.subr.mxu0 0.0
    %2429 = vmatpush2.msra.mxu0 0.0
    %2430 = vmatprep.subr.mxu0 0.0
    %2431 = vmatpush2.msra.mxu0 0.0
    %2432 = vmatprep.subr.mxu0 0.0
    %2433 = vmatpush2.msra.mxu0 0.0
    %2434 = vmatprep.subr.mxu0 0.0
    %2435 = vmatpush2.msra.mxu0 0.0
    %2436 = vmatprep.subr.mxu0 0.0
    %2437 = vmatpush2.msra.mxu0 0.0
    %2438 = vmatprep.subr.mxu0 0.0
    %2439 = vmatpush2.msra.mxu0 0.0
    %2440 = vmatprep.subr.mxu0 0.0
    %2441 = vmatpush2.msra.mxu0 0.0
    %2442 = vmatprep.subr.mxu0 0.0
    %2443 = vmatpush2.msra.mxu0 0.0
    %2444 = vmatprep.subr.mxu0 0.0
    %2445 = vmatpush2.msra.mxu0 0.0
    %2446 = vmatprep.subr.mxu0 0.0
    %2447 = vmatpush2.msra.mxu0 0.0
    %2448 = vmatprep.subr.mxu0 0.0
    %2449 = vmatpush2.msra.mxu0 0.0
    %2450 = vmatprep.subr.mxu0 0.0
    %2451 = vmatpush2.msra.mxu0 0.0
    %2452 = vmatprep.mubr.f32.mxu0 0.0
    %2453 = vmatmul.mubr.f32.gmra.mxu0 %v2383
    %v2454 = vpop.f32.mrf.mxu0
    %v2455 = vadd.f32 0.0, %v2454
    %v2456 = vpop.f32.mrf.mxu0
    %2457 = vmatprep.mubr.f32.mxu0 0.0
    %2458 = vmatmul.mubr.f32.gmra.mxu0 %v2386
    %v2459 = vpop.f32.mrf.mxu0
    %v2460 = vadd.f32 0.0, %v2459
    %v2461 = vpop.f32.mrf.mxu0
    %2462 = vdwg.mxu0
    %v2464 = vsel %vm293, %v2200, 0
    %v2467 = vsel %vm293, %v2205, 0
    %2469 = vmatprep.subr.mxu0 0.0
    %2470 = vmatpush1.msra.mxu0 0.0
    %2471 = vmatprep.subr.mxu0 0.0
    %2472 = vmatpush1.msra.mxu0 0.0
    %2473 = vmatprep.subr.mxu0 0.0
    %2474 = vmatpush1.msra.mxu0 0.0
    %2475 = vmatprep.subr.mxu0 0.0
    %2476 = vmatpush1.msra.mxu0 0.0
    %2477 = vmatprep.subr.mxu0 0.0
    %2478 = vmatpush1.msra.mxu0 0.0
    %2479 = vmatprep.subr.mxu0 0.0
    %2480 = vmatpush1.msra.mxu0 0.0
    %2481 = vmatprep.subr.mxu0 0.0
    %2482 = vmatpush1.msra.mxu0 0.0
    %2483 = vmatprep.subr.mxu0 0.0
    %2484 = vmatpush1.msra.mxu0 0.0
    %2485 = vmatprep.subr.mxu0 0.0
    %2486 = vmatpush1.msra.mxu0 0.0
    %2487 = vmatprep.subr.mxu0 0.0
    %2488 = vmatpush1.msra.mxu0 0.0
    %2489 = vmatprep.subr.mxu0 0.0
    %2490 = vmatpush1.msra.mxu0 0.0
    %2491 = vmatprep.subr.mxu0 0.0
    %2492 = vmatpush1.msra.mxu0 0.0
    %2493 = vmatprep.subr.mxu0 0.0
    %2494 = vmatpush1.msra.mxu0 0.0
    %2495 = vmatprep.subr.mxu0 0.0
    %2496 = vmatpush1.msra.mxu0 0.0
    %2497 = vmatprep.subr.mxu0 0.0
    %2498 = vmatpush1.msra.mxu0 0.0
    %2499 = vmatprep.subr.mxu0 0.0
    %2500 = vmatpush1.msra.mxu0 %v1178
    %2501 = vmatprep.subr.mxu0 0.0
    %2502 = vmatpush2.msra.mxu0 0.0
    %2503 = vmatprep.subr.mxu0 0.0
    %2504 = vmatpush2.msra.mxu0 0.0
    %2505 = vmatprep.subr.mxu0 0.0
    %2506 = vmatpush2.msra.mxu0 0.0
    %2507 = vmatprep.subr.mxu0 0.0
    %2508 = vmatpush2.msra.mxu0 0.0
    %2509 = vmatprep.subr.mxu0 0.0
    %2510 = vmatpush2.msra.mxu0 0.0
    %2511 = vmatprep.subr.mxu0 0.0
    %2512 = vmatpush2.msra.mxu0 0.0
    %2513 = vmatprep.subr.mxu0 0.0
    %2514 = vmatpush2.msra.mxu0 0.0
    %2515 = vmatprep.subr.mxu0 0.0
    %2516 = vmatpush2.msra.mxu0 0.0
    %2517 = vmatprep.subr.mxu0 0.0
    %2518 = vmatpush2.msra.mxu0 0.0
    %2519 = vmatprep.subr.mxu0 0.0
    %2520 = vmatpush2.msra.mxu0 0.0
    %2521 = vmatprep.subr.mxu0 0.0
    %2522 = vmatpush2.msra.mxu0 0.0
    %2523 = vmatprep.subr.mxu0 0.0
    %2524 = vmatpush2.msra.mxu0 0.0
    %2525 = vmatprep.subr.mxu0 0.0
    %2526 = vmatpush2.msra.mxu0 0.0
    %2527 = vmatprep.subr.mxu0 0.0
    %2528 = vmatpush2.msra.mxu0 0.0
    %2529 = vmatprep.subr.mxu0 0.0
    %2530 = vmatpush2.msra.mxu0 0.0
    %2531 = vmatprep.subr.mxu0 0.0
    %2532 = vmatpush2.msra.mxu0 0.0
    %2533 = vmatprep.mubr.f32.mxu0 0.0
    %2534 = vmatmul.mubr.f32.gmra.mxu0 %v2464
    %v2535 = vpop.f32.mrf.mxu0
    %v2536 = vadd.f32 0.0, %v2535
    %v2537 = vpop.f32.mrf.mxu0
    %2538 = vmatprep.mubr.f32.mxu0 0.0
    %2539 = vmatmul.mubr.f32.gmra.mxu0 %v2467
    %v2540 = vpop.f32.mrf.mxu0
    %v2541 = vadd.f32 0.0, %v2540
    %v2542 = vpop.f32.mrf.mxu0
    %2543 = vdwg.mxu0
    %v2545 = vsel %vm293, %v2287, 0
    %v2548 = vsel %vm293, %v2292, 0
    %2550 = vmatprep.subr.mxu0 0.0
    %2551 = vmatpush1.msra.mxu0 0.0
    %2552 = vmatprep.subr.mxu0 0.0
    %2553 = vmatpush1.msra.mxu0 0.0
    %2554 = vmatprep.subr.mxu0 0.0
    %2555 = vmatpush1.msra.mxu0 0.0
    %2556 = vmatprep.subr.mxu0 0.0
    %2557 = vmatpush1.msra.mxu0 0.0
    %2558 = vmatprep.subr.mxu0 0.0
    %2559 = vmatpush1.msra.mxu0 0.0
    %2560 = vmatprep.subr.mxu0 0.0
    %2561 = vmatpush1.msra.mxu0 0.0
    %2562 = vmatprep.subr.mxu0 0.0
    %2563 = vmatpush1.msra.mxu0 0.0
    %2564 = vmatprep.subr.mxu0 0.0
    %2565 = vmatpush1.msra.mxu0 0.0
    %2566 = vmatprep.subr.mxu0 0.0
    %2567 = vmatpush1.msra.mxu0 0.0
    %2568 = vmatprep.subr.mxu0 0.0
    %2569 = vmatpush1.msra.mxu0 0.0
    %2570 = vmatprep.subr.mxu0 0.0
    %2571 = vmatpush1.msra.mxu0 0.0
    %2572 = vmatprep.subr.mxu0 0.0
    %2573 = vmatpush1.msra.mxu0 0.0
    %2574 = vmatprep.subr.mxu0 0.0
    %2575 = vmatpush1.msra.mxu0 0.0
    %2576 = vmatprep.subr.mxu0 0.0
    %2577 = vmatpush1.msra.mxu0 0.0
    %2578 = vmatprep.subr.mxu0 0.0
    %2579 = vmatpush1.msra.mxu0 0.0
    %2580 = vmatprep.subr.mxu0 0.0
    %2581 = vmatpush1.msra.mxu0 %v1263
    %2582 = vmatprep.subr.mxu0 0.0
    %2583 = vmatpush2.msra.mxu0 0.0
    %2584 = vmatprep.subr.mxu0 0.0
    %2585 = vmatpush2.msra.mxu0 0.0
    %2586 = vmatprep.subr.mxu0 0.0
    %2587 = vmatpush2.msra.mxu0 0.0
    %2588 = vmatprep.subr.mxu0 0.0
    %2589 = vmatpush2.msra.mxu0 0.0
    %2590 = vmatprep.subr.mxu0 0.0
    %2591 = vmatpush2.msra.mxu0 0.0
    %2592 = vmatprep.subr.mxu0 0.0
    %2593 = vmatpush2.msra.mxu0 0.0
    %2594 = vmatprep.subr.mxu0 0.0
    %2595 = vmatpush2.msra.mxu0 0.0
    %2596 = vmatprep.subr.mxu0 0.0
    %2597 = vmatpush2.msra.mxu0 0.0
    %2598 = vmatprep.subr.mxu0 0.0
    %2599 = vmatpush2.msra.mxu0 0.0
    %2600 = vmatprep.subr.mxu0 0.0
    %2601 = vmatpush2.msra.mxu0 0.0
    %2602 = vmatprep.subr.mxu0 0.0
    %2603 = vmatpush2.msra.mxu0 0.0
    %2604 = vmatprep.subr.mxu0 0.0
    %2605 = vmatpush2.msra.mxu0 0.0
    %2606 = vmatprep.subr.mxu0 0.0
    %2607 = vmatpush2.msra.mxu0 0.0
    %2608 = vmatprep.subr.mxu0 0.0
    %2609 = vmatpush2.msra.mxu0 0.0
    %2610 = vmatprep.subr.mxu0 0.0
    %2611 = vmatpush2.msra.mxu0 0.0
    %2612 = vmatprep.subr.mxu0 0.0
    %2613 = vmatpush2.msra.mxu0 0.0
    %2614 = vmatprep.mubr.f32.mxu0 0.0
    %2615 = vmatmul.mubr.f32.gmra.mxu0 %v2545
    %v2616 = vpop.f32.mrf.mxu0
    %v2617 = vadd.f32 0.0, %v2616
    %v2618 = vpop.f32.mrf.mxu0
    %2619 = vmatprep.mubr.f32.mxu0 0.0
    %2620 = vmatmul.mubr.f32.gmra.mxu0 %v2548
    %v2621 = vpop.f32.mrf.mxu0
    %v2622 = vadd.f32 0.0, %v2621
    %v2623 = vpop.f32.mrf.mxu0
    %2624 = vdwg.mxu0
    %v2626 = vsel %vm293, %v2374, 0
    %v2629 = vsel %vm293, %v2379, 0
    %2631 = vmatprep.subr.mxu0 0.0
    %2632 = vmatpush1.msra.mxu0 0.0
    %2633 = vmatprep.subr.mxu0 0.0
    %2634 = vmatpush1.msra.mxu0 0.0
    %2635 = vmatprep.subr.mxu0 0.0
    %2636 = vmatpush1.msra.mxu0 0.0
    %2637 = vmatprep.subr.mxu0 0.0
    %2638 = vmatpush1.msra.mxu0 0.0
    %2639 = vmatprep.subr.mxu0 0.0
    %2640 = vmatpush1.msra.mxu0 0.0
    %2641 = vmatprep.subr.mxu0 0.0
    %2642 = vmatpush1.msra.mxu0 0.0
    %2643 = vmatprep.subr.mxu0 0.0
    %2644 = vmatpush1.msra.mxu0 0.0
    %2645 = vmatprep.subr.mxu0 0.0
    %2646 = vmatpush1.msra.mxu0 0.0
    %2647 = vmatprep.subr.mxu0 0.0
    %2648 = vmatpush1.msra.mxu0 0.0
    %2649 = vmatprep.subr.mxu0 0.0
    %2650 = vmatpush1.msra.mxu0 0.0
    %2651 = vmatprep.subr.mxu0 0.0
    %2652 = vmatpush1.msra.mxu0 0.0
    %2653 = vmatprep.subr.mxu0 0.0
    %2654 = vmatpush1.msra.mxu0 0.0
    %2655 = vmatprep.subr.mxu0 0.0
    %2656 = vmatpush1.msra.mxu0 0.0
    %2657 = vmatprep.subr.mxu0 0.0
    %2658 = vmatpush1.msra.mxu0 0.0
    %2659 = vmatprep.subr.mxu0 0.0
    %2660 = vmatpush1.msra.mxu0 0.0
    %2661 = vmatprep.subr.mxu0 0.0
    %2662 = vmatpush1.msra.mxu0 %v1348
    %2663 = vmatprep.subr.mxu0 0.0
    %2664 = vmatpush2.msra.mxu0 0.0
    %2665 = vmatprep.subr.mxu0 0.0
    %2666 = vmatpush2.msra.mxu0 0.0
    %2667 = vmatprep.subr.mxu0 0.0
    %2668 = vmatpush2.msra.mxu0 0.0
    %2669 = vmatprep.subr.mxu0 0.0
    %2670 = vmatpush2.msra.mxu0 0.0
    %2671 = vmatprep.subr.mxu0 0.0
    %2672 = vmatpush2.msra.mxu0 0.0
    %2673 = vmatprep.subr.mxu0 0.0
    %2674 = vmatpush2.msra.mxu0 0.0
    %2675 = vmatprep.subr.mxu0 0.0
    %2676 = vmatpush2.msra.mxu0 0.0
    %2677 = vmatprep.subr.mxu0 0.0
    %2678 = vmatpush2.msra.mxu0 0.0
    %2679 = vmatprep.subr.mxu0 0.0
    %2680 = vmatpush2.msra.mxu0 0.0
    %2681 = vmatprep.subr.mxu0 0.0
    %2682 = vmatpush2.msra.mxu0 0.0
    %2683 = vmatprep.subr.mxu0 0.0
    %2684 = vmatpush2.msra.mxu0 0.0
    %2685 = vmatprep.subr.mxu0 0.0
    %2686 = vmatpush2.msra.mxu0 0.0
    %2687 = vmatprep.subr.mxu0 0.0
    %2688 = vmatpush2.msra.mxu0 0.0
    %2689 = vmatprep.subr.mxu0 0.0
    %2690 = vmatpush2.msra.mxu0 0.0
    %2691 = vmatprep.subr.mxu0 0.0
    %2692 = vmatpush2.msra.mxu0 0.0
    %2693 = vmatprep.subr.mxu0 0.0
    %2694 = vmatpush2.msra.mxu0 0.0
    %2695 = vmatprep.mubr.f32.mxu0 0.0
    %2696 = vmatmul.mubr.f32.gmra.mxu0 %v2626
    %v2697 = vpop.f32.mrf.mxu0
    %v2698 = vadd.f32 0.0, %v2697
    %v2699 = vpop.f32.mrf.mxu0
    %2700 = vmatprep.mubr.f32.mxu0 0.0
    %2701 = vmatmul.mubr.f32.gmra.mxu0 %v2629
    %v2702 = vpop.f32.mrf.mxu0
    %v2703 = vadd.f32 0.0, %v2702
    %v2704 = vpop.f32.mrf.mxu0
    %2705 = vdwg.mxu0
    %v2706 = vsel %vm78, %v2455, 0.0
    %v2707 = vsel %vm78, %v2536, 0.0
    %v2708 = vadd.f32 %v2706, %v2707
    %v2709 = vsel %vm78, %v2617, 0.0
    %v2710 = vadd.f32 %v2708, %v2709
    %v2711 = vsel %vm78, %v2698, 0.0
    %v2712 = vadd.f32 %v2710, %v2711
    %v2713 = vsel %vm78, %v2460, 0.0
    %v2714 = vsel %vm78, %v2541, 0.0
    %v2715 = vadd.f32 %v2713, %v2714
    %v2716 = vsel %vm78, %v2622, 0.0
    %v2717 = vadd.f32 %v2715, %v2716
    %v2718 = vsel %vm78, %v2703, 0.0
    %v2719 = vadd.f32 %v2717, %v2718
    %v2720 = vadd.f32 %v2712, %v1448
    %v2721 = vadd.f32 %v2719, %v1448
    %v2722 = vld [vmem:[#allocation7 + $0x45] sm:$0x1]
    %v2723 = vld [vmem:[#allocation7 + $0x48] sm:$0x1]
    %v2724 = vsel %vm78, %v2720, 0.0
    %2725 = vadd.xlane.f32.xlu0 %v2724
    %v2726 = vpop.xlane.xlu0 %2725
    %v2727 = vsel %vm78, %v2721, 0.0
    %2728 = vadd.xlane.f32.xlu0 %v2727
    %v2729 = vpop.xlane.xlu0 %2728
    %v2730 = vmul.f32 %v2726, %v1459
    %v2731 = vmul.f32 %v2729, %v1459
    %v2732 = vsub.f32 %v2720, %v2730
    %v2733 = vsub.f32 %v2721, %v2731
    %v2734 = vmul.f32 %v2732, %v2732
    %v2735 = vmul.f32 %v2733, %v2733
    %v2736 = vsel %vm78, %v2734, 0.0
    %2737 = vadd.xlane.f32.xlu0 %v2736
    %v2738 = vpop.xlane.xlu0 %2737
    %v2739 = vsel %vm78, %v2735, 0.0
    %2740 = vadd.xlane.f32.xlu0 %v2739
    %v2741 = vpop.xlane.xlu0 %2740
    %v2742 = vmul.f32 %v2738, %v1459
    %v2743 = vmul.f32 %v2741, %v1459
    %v2744 = vadd.f32 %v2742, 1e-05
    %v2745 = vadd.f32 %v2743, 1e-05
    %v2746 = vrsqrt.pop %v2744
    %v2747 = vrsqrt.pop %v2745
    %v2748 = vmul.f32 %v2732, %v2746
    %v2749 = vmul.f32 %v2733, %v2747
    %v2750 = vlaneseq
    %v2751 = vshrl.u32 %v2750, 7
    %v2752 = vsub.s32 0, %v2751
    %v2753 = vrot.slane %v2722, %v2752
    %v2754 = vmul.f32 %v2748, %v2753
    %v2755 = vmul.f32 %v2749, %v2753
    %v2756 = vlaneseq
    %v2757 = vshrl.u32 %v2756, 7
    %v2758 = vsub.s32 0, %v2757
    %v2759 = vrot.slane %v2723, %v2758
    %v2760 = vadd.f32 %v2754, %v2759
    %v2761 = vadd.f32 %v2755, %v2759
    %v2762 = vadd.f32 %v1492, %v2760
    %v2763 = vadd.f32 %v1493, %v2761
    %v2764 = vlaneseq
    %v2765 = vshrl.u32 %v2764, 7
    %v2766 = vsub.s32 0, %v2765
    %v2767 = vrot.slane %v184, %v2766
    %v2769 = vsel %vm78, %v2762, 0
    %v2772 = vsel %vm78, %v2763, 0
    %2774 = vmatprep.subr.mxu0 0.0
    %2775 = vmatpush1.msra.mxu0 0.0
    %2776 = vmatprep.subr.mxu0 0.0
    %2777 = vmatpush1.msra.mxu0 0.0
    %2778 = vmatprep.subr.mxu0 0.0
    %2779 = vmatpush1.msra.mxu0 0.0
    %2780 = vmatprep.subr.mxu0 0.0
    %2781 = vmatpush1.msra.mxu0 0.0
    %2782 = vmatprep.subr.mxu0 0.0
    %2783 = vmatpush1.msra.mxu0 0.0
    %2784 = vmatprep.subr.mxu0 0.0
    %2785 = vmatpush1.msra.mxu0 0.0
    %2786 = vmatprep.subr.mxu0 0.0
    %2787 = vmatpush1.msra.mxu0 0.0
    %2788 = vmatprep.subr.mxu0 0.0
    %2789 = vmatpush1.msra.mxu0 0.0
    %2790 = vmatprep.subr.mxu0 0.0
    %2791 = vmatpush1.msra.mxu0 0.0
    %2792 = vmatprep.subr.mxu0 0.0
    %2793 = vmatpush1.msra.mxu0 0.0
    %2794 = vmatprep.subr.mxu0 0.0
    %2795 = vmatpush1.msra.mxu0 0.0
    %2796 = vmatprep.subr.mxu0 0.0
    %2797 = vmatpush1.msra.mxu0 0.0
    %2798 = vmatprep.subr.mxu0 0.0
    %2799 = vmatpush1.msra.mxu0 %v183
    %2800 = vmatprep.subr.mxu0 0.0
    %2801 = vmatpush1.msra.mxu0 %v182
    %2802 = vmatprep.subr.mxu0 0.0
    %2803 = vmatpush1.msra.mxu0 %v181
    %2804 = vmatprep.subr.mxu0 0.0
    %2805 = vmatpush1.msra.mxu0 %v180
    %2806 = vmatprep.subr.mxu0 0.0
    %2807 = vmatpush2.msra.mxu0 0.0
    %2808 = vmatprep.subr.mxu0 0.0
    %2809 = vmatpush2.msra.mxu0 0.0
    %2810 = vmatprep.subr.mxu0 0.0
    %2811 = vmatpush2.msra.mxu0 0.0
    %2812 = vmatprep.subr.mxu0 0.0
    %2813 = vmatpush2.msra.mxu0 0.0
    %2814 = vmatprep.subr.mxu0 0.0
    %2815 = vmatpush2.msra.mxu0 0.0
    %2816 = vmatprep.subr.mxu0 0.0
    %2817 = vmatpush2.msra.mxu0 0.0
    %2818 = vmatprep.subr.mxu0 0.0
    %2819 = vmatpush2.msra.mxu0 0.0
    %2820 = vmatprep.subr.mxu0 0.0
    %2821 = vmatpush2.msra.mxu0 0.0
    %2822 = vmatprep.subr.mxu0 0.0
    %2823 = vmatpush2.msra.mxu0 0.0
    %2824 = vmatprep.subr.mxu0 0.0
    %2825 = vmatpush2.msra.mxu0 0.0
    %2826 = vmatprep.subr.mxu0 0.0
    %2827 = vmatpush2.msra.mxu0 0.0
    %2828 = vmatprep.subr.mxu0 0.0
    %2829 = vmatpush2.msra.mxu0 0.0
    %2830 = vmatprep.subr.mxu0 0.0
    %2831 = vmatpush2.msra.mxu0 0.0
    %2832 = vmatprep.subr.mxu0 0.0
    %2833 = vmatpush2.msra.mxu0 0.0
    %2834 = vmatprep.subr.mxu0 0.0
    %2835 = vmatpush2.msra.mxu0 0.0
    %2836 = vmatprep.subr.mxu0 0.0
    %2837 = vmatpush2.msra.mxu0 0.0
    %2838 = vmatprep.mubr.f32.mxu0 0.0
    %2839 = vmatmul.mubr.f32.gmra.mxu0 %v2769
    %v2840 = vpop.f32.mrf.mxu0
    %v2841 = vadd.f32 %v2767, %v2840
    %v2842 = vpop.f32.mrf.mxu0
    %2843 = vmatprep.mubr.f32.mxu0 0.0
    %2844 = vmatmul.mubr.f32.gmra.mxu0 %v2772
    %v2845 = vpop.f32.mrf.mxu0
    %v2846 = vadd.f32 %v2767, %v2845
    %v2847 = vpop.f32.mrf.mxu0
    %2848 = vdwg.mxu0
    %vm2849 = vcmp.ge.f32.partialorder %v2841, 0.0
    %vm2850 = vcmp.ge.f32.partialorder %v2846, 0.0
    %v2851 = vmul.f32 %v2841, 0.1
    %v2852 = vmul.f32 %v2846, 0.1
    %v2853 = vsel %vm2849, %v2841, %v2851
    %v2854 = vsel %vm2850, %v2846, %v2852
    %v2855 = vlaneseq
    %v2856 = vshrl.u32 %v2855, 7
    %v2857 = vsub.s32 0, %v2856
    %v2858 = vrot.slane %v189, %v2857
    %2867 = vrot.lane.b32.xlu0 %v180, 32
    %v2868 = vpop.permute.xlu0 %2867
    %2869 = vrot.lane.b32.xlu0 %v181, 32
    %v2870 = vpop.permute.xlu0 %2869
    %2871 = vrot.lane.b32.xlu0 %v182, 32
    %v2872 = vpop.permute.xlu0 %2871
    %2873 = vrot.lane.b32.xlu0 %v183, 32
    %v2874 = vpop.permute.xlu0 %2873
    %2875 = vrot.lane.b32.xlu0 %v185, 32
    %v2876 = vpop.permute.xlu0 %2875
    %2877 = vrot.lane.b32.xlu0 %v186, 32
    %v2878 = vpop.permute.xlu0 %2877
    %2879 = vrot.lane.b32.xlu0 %v187, 32
    %v2880 = vpop.permute.xlu0 %2879
    %2881 = vrot.lane.b32.xlu0 %v188, 32
    %v2882 = vpop.permute.xlu0 %2881
    %vm2891 = vcmask 523264
    %v2893 = vsel %vm2891, %v2853, 0
    %v2896 = vsel %vm2891, %v2854, 0
    %2898 = vmatprep.subr.mxu0 0.0
    %2899 = vmatpush1.msra.mxu0 0.0
    %2900 = vmatprep.subr.mxu0 0.0
    %2901 = vmatpush1.msra.mxu0 0.0
    %2902 = vmatprep.subr.mxu0 0.0
    %2903 = vmatpush1.msra.mxu0 0.0
    %2904 = vmatprep.subr.mxu0 0.0
    %2905 = vmatpush1.msra.mxu0 0.0
    %2906 = vmatprep.subr.mxu0 0.0
    %2907 = vmatpush1.msra.mxu0 0.0
    %2908 = vmatprep.subr.mxu0 0.0
    %2909 = vmatpush1.msra.mxu0 0.0
    %2910 = vmatprep.subr.mxu0 0.0
    %2911 = vmatpush1.msra.mxu0 0.0
    %2912 = vmatprep.subr.mxu0 0.0
    %2913 = vmatpush1.msra.mxu0 0.0
    %2914 = vmatprep.subr.mxu0 0.0
    %2915 = vmatpush1.msra.mxu0 %v2882
    %2916 = vmatprep.subr.mxu0 0.0
    %2917 = vmatpush1.msra.mxu0 %v2880
    %2918 = vmatprep.subr.mxu0 0.0
    %2919 = vmatpush1.msra.mxu0 %v2878
    %2920 = vmatprep.subr.mxu0 0.0
    %2921 = vmatpush1.msra.mxu0 %v2876
    %2922 = vmatprep.subr.mxu0 0.0
    %2923 = vmatpush1.msra.mxu0 %v2874
    %2924 = vmatprep.subr.mxu0 0.0
    %2925 = vmatpush1.msra.mxu0 %v2872
    %2926 = vmatprep.subr.mxu0 0.0
    %2927 = vmatpush1.msra.mxu0 %v2870
    %2928 = vmatprep.subr.mxu0 0.0
    %2929 = vmatpush1.msra.mxu0 %v2868
    %2930 = vmatprep.subr.mxu0 0.0
    %2931 = vmatpush2.msra.mxu0 0.0
    %2932 = vmatprep.subr.mxu0 0.0
    %2933 = vmatpush2.msra.mxu0 0.0
    %2934 = vmatprep.subr.mxu0 0.0
    %2935 = vmatpush2.msra.mxu0 0.0
    %2936 = vmatprep.subr.mxu0 0.0
    %2937 = vmatpush2.msra.mxu0 0.0
    %2938 = vmatprep.subr.mxu0 0.0
    %2939 = vmatpush2.msra.mxu0 0.0
    %2940 = vmatprep.subr.mxu0 0.0
    %2941 = vmatpush2.msra.mxu0 0.0
    %2942 = vmatprep.subr.mxu0 0.0
    %2943 = vmatpush2.msra.mxu0 0.0
    %2944 = vmatprep.subr.mxu0 0.0
    %2945 = vmatpush2.msra.mxu0 0.0
    %2946 = vmatprep.subr.mxu0 0.0
    %2947 = vmatpush2.msra.mxu0 0.0
    %2948 = vmatprep.subr.mxu0 0.0
    %2949 = vmatpush2.msra.mxu0 0.0
    %2950 = vmatprep.subr.mxu0 0.0
    %2951 = vmatpush2.msra.mxu0 0.0
    %2952 = vmatprep.subr.mxu0 0.0
    %2953 = vmatpush2.msra.mxu0 0.0
    %2954 = vmatprep.subr.mxu0 0.0
    %2955 = vmatpush2.msra.mxu0 0.0
    %2956 = vmatprep.subr.mxu0 0.0
    %2957 = vmatpush2.msra.mxu0 0.0
    %2958 = vmatprep.subr.mxu0 0.0
    %2959 = vmatpush2.msra.mxu0 0.0
    %2960 = vmatprep.subr.mxu0 0.0
    %2961 = vmatpush2.msra.mxu0 0.0
    %2962 = vmatprep.mubr.f32.mxu0 0.0
    %2963 = vmatmul.mubr.f32.gmra.mxu0 %v2893
    %v2964 = vpop.f32.mrf.mxu0
    %v2965 = vadd.f32 %v2858, %v2964
    %v2966 = vpop.f32.mrf.mxu0
    %2967 = vmatprep.mubr.f32.mxu0 0.0
    %2968 = vmatmul.mubr.f32.gmra.mxu0 %v2896
    %v2969 = vpop.f32.mrf.mxu0
    %v2970 = vadd.f32 %v2858, %v2969
    %v2971 = vpop.f32.mrf.mxu0
    %2972 = vdwg.mxu0
    %v2973 = vld [vmem:[#allocation7 + $0x46] sm:$0x1]
    %v2974 = vld [vmem:[#allocation7 + $0x49] sm:$0x1]
    %v2975 = vsel %vm78, %v2965, 0.0
    %2976 = vadd.xlane.f32.xlu0 %v2975
    %v2977 = vpop.xlane.xlu0 %2976
    %v2978 = vsel %vm78, %v2970, 0.0
    %2979 = vadd.xlane.f32.xlu0 %v2978
    %v2980 = vpop.xlane.xlu0 %2979
    %v2981 = vmul.f32 %v2977, %v1459
    %v2982 = vmul.f32 %v2980, %v1459
    %v2983 = vsub.f32 %v2965, %v2981
    %v2984 = vsub.f32 %v2970, %v2982
    %v2985 = vmul.f32 %v2983, %v2983
    %v2986 = vmul.f32 %v2984, %v2984
    %v2987 = vsel %vm78, %v2985, 0.0
    %2988 = vadd.xlane.f32.xlu0 %v2987
    %v2989 = vpop.xlane.xlu0 %2988
    %v2990 = vsel %vm78, %v2986, 0.0
    %2991 = vadd.xlane.f32.xlu0 %v2990
    %v2992 = vpop.xlane.xlu0 %2991
    %v2993 = vmul.f32 %v2989, %v1459
    %v2994 = vmul.f32 %v2992, %v1459
    %v2995 = vadd.f32 %v2993, 1e-05
    %v2996 = vadd.f32 %v2994, 1e-05
    %v2997 = vrsqrt.pop %v2995
    %v2998 = vrsqrt.pop %v2996
    %v2999 = vmul.f32 %v2983, %v2997
    %v3000 = vmul.f32 %v2984, %v2998
    %v3001 = vlaneseq
    %v3002 = vshrl.u32 %v3001, 7
    %v3003 = vsub.s32 0, %v3002
    %v3004 = vrot.slane %v2973, %v3003
    %v3005 = vmul.f32 %v2999, %v3004
    %v3006 = vmul.f32 %v3000, %v3004
    %v3007 = vlaneseq
    %v3008 = vshrl.u32 %v3007, 7
    %v3009 = vsub.s32 0, %v3008
    %v3010 = vrot.slane %v2974, %v3009
    %v3011 = vadd.f32 %v3005, %v3010
    %v3012 = vadd.f32 %v3006, %v3010
    %v3013 = vadd.f32 %v2965, %v3011
    %v3014 = vadd.f32 %v2970, %v3012
    %v3015 = vld [vmem:[#allocation7 + $0x60] sm:$0xff]
    %v3016 = vld [vmem:[#allocation7 + $0x68] sm:$0xff]
    %v3017 = vld [vmem:[#allocation7 + $0x70] sm:$0xff]
    %v3018 = vld [vmem:[#allocation7 + $0x78] sm:$0xff]
    %v3019 = vld [vmem:[#allocation7 + $0xa0] sm:$0x1]
    %v3020 = vld [vmem:[#allocation7 + $0xa1] sm:$0x1]
    %v3021 = vld [vmem:[#allocation7 + $0x80] sm:$0xff]
    %v3022 = vld [vmem:[#allocation7 + $0x88] sm:$0xff]
    %v3023 = vld [vmem:[#allocation7 + $0x90] sm:$0xff]
    %v3024 = vld [vmem:[#allocation7 + $0x98] sm:$0xff]
    %v3025 = vld [vmem:[#allocation7 + $0xa2] sm:$0x1]
    %v3026 = vld [vmem:[#allocation7 + $0xa0] sm:$0xff]
    %v3027 = vld [vmem:[#allocation7 + $0xa8] sm:$0xff]
    %v3028 = vld [vmem:[#allocation7 + $0xb0] sm:$0xff]
    %v3029 = vld [vmem:[#allocation7 + $0xb8] sm:$0xff]
    %v3030 = vld [vmem:[#allocation7 + $0xa3] sm:$0x1]
    %v3031 = vlaneseq
    %v3032 = vshrl.u32 %v3031, 7
    %v3033 = vsub.s32 0, %v3032
    %v3034 = vrot.slane %v3019, %v3033
    %v3036 = vsel %vm78, %v3013, 0
    %v3039 = vsel %vm78, %v3014, 0
    %3041 = vmatprep.subr.mxu0 0.0
    %3042 = vmatpush1.msra.mxu0 0.0
    %3043 = vmatprep.subr.mxu0 0.0
    %3044 = vmatpush1.msra.mxu0 0.0
    %3045 = vmatprep.subr.mxu0 0.0
    %3046 = vmatpush1.msra.mxu0 0.0
    %3047 = vmatprep.subr.mxu0 0.0
    %3048 = vmatpush1.msra.mxu0 0.0
    %3049 = vmatprep.subr.mxu0 0.0
    %3050 = vmatpush1.msra.mxu0 0.0
    %3051 = vmatprep.subr.mxu0 0.0
    %3052 = vmatpush1.msra.mxu0 0.0
    %3053 = vmatprep.subr.mxu0 0.0
    %3054 = vmatpush1.msra.mxu0 0.0
    %3055 = vmatprep.subr.mxu0 0.0
    %3056 = vmatpush1.msra.mxu0 0.0
    %3057 = vmatprep.subr.mxu0 0.0
    %3058 = vmatpush1.msra.mxu0 0.0
    %3059 = vmatprep.subr.mxu0 0.0
    %3060 = vmatpush1.msra.mxu0 0.0
    %3061 = vmatprep.subr.mxu0 0.0
    %3062 = vmatpush1.msra.mxu0 0.0
    %3063 = vmatprep.subr.mxu0 0.0
    %3064 = vmatpush1.msra.mxu0 0.0
    %3065 = vmatprep.subr.mxu0 0.0
    %3066 = vmatpush1.msra.mxu0 %v3018
    %3067 = vmatprep.subr.mxu0 0.0
    %3068 = vmatpush1.msra.mxu0 %v3017
    %3069 = vmatprep.subr.mxu0 0.0
    %3070 = vmatpush1.msra.mxu0 %v3016
    %3071 = vmatprep.subr.mxu0 0.0
    %3072 = vmatpush1.msra.mxu0 %v3015
    %3073 = vmatprep.subr.mxu0 0.0
    %3074 = vmatpush2.msra.mxu0 0.0
    %3075 = vmatprep.subr.mxu0 0.0
    %3076 = vmatpush2.msra.mxu0 0.0
    %3077 = vmatprep.subr.mxu0 0.0
    %3078 = vmatpush2.msra.mxu0 0.0
    %3079 = vmatprep.subr.mxu0 0.0
    %3080 = vmatpush2.msra.mxu0 0.0
    %3081 = vmatprep.subr.mxu0 0.0
    %3082 = vmatpush2.msra.mxu0 0.0
    %3083 = vmatprep.subr.mxu0 0.0
    %3084 = vmatpush2.msra.mxu0 0.0
    %3085 = vmatprep.subr.mxu0 0.0
    %3086 = vmatpush2.msra.mxu0 0.0
    %3087 = vmatprep.subr.mxu0 0.0
    %3088 = vmatpush2.msra.mxu0 0.0
    %3089 = vmatprep.subr.mxu0 0.0
    %3090 = vmatpush2.msra.mxu0 0.0
    %3091 = vmatprep.subr.mxu0 0.0
    %3092 = vmatpush2.msra.mxu0 0.0
    %3093 = vmatprep.subr.mxu0 0.0
    %3094 = vmatpush2.msra.mxu0 0.0
    %3095 = vmatprep.subr.mxu0 0.0
    %3096 = vmatpush2.msra.mxu0 0.0
    %3097 = vmatprep.subr.mxu0 0.0
    %3098 = vmatpush2.msra.mxu0 0.0
    %3099 = vmatprep.subr.mxu0 0.0
    %3100 = vmatpush2.msra.mxu0 0.0
    %3101 = vmatprep.subr.mxu0 0.0
    %3102 = vmatpush2.msra.mxu0 0.0
    %3103 = vmatprep.subr.mxu0 0.0
    %3104 = vmatpush2.msra.mxu0 0.0
    %3105 = vmatprep.mubr.f32.mxu0 0.0
    %3106 = vmatmul.mubr.f32.gmra.mxu0 %v3036
    %v3107 = vpop.f32.mrf.mxu0
    %v3108 = vadd.f32 %v3034, %v3107
    %v3109 = vpop.f32.mrf.mxu0
    %3110 = vmatprep.mubr.f32.mxu0 0.0
    %3111 = vmatmul.mubr.f32.gmra.mxu0 %v3039
    %v3112 = vpop.f32.mrf.mxu0
    %v3113 = vadd.f32 %v3034, %v3112
    %v3114 = vpop.f32.mrf.mxu0
    %3115 = vdwg.mxu0
    %3118 = vrot.lane.b32.xlu0 %v3108, 120
    %v3119 = vpop.permute.xlu0 %3118
    %3120 = vrot.lane.b32.xlu0 %v3113, 120
    %v3121 = vpop.permute.xlu0 %3120
    %3122 = vrot.lane.b32.xlu0 %v3108, 112
    %v3123 = vpop.permute.xlu0 %3122
    %3124 = vrot.lane.b32.xlu0 %v3113, 112
    %v3125 = vpop.permute.xlu0 %3124
    %3126 = vrot.lane.b32.xlu0 %v3108, 104
    %v3127 = vpop.permute.xlu0 %3126
    %3128 = vrot.lane.b32.xlu0 %v3113, 104
    %v3129 = vpop.permute.xlu0 %3128
    %3130 = vrot.lane.b32.xlu0 %v3108, 96
    %v3131 = vpop.permute.xlu0 %3130
    %3132 = vrot.lane.b32.xlu0 %v3113, 96
    %v3133 = vpop.permute.xlu0 %3132
    %v3134 = vsel %vm293, %v3131, 0
    %v3136 = vsel %vm293, %v3133, 0
    %v3138 = vsel %vm293, %v3108, 0
    %v3140 = vsel %vm293, %v3113, 0
    %3142 = vmatprep.subr.mxu0 0.0
    %3143 = vmatpush1.xpose.msra.mxu0 0.0
    %3144 = vmatprep.subr.mxu0 0.0
    %3145 = vmatpush1.xpose.msra.mxu0 0.0
    %3146 = vmatprep.subr.mxu0 0.0
    %3147 = vmatpush1.xpose.msra.mxu0 0.0
    %3148 = vmatprep.subr.mxu0 0.0
    %3149 = vmatpush1.xpose.msra.mxu0 0.0
    %3150 = vmatprep.subr.mxu0 0.0
    %3151 = vmatpush1.xpose.msra.mxu0 0.0
    %3152 = vmatprep.subr.mxu0 0.0
    %3153 = vmatpush1.xpose.msra.mxu0 0.0
    %3154 = vmatprep.subr.mxu0 0.0
    %3155 = vmatpush1.xpose.msra.mxu0 0.0
    %3156 = vmatprep.subr.mxu0 0.0
    %3157 = vmatpush1.xpose.msra.mxu0 0.0
    %3158 = vmatprep.subr.mxu0 0.0
    %3159 = vmatpush1.xpose.msra.mxu0 0.0
    %3160 = vmatprep.subr.mxu0 0.0
    %3161 = vmatpush1.xpose.msra.mxu0 0.0
    %3162 = vmatprep.subr.mxu0 0.0
    %3163 = vmatpush1.xpose.msra.mxu0 0.0
    %3164 = vmatprep.subr.mxu0 0.0
    %3165 = vmatpush1.xpose.msra.mxu0 0.0
    %3166 = vmatprep.subr.mxu0 0.0
    %3167 = vmatpush1.xpose.msra.mxu0 0.0
    %3168 = vmatprep.subr.mxu0 0.0
    %3169 = vmatpush1.xpose.msra.mxu0 0.0
    %3170 = vmatprep.subr.mxu0 0.0
    %3171 = vmatpush1.xpose.msra.mxu0 %v3140
    %3172 = vmatprep.subr.mxu0 0.0
    %3173 = vmatpush1.xpose.msra.mxu0 %v3138
    %3174 = vmatprep.subr.mxu0 0.0
    %3175 = vmatpush2.xpose.msra.mxu0 0.0
    %3176 = vmatprep.subr.mxu0 0.0
    %3177 = vmatpush2.xpose.msra.mxu0 0.0
    %3178 = vmatprep.subr.mxu0 0.0
    %3179 = vmatpush2.xpose.msra.mxu0 0.0
    %3180 = vmatprep.subr.mxu0 0.0
    %3181 = vmatpush2.xpose.msra.mxu0 0.0
    %3182 = vmatprep.subr.mxu0 0.0
    %3183 = vmatpush2.xpose.msra.mxu0 0.0
    %3184 = vmatprep.subr.mxu0 0.0
    %3185 = vmatpush2.xpose.msra.mxu0 0.0
    %3186 = vmatprep.subr.mxu0 0.0
    %3187 = vmatpush2.xpose.msra.mxu0 0.0
    %3188 = vmatprep.subr.mxu0 0.0
    %3189 = vmatpush2.xpose.msra.mxu0 0.0
    %3190 = vmatprep.subr.mxu0 0.0
    %3191 = vmatpush2.xpose.msra.mxu0 0.0
    %3192 = vmatprep.subr.mxu0 0.0
    %3193 = vmatpush2.xpose.msra.mxu0 0.0
    %3194 = vmatprep.subr.mxu0 0.0
    %3195 = vmatpush2.xpose.msra.mxu0 0.0
    %3196 = vmatprep.subr.mxu0 0.0
    %3197 = vmatpush2.xpose.msra.mxu0 0.0
    %3198 = vmatprep.subr.mxu0 0.0
    %3199 = vmatpush2.xpose.msra.mxu0 0.0
    %3200 = vmatprep.subr.mxu0 0.0
    %3201 = vmatpush2.xpose.msra.mxu0 0.0
    %3202 = vmatprep.subr.mxu0 0.0
    %3203 = vmatpush2.xpose.msra.mxu0 0.0
    %3204 = vmatprep.subr.mxu0 0.0
    %3205 = vmatpush2.xpose.msra.mxu0 0.0
    %3206 = vmatprep.mubr.f32.mxu0 0.0
    %3207 = vmatmul.mubr.f32.gmra.mxu0 %v3134
    %v3208 = vpop.f32.mrf.mxu0
    %v3209 = vadd.f32 0.0, %v3208
    %v3210 = vpop.f32.mrf.mxu0
    %3211 = vmatprep.mubr.f32.mxu0 0.0
    %3212 = vmatmul.mubr.f32.gmra.mxu0 %v3136
    %v3213 = vpop.f32.mrf.mxu0
    %v3214 = vadd.f32 0.0, %v3213
    %v3215 = vpop.f32.mrf.mxu0
    %3216 = vdwg.mxu0
    %3217 = vrot.lane.b32.xlu0 %v3119, 96
    %v3218 = vpop.permute.xlu0 %3217
    %3219 = vrot.lane.b32.xlu0 %v3121, 96
    %v3220 = vpop.permute.xlu0 %3219
    %v3221 = vsel %vm293, %v3218, 0
    %v3223 = vsel %vm293, %v3220, 0
    %v3225 = vsel %vm293, %v3119, 0
    %v3227 = vsel %vm293, %v3121, 0
    %3229 = vmatprep.subr.mxu0 0.0
    %3230 = vmatpush1.xpose.msra.mxu0 0.0
    %3231 = vmatprep.subr.mxu0 0.0
    %3232 = vmatpush1.xpose.msra.mxu0 0.0
    %3233 = vmatprep.subr.mxu0 0.0
    %3234 = vmatpush1.xpose.msra.mxu0 0.0
    %3235 = vmatprep.subr.mxu0 0.0
    %3236 = vmatpush1.xpose.msra.mxu0 0.0
    %3237 = vmatprep.subr.mxu0 0.0
    %3238 = vmatpush1.xpose.msra.mxu0 0.0
    %3239 = vmatprep.subr.mxu0 0.0
    %3240 = vmatpush1.xpose.msra.mxu0 0.0
    %3241 = vmatprep.subr.mxu0 0.0
    %3242 = vmatpush1.xpose.msra.mxu0 0.0
    %3243 = vmatprep.subr.mxu0 0.0
    %3244 = vmatpush1.xpose.msra.mxu0 0.0
    %3245 = vmatprep.subr.mxu0 0.0
    %3246 = vmatpush1.xpose.msra.mxu0 0.0
    %3247 = vmatprep.subr.mxu0 0.0
    %3248 = vmatpush1.xpose.msra.mxu0 0.0
    %3249 = vmatprep.subr.mxu0 0.0
    %3250 = vmatpush1.xpose.msra.mxu0 0.0
    %3251 = vmatprep.subr.mxu0 0.0
    %3252 = vmatpush1.xpose.msra.mxu0 0.0
    %3253 = vmatprep.subr.mxu0 0.0
    %3254 = vmatpush1.xpose.msra.mxu0 0.0
    %3255 = vmatprep.subr.mxu0 0.0
    %3256 = vmatpush1.xpose.msra.mxu0 0.0
    %3257 = vmatprep.subr.mxu0 0.0
    %3258 = vmatpush1.xpose.msra.mxu0 %v3227
    %3259 = vmatprep.subr.mxu0 0.0
    %3260 = vmatpush1.xpose.msra.mxu0 %v3225
    %3261 = vmatprep.subr.mxu0 0.0
    %3262 = vmatpush2.xpose.msra.mxu0 0.0
    %3263 = vmatprep.subr.mxu0 0.0
    %3264 = vmatpush2.xpose.msra.mxu0 0.0
    %3265 = vmatprep.subr.mxu0 0.0
    %3266 = vmatpush2.xpose.msra.mxu0 0.0
    %3267 = vmatprep.subr.mxu0 0.0
    %3268 = vmatpush2.xpose.msra.mxu0 0.0
    %3269 = vmatprep.subr.mxu0 0.0
    %3270 = vmatpush2.xpose.msra.mxu0 0.0
    %3271 = vmatprep.subr.mxu0 0.0
    %3272 = vmatpush2.xpose.msra.mxu0 0.0
    %3273 = vmatprep.subr.mxu0 0.0
    %3274 = vmatpush2.xpose.msra.mxu0 0.0
    %3275 = vmatprep.subr.mxu0 0.0
    %3276 = vmatpush2.xpose.msra.mxu0 0.0
    %3277 = vmatprep.subr.mxu0 0.0
    %3278 = vmatpush2.xpose.msra.mxu0 0.0
    %3279 = vmatprep.subr.mxu0 0.0
    %3280 = vmatpush2.xpose.msra.mxu0 0.0
    %3281 = vmatprep.subr.mxu0 0.0
    %3282 = vmatpush2.xpose.msra.mxu0 0.0
    %3283 = vmatprep.subr.mxu0 0.0
    %3284 = vmatpush2.xpose.msra.mxu0 0.0
    %3285 = vmatprep.subr.mxu0 0.0
    %3286 = vmatpush2.xpose.msra.mxu0 0.0
    %3287 = vmatprep.subr.mxu0 0.0
    %3288 = vmatpush2.xpose.msra.mxu0 0.0
    %3289 = vmatprep.subr.mxu0 0.0
    %3290 = vmatpush2.xpose.msra.mxu0 0.0
    %3291 = vmatprep.subr.mxu0 0.0
    %3292 = vmatpush2.xpose.msra.mxu0 0.0
    %3293 = vmatprep.mubr.f32.mxu0 0.0
    %3294 = vmatmul.mubr.f32.gmra.mxu0 %v3221
    %v3295 = vpop.f32.mrf.mxu0
    %v3296 = vadd.f32 0.0, %v3295
    %v3297 = vpop.f32.mrf.mxu0
    %3298 = vmatprep.mubr.f32.mxu0 0.0
    %3299 = vmatmul.mubr.f32.gmra.mxu0 %v3223
    %v3300 = vpop.f32.mrf.mxu0
    %v3301 = vadd.f32 0.0, %v3300
    %v3302 = vpop.f32.mrf.mxu0
    %3303 = vdwg.mxu0
    %3304 = vrot.lane.b32.xlu0 %v3123, 96
    %v3305 = vpop.permute.xlu0 %3304
    %3306 = vrot.lane.b32.xlu0 %v3125, 96
    %v3307 = vpop.permute.xlu0 %3306
    %v3308 = vsel %vm293, %v3305, 0
    %v3310 = vsel %vm293, %v3307, 0
    %v3312 = vsel %vm293, %v3123, 0
    %v3314 = vsel %vm293, %v3125, 0
    %3316 = vmatprep.subr.mxu0 0.0
    %3317 = vmatpush1.xpose.msra.mxu0 0.0
    %3318 = vmatprep.subr.mxu0 0.0
    %3319 = vmatpush1.xpose.msra.mxu0 0.0
    %3320 = vmatprep.subr.mxu0 0.0
    %3321 = vmatpush1.xpose.msra.mxu0 0.0
    %3322 = vmatprep.subr.mxu0 0.0
    %3323 = vmatpush1.xpose.msra.mxu0 0.0
    %3324 = vmatprep.subr.mxu0 0.0
    %3325 = vmatpush1.xpose.msra.mxu0 0.0
    %3326 = vmatprep.subr.mxu0 0.0
    %3327 = vmatpush1.xpose.msra.mxu0 0.0
    %3328 = vmatprep.subr.mxu0 0.0
    %3329 = vmatpush1.xpose.msra.mxu0 0.0
    %3330 = vmatprep.subr.mxu0 0.0
    %3331 = vmatpush1.xpose.msra.mxu0 0.0
    %3332 = vmatprep.subr.mxu0 0.0
    %3333 = vmatpush1.xpose.msra.mxu0 0.0
    %3334 = vmatprep.subr.mxu0 0.0
    %3335 = vmatpush1.xpose.msra.mxu0 0.0
    %3336 = vmatprep.subr.mxu0 0.0
    %3337 = vmatpush1.xpose.msra.mxu0 0.0
    %3338 = vmatprep.subr.mxu0 0.0
    %3339 = vmatpush1.xpose.msra.mxu0 0.0
    %3340 = vmatprep.subr.mxu0 0.0
    %3341 = vmatpush1.xpose.msra.mxu0 0.0
    %3342 = vmatprep.subr.mxu0 0.0
    %3343 = vmatpush1.xpose.msra.mxu0 0.0
    %3344 = vmatprep.subr.mxu0 0.0
    %3345 = vmatpush1.xpose.msra.mxu0 %v3314
    %3346 = vmatprep.subr.mxu0 0.0
    %3347 = vmatpush1.xpose.msra.mxu0 %v3312
    %3348 = vmatprep.subr.mxu0 0.0
    %3349 = vmatpush2.xpose.msra.mxu0 0.0
    %3350 = vmatprep.subr.mxu0 0.0
    %3351 = vmatpush2.xpose.msra.mxu0 0.0
    %3352 = vmatprep.subr.mxu0 0.0
    %3353 = vmatpush2.xpose.msra.mxu0 0.0
    %3354 = vmatprep.subr.mxu0 0.0
    %3355 = vmatpush2.xpose.msra.mxu0 0.0
    %3356 = vmatprep.subr.mxu0 0.0
    %3357 = vmatpush2.xpose.msra.mxu0 0.0
    %3358 = vmatprep.subr.mxu0 0.0
    %3359 = vmatpush2.xpose.msra.mxu0 0.0
    %3360 = vmatprep.subr.mxu0 0.0
    %3361 = vmatpush2.xpose.msra.mxu0 0.0
    %3362 = vmatprep.subr.mxu0 0.0
    %3363 = vmatpush2.xpose.msra.mxu0 0.0
    %3364 = vmatprep.subr.mxu0 0.0
    %3365 = vmatpush2.xpose.msra.mxu0 0.0
    %3366 = vmatprep.subr.mxu0 0.0
    %3367 = vmatpush2.xpose.msra.mxu0 0.0
    %3368 = vmatprep.subr.mxu0 0.0
    %3369 = vmatpush2.xpose.msra.mxu0 0.0
    %3370 = vmatprep.subr.mxu0 0.0
    %3371 = vmatpush2.xpose.msra.mxu0 0.0
    %3372 = vmatprep.subr.mxu0 0.0
    %3373 = vmatpush2.xpose.msra.mxu0 0.0
    %3374 = vmatprep.subr.mxu0 0.0
    %3375 = vmatpush2.xpose.msra.mxu0 0.0
    %3376 = vmatprep.subr.mxu0 0.0
    %3377 = vmatpush2.xpose.msra.mxu0 0.0
    %3378 = vmatprep.subr.mxu0 0.0
    %3379 = vmatpush2.xpose.msra.mxu0 0.0
    %3380 = vmatprep.mubr.f32.mxu0 0.0
    %3381 = vmatmul.mubr.f32.gmra.mxu0 %v3308
    %v3382 = vpop.f32.mrf.mxu0
    %v3383 = vadd.f32 0.0, %v3382
    %v3384 = vpop.f32.mrf.mxu0
    %3385 = vmatprep.mubr.f32.mxu0 0.0
    %3386 = vmatmul.mubr.f32.gmra.mxu0 %v3310
    %v3387 = vpop.f32.mrf.mxu0
    %v3388 = vadd.f32 0.0, %v3387
    %v3389 = vpop.f32.mrf.mxu0
    %3390 = vdwg.mxu0
    %3391 = vrot.lane.b32.xlu0 %v3127, 96
    %v3392 = vpop.permute.xlu0 %3391
    %3393 = vrot.lane.b32.xlu0 %v3129, 96
    %v3394 = vpop.permute.xlu0 %3393
    %v3395 = vsel %vm293, %v3392, 0
    %v3397 = vsel %vm293, %v3394, 0
    %v3399 = vsel %vm293, %v3127, 0
    %v3401 = vsel %vm293, %v3129, 0
    %3403 = vmatprep.subr.mxu0 0.0
    %3404 = vmatpush1.xpose.msra.mxu0 0.0
    %3405 = vmatprep.subr.mxu0 0.0
    %3406 = vmatpush1.xpose.msra.mxu0 0.0
    %3407 = vmatprep.subr.mxu0 0.0
    %3408 = vmatpush1.xpose.msra.mxu0 0.0
    %3409 = vmatprep.subr.mxu0 0.0
    %3410 = vmatpush1.xpose.msra.mxu0 0.0
    %3411 = vmatprep.subr.mxu0 0.0
    %3412 = vmatpush1.xpose.msra.mxu0 0.0
    %3413 = vmatprep.subr.mxu0 0.0
    %3414 = vmatpush1.xpose.msra.mxu0 0.0
    %3415 = vmatprep.subr.mxu0 0.0
    %3416 = vmatpush1.xpose.msra.mxu0 0.0
    %3417 = vmatprep.subr.mxu0 0.0
    %3418 = vmatpush1.xpose.msra.mxu0 0.0
    %3419 = vmatprep.subr.mxu0 0.0
    %3420 = vmatpush1.xpose.msra.mxu0 0.0
    %3421 = vmatprep.subr.mxu0 0.0
    %3422 = vmatpush1.xpose.msra.mxu0 0.0
    %3423 = vmatprep.subr.mxu0 0.0
    %3424 = vmatpush1.xpose.msra.mxu0 0.0
    %3425 = vmatprep.subr.mxu0 0.0
    %3426 = vmatpush1.xpose.msra.mxu0 0.0
    %3427 = vmatprep.subr.mxu0 0.0
    %3428 = vmatpush1.xpose.msra.mxu0 0.0
    %3429 = vmatprep.subr.mxu0 0.0
    %3430 = vmatpush1.xpose.msra.mxu0 0.0
    %3431 = vmatprep.subr.mxu0 0.0
    %3432 = vmatpush1.xpose.msra.mxu0 %v3401
    %3433 = vmatprep.subr.mxu0 0.0
    %3434 = vmatpush1.xpose.msra.mxu0 %v3399
    %3435 = vmatprep.subr.mxu0 0.0
    %3436 = vmatpush2.xpose.msra.mxu0 0.0
    %3437 = vmatprep.subr.mxu0 0.0
    %3438 = vmatpush2.xpose.msra.mxu0 0.0
    %3439 = vmatprep.subr.mxu0 0.0
    %3440 = vmatpush2.xpose.msra.mxu0 0.0
    %3441 = vmatprep.subr.mxu0 0.0
    %3442 = vmatpush2.xpose.msra.mxu0 0.0
    %3443 = vmatprep.subr.mxu0 0.0
    %3444 = vmatpush2.xpose.msra.mxu0 0.0
    %3445 = vmatprep.subr.mxu0 0.0
    %3446 = vmatpush2.xpose.msra.mxu0 0.0
    %3447 = vmatprep.subr.mxu0 0.0
    %3448 = vmatpush2.xpose.msra.mxu0 0.0
    %3449 = vmatprep.subr.mxu0 0.0
    %3450 = vmatpush2.xpose.msra.mxu0 0.0
    %3451 = vmatprep.subr.mxu0 0.0
    %3452 = vmatpush2.xpose.msra.mxu0 0.0
    %3453 = vmatprep.subr.mxu0 0.0
    %3454 = vmatpush2.xpose.msra.mxu0 0.0
    %3455 = vmatprep.subr.mxu0 0.0
    %3456 = vmatpush2.xpose.msra.mxu0 0.0
    %3457 = vmatprep.subr.mxu0 0.0
    %3458 = vmatpush2.xpose.msra.mxu0 0.0
    %3459 = vmatprep.subr.mxu0 0.0
    %3460 = vmatpush2.xpose.msra.mxu0 0.0
    %3461 = vmatprep.subr.mxu0 0.0
    %3462 = vmatpush2.xpose.msra.mxu0 0.0
    %3463 = vmatprep.subr.mxu0 0.0
    %3464 = vmatpush2.xpose.msra.mxu0 0.0
    %3465 = vmatprep.subr.mxu0 0.0
    %3466 = vmatpush2.xpose.msra.mxu0 0.0
    %3467 = vmatprep.mubr.f32.mxu0 0.0
    %3468 = vmatmul.mubr.f32.gmra.mxu0 %v3395
    %v3469 = vpop.f32.mrf.mxu0
    %v3470 = vadd.f32 0.0, %v3469
    %v3471 = vpop.f32.mrf.mxu0
    %3472 = vmatprep.mubr.f32.mxu0 0.0
    %3473 = vmatmul.mubr.f32.gmra.mxu0 %v3397
    %v3474 = vpop.f32.mrf.mxu0
    %v3475 = vadd.f32 0.0, %v3474
    %v3476 = vpop.f32.mrf.mxu0
    %3477 = vdwg.mxu0
    %v3478 = vmul.f32 %v3209, 0.35355338
    %v3479 = vmul.f32 %v3214, 0.35355338
    %v3480 = vmul.f32 %v3296, 0.35355338
    %v3481 = vmul.f32 %v3301, 0.35355338
    %v3482 = vmul.f32 %v3383, 0.35355338
    %v3483 = vmul.f32 %v3388, 0.35355338
    %v3484 = vmul.f32 %v3470, 0.35355338
    %v3485 = vmul.f32 %v3475, 0.35355338
    %v3486 = vadd.f32 %v3478, %v57
    %v3487 = vadd.f32 %v3479, %v58
    %v3488 = vadd.f32 %v3480, %v57
    %v3489 = vadd.f32 %v3481, %v58
    %v3490 = vadd.f32 %v3482, %v57
    %v3491 = vadd.f32 %v3483, %v58
    %v3492 = vadd.f32 %v3484, %v57
    %v3493 = vadd.f32 %v3485, %v58
    %v3494 = vsel %vm654, %v3486, -inf
    %3495 = vmax.xlane.f32.xlu0 %v3494
    %v3496 = vpop.xlane.xlu0 %3495
    %v3497 = vsel %vm654, %v3487, -inf
    %3498 = vmax.xlane.f32.xlu0 %v3497
    %v3499 = vpop.xlane.xlu0 %3498
    %v3500 = vsel %vm654, %v3488, -inf
    %3501 = vmax.xlane.f32.xlu0 %v3500
    %v3502 = vpop.xlane.xlu0 %3501
    %v3503 = vsel %vm654, %v3489, -inf
    %3504 = vmax.xlane.f32.xlu0 %v3503
    %v3505 = vpop.xlane.xlu0 %3504
    %v3506 = vsel %vm654, %v3490, -inf
    %3507 = vmax.xlane.f32.xlu0 %v3506
    %v3508 = vpop.xlane.xlu0 %3507
    %v3509 = vsel %vm654, %v3491, -inf
    %3510 = vmax.xlane.f32.xlu0 %v3509
    %v3511 = vpop.xlane.xlu0 %3510
    %v3512 = vsel %vm654, %v3492, -inf
    %3513 = vmax.xlane.f32.xlu0 %v3512
    %v3514 = vpop.xlane.xlu0 %3513
    %v3515 = vsel %vm654, %v3493, -inf
    %3516 = vmax.xlane.f32.xlu0 %v3515
    %v3517 = vpop.xlane.xlu0 %3516
    %v3518 = vsub.f32 %v3486, %v3496
    %v3519 = vsub.f32 %v3487, %v3499
    %v3520 = vsub.f32 %v3488, %v3502
    %v3521 = vsub.f32 %v3489, %v3505
    %v3522 = vsub.f32 %v3490, %v3508
    %v3523 = vsub.f32 %v3491, %v3511
    %v3524 = vsub.f32 %v3492, %v3514
    %v3525 = vsub.f32 %v3493, %v3517
    %v3526 = vmul.f32 %v3518, 1.442695
    %v3527 = vpow.pop %v3526
    %v3528 = vmul.f32 %v3519, 1.442695
    %v3529 = vpow.pop %v3528
    %v3530 = vmul.f32 %v3520, 1.442695
    %v3531 = vpow.pop %v3530
    %v3532 = vmul.f32 %v3521, 1.442695
    %v3533 = vpow.pop %v3532
    %v3534 = vmul.f32 %v3522, 1.442695
    %v3535 = vpow.pop %v3534
    %v3536 = vmul.f32 %v3523, 1.442695
    %v3537 = vpow.pop %v3536
    %v3538 = vmul.f32 %v3524, 1.442695
    %v3539 = vpow.pop %v3538
    %v3540 = vmul.f32 %v3525, 1.442695
    %v3541 = vpow.pop %v3540
    %v3542 = vsel %vm654, %v3527, 0.0
    %3543 = vadd.xlane.f32.xlu0 %v3542
    %v3544 = vpop.xlane.xlu0 %3543
    %v3545 = vsel %vm654, %v3529, 0.0
    %3546 = vadd.xlane.f32.xlu0 %v3545
    %v3547 = vpop.xlane.xlu0 %3546
    %v3548 = vsel %vm654, %v3531, 0.0
    %3549 = vadd.xlane.f32.xlu0 %v3548
    %v3550 = vpop.xlane.xlu0 %3549
    %v3551 = vsel %vm654, %v3533, 0.0
    %3552 = vadd.xlane.f32.xlu0 %v3551
    %v3553 = vpop.xlane.xlu0 %3552
    %v3554 = vsel %vm654, %v3535, 0.0
    %3555 = vadd.xlane.f32.xlu0 %v3554
    %v3556 = vpop.xlane.xlu0 %3555
    %v3557 = vsel %vm654, %v3537, 0.0
    %3558 = vadd.xlane.f32.xlu0 %v3557
    %v3559 = vpop.xlane.xlu0 %3558
    %v3560 = vsel %vm654, %v3539, 0.0
    %3561 = vadd.xlane.f32.xlu0 %v3560
    %v3562 = vpop.xlane.xlu0 %3561
    %v3563 = vsel %vm654, %v3541, 0.0
    %3564 = vadd.xlane.f32.xlu0 %v3563
    %v3565 = vpop.xlane.xlu0 %3564
    %v3566 = vrcp.pop %v3544
    %v3567 = vrcp.pop %v3547
    %v3568 = vrcp.pop %v3550
    %v3569 = vrcp.pop %v3553
    %v3570 = vrcp.pop %v3556
    %v3571 = vrcp.pop %v3559
    %v3572 = vrcp.pop %v3562
    %v3573 = vrcp.pop %v3565
    %v3574 = vmul.f32 %v3527, %v3566
    %v3575 = vmul.f32 %v3529, %v3567
    %v3576 = vmul.f32 %v3531, %v3568
    %v3577 = vmul.f32 %v3533, %v3569
    %v3578 = vmul.f32 %v3535, %v3570
    %v3579 = vmul.f32 %v3537, %v3571
    %v3580 = vmul.f32 %v3539, %v3572
    %v3581 = vmul.f32 %v3541, %v3573
    %3582 = vrot.lane.b32.xlu0 %v3108, 64
    %v3583 = vpop.permute.xlu0 %3582
    %3584 = vrot.lane.b32.xlu0 %v3113, 64
    %v3585 = vpop.permute.xlu0 %3584
    %v3589 = vsel %vm654, %v3574, 0
    %v3592 = vsel %vm654, %v3575, 0
    %3594 = vmatprep.subr.mxu0 0.0
    %3595 = vmatpush1.msra.mxu0 0.0
    %3596 = vmatprep.subr.mxu0 0.0
    %3597 = vmatpush1.msra.mxu0 0.0
    %3598 = vmatprep.subr.mxu0 0.0
    %3599 = vmatpush1.msra.mxu0 0.0
    %3600 = vmatprep.subr.mxu0 0.0
    %3601 = vmatpush1.msra.mxu0 0.0
    %3602 = vmatprep.subr.mxu0 0.0
    %3603 = vmatpush1.msra.mxu0 0.0
    %3604 = vmatprep.subr.mxu0 0.0
    %3605 = vmatpush1.msra.mxu0 0.0
    %3606 = vmatprep.subr.mxu0 0.0
    %3607 = vmatpush1.msra.mxu0 0.0
    %3608 = vmatprep.subr.mxu0 0.0
    %3609 = vmatpush1.msra.mxu0 0.0
    %3610 = vmatprep.subr.mxu0 0.0
    %3611 = vmatpush1.msra.mxu0 0.0
    %3612 = vmatprep.subr.mxu0 0.0
    %3613 = vmatpush1.msra.mxu0 0.0
    %3614 = vmatprep.subr.mxu0 0.0
    %3615 = vmatpush1.msra.mxu0 0.0
    %3616 = vmatprep.subr.mxu0 0.0
    %3617 = vmatpush1.msra.mxu0 0.0
    %3618 = vmatprep.subr.mxu0 0.0
    %3619 = vmatpush1.msra.mxu0 0.0
    %3620 = vmatprep.subr.mxu0 0.0
    %3621 = vmatpush1.msra.mxu0 0.0
    %3622 = vmatprep.subr.mxu0 0.0
    %3623 = vmatpush1.msra.mxu0 %v3585
    %3624 = vmatprep.subr.mxu0 0.0
    %3625 = vmatpush1.msra.mxu0 %v3583
    %3626 = vmatprep.subr.mxu0 0.0
    %3627 = vmatpush2.msra.mxu0 0.0
    %3628 = vmatprep.subr.mxu0 0.0
    %3629 = vmatpush2.msra.mxu0 0.0
    %3630 = vmatprep.subr.mxu0 0.0
    %3631 = vmatpush2.msra.mxu0 0.0
    %3632 = vmatprep.subr.mxu0 0.0
    %3633 = vmatpush2.msra.mxu0 0.0
    %3634 = vmatprep.subr.mxu0 0.0
    %3635 = vmatpush2.msra.mxu0 0.0
    %3636 = vmatprep.subr.mxu0 0.0
    %3637 = vmatpush2.msra.mxu0 0.0
    %3638 = vmatprep.subr.mxu0 0.0
    %3639 = vmatpush2.msra.mxu0 0.0
    %3640 = vmatprep.subr.mxu0 0.0
    %3641 = vmatpush2.msra.mxu0 0.0
    %3642 = vmatprep.subr.mxu0 0.0
    %3643 = vmatpush2.msra.mxu0 0.0
    %3644 = vmatprep.subr.mxu0 0.0
    %3645 = vmatpush2.msra.mxu0 0.0
    %3646 = vmatprep.subr.mxu0 0.0
    %3647 = vmatpush2.msra.mxu0 0.0
    %3648 = vmatprep.subr.mxu0 0.0
    %3649 = vmatpush2.msra.mxu0 0.0
    %3650 = vmatprep.subr.mxu0 0.0
    %3651 = vmatpush2.msra.mxu0 0.0
    %3652 = vmatprep.subr.mxu0 0.0
    %3653 = vmatpush2.msra.mxu0 0.0
    %3654 = vmatprep.subr.mxu0 0.0
    %3655 = vmatpush2.msra.mxu0 0.0
    %3656 = vmatprep.subr.mxu0 0.0
    %3657 = vmatpush2.msra.mxu0 0.0
    %3658 = vmatprep.mubr.f32.mxu0 0.0
    %3659 = vmatmul.mubr.f32.gmra.mxu0 %v3589
    %v3660 = vpop.f32.mrf.mxu0
    %v3661 = vadd.f32 0.0, %v3660
    %v3662 = vpop.f32.mrf.mxu0
    %3663 = vmatprep.mubr.f32.mxu0 0.0
    %3664 = vmatmul.mubr.f32.gmra.mxu0 %v3592
    %v3665 = vpop.f32.mrf.mxu0
    %v3666 = vadd.f32 0.0, %v3665
    %v3667 = vpop.f32.mrf.mxu0
    %3668 = vdwg.mxu0
    %3669 = vrot.lane.b32.xlu0 %v3119, 64
    %v3670 = vpop.permute.xlu0 %3669
    %3671 = vrot.lane.b32.xlu0 %v3121, 64
    %v3672 = vpop.permute.xlu0 %3671
    %v3676 = vsel %vm654, %v3576, 0
    %v3679 = vsel %vm654, %v3577, 0
    %3681 = vmatprep.subr.mxu0 0.0
    %3682 = vmatpush1.msra.mxu0 0.0
    %3683 = vmatprep.subr.mxu0 0.0
    %3684 = vmatpush1.msra.mxu0 0.0
    %3685 = vmatprep.subr.mxu0 0.0
    %3686 = vmatpush1.msra.mxu0 0.0
    %3687 = vmatprep.subr.mxu0 0.0
    %3688 = vmatpush1.msra.mxu0 0.0
    %3689 = vmatprep.subr.mxu0 0.0
    %3690 = vmatpush1.msra.mxu0 0.0
    %3691 = vmatprep.subr.mxu0 0.0
    %3692 = vmatpush1.msra.mxu0 0.0
    %3693 = vmatprep.subr.mxu0 0.0
    %3694 = vmatpush1.msra.mxu0 0.0
    %3695 = vmatprep.subr.mxu0 0.0
    %3696 = vmatpush1.msra.mxu0 0.0
    %3697 = vmatprep.subr.mxu0 0.0
    %3698 = vmatpush1.msra.mxu0 0.0
    %3699 = vmatprep.subr.mxu0 0.0
    %3700 = vmatpush1.msra.mxu0 0.0
    %3701 = vmatprep.subr.mxu0 0.0
    %3702 = vmatpush1.msra.mxu0 0.0
    %3703 = vmatprep.subr.mxu0 0.0
    %3704 = vmatpush1.msra.mxu0 0.0
    %3705 = vmatprep.subr.mxu0 0.0
    %3706 = vmatpush1.msra.mxu0 0.0
    %3707 = vmatprep.subr.mxu0 0.0
    %3708 = vmatpush1.msra.mxu0 0.0
    %3709 = vmatprep.subr.mxu0 0.0
    %3710 = vmatpush1.msra.mxu0 %v3672
    %3711 = vmatprep.subr.mxu0 0.0
    %3712 = vmatpush1.msra.mxu0 %v3670
    %3713 = vmatprep.subr.mxu0 0.0
    %3714 = vmatpush2.msra.mxu0 0.0
    %3715 = vmatprep.subr.mxu0 0.0
    %3716 = vmatpush2.msra.mxu0 0.0
    %3717 = vmatprep.subr.mxu0 0.0
    %3718 = vmatpush2.msra.mxu0 0.0
    %3719 = vmatprep.subr.mxu0 0.0
    %3720 = vmatpush2.msra.mxu0 0.0
    %3721 = vmatprep.subr.mxu0 0.0
    %3722 = vmatpush2.msra.mxu0 0.0
    %3723 = vmatprep.subr.mxu0 0.0
    %3724 = vmatpush2.msra.mxu0 0.0
    %3725 = vmatprep.subr.mxu0 0.0
    %3726 = vmatpush2.msra.mxu0 0.0
    %3727 = vmatprep.subr.mxu0 0.0
    %3728 = vmatpush2.msra.mxu0 0.0
    %3729 = vmatprep.subr.mxu0 0.0
    %3730 = vmatpush2.msra.mxu0 0.0
    %3731 = vmatprep.subr.mxu0 0.0
    %3732 = vmatpush2.msra.mxu0 0.0
    %3733 = vmatprep.subr.mxu0 0.0
    %3734 = vmatpush2.msra.mxu0 0.0
    %3735 = vmatprep.subr.mxu0 0.0
    %3736 = vmatpush2.msra.mxu0 0.0
    %3737 = vmatprep.subr.mxu0 0.0
    %3738 = vmatpush2.msra.mxu0 0.0
    %3739 = vmatprep.subr.mxu0 0.0
    %3740 = vmatpush2.msra.mxu0 0.0
    %3741 = vmatprep.subr.mxu0 0.0
    %3742 = vmatpush2.msra.mxu0 0.0
    %3743 = vmatprep.subr.mxu0 0.0
    %3744 = vmatpush2.msra.mxu0 0.0
    %3745 = vmatprep.mubr.f32.mxu0 0.0
    %3746 = vmatmul.mubr.f32.gmra.mxu0 %v3676
    %v3747 = vpop.f32.mrf.mxu0
    %v3748 = vadd.f32 0.0, %v3747
    %v3749 = vpop.f32.mrf.mxu0
    %3750 = vmatprep.mubr.f32.mxu0 0.0
    %3751 = vmatmul.mubr.f32.gmra.mxu0 %v3679
    %v3752 = vpop.f32.mrf.mxu0
    %v3753 = vadd.f32 0.0, %v3752
    %v3754 = vpop.f32.mrf.mxu0
    %3755 = vdwg.mxu0
    %3756 = vrot.lane.b32.xlu0 %v3123, 64
    %v3757 = vpop.permute.xlu0 %3756
    %3758 = vrot.lane.b32.xlu0 %v3125, 64
    %v3759 = vpop.permute.xlu0 %3758
    %v3763 = vsel %vm654, %v3578, 0
    %v3766 = vsel %vm654, %v3579, 0
    %3768 = vmatprep.subr.mxu0 0.0
    %3769 = vmatpush1.msra.mxu0 0.0
    %3770 = vmatprep.subr.mxu0 0.0
    %3771 = vmatpush1.msra.mxu0 0.0
    %3772 = vmatprep.subr.mxu0 0.0
    %3773 = vmatpush1.msra.mxu0 0.0
    %3774 = vmatprep.subr.mxu0 0.0
    %3775 = vmatpush1.msra.mxu0 0.0
    %3776 = vmatprep.subr.mxu0 0.0
    %3777 = vmatpush1.msra.mxu0 0.0
    %3778 = vmatprep.subr.mxu0 0.0
    %3779 = vmatpush1.msra.mxu0 0.0
    %3780 = vmatprep.subr.mxu0 0.0
    %3781 = vmatpush1.msra.mxu0 0.0
    %3782 = vmatprep.subr.mxu0 0.0
    %3783 = vmatpush1.msra.mxu0 0.0
    %3784 = vmatprep.subr.mxu0 0.0
    %3785 = vmatpush1.msra.mxu0 0.0
    %3786 = vmatprep.subr.mxu0 0.0
    %3787 = vmatpush1.msra.mxu0 0.0
    %3788 = vmatprep.subr.mxu0 0.0
    %3789 = vmatpush1.msra.mxu0 0.0
    %3790 = vmatprep.subr.mxu0 0.0
    %3791 = vmatpush1.msra.mxu0 0.0
    %3792 = vmatprep.subr.mxu0 0.0
    %3793 = vmatpush1.msra.mxu0 0.0
    %3794 = vmatprep.subr.mxu0 0.0
    %3795 = vmatpush1.msra.mxu0 0.0
    %3796 = vmatprep.subr.mxu0 0.0
    %3797 = vmatpush1.msra.mxu0 %v3759
    %3798 = vmatprep.subr.mxu0 0.0
    %3799 = vmatpush1.msra.mxu0 %v3757
    %3800 = vmatprep.subr.mxu0 0.0
    %3801 = vmatpush2.msra.mxu0 0.0
    %3802 = vmatprep.subr.mxu0 0.0
    %3803 = vmatpush2.msra.mxu0 0.0
    %3804 = vmatprep.subr.mxu0 0.0
    %3805 = vmatpush2.msra.mxu0 0.0
    %3806 = vmatprep.subr.mxu0 0.0
    %3807 = vmatpush2.msra.mxu0 0.0
    %3808 = vmatprep.subr.mxu0 0.0
    %3809 = vmatpush2.msra.mxu0 0.0
    %3810 = vmatprep.subr.mxu0 0.0
    %3811 = vmatpush2.msra.mxu0 0.0
    %3812 = vmatprep.subr.mxu0 0.0
    %3813 = vmatpush2.msra.mxu0 0.0
    %3814 = vmatprep.subr.mxu0 0.0
    %3815 = vmatpush2.msra.mxu0 0.0
    %3816 = vmatprep.subr.mxu0 0.0
    %3817 = vmatpush2.msra.mxu0 0.0
    %3818 = vmatprep.subr.mxu0 0.0
    %3819 = vmatpush2.msra.mxu0 0.0
    %3820 = vmatprep.subr.mxu0 0.0
    %3821 = vmatpush2.msra.mxu0 0.0
    %3822 = vmatprep.subr.mxu0 0.0
    %3823 = vmatpush2.msra.mxu0 0.0
    %3824 = vmatprep.subr.mxu0 0.0
    %3825 = vmatpush2.msra.mxu0 0.0
    %3826 = vmatprep.subr.mxu0 0.0
    %3827 = vmatpush2.msra.mxu0 0.0
    %3828 = vmatprep.subr.mxu0 0.0
    %3829 = vmatpush2.msra.mxu0 0.0
    %3830 = vmatprep.subr.mxu0 0.0
    %3831 = vmatpush2.msra.mxu0 0.0
    %3832 = vmatprep.mubr.f32.mxu0 0.0
    %3833 = vmatmul.mubr.f32.gmra.mxu0 %v3763
    %v3834 = vpop.f32.mrf.mxu0
    %v3835 = vadd.f32 0.0, %v3834
    %v3836 = vpop.f32.mrf.mxu0
    %3837 = vmatprep.mubr.f32.mxu0 0.0
    %3838 = vmatmul.mubr.f32.gmra.mxu0 %v3766
    %v3839 = vpop.f32.mrf.mxu0
    %v3840 = vadd.f32 0.0, %v3839
    %v3841 = vpop.f32.mrf.mxu0
    %3842 = vdwg.mxu0
    %3843 = vrot.lane.b32.xlu0 %v3127, 64
    %v3844 = vpop.permute.xlu0 %3843
    %3845 = vrot.lane.b32.xlu0 %v3129, 64
    %v3846 = vpop.permute.xlu0 %3845
    %v3850 = vsel %vm654, %v3580, 0
    %v3853 = vsel %vm654, %v3581, 0
    %3855 = vmatprep.subr.mxu0 0.0
    %3856 = vmatpush1.msra.mxu0 0.0
    %3857 = vmatprep.subr.mxu0 0.0
    %3858 = vmatpush1.msra.mxu0 0.0
    %3859 = vmatprep.subr.mxu0 0.0
    %3860 = vmatpush1.msra.mxu0 0.0
    %3861 = vmatprep.subr.mxu0 0.0
    %3862 = vmatpush1.msra.mxu0 0.0
    %3863 = vmatprep.subr.mxu0 0.0
    %3864 = vmatpush1.msra.mxu0 0.0
    %3865 = vmatprep.subr.mxu0 0.0
    %3866 = vmatpush1.msra.mxu0 0.0
    %3867 = vmatprep.subr.mxu0 0.0
    %3868 = vmatpush1.msra.mxu0 0.0
    %3869 = vmatprep.subr.mxu0 0.0
    %3870 = vmatpush1.msra.mxu0 0.0
    %3871 = vmatprep.subr.mxu0 0.0
    %3872 = vmatpush1.msra.mxu0 0.0
    %3873 = vmatprep.subr.mxu0 0.0
    %3874 = vmatpush1.msra.mxu0 0.0
    %3875 = vmatprep.subr.mxu0 0.0
    %3876 = vmatpush1.msra.mxu0 0.0
    %3877 = vmatprep.subr.mxu0 0.0
    %3878 = vmatpush1.msra.mxu0 0.0
    %3879 = vmatprep.subr.mxu0 0.0
    %3880 = vmatpush1.msra.mxu0 0.0
    %3881 = vmatprep.subr.mxu0 0.0
    %3882 = vmatpush1.msra.mxu0 0.0
    %3883 = vmatprep.subr.mxu0 0.0
    %3884 = vmatpush1.msra.mxu0 %v3846
    %3885 = vmatprep.subr.mxu0 0.0
    %3886 = vmatpush1.msra.mxu0 %v3844
    %3887 = vmatprep.subr.mxu0 0.0
    %3888 = vmatpush2.msra.mxu0 0.0
    %3889 = vmatprep.subr.mxu0 0.0
    %3890 = vmatpush2.msra.mxu0 0.0
    %3891 = vmatprep.subr.mxu0 0.0
    %3892 = vmatpush2.msra.mxu0 0.0
    %3893 = vmatprep.subr.mxu0 0.0
    %3894 = vmatpush2.msra.mxu0 0.0
    %3895 = vmatprep.subr.mxu0 0.0
    %3896 = vmatpush2.msra.mxu0 0.0
    %3897 = vmatprep.subr.mxu0 0.0
    %3898 = vmatpush2.msra.mxu0 0.0
    %3899 = vmatprep.subr.mxu0 0.0
    %3900 = vmatpush2.msra.mxu0 0.0
    %3901 = vmatprep.subr.mxu0 0.0
    %3902 = vmatpush2.msra.mxu0 0.0
    %3903 = vmatprep.subr.mxu0 0.0
    %3904 = vmatpush2.msra.mxu0 0.0
    %3905 = vmatprep.subr.mxu0 0.0
    %3906 = vmatpush2.msra.mxu0 0.0
    %3907 = vmatprep.subr.mxu0 0.0
    %3908 = vmatpush2.msra.mxu0 0.0
    %3909 = vmatprep.subr.mxu0 0.0
    %3910 = vmatpush2.msra.mxu0 0.0
    %3911 = vmatprep.subr.mxu0 0.0
    %3912 = vmatpush2.msra.mxu0 0.0
    %3913 = vmatprep.subr.mxu0 0.0
    %3914 = vmatpush2.msra.mxu0 0.0
    %3915 = vmatprep.subr.mxu0 0.0
    %3916 = vmatpush2.msra.mxu0 0.0
    %3917 = vmatprep.subr.mxu0 0.0
    %3918 = vmatpush2.msra.mxu0 0.0
    %3919 = vmatprep.mubr.f32.mxu0 0.0
    %3920 = vmatmul.mubr.f32.gmra.mxu0 %v3850
    %v3921 = vpop.f32.mrf.mxu0
    %v3922 = vadd.f32 0.0, %v3921
    %v3923 = vpop.f32.mrf.mxu0
    %3924 = vmatprep.mubr.f32.mxu0 0.0
    %3925 = vmatmul.mubr.f32.gmra.mxu0 %v3853
    %v3926 = vpop.f32.mrf.mxu0
    %v3927 = vadd.f32 0.0, %v3926
    %v3928 = vpop.f32.mrf.mxu0
    %3929 = vdwg.mxu0
    %3931 = vrot.lane.b32.xlu0 %v3015, 32
    %v3932 = vpop.permute.xlu0 %3931
    %v3935 = vsel %vm293, %v3661, 0
    %v3938 = vsel %vm293, %v3666, 0
    %3940 = vmatprep.subr.mxu0 0.0
    %3941 = vmatpush1.msra.mxu0 0.0
    %3942 = vmatprep.subr.mxu0 0.0
    %3943 = vmatpush1.msra.mxu0 0.0
    %3944 = vmatprep.subr.mxu0 0.0
    %3945 = vmatpush1.msra.mxu0 0.0
    %3946 = vmatprep.subr.mxu0 0.0
    %3947 = vmatpush1.msra.mxu0 0.0
    %3948 = vmatprep.subr.mxu0 0.0
    %3949 = vmatpush1.msra.mxu0 0.0
    %3950 = vmatprep.subr.mxu0 0.0
    %3951 = vmatpush1.msra.mxu0 0.0
    %3952 = vmatprep.subr.mxu0 0.0
    %3953 = vmatpush1.msra.mxu0 0.0
    %3954 = vmatprep.subr.mxu0 0.0
    %3955 = vmatpush1.msra.mxu0 0.0
    %3956 = vmatprep.subr.mxu0 0.0
    %3957 = vmatpush1.msra.mxu0 0.0
    %3958 = vmatprep.subr.mxu0 0.0
    %3959 = vmatpush1.msra.mxu0 0.0
    %3960 = vmatprep.subr.mxu0 0.0
    %3961 = vmatpush1.msra.mxu0 0.0
    %3962 = vmatprep.subr.mxu0 0.0
    %3963 = vmatpush1.msra.mxu0 0.0
    %3964 = vmatprep.subr.mxu0 0.0
    %3965 = vmatpush1.msra.mxu0 0.0
    %3966 = vmatprep.subr.mxu0 0.0
    %3967 = vmatpush1.msra.mxu0 0.0
    %3968 = vmatprep.subr.mxu0 0.0
    %3969 = vmatpush1.msra.mxu0 0.0
    %3970 = vmatprep.subr.mxu0 0.0
    %3971 = vmatpush1.msra.mxu0 %v3932
    %3972 = vmatprep.subr.mxu0 0.0
    %3973 = vmatpush2.msra.mxu0 0.0
    %3974 = vmatprep.subr.mxu0 0.0
    %3975 = vmatpush2.msra.mxu0 0.0
    %3976 = vmatprep.subr.mxu0 0.0
    %3977 = vmatpush2.msra.mxu0 0.0
    %3978 = vmatprep.subr.mxu0 0.0
    %3979 = vmatpush2.msra.mxu0 0.0
    %3980 = vmatprep.subr.mxu0 0.0
    %3981 = vmatpush2.msra.mxu0 0.0
    %3982 = vmatprep.subr.mxu0 0.0
    %3983 = vmatpush2.msra.mxu0 0.0
    %3984 = vmatprep.subr.mxu0 0.0
    %3985 = vmatpush2.msra.mxu0 0.0
    %3986 = vmatprep.subr.mxu0 0.0
    %3987 = vmatpush2.msra.mxu0 0.0
    %3988 = vmatprep.subr.mxu0 0.0
    %3989 = vmatpush2.msra.mxu0 0.0
    %3990 = vmatprep.subr.mxu0 0.0
    %3991 = vmatpush2.msra.mxu0 0.0
    %3992 = vmatprep.subr.mxu0 0.0
    %3993 = vmatpush2.msra.mxu0 0.0
    %3994 = vmatprep.subr.mxu0 0.0
    %3995 = vmatpush2.msra.mxu0 0.0
    %3996 = vmatprep.subr.mxu0 0.0
    %3997 = vmatpush2.msra.mxu0 0.0
    %3998 = vmatprep.subr.mxu0 0.0
    %3999 = vmatpush2.msra.mxu0 0.0
    %4000 = vmatprep.subr.mxu0 0.0
    %4001 = vmatpush2.msra.mxu0 0.0
    %4002 = vmatprep.subr.mxu0 0.0
    %4003 = vmatpush2.msra.mxu0 0.0
    %4004 = vmatprep.mubr.f32.mxu0 0.0
    %4005 = vmatmul.mubr.f32.gmra.mxu0 %v3935
    %v4006 = vpop.f32.mrf.mxu0
    %v4007 = vadd.f32 0.0, %v4006
    %v4008 = vpop.f32.mrf.mxu0
    %4009 = vmatprep.mubr.f32.mxu0 0.0
    %4010 = vmatmul.mubr.f32.gmra.mxu0 %v3938
    %v4011 = vpop.f32.mrf.mxu0
    %v4012 = vadd.f32 0.0, %v4011
    %v4013 = vpop.f32.mrf.mxu0
    %4014 = vdwg.mxu0
    %4016 = vrot.lane.b32.xlu0 %v3016, 32
    %v4017 = vpop.permute.xlu0 %4016
    %v4020 = vsel %vm293, %v3748, 0
    %v4023 = vsel %vm293, %v3753, 0
    %4025 = vmatprep.subr.mxu0 0.0
    %4026 = vmatpush1.msra.mxu0 0.0
    %4027 = vmatprep.subr.mxu0 0.0
    %4028 = vmatpush1.msra.mxu0 0.0
    %4029 = vmatprep.subr.mxu0 0.0
    %4030 = vmatpush1.msra.mxu0 0.0
    %4031 = vmatprep.subr.mxu0 0.0
    %4032 = vmatpush1.msra.mxu0 0.0
    %4033 = vmatprep.subr.mxu0 0.0
    %4034 = vmatpush1.msra.mxu0 0.0
    %4035 = vmatprep.subr.mxu0 0.0
    %4036 = vmatpush1.msra.mxu0 0.0
    %4037 = vmatprep.subr.mxu0 0.0
    %4038 = vmatpush1.msra.mxu0 0.0
    %4039 = vmatprep.subr.mxu0 0.0
    %4040 = vmatpush1.msra.mxu0 0.0
    %4041 = vmatprep.subr.mxu0 0.0
    %4042 = vmatpush1.msra.mxu0 0.0
    %4043 = vmatprep.subr.mxu0 0.0
    %4044 = vmatpush1.msra.mxu0 0.0
    %4045 = vmatprep.subr.mxu0 0.0
    %4046 = vmatpush1.msra.mxu0 0.0
    %4047 = vmatprep.subr.mxu0 0.0
    %4048 = vmatpush1.msra.mxu0 0.0
    %4049 = vmatprep.subr.mxu0 0.0
    %4050 = vmatpush1.msra.mxu0 0.0
    %4051 = vmatprep.subr.mxu0 0.0
    %4052 = vmatpush1.msra.mxu0 0.0
    %4053 = vmatprep.subr.mxu0 0.0
    %4054 = vmatpush1.msra.mxu0 0.0
    %4055 = vmatprep.subr.mxu0 0.0
    %4056 = vmatpush1.msra.mxu0 %v4017
    %4057 = vmatprep.subr.mxu0 0.0
    %4058 = vmatpush2.msra.mxu0 0.0
    %4059 = vmatprep.subr.mxu0 0.0
    %4060 = vmatpush2.msra.mxu0 0.0
    %4061 = vmatprep.subr.mxu0 0.0
    %4062 = vmatpush2.msra.mxu0 0.0
    %4063 = vmatprep.subr.mxu0 0.0
    %4064 = vmatpush2.msra.mxu0 0.0
    %4065 = vmatprep.subr.mxu0 0.0
    %4066 = vmatpush2.msra.mxu0 0.0
    %4067 = vmatprep.subr.mxu0 0.0
    %4068 = vmatpush2.msra.mxu0 0.0
    %4069 = vmatprep.subr.mxu0 0.0
    %4070 = vmatpush2.msra.mxu0 0.0
    %4071 = vmatprep.subr.mxu0 0.0
    %4072 = vmatpush2.msra.mxu0 0.0
    %4073 = vmatprep.subr.mxu0 0.0
    %4074 = vmatpush2.msra.mxu0 0.0
    %4075 = vmatprep.subr.mxu0 0.0
    %4076 = vmatpush2.msra.mxu0 0.0
    %4077 = vmatprep.subr.mxu0 0.0
    %4078 = vmatpush2.msra.mxu0 0.0
    %4079 = vmatprep.subr.mxu0 0.0
    %4080 = vmatpush2.msra.mxu0 0.0
    %4081 = vmatprep.subr.mxu0 0.0
    %4082 = vmatpush2.msra.mxu0 0.0
    %4083 = vmatprep.subr.mxu0 0.0
    %4084 = vmatpush2.msra.mxu0 0.0
    %4085 = vmatprep.subr.mxu0 0.0
    %4086 = vmatpush2.msra.mxu0 0.0
    %4087 = vmatprep.subr.mxu0 0.0
    %4088 = vmatpush2.msra.mxu0 0.0
    %4089 = vmatprep.mubr.f32.mxu0 0.0
    %4090 = vmatmul.mubr.f32.gmra.mxu0 %v4020
    %v4091 = vpop.f32.mrf.mxu0
    %v4092 = vadd.f32 0.0, %v4091
    %v4093 = vpop.f32.mrf.mxu0
    %4094 = vmatprep.mubr.f32.mxu0 0.0
    %4095 = vmatmul.mubr.f32.gmra.mxu0 %v4023
    %v4096 = vpop.f32.mrf.mxu0
    %v4097 = vadd.f32 0.0, %v4096
    %v4098 = vpop.f32.mrf.mxu0
    %4099 = vdwg.mxu0
    %4101 = vrot.lane.b32.xlu0 %v3017, 32
    %v4102 = vpop.permute.xlu0 %4101
    %v4105 = vsel %vm293, %v3835, 0
    %v4108 = vsel %vm293, %v3840, 0
    %4110 = vmatprep.subr.mxu0 0.0
    %4111 = vmatpush1.msra.mxu0 0.0
    %4112 = vmatprep.subr.mxu0 0.0
    %4113 = vmatpush1.msra.mxu0 0.0
    %4114 = vmatprep.subr.mxu0 0.0
    %4115 = vmatpush1.msra.mxu0 0.0
    %4116 = vmatprep.subr.mxu0 0.0
    %4117 = vmatpush1.msra.mxu0 0.0
    %4118 = vmatprep.subr.mxu0 0.0
    %4119 = vmatpush1.msra.mxu0 0.0
    %4120 = vmatprep.subr.mxu0 0.0
    %4121 = vmatpush1.msra.mxu0 0.0
    %4122 = vmatprep.subr.mxu0 0.0
    %4123 = vmatpush1.msra.mxu0 0.0
    %4124 = vmatprep.subr.mxu0 0.0
    %4125 = vmatpush1.msra.mxu0 0.0
    %4126 = vmatprep.subr.mxu0 0.0
    %4127 = vmatpush1.msra.mxu0 0.0
    %4128 = vmatprep.subr.mxu0 0.0
    %4129 = vmatpush1.msra.mxu0 0.0
    %4130 = vmatprep.subr.mxu0 0.0
    %4131 = vmatpush1.msra.mxu0 0.0
    %4132 = vmatprep.subr.mxu0 0.0
    %4133 = vmatpush1.msra.mxu0 0.0
    %4134 = vmatprep.subr.mxu0 0.0
    %4135 = vmatpush1.msra.mxu0 0.0
    %4136 = vmatprep.subr.mxu0 0.0
    %4137 = vmatpush1.msra.mxu0 0.0
    %4138 = vmatprep.subr.mxu0 0.0
    %4139 = vmatpush1.msra.mxu0 0.0
    %4140 = vmatprep.subr.mxu0 0.0
    %4141 = vmatpush1.msra.mxu0 %v4102
    %4142 = vmatprep.subr.mxu0 0.0
    %4143 = vmatpush2.msra.mxu0 0.0
    %4144 = vmatprep.subr.mxu0 0.0
    %4145 = vmatpush2.msra.mxu0 0.0
    %4146 = vmatprep.subr.mxu0 0.0
    %4147 = vmatpush2.msra.mxu0 0.0
    %4148 = vmatprep.subr.mxu0 0.0
    %4149 = vmatpush2.msra.mxu0 0.0
    %4150 = vmatprep.subr.mxu0 0.0
    %4151 = vmatpush2.msra.mxu0 0.0
    %4152 = vmatprep.subr.mxu0 0.0
    %4153 = vmatpush2.msra.mxu0 0.0
    %4154 = vmatprep.subr.mxu0 0.0
    %4155 = vmatpush2.msra.mxu0 0.0
    %4156 = vmatprep.subr.mxu0 0.0
    %4157 = vmatpush2.msra.mxu0 0.0
    %4158 = vmatprep.subr.mxu0 0.0
    %4159 = vmatpush2.msra.mxu0 0.0
    %4160 = vmatprep.subr.mxu0 0.0
    %4161 = vmatpush2.msra.mxu0 0.0
    %4162 = vmatprep.subr.mxu0 0.0
    %4163 = vmatpush2.msra.mxu0 0.0
    %4164 = vmatprep.subr.mxu0 0.0
    %4165 = vmatpush2.msra.mxu0 0.0
    %4166 = vmatprep.subr.mxu0 0.0
    %4167 = vmatpush2.msra.mxu0 0.0
    %4168 = vmatprep.subr.mxu0 0.0
    %4169 = vmatpush2.msra.mxu0 0.0
    %4170 = vmatprep.subr.mxu0 0.0
    %4171 = vmatpush2.msra.mxu0 0.0
    %4172 = vmatprep.subr.mxu0 0.0
    %4173 = vmatpush2.msra.mxu0 0.0
    %4174 = vmatprep.mubr.f32.mxu0 0.0
    %4175 = vmatmul.mubr.f32.gmra.mxu0 %v4105
    %v4176 = vpop.f32.mrf.mxu0
    %v4177 = vadd.f32 0.0, %v4176
    %v4178 = vpop.f32.mrf.mxu0
    %4179 = vmatprep.mubr.f32.mxu0 0.0
    %4180 = vmatmul.mubr.f32.gmra.mxu0 %v4108
    %v4181 = vpop.f32.mrf.mxu0
    %v4182 = vadd.f32 0.0, %v4181
    %v4183 = vpop.f32.mrf.mxu0
    %4184 = vdwg.mxu0
    %4186 = vrot.lane.b32.xlu0 %v3018, 32
    %v4187 = vpop.permute.xlu0 %4186
    %v4190 = vsel %vm293, %v3922, 0
    %v4193 = vsel %vm293, %v3927, 0
    %4195 = vmatprep.subr.mxu0 0.0
    %4196 = vmatpush1.msra.mxu0 0.0
    %4197 = vmatprep.subr.mxu0 0.0
    %4198 = vmatpush1.msra.mxu0 0.0
    %4199 = vmatprep.subr.mxu0 0.0
    %4200 = vmatpush1.msra.mxu0 0.0
    %4201 = vmatprep.subr.mxu0 0.0
    %4202 = vmatpush1.msra.mxu0 0.0
    %4203 = vmatprep.subr.mxu0 0.0
    %4204 = vmatpush1.msra.mxu0 0.0
    %4205 = vmatprep.subr.mxu0 0.0
    %4206 = vmatpush1.msra.mxu0 0.0
    %4207 = vmatprep.subr.mxu0 0.0
    %4208 = vmatpush1.msra.mxu0 0.0
    %4209 = vmatprep.subr.mxu0 0.0
    %4210 = vmatpush1.msra.mxu0 0.0
    %4211 = vmatprep.subr.mxu0 0.0
    %4212 = vmatpush1.msra.mxu0 0.0
    %4213 = vmatprep.subr.mxu0 0.0
    %4214 = vmatpush1.msra.mxu0 0.0
    %4215 = vmatprep.subr.mxu0 0.0
    %4216 = vmatpush1.msra.mxu0 0.0
    %4217 = vmatprep.subr.mxu0 0.0
    %4218 = vmatpush1.msra.mxu0 0.0
    %4219 = vmatprep.subr.mxu0 0.0
    %4220 = vmatpush1.msra.mxu0 0.0
    %4221 = vmatprep.subr.mxu0 0.0
    %4222 = vmatpush1.msra.mxu0 0.0
    %4223 = vmatprep.subr.mxu0 0.0
    %4224 = vmatpush1.msra.mxu0 0.0
    %4225 = vmatprep.subr.mxu0 0.0
    %4226 = vmatpush1.msra.mxu0 %v4187
    %4227 = vmatprep.subr.mxu0 0.0
    %4228 = vmatpush2.msra.mxu0 0.0
    %4229 = vmatprep.subr.mxu0 0.0
    %4230 = vmatpush2.msra.mxu0 0.0
    %4231 = vmatprep.subr.mxu0 0.0
    %4232 = vmatpush2.msra.mxu0 0.0
    %4233 = vmatprep.subr.mxu0 0.0
    %4234 = vmatpush2.msra.mxu0 0.0
    %4235 = vmatprep.subr.mxu0 0.0
    %4236 = vmatpush2.msra.mxu0 0.0
    %4237 = vmatprep.subr.mxu0 0.0
    %4238 = vmatpush2.msra.mxu0 0.0
    %4239 = vmatprep.subr.mxu0 0.0
    %4240 = vmatpush2.msra.mxu0 0.0
    %4241 = vmatprep.subr.mxu0 0.0
    %4242 = vmatpush2.msra.mxu0 0.0
    %4243 = vmatprep.subr.mxu0 0.0
    %4244 = vmatpush2.msra.mxu0 0.0
    %4245 = vmatprep.subr.mxu0 0.0
    %4246 = vmatpush2.msra.mxu0 0.0
    %4247 = vmatprep.subr.mxu0 0.0
    %4248 = vmatpush2.msra.mxu0 0.0
    %4249 = vmatprep.subr.mxu0 0.0
    %4250 = vmatpush2.msra.mxu0 0.0
    %4251 = vmatprep.subr.mxu0 0.0
    %4252 = vmatpush2.msra.mxu0 0.0
    %4253 = vmatprep.subr.mxu0 0.0
    %4254 = vmatpush2.msra.mxu0 0.0
    %4255 = vmatprep.subr.mxu0 0.0
    %4256 = vmatpush2.msra.mxu0 0.0
    %4257 = vmatprep.subr.mxu0 0.0
    %4258 = vmatpush2.msra.mxu0 0.0
    %4259 = vmatprep.mubr.f32.mxu0 0.0
    %4260 = vmatmul.mubr.f32.gmra.mxu0 %v4190
    %v4261 = vpop.f32.mrf.mxu0
    %v4262 = vadd.f32 0.0, %v4261
    %v4263 = vpop.f32.mrf.mxu0
    %4264 = vmatprep.mubr.f32.mxu0 0.0
    %4265 = vmatmul.mubr.f32.gmra.mxu0 %v4193
    %v4266 = vpop.f32.mrf.mxu0
    %v4267 = vadd.f32 0.0, %v4266
    %v4268 = vpop.f32.mrf.mxu0
    %4269 = vdwg.mxu0
    %v4270 = vsel %vm78, %v4007, 0.0
    %v4271 = vsel %vm78, %v4092, 0.0
    %v4272 = vadd.f32 %v4270, %v4271
    %v4273 = vsel %vm78, %v4177, 0.0
    %v4274 = vadd.f32 %v4272, %v4273
    %v4275 = vsel %vm78, %v4262, 0.0
    %v4276 = vadd.f32 %v4274, %v4275
    %v4277 = vsel %vm78, %v4012, 0.0
    %v4278 = vsel %vm78, %v4097, 0.0
    %v4279 = vadd.f32 %v4277, %v4278
    %v4280 = vsel %vm78, %v4182, 0.0
    %v4281 = vadd.f32 %v4279, %v4280
    %v4282 = vsel %vm78, %v4267, 0.0
    %v4283 = vadd.f32 %v4281, %v4282
    %v4284 = vlaneseq
    %v4285 = vshrl.u32 %v4284, 7
    %v4286 = vsub.s32 0, %v4285
    %v4287 = vrot.slane %v3020, %v4286
    %v4288 = vadd.f32 %v4276, %v4287
    %v4289 = vadd.f32 %v4283, %v4287
    %v4290 = vld [vmem:[#allocation7 + $0xa4] sm:$0x1]
    %v4291 = vld [vmem:[#allocation7 + $0xa7] sm:$0x1]
    %v4292 = vsel %vm78, %v4288, 0.0
    %4293 = vadd.xlane.f32.xlu0 %v4292
    %v4294 = vpop.xlane.xlu0 %4293
    %v4295 = vsel %vm78, %v4289, 0.0
    %4296 = vadd.xlane.f32.xlu0 %v4295
    %v4297 = vpop.xlane.xlu0 %4296
    %v4298 = vmul.f32 %v4294, %v1459
    %v4299 = vmul.f32 %v4297, %v1459
    %v4300 = vsub.f32 %v4288, %v4298
    %v4301 = vsub.f32 %v4289, %v4299
    %v4302 = vmul.f32 %v4300, %v4300
    %v4303 = vmul.f32 %v4301, %v4301
    %v4304 = vsel %vm78, %v4302, 0.0
    %4305 = vadd.xlane.f32.xlu0 %v4304
    %v4306 = vpop.xlane.xlu0 %4305
    %v4307 = vsel %vm78, %v4303, 0.0
    %4308 = vadd.xlane.f32.xlu0 %v4307
    %v4309 = vpop.xlane.xlu0 %4308
    %v4310 = vmul.f32 %v4306, %v1459
    %v4311 = vmul.f32 %v4309, %v1459
    %v4312 = vadd.f32 %v4310, 1e-05
    %v4313 = vadd.f32 %v4311, 1e-05
    %v4314 = vrsqrt.pop %v4312
    %v4315 = vrsqrt.pop %v4313
    %v4316 = vmul.f32 %v4300, %v4314
    %v4317 = vmul.f32 %v4301, %v4315
    %v4318 = vlaneseq
    %v4319 = vshrl.u32 %v4318, 7
    %v4320 = vsub.s32 0, %v4319
    %v4321 = vrot.slane %v4290, %v4320
    %v4322 = vmul.f32 %v4316, %v4321
    %v4323 = vmul.f32 %v4317, %v4321
    %v4324 = vlaneseq
    %v4325 = vshrl.u32 %v4324, 7
    %v4326 = vsub.s32 0, %v4325
    %v4327 = vrot.slane %v4291, %v4326
    %v4328 = vadd.f32 %v4322, %v4327
    %v4329 = vadd.f32 %v4323, %v4327
    %v4330 = vadd.f32 %v3013, %v4328
    %v4331 = vadd.f32 %v3014, %v4329
    %v4332 = vld [vmem:[#allocation7 + $0x60] sm:$0xff]
    %v4333 = vld [vmem:[#allocation7 + $0x68] sm:$0xff]
    %v4334 = vld [vmem:[#allocation7 + $0x70] sm:$0xff]
    %v4335 = vld [vmem:[#allocation7 + $0x78] sm:$0xff]
    %v4336 = vld [vmem:[#allocation7 + $0xa0] sm:$0x1]
    %v4337 = vlaneseq
    %v4338 = vshrl.u32 %v4337, 7
    %v4339 = vsub.s32 0, %v4338
    %v4340 = vrot.slane %v4336, %v4339
    %v4342 = vsel %vm78, %v4330, 0
    %v4345 = vsel %vm78, %v4331, 0
    %4347 = vmatprep.subr.mxu0 0.0
    %4348 = vmatpush1.msra.mxu0 0.0
    %4349 = vmatprep.subr.mxu0 0.0
    %4350 = vmatpush1.msra.mxu0 0.0
    %4351 = vmatprep.subr.mxu0 0.0
    %4352 = vmatpush1.msra.mxu0 0.0
    %4353 = vmatprep.subr.mxu0 0.0
    %4354 = vmatpush1.msra.mxu0 0.0
    %4355 = vmatprep.subr.mxu0 0.0
    %4356 = vmatpush1.msra.mxu0 0.0
    %4357 = vmatprep.subr.mxu0 0.0
    %4358 = vmatpush1.msra.mxu0 0.0
    %4359 = vmatprep.subr.mxu0 0.0
    %4360 = vmatpush1.msra.mxu0 0.0
    %4361 = vmatprep.subr.mxu0 0.0
    %4362 = vmatpush1.msra.mxu0 0.0
    %4363 = vmatprep.subr.mxu0 0.0
    %4364 = vmatpush1.msra.mxu0 0.0
    %4365 = vmatprep.subr.mxu0 0.0
    %4366 = vmatpush1.msra.mxu0 0.0
    %4367 = vmatprep.subr.mxu0 0.0
    %4368 = vmatpush1.msra.mxu0 0.0
    %4369 = vmatprep.subr.mxu0 0.0
    %4370 = vmatpush1.msra.mxu0 0.0
    %4371 = vmatprep.subr.mxu0 0.0
    %4372 = vmatpush1.msra.mxu0 %v4335
    %4373 = vmatprep.subr.mxu0 0.0
    %4374 = vmatpush1.msra.mxu0 %v4334
    %4375 = vmatprep.subr.mxu0 0.0
    %4376 = vmatpush1.msra.mxu0 %v4333
    %4377 = vmatprep.subr.mxu0 0.0
    %4378 = vmatpush1.msra.mxu0 %v4332
    %4379 = vmatprep.subr.mxu0 0.0
    %4380 = vmatpush2.msra.mxu0 0.0
    %4381 = vmatprep.subr.mxu0 0.0
    %4382 = vmatpush2.msra.mxu0 0.0
    %4383 = vmatprep.subr.mxu0 0.0
    %4384 = vmatpush2.msra.mxu0 0.0
    %4385 = vmatprep.subr.mxu0 0.0
    %4386 = vmatpush2.msra.mxu0 0.0
    %4387 = vmatprep.subr.mxu0 0.0
    %4388 = vmatpush2.msra.mxu0 0.0
    %4389 = vmatprep.subr.mxu0 0.0
    %4390 = vmatpush2.msra.mxu0 0.0
    %4391 = vmatprep.subr.mxu0 0.0
    %4392 = vmatpush2.msra.mxu0 0.0
    %4393 = vmatprep.subr.mxu0 0.0
    %4394 = vmatpush2.msra.mxu0 0.0
    %4395 = vmatprep.subr.mxu0 0.0
    %4396 = vmatpush2.msra.mxu0 0.0
    %4397 = vmatprep.subr.mxu0 0.0
    %4398 = vmatpush2.msra.mxu0 0.0
    %4399 = vmatprep.subr.mxu0 0.0
    %4400 = vmatpush2.msra.mxu0 0.0
    %4401 = vmatprep.subr.mxu0 0.0
    %4402 = vmatpush2.msra.mxu0 0.0
    %4403 = vmatprep.subr.mxu0 0.0
    %4404 = vmatpush2.msra.mxu0 0.0
    %4405 = vmatprep.subr.mxu0 0.0
    %4406 = vmatpush2.msra.mxu0 0.0
    %4407 = vmatprep.subr.mxu0 0.0
    %4408 = vmatpush2.msra.mxu0 0.0
    %4409 = vmatprep.subr.mxu0 0.0
    %4410 = vmatpush2.msra.mxu0 0.0
    %4411 = vmatprep.mubr.f32.mxu0 0.0
    %4412 = vmatmul.mubr.f32.gmra.mxu0 %v4342
    %v4413 = vpop.f32.mrf.mxu0
    %v4414 = vadd.f32 %v4340, %v4413
    %v4415 = vpop.f32.mrf.mxu0
    %4416 = vmatprep.mubr.f32.mxu0 0.0
    %4417 = vmatmul.mubr.f32.gmra.mxu0 %v4345
    %v4418 = vpop.f32.mrf.mxu0
    %v4419 = vadd.f32 %v4340, %v4418
    %v4420 = vpop.f32.mrf.mxu0
    %4421 = vdwg.mxu0
    %4424 = vrot.lane.b32.xlu0 %v4414, 120
    %v4425 = vpop.permute.xlu0 %4424
    %4426 = vrot.lane.b32.xlu0 %v4419, 120
    %v4427 = vpop.permute.xlu0 %4426
    %4428 = vrot.lane.b32.xlu0 %v4414, 112
    %v4429 = vpop.permute.xlu0 %4428
    %4430 = vrot.lane.b32.xlu0 %v4419, 112
    %v4431 = vpop.permute.xlu0 %4430
    %4432 = vrot.lane.b32.xlu0 %v4414, 104
    %v4433 = vpop.permute.xlu0 %4432
    %4434 = vrot.lane.b32.xlu0 %v4419, 104
    %v4435 = vpop.permute.xlu0 %4434
    %4436 = vrot.lane.b32.xlu0 %v152, 64
    %v4437 = vpop.permute.xlu0 %4436
    %4438 = vrot.lane.b32.xlu0 %v157, 64
    %v4439 = vpop.permute.xlu0 %4438
    %v4440 = vsel %vm293, %v4437, 0
    %v4442 = vsel %vm293, %v4439, 0
    %v4444 = vsel %vm293, %v4414, 0
    %v4446 = vsel %vm293, %v4419, 0
    %4448 = vmatprep.subr.mxu0 0.0
    %4449 = vmatpush1.xpose.msra.mxu0 0.0
    %4450 = vmatprep.subr.mxu0 0.0
    %4451 = vmatpush1.xpose.msra.mxu0 0.0
    %4452 = vmatprep.subr.mxu0 0.0
    %4453 = vmatpush1.xpose.msra.mxu0 0.0
    %4454 = vmatprep.subr.mxu0 0.0
    %4455 = vmatpush1.xpose.msra.mxu0 0.0
    %4456 = vmatprep.subr.mxu0 0.0
    %4457 = vmatpush1.xpose.msra.mxu0 0.0
    %4458 = vmatprep.subr.mxu0 0.0
    %4459 = vmatpush1.xpose.msra.mxu0 0.0
    %4460 = vmatprep.subr.mxu0 0.0
    %4461 = vmatpush1.xpose.msra.mxu0 0.0
    %4462 = vmatprep.subr.mxu0 0.0
    %4463 = vmatpush1.xpose.msra.mxu0 0.0
    %4464 = vmatprep.subr.mxu0 0.0
    %4465 = vmatpush1.xpose.msra.mxu0 0.0
    %4466 = vmatprep.subr.mxu0 0.0
    %4467 = vmatpush1.xpose.msra.mxu0 0.0
    %4468 = vmatprep.subr.mxu0 0.0
    %4469 = vmatpush1.xpose.msra.mxu0 0.0
    %4470 = vmatprep.subr.mxu0 0.0
    %4471 = vmatpush1.xpose.msra.mxu0 0.0
    %4472 = vmatprep.subr.mxu0 0.0
    %4473 = vmatpush1.xpose.msra.mxu0 0.0
    %4474 = vmatprep.subr.mxu0 0.0
    %4475 = vmatpush1.xpose.msra.mxu0 0.0
    %4476 = vmatprep.subr.mxu0 0.0
    %4477 = vmatpush1.xpose.msra.mxu0 %v4446
    %4478 = vmatprep.subr.mxu0 0.0
    %4479 = vmatpush1.xpose.msra.mxu0 %v4444
    %4480 = vmatprep.subr.mxu0 0.0
    %4481 = vmatpush2.xpose.msra.mxu0 0.0
    %4482 = vmatprep.subr.mxu0 0.0
    %4483 = vmatpush2.xpose.msra.mxu0 0.0
    %4484 = vmatprep.subr.mxu0 0.0
    %4485 = vmatpush2.xpose.msra.mxu0 0.0
    %4486 = vmatprep.subr.mxu0 0.0
    %4487 = vmatpush2.xpose.msra.mxu0 0.0
    %4488 = vmatprep.subr.mxu0 0.0
    %4489 = vmatpush2.xpose.msra.mxu0 0.0
    %4490 = vmatprep.subr.mxu0 0.0
    %4491 = vmatpush2.xpose.msra.mxu0 0.0
    %4492 = vmatprep.subr.mxu0 0.0
    %4493 = vmatpush2.xpose.msra.mxu0 0.0
    %4494 = vmatprep.subr.mxu0 0.0
    %4495 = vmatpush2.xpose.msra.mxu0 0.0
    %4496 = vmatprep.subr.mxu0 0.0
    %4497 = vmatpush2.xpose.msra.mxu0 0.0
    %4498 = vmatprep.subr.mxu0 0.0
    %4499 = vmatpush2.xpose.msra.mxu0 0.0
    %4500 = vmatprep.subr.mxu0 0.0
    %4501 = vmatpush2.xpose.msra.mxu0 0.0
    %4502 = vmatprep.subr.mxu0 0.0
    %4503 = vmatpush2.xpose.msra.mxu0 0.0
    %4504 = vmatprep.subr.mxu0 0.0
    %4505 = vmatpush2.xpose.msra.mxu0 0.0
    %4506 = vmatprep.subr.mxu0 0.0
    %4507 = vmatpush2.xpose.msra.mxu0 0.0
    %4508 = vmatprep.subr.mxu0 0.0
    %4509 = vmatpush2.xpose.msra.mxu0 0.0
    %4510 = vmatprep.subr.mxu0 0.0
    %4511 = vmatpush2.xpose.msra.mxu0 0.0
    %4512 = vmatprep.mubr.f32.mxu0 0.0
    %4513 = vmatmul.mubr.f32.gmra.mxu0 %v4440
    %v4514 = vpop.f32.mrf.mxu0
    %v4515 = vadd.f32 0.0, %v4514
    %v4516 = vpop.f32.mrf.mxu0
    %4517 = vmatprep.mubr.f32.mxu0 0.0
    %4518 = vmatmul.mubr.f32.gmra.mxu0 %v4442
    %v4519 = vpop.f32.mrf.mxu0
    %v4520 = vadd.f32 0.0, %v4519
    %v4521 = vpop.f32.mrf.mxu0
    %4522 = vdwg.mxu0
    %4523 = vrot.lane.b32.xlu0 %v163, 64
    %v4524 = vpop.permute.xlu0 %4523
    %4525 = vrot.lane.b32.xlu0 %v165, 64
    %v4526 = vpop.permute.xlu0 %4525
    %v4527 = vsel %vm293, %v4524, 0
    %v4529 = vsel %vm293, %v4526, 0
    %v4531 = vsel %vm293, %v4425, 0
    %v4533 = vsel %vm293, %v4427, 0
    %4535 = vmatprep.subr.mxu0 0.0
    %4536 = vmatpush1.xpose.msra.mxu0 0.0
    %4537 = vmatprep.subr.mxu0 0.0
    %4538 = vmatpush1.xpose.msra.mxu0 0.0
    %4539 = vmatprep.subr.mxu0 0.0
    %4540 = vmatpush1.xpose.msra.mxu0 0.0
    %4541 = vmatprep.subr.mxu0 0.0
    %4542 = vmatpush1.xpose.msra.mxu0 0.0
    %4543 = vmatprep.subr.mxu0 0.0
    %4544 = vmatpush1.xpose.msra.mxu0 0.0
    %4545 = vmatprep.subr.mxu0 0.0
    %4546 = vmatpush1.xpose.msra.mxu0 0.0
    %4547 = vmatprep.subr.mxu0 0.0
    %4548 = vmatpush1.xpose.msra.mxu0 0.0
    %4549 = vmatprep.subr.mxu0 0.0
    %4550 = vmatpush1.xpose.msra.mxu0 0.0
    %4551 = vmatprep.subr.mxu0 0.0
    %4552 = vmatpush1.xpose.msra.mxu0 0.0
    %4553 = vmatprep.subr.mxu0 0.0
    %4554 = vmatpush1.xpose.msra.mxu0 0.0
    %4555 = vmatprep.subr.mxu0 0.0
    %4556 = vmatpush1.xpose.msra.mxu0 0.0
    %4557 = vmatprep.subr.mxu0 0.0
    %4558 = vmatpush1.xpose.msra.mxu0 0.0
    %4559 = vmatprep.subr.mxu0 0.0
    %4560 = vmatpush1.xpose.msra.mxu0 0.0
    %4561 = vmatprep.subr.mxu0 0.0
    %4562 = vmatpush1.xpose.msra.mxu0 0.0
    %4563 = vmatprep.subr.mxu0 0.0
    %4564 = vmatpush1.xpose.msra.mxu0 %v4533
    %4565 = vmatprep.subr.mxu0 0.0
    %4566 = vmatpush1.xpose.msra.mxu0 %v4531
    %4567 = vmatprep.subr.mxu0 0.0
    %4568 = vmatpush2.xpose.msra.mxu0 0.0
    %4569 = vmatprep.subr.mxu0 0.0
    %4570 = vmatpush2.xpose.msra.mxu0 0.0
    %4571 = vmatprep.subr.mxu0 0.0
    %4572 = vmatpush2.xpose.msra.mxu0 0.0
    %4573 = vmatprep.subr.mxu0 0.0
    %4574 = vmatpush2.xpose.msra.mxu0 0.0
    %4575 = vmatprep.subr.mxu0 0.0
    %4576 = vmatpush2.xpose.msra.mxu0 0.0
    %4577 = vmatprep.subr.mxu0 0.0
    %4578 = vmatpush2.xpose.msra.mxu0 0.0
    %4579 = vmatprep.subr.mxu0 0.0
    %4580 = vmatpush2.xpose.msra.mxu0 0.0
    %4581 = vmatprep.subr.mxu0 0.0
    %4582 = vmatpush2.xpose.msra.mxu0 0.0
    %4583 = vmatprep.subr.mxu0 0.0
    %4584 = vmatpush2.xpose.msra.mxu0 0.0
    %4585 = vmatprep.subr.mxu0 0.0
    %4586 = vmatpush2.xpose.msra.mxu0 0.0
    %4587 = vmatprep.subr.mxu0 0.0
    %4588 = vmatpush2.xpose.msra.mxu0 0.0
    %4589 = vmatprep.subr.mxu0 0.0
    %4590 = vmatpush2.xpose.msra.mxu0 0.0
    %4591 = vmatprep.subr.mxu0 0.0
    %4592 = vmatpush2.xpose.msra.mxu0 0.0
    %4593 = vmatprep.subr.mxu0 0.0
    %4594 = vmatpush2.xpose.msra.mxu0 0.0
    %4595 = vmatprep.subr.mxu0 0.0
    %4596 = vmatpush2.xpose.msra.mxu0 0.0
    %4597 = vmatprep.subr.mxu0 0.0
    %4598 = vmatpush2.xpose.msra.mxu0 0.0
    %4599 = vmatprep.mubr.f32.mxu0 0.0
    %4600 = vmatmul.mubr.f32.gmra.mxu0 %v4527
    %v4601 = vpop.f32.mrf.mxu0
    %v4602 = vadd.f32 0.0, %v4601
    %v4603 = vpop.f32.mrf.mxu0
    %4604 = vmatprep.mubr.f32.mxu0 0.0
    %4605 = vmatmul.mubr.f32.gmra.mxu0 %v4529
    %v4606 = vpop.f32.mrf.mxu0
    %v4607 = vadd.f32 0.0, %v4606
    %v4608 = vpop.f32.mrf.mxu0
    %4609 = vdwg.mxu0
    %4610 = vrot.lane.b32.xlu0 %v167, 64
    %v4611 = vpop.permute.xlu0 %4610
    %4612 = vrot.lane.b32.xlu0 %v169, 64
    %v4613 = vpop.permute.xlu0 %4612
    %v4614 = vsel %vm293, %v4611, 0
    %v4616 = vsel %vm293, %v4613, 0
    %v4618 = vsel %vm293, %v4429, 0
    %v4620 = vsel %vm293, %v4431, 0
    %4622 = vmatprep.subr.mxu0 0.0
    %4623 = vmatpush1.xpose.msra.mxu0 0.0
    %4624 = vmatprep.subr.mxu0 0.0
    %4625 = vmatpush1.xpose.msra.mxu0 0.0
    %4626 = vmatprep.subr.mxu0 0.0
    %4627 = vmatpush1.xpose.msra.mxu0 0.0
    %4628 = vmatprep.subr.mxu0 0.0
    %4629 = vmatpush1.xpose.msra.mxu0 0.0
    %4630 = vmatprep.subr.mxu0 0.0
    %4631 = vmatpush1.xpose.msra.mxu0 0.0
    %4632 = vmatprep.subr.mxu0 0.0
    %4633 = vmatpush1.xpose.msra.mxu0 0.0
    %4634 = vmatprep.subr.mxu0 0.0
    %4635 = vmatpush1.xpose.msra.mxu0 0.0
    %4636 = vmatprep.subr.mxu0 0.0
    %4637 = vmatpush1.xpose.msra.mxu0 0.0
    %4638 = vmatprep.subr.mxu0 0.0
    %4639 = vmatpush1.xpose.msra.mxu0 0.0
    %4640 = vmatprep.subr.mxu0 0.0
    %4641 = vmatpush1.xpose.msra.mxu0 0.0
    %4642 = vmatprep.subr.mxu0 0.0
    %4643 = vmatpush1.xpose.msra.mxu0 0.0
    %4644 = vmatprep.subr.mxu0 0.0
    %4645 = vmatpush1.xpose.msra.mxu0 0.0
    %4646 = vmatprep.subr.mxu0 0.0
    %4647 = vmatpush1.xpose.msra.mxu0 0.0
    %4648 = vmatprep.subr.mxu0 0.0
    %4649 = vmatpush1.xpose.msra.mxu0 0.0
    %4650 = vmatprep.subr.mxu0 0.0
    %4651 = vmatpush1.xpose.msra.mxu0 %v4620
    %4652 = vmatprep.subr.mxu0 0.0
    %4653 = vmatpush1.xpose.msra.mxu0 %v4618
    %4654 = vmatprep.subr.mxu0 0.0
    %4655 = vmatpush2.xpose.msra.mxu0 0.0
    %4656 = vmatprep.subr.mxu0 0.0
    %4657 = vmatpush2.xpose.msra.mxu0 0.0
    %4658 = vmatprep.subr.mxu0 0.0
    %4659 = vmatpush2.xpose.msra.mxu0 0.0
    %4660 = vmatprep.subr.mxu0 0.0
    %4661 = vmatpush2.xpose.msra.mxu0 0.0
    %4662 = vmatprep.subr.mxu0 0.0
    %4663 = vmatpush2.xpose.msra.mxu0 0.0
    %4664 = vmatprep.subr.mxu0 0.0
    %4665 = vmatpush2.xpose.msra.mxu0 0.0
    %4666 = vmatprep.subr.mxu0 0.0
    %4667 = vmatpush2.xpose.msra.mxu0 0.0
    %4668 = vmatprep.subr.mxu0 0.0
    %4669 = vmatpush2.xpose.msra.mxu0 0.0
    %4670 = vmatprep.subr.mxu0 0.0
    %4671 = vmatpush2.xpose.msra.mxu0 0.0
    %4672 = vmatprep.subr.mxu0 0.0
    %4673 = vmatpush2.xpose.msra.mxu0 0.0
    %4674 = vmatprep.subr.mxu0 0.0
    %4675 = vmatpush2.xpose.msra.mxu0 0.0
    %4676 = vmatprep.subr.mxu0 0.0
    %4677 = vmatpush2.xpose.msra.mxu0 0.0
    %4678 = vmatprep.subr.mxu0 0.0
    %4679 = vmatpush2.xpose.msra.mxu0 0.0
    %4680 = vmatprep.subr.mxu0 0.0
    %4681 = vmatpush2.xpose.msra.mxu0 0.0
    %4682 = vmatprep.subr.mxu0 0.0
    %4683 = vmatpush2.xpose.msra.mxu0 0.0
    %4684 = vmatprep.subr.mxu0 0.0
    %4685 = vmatpush2.xpose.msra.mxu0 0.0
    %4686 = vmatprep.mubr.f32.mxu0 0.0
    %4687 = vmatmul.mubr.f32.gmra.mxu0 %v4614
    %v4688 = vpop.f32.mrf.mxu0
    %v4689 = vadd.f32 0.0, %v4688
    %v4690 = vpop.f32.mrf.mxu0
    %4691 = vmatprep.mubr.f32.mxu0 0.0
    %4692 = vmatmul.mubr.f32.gmra.mxu0 %v4616
    %v4693 = vpop.f32.mrf.mxu0
    %v4694 = vadd.f32 0.0, %v4693
    %v4695 = vpop.f32.mrf.mxu0
    %4696 = vdwg.mxu0
    %4697 = vrot.lane.b32.xlu0 %v171, 64
    %v4698 = vpop.permute.xlu0 %4697
    %4699 = vrot.lane.b32.xlu0 %v173, 64
    %v4700 = vpop.permute.xlu0 %4699
    %v4701 = vsel %vm293, %v4698, 0
    %v4703 = vsel %vm293, %v4700, 0
    %v4705 = vsel %vm293, %v4433, 0
    %v4707 = vsel %vm293, %v4435, 0
    %4709 = vmatprep.subr.mxu0 0.0
    %4710 = vmatpush1.xpose.msra.mxu0 0.0
    %4711 = vmatprep.subr.mxu0 0.0
    %4712 = vmatpush1.xpose.msra.mxu0 0.0
    %4713 = vmatprep.subr.mxu0 0.0
    %4714 = vmatpush1.xpose.msra.mxu0 0.0
    %4715 = vmatprep.subr.mxu0 0.0
    %4716 = vmatpush1.xpose.msra.mxu0 0.0
    %4717 = vmatprep.subr.mxu0 0.0
    %4718 = vmatpush1.xpose.msra.mxu0 0.0
    %4719 = vmatprep.subr.mxu0 0.0
    %4720 = vmatpush1.xpose.msra.mxu0 0.0
    %4721 = vmatprep.subr.mxu0 0.0
    %4722 = vmatpush1.xpose.msra.mxu0 0.0
    %4723 = vmatprep.subr.mxu0 0.0
    %4724 = vmatpush1.xpose.msra.mxu0 0.0
    %4725 = vmatprep.subr.mxu0 0.0
    %4726 = vmatpush1.xpose.msra.mxu0 0.0
    %4727 = vmatprep.subr.mxu0 0.0
    %4728 = vmatpush1.xpose.msra.mxu0 0.0
    %4729 = vmatprep.subr.mxu0 0.0
    %4730 = vmatpush1.xpose.msra.mxu0 0.0
    %4731 = vmatprep.subr.mxu0 0.0
    %4732 = vmatpush1.xpose.msra.mxu0 0.0
    %4733 = vmatprep.subr.mxu0 0.0
    %4734 = vmatpush1.xpose.msra.mxu0 0.0
    %4735 = vmatprep.subr.mxu0 0.0
    %4736 = vmatpush1.xpose.msra.mxu0 0.0
    %4737 = vmatprep.subr.mxu0 0.0
    %4738 = vmatpush1.xpose.msra.mxu0 %v4707
    %4739 = vmatprep.subr.mxu0 0.0
    %4740 = vmatpush1.xpose.msra.mxu0 %v4705
    %4741 = vmatprep.subr.mxu0 0.0
    %4742 = vmatpush2.xpose.msra.mxu0 0.0
    %4743 = vmatprep.subr.mxu0 0.0
    %4744 = vmatpush2.xpose.msra.mxu0 0.0
    %4745 = vmatprep.subr.mxu0 0.0
    %4746 = vmatpush2.xpose.msra.mxu0 0.0
    %4747 = vmatprep.subr.mxu0 0.0
    %4748 = vmatpush2.xpose.msra.mxu0 0.0
    %4749 = vmatprep.subr.mxu0 0.0
    %4750 = vmatpush2.xpose.msra.mxu0 0.0
    %4751 = vmatprep.subr.mxu0 0.0
    %4752 = vmatpush2.xpose.msra.mxu0 0.0
    %4753 = vmatprep.subr.mxu0 0.0
    %4754 = vmatpush2.xpose.msra.mxu0 0.0
    %4755 = vmatprep.subr.mxu0 0.0
    %4756 = vmatpush2.xpose.msra.mxu0 0.0
    %4757 = vmatprep.subr.mxu0 0.0
    %4758 = vmatpush2.xpose.msra.mxu0 0.0
    %4759 = vmatprep.subr.mxu0 0.0
    %4760 = vmatpush2.xpose.msra.mxu0 0.0
    %4761 = vmatprep.subr.mxu0 0.0
    %4762 = vmatpush2.xpose.msra.mxu0 0.0
    %4763 = vmatprep.subr.mxu0 0.0
    %4764 = vmatpush2.xpose.msra.mxu0 0.0
    %4765 = vmatprep.subr.mxu0 0.0
    %4766 = vmatpush2.xpose.msra.mxu0 0.0
    %4767 = vmatprep.subr.mxu0 0.0
    %4768 = vmatpush2.xpose.msra.mxu0 0.0
    %4769 = vmatprep.subr.mxu0 0.0
    %4770 = vmatpush2.xpose.msra.mxu0 0.0
    %4771 = vmatprep.subr.mxu0 0.0
    %4772 = vmatpush2.xpose.msra.mxu0 0.0
    %4773 = vmatprep.mubr.f32.mxu0 0.0
    %4774 = vmatmul.mubr.f32.gmra.mxu0 %v4701
    %v4775 = vpop.f32.mrf.mxu0
    %v4776 = vadd.f32 0.0, %v4775
    %v4777 = vpop.f32.mrf.mxu0
    %4778 = vmatprep.mubr.f32.mxu0 0.0
    %4779 = vmatmul.mubr.f32.gmra.mxu0 %v4703
    %v4780 = vpop.f32.mrf.mxu0
    %v4781 = vadd.f32 0.0, %v4780
    %v4782 = vpop.f32.mrf.mxu0
    %4783 = vdwg.mxu0
    %v4784 = vmul.f32 %v4515, 0.35355338
    %v4785 = vmul.f32 %v4520, 0.35355338
    %v4786 = vmul.f32 %v4602, 0.35355338
    %v4787 = vmul.f32 %v4607, 0.35355338
    %v4788 = vmul.f32 %v4689, 0.35355338
    %v4789 = vmul.f32 %v4694, 0.35355338
    %v4790 = vmul.f32 %v4776, 0.35355338
    %v4791 = vmul.f32 %v4781, 0.35355338
    %v4792 = vadd.f32 %v4784, %v57
    %v4793 = vadd.f32 %v4785, %v58
    %v4794 = vadd.f32 %v4786, %v57
    %v4795 = vadd.f32 %v4787, %v58
    %v4796 = vadd.f32 %v4788, %v57
    %v4797 = vadd.f32 %v4789, %v58
    %v4798 = vadd.f32 %v4790, %v57
    %v4799 = vadd.f32 %v4791, %v58
    %v4800 = vsel %vm654, %v4792, -inf
    %4801 = vmax.xlane.f32.xlu0 %v4800
    %v4802 = vpop.xlane.xlu0 %4801
    %v4803 = vsel %vm654, %v4793, -inf
    %4804 = vmax.xlane.f32.xlu0 %v4803
    %v4805 = vpop.xlane.xlu0 %4804
    %v4806 = vsel %vm654, %v4794, -inf
    %4807 = vmax.xlane.f32.xlu0 %v4806
    %v4808 = vpop.xlane.xlu0 %4807
    %v4809 = vsel %vm654, %v4795, -inf
    %4810 = vmax.xlane.f32.xlu0 %v4809
    %v4811 = vpop.xlane.xlu0 %4810
    %v4812 = vsel %vm654, %v4796, -inf
    %4813 = vmax.xlane.f32.xlu0 %v4812
    %v4814 = vpop.xlane.xlu0 %4813
    %v4815 = vsel %vm654, %v4797, -inf
    %4816 = vmax.xlane.f32.xlu0 %v4815
    %v4817 = vpop.xlane.xlu0 %4816
    %v4818 = vsel %vm654, %v4798, -inf
    %4819 = vmax.xlane.f32.xlu0 %v4818
    %v4820 = vpop.xlane.xlu0 %4819
    %v4821 = vsel %vm654, %v4799, -inf
    %4822 = vmax.xlane.f32.xlu0 %v4821
    %v4823 = vpop.xlane.xlu0 %4822
    %v4824 = vsub.f32 %v4792, %v4802
    %v4825 = vsub.f32 %v4793, %v4805
    %v4826 = vsub.f32 %v4794, %v4808
    %v4827 = vsub.f32 %v4795, %v4811
    %v4828 = vsub.f32 %v4796, %v4814
    %v4829 = vsub.f32 %v4797, %v4817
    %v4830 = vsub.f32 %v4798, %v4820
    %v4831 = vsub.f32 %v4799, %v4823
    %v4832 = vmul.f32 %v4824, 1.442695
    %v4833 = vpow.pop %v4832
    %v4834 = vmul.f32 %v4825, 1.442695
    %v4835 = vpow.pop %v4834
    %v4836 = vmul.f32 %v4826, 1.442695
    %v4837 = vpow.pop %v4836
    %v4838 = vmul.f32 %v4827, 1.442695
    %v4839 = vpow.pop %v4838
    %v4840 = vmul.f32 %v4828, 1.442695
    %v4841 = vpow.pop %v4840
    %v4842 = vmul.f32 %v4829, 1.442695
    %v4843 = vpow.pop %v4842
    %v4844 = vmul.f32 %v4830, 1.442695
    %v4845 = vpow.pop %v4844
    %v4846 = vmul.f32 %v4831, 1.442695
    %v4847 = vpow.pop %v4846
    %v4848 = vsel %vm654, %v4833, 0.0
    %4849 = vadd.xlane.f32.xlu0 %v4848
    %v4850 = vpop.xlane.xlu0 %4849
    %v4851 = vsel %vm654, %v4835, 0.0
    %4852 = vadd.xlane.f32.xlu0 %v4851
    %v4853 = vpop.xlane.xlu0 %4852
    %v4854 = vsel %vm654, %v4837, 0.0
    %4855 = vadd.xlane.f32.xlu0 %v4854
    %v4856 = vpop.xlane.xlu0 %4855
    %v4857 = vsel %vm654, %v4839, 0.0
    %4858 = vadd.xlane.f32.xlu0 %v4857
    %v4859 = vpop.xlane.xlu0 %4858
    %v4860 = vsel %vm654, %v4841, 0.0
    %4861 = vadd.xlane.f32.xlu0 %v4860
    %v4862 = vpop.xlane.xlu0 %4861
    %v4863 = vsel %vm654, %v4843, 0.0
    %4864 = vadd.xlane.f32.xlu0 %v4863
    %v4865 = vpop.xlane.xlu0 %4864
    %v4866 = vsel %vm654, %v4845, 0.0
    %4867 = vadd.xlane.f32.xlu0 %v4866
    %v4868 = vpop.xlane.xlu0 %4867
    %v4869 = vsel %vm654, %v4847, 0.0
    %4870 = vadd.xlane.f32.xlu0 %v4869
    %v4871 = vpop.xlane.xlu0 %4870
    %v4872 = vrcp.pop %v4850
    %v4873 = vrcp.pop %v4853
    %v4874 = vrcp.pop %v4856
    %v4875 = vrcp.pop %v4859
    %v4876 = vrcp.pop %v4862
    %v4877 = vrcp.pop %v4865
    %v4878 = vrcp.pop %v4868
    %v4879 = vrcp.pop %v4871
    %v4880 = vmul.f32 %v4833, %v4872
    %v4881 = vmul.f32 %v4835, %v4873
    %v4882 = vmul.f32 %v4837, %v4874
    %v4883 = vmul.f32 %v4839, %v4875
    %v4884 = vmul.f32 %v4841, %v4876
    %v4885 = vmul.f32 %v4843, %v4877
    %v4886 = vmul.f32 %v4845, %v4878
    %v4887 = vmul.f32 %v4847, %v4879
    %4888 = vrot.lane.b32.xlu0 %v152, 32
    %v4889 = vpop.permute.xlu0 %4888
    %4890 = vrot.lane.b32.xlu0 %v157, 32
    %v4891 = vpop.permute.xlu0 %4890
    %v4895 = vsel %vm654, %v4880, 0
    %v4898 = vsel %vm654, %v4881, 0
    %4900 = vmatprep.subr.mxu0 0.0
    %4901 = vmatpush1.msra.mxu0 0.0
    %4902 = vmatprep.subr.mxu0 0.0
    %4903 = vmatpush1.msra.mxu0 0.0
    %4904 = vmatprep.subr.mxu0 0.0
    %4905 = vmatpush1.msra.mxu0 0.0
    %4906 = vmatprep.subr.mxu0 0.0
    %4907 = vmatpush1.msra.mxu0 0.0
    %4908 = vmatprep.subr.mxu0 0.0
    %4909 = vmatpush1.msra.mxu0 0.0
    %4910 = vmatprep.subr.mxu0 0.0
    %4911 = vmatpush1.msra.mxu0 0.0
    %4912 = vmatprep.subr.mxu0 0.0
    %4913 = vmatpush1.msra.mxu0 0.0
    %4914 = vmatprep.subr.mxu0 0.0
    %4915 = vmatpush1.msra.mxu0 0.0
    %4916 = vmatprep.subr.mxu0 0.0
    %4917 = vmatpush1.msra.mxu0 0.0
    %4918 = vmatprep.subr.mxu0 0.0
    %4919 = vmatpush1.msra.mxu0 0.0
    %4920 = vmatprep.subr.mxu0 0.0
    %4921 = vmatpush1.msra.mxu0 0.0
    %4922 = vmatprep.subr.mxu0 0.0
    %4923 = vmatpush1.msra.mxu0 0.0
    %4924 = vmatprep.subr.mxu0 0.0
    %4925 = vmatpush1.msra.mxu0 0.0
    %4926 = vmatprep.subr.mxu0 0.0
    %4927 = vmatpush1.msra.mxu0 0.0
    %4928 = vmatprep.subr.mxu0 0.0
    %4929 = vmatpush1.msra.mxu0 %v4891
    %4930 = vmatprep.subr.mxu0 0.0
    %4931 = vmatpush1.msra.mxu0 %v4889
    %4932 = vmatprep.subr.mxu0 0.0
    %4933 = vmatpush2.msra.mxu0 0.0
    %4934 = vmatprep.subr.mxu0 0.0
    %4935 = vmatpush2.msra.mxu0 0.0
    %4936 = vmatprep.subr.mxu0 0.0
    %4937 = vmatpush2.msra.mxu0 0.0
    %4938 = vmatprep.subr.mxu0 0.0
    %4939 = vmatpush2.msra.mxu0 0.0
    %4940 = vmatprep.subr.mxu0 0.0
    %4941 = vmatpush2.msra.mxu0 0.0
    %4942 = vmatprep.subr.mxu0 0.0
    %4943 = vmatpush2.msra.mxu0 0.0
    %4944 = vmatprep.subr.mxu0 0.0
    %4945 = vmatpush2.msra.mxu0 0.0
    %4946 = vmatprep.subr.mxu0 0.0
    %4947 = vmatpush2.msra.mxu0 0.0
    %4948 = vmatprep.subr.mxu0 0.0
    %4949 = vmatpush2.msra.mxu0 0.0
    %4950 = vmatprep.subr.mxu0 0.0
    %4951 = vmatpush2.msra.mxu0 0.0
    %4952 = vmatprep.subr.mxu0 0.0
    %4953 = vmatpush2.msra.mxu0 0.0
    %4954 = vmatprep.subr.mxu0 0.0
    %4955 = vmatpush2.msra.mxu0 0.0
    %4956 = vmatprep.subr.mxu0 0.0
    %4957 = vmatpush2.msra.mxu0 0.0
    %4958 = vmatprep.subr.mxu0 0.0
    %4959 = vmatpush2.msra.mxu0 0.0
    %4960 = vmatprep.subr.mxu0 0.0
    %4961 = vmatpush2.msra.mxu0 0.0
    %4962 = vmatprep.subr.mxu0 0.0
    %4963 = vmatpush2.msra.mxu0 0.0
    %4964 = vmatprep.mubr.f32.mxu0 0.0
    %4965 = vmatmul.mubr.f32.gmra.mxu0 %v4895
    %v4966 = vpop.f32.mrf.mxu0
    %v4967 = vadd.f32 0.0, %v4966
    %v4968 = vpop.f32.mrf.mxu0
    %4969 = vmatprep.mubr.f32.mxu0 0.0
    %4970 = vmatmul.mubr.f32.gmra.mxu0 %v4898
    %v4971 = vpop.f32.mrf.mxu0
    %v4972 = vadd.f32 0.0, %v4971
    %v4973 = vpop.f32.mrf.mxu0
    %4974 = vdwg.mxu0
    %4975 = vrot.lane.b32.xlu0 %v163, 32
    %v4976 = vpop.permute.xlu0 %4975
    %4977 = vrot.lane.b32.xlu0 %v165, 32
    %v4978 = vpop.permute.xlu0 %4977
    %v4982 = vsel %vm654, %v4882, 0
    %v4985 = vsel %vm654, %v4883, 0
    %4987 = vmatprep.subr.mxu0 0.0
    %4988 = vmatpush1.msra.mxu0 0.0
    %4989 = vmatprep.subr.mxu0 0.0
    %4990 = vmatpush1.msra.mxu0 0.0
    %4991 = vmatprep.subr.mxu0 0.0
    %4992 = vmatpush1.msra.mxu0 0.0
    %4993 = vmatprep.subr.mxu0 0.0
    %4994 = vmatpush1.msra.mxu0 0.0
    %4995 = vmatprep.subr.mxu0 0.0
    %4996 = vmatpush1.msra.mxu0 0.0
    %4997 = vmatprep.subr.mxu0 0.0
    %4998 = vmatpush1.msra.mxu0 0.0
    %4999 = vmatprep.subr.mxu0 0.0
    %5000 = vmatpush1.msra.mxu0 0.0
    %5001 = vmatprep.subr.mxu0 0.0
    %5002 = vmatpush1.msra.mxu0 0.0
    %5003 = vmatprep.subr.mxu0 0.0
    %5004 = vmatpush1.msra.mxu0 0.0
    %5005 = vmatprep.subr.mxu0 0.0
    %5006 = vmatpush1.msra.mxu0 0.0
    %5007 = vmatprep.subr.mxu0 0.0
    %5008 = vmatpush1.msra.mxu0 0.0
    %5009 = vmatprep.subr.mxu0 0.0
    %5010 = vmatpush1.msra.mxu0 0.0
    %5011 = vmatprep.subr.mxu0 0.0
    %5012 = vmatpush1.msra.mxu0 0.0
    %5013 = vmatprep.subr.mxu0 0.0
    %5014 = vmatpush1.msra.mxu0 0.0
    %5015 = vmatprep.subr.mxu0 0.0
    %5016 = vmatpush1.msra.mxu0 %v4978
    %5017 = vmatprep.subr.mxu0 0.0
    %5018 = vmatpush1.msra.mxu0 %v4976
    %5019 = vmatprep.subr.mxu0 0.0
    %5020 = vmatpush2.msra.mxu0 0.0
    %5021 = vmatprep.subr.mxu0 0.0
    %5022 = vmatpush2.msra.mxu0 0.0
    %5023 = vmatprep.subr.mxu0 0.0
    %5024 = vmatpush2.msra.mxu0 0.0
    %5025 = vmatprep.subr.mxu0 0.0
    %5026 = vmatpush2.msra.mxu0 0.0
    %5027 = vmatprep.subr.mxu0 0.0
    %5028 = vmatpush2.msra.mxu0 0.0
    %5029 = vmatprep.subr.mxu0 0.0
    %5030 = vmatpush2.msra.mxu0 0.0
    %5031 = vmatprep.subr.mxu0 0.0
    %5032 = vmatpush2.msra.mxu0 0.0
    %5033 = vmatprep.subr.mxu0 0.0
    %5034 = vmatpush2.msra.mxu0 0.0
    %5035 = vmatprep.subr.mxu0 0.0
    %5036 = vmatpush2.msra.mxu0 0.0
    %5037 = vmatprep.subr.mxu0 0.0
    %5038 = vmatpush2.msra.mxu0 0.0
    %5039 = vmatprep.subr.mxu0 0.0
    %5040 = vmatpush2.msra.mxu0 0.0
    %5041 = vmatprep.subr.mxu0 0.0
    %5042 = vmatpush2.msra.mxu0 0.0
    %5043 = vmatprep.subr.mxu0 0.0
    %5044 = vmatpush2.msra.mxu0 0.0
    %5045 = vmatprep.subr.mxu0 0.0
    %5046 = vmatpush2.msra.mxu0 0.0
    %5047 = vmatprep.subr.mxu0 0.0
    %5048 = vmatpush2.msra.mxu0 0.0
    %5049 = vmatprep.subr.mxu0 0.0
    %5050 = vmatpush2.msra.mxu0 0.0
    %5051 = vmatprep.mubr.f32.mxu0 0.0
    %5052 = vmatmul.mubr.f32.gmra.mxu0 %v4982
    %v5053 = vpop.f32.mrf.mxu0
    %v5054 = vadd.f32 0.0, %v5053
    %v5055 = vpop.f32.mrf.mxu0
    %5056 = vmatprep.mubr.f32.mxu0 0.0
    %5057 = vmatmul.mubr.f32.gmra.mxu0 %v4985
    %v5058 = vpop.f32.mrf.mxu0
    %v5059 = vadd.f32 0.0, %v5058
    %v5060 = vpop.f32.mrf.mxu0
    %5061 = vdwg.mxu0
    %5062 = vrot.lane.b32.xlu0 %v167, 32
    %v5063 = vpop.permute.xlu0 %5062
    %5064 = vrot.lane.b32.xlu0 %v169, 32
    %v5065 = vpop.permute.xlu0 %5064
    %v5069 = vsel %vm654, %v4884, 0
    %v5072 = vsel %vm654, %v4885, 0
    %5074 = vmatprep.subr.mxu0 0.0
    %5075 = vmatpush1.msra.mxu0 0.0
    %5076 = vmatprep.subr.mxu0 0.0
    %5077 = vmatpush1.msra.mxu0 0.0
    %5078 = vmatprep.subr.mxu0 0.0
    %5079 = vmatpush1.msra.mxu0 0.0
    %5080 = vmatprep.subr.mxu0 0.0
    %5081 = vmatpush1.msra.mxu0 0.0
    %5082 = vmatprep.subr.mxu0 0.0
    %5083 = vmatpush1.msra.mxu0 0.0
    %5084 = vmatprep.subr.mxu0 0.0
    %5085 = vmatpush1.msra.mxu0 0.0
    %5086 = vmatprep.subr.mxu0 0.0
    %5087 = vmatpush1.msra.mxu0 0.0
    %5088 = vmatprep.subr.mxu0 0.0
    %5089 = vmatpush1.msra.mxu0 0.0
    %5090 = vmatprep.subr.mxu0 0.0
    %5091 = vmatpush1.msra.mxu0 0.0
    %5092 = vmatprep.subr.mxu0 0.0
    %5093 = vmatpush1.msra.mxu0 0.0
    %5094 = vmatprep.subr.mxu0 0.0
    %5095 = vmatpush1.msra.mxu0 0.0
    %5096 = vmatprep.subr.mxu0 0.0
    %5097 = vmatpush1.msra.mxu0 0.0
    %5098 = vmatprep.subr.mxu0 0.0
    %5099 = vmatpush1.msra.mxu0 0.0
    %5100 = vmatprep.subr.mxu0 0.0
    %5101 = vmatpush1.msra.mxu0 0.0
    %5102 = vmatprep.subr.mxu0 0.0
    %5103 = vmatpush1.msra.mxu0 %v5065
    %5104 = vmatprep.subr.mxu0 0.0
    %5105 = vmatpush1.msra.mxu0 %v5063
    %5106 = vmatprep.subr.mxu0 0.0
    %5107 = vmatpush2.msra.mxu0 0.0
    %5108 = vmatprep.subr.mxu0 0.0
    %5109 = vmatpush2.msra.mxu0 0.0
    %5110 = vmatprep.subr.mxu0 0.0
    %5111 = vmatpush2.msra.mxu0 0.0
    %5112 = vmatprep.subr.mxu0 0.0
    %5113 = vmatpush2.msra.mxu0 0.0
    %5114 = vmatprep.subr.mxu0 0.0
    %5115 = vmatpush2.msra.mxu0 0.0
    %5116 = vmatprep.subr.mxu0 0.0
    %5117 = vmatpush2.msra.mxu0 0.0
    %5118 = vmatprep.subr.mxu0 0.0
    %5119 = vmatpush2.msra.mxu0 0.0
    %5120 = vmatprep.subr.mxu0 0.0
    %5121 = vmatpush2.msra.mxu0 0.0
    %5122 = vmatprep.subr.mxu0 0.0
    %5123 = vmatpush2.msra.mxu0 0.0
    %5124 = vmatprep.subr.mxu0 0.0
    %5125 = vmatpush2.msra.mxu0 0.0
    %5126 = vmatprep.subr.mxu0 0.0
    %5127 = vmatpush2.msra.mxu0 0.0
    %5128 = vmatprep.subr.mxu0 0.0
    %5129 = vmatpush2.msra.mxu0 0.0
    %5130 = vmatprep.subr.mxu0 0.0
    %5131 = vmatpush2.msra.mxu0 0.0
    %5132 = vmatprep.subr.mxu0 0.0
    %5133 = vmatpush2.msra.mxu0 0.0
    %5134 = vmatprep.subr.mxu0 0.0
    %5135 = vmatpush2.msra.mxu0 0.0
    %5136 = vmatprep.subr.mxu0 0.0
    %5137 = vmatpush2.msra.mxu0 0.0
    %5138 = vmatprep.mubr.f32.mxu0 0.0
    %5139 = vmatmul.mubr.f32.gmra.mxu0 %v5069
    %v5140 = vpop.f32.mrf.mxu0
    %v5141 = vadd.f32 0.0, %v5140
    %v5142 = vpop.f32.mrf.mxu0
    %5143 = vmatprep.mubr.f32.mxu0 0.0
    %5144 = vmatmul.mubr.f32.gmra.mxu0 %v5072
    %v5145 = vpop.f32.mrf.mxu0
    %v5146 = vadd.f32 0.0, %v5145
    %v5147 = vpop.f32.mrf.mxu0
    %5148 = vdwg.mxu0
    %5149 = vrot.lane.b32.xlu0 %v171, 32
    %v5150 = vpop.permute.xlu0 %5149
    %5151 = vrot.lane.b32.xlu0 %v173, 32
    %v5152 = vpop.permute.xlu0 %5151
    %v5156 = vsel %vm654, %v4886, 0
    %v5159 = vsel %vm654, %v4887, 0
    %5161 = vmatprep.subr.mxu0 0.0
    %5162 = vmatpush1.msra.mxu0 0.0
    %5163 = vmatprep.subr.mxu0 0.0
    %5164 = vmatpush1.msra.mxu0 0.0
    %5165 = vmatprep.subr.mxu0 0.0
    %5166 = vmatpush1.msra.mxu0 0.0
    %5167 = vmatprep.subr.mxu0 0.0
    %5168 = vmatpush1.msra.mxu0 0.0
    %5169 = vmatprep.subr.mxu0 0.0
    %5170 = vmatpush1.msra.mxu0 0.0
    %5171 = vmatprep.subr.mxu0 0.0
    %5172 = vmatpush1.msra.mxu0 0.0
    %5173 = vmatprep.subr.mxu0 0.0
    %5174 = vmatpush1.msra.mxu0 0.0
    %5175 = vmatprep.subr.mxu0 0.0
    %5176 = vmatpush1.msra.mxu0 0.0
    %5177 = vmatprep.subr.mxu0 0.0
    %5178 = vmatpush1.msra.mxu0 0.0
    %5179 = vmatprep.subr.mxu0 0.0
    %5180 = vmatpush1.msra.mxu0 0.0
    %5181 = vmatprep.subr.mxu0 0.0
    %5182 = vmatpush1.msra.mxu0 0.0
    %5183 = vmatprep.subr.mxu0 0.0
    %5184 = vmatpush1.msra.mxu0 0.0
    %5185 = vmatprep.subr.mxu0 0.0
    %5186 = vmatpush1.msra.mxu0 0.0
    %5187 = vmatprep.subr.mxu0 0.0
    %5188 = vmatpush1.msra.mxu0 0.0
    %5189 = vmatprep.subr.mxu0 0.0
    %5190 = vmatpush1.msra.mxu0 %v5152
    %5191 = vmatprep.subr.mxu0 0.0
    %5192 = vmatpush1.msra.mxu0 %v5150
    %5193 = vmatprep.subr.mxu0 0.0
    %5194 = vmatpush2.msra.mxu0 0.0
    %5195 = vmatprep.subr.mxu0 0.0
    %5196 = vmatpush2.msra.mxu0 0.0
    %5197 = vmatprep.subr.mxu0 0.0
    %5198 = vmatpush2.msra.mxu0 0.0
    %5199 = vmatprep.subr.mxu0 0.0
    %5200 = vmatpush2.msra.mxu0 0.0
    %5201 = vmatprep.subr.mxu0 0.0
    %5202 = vmatpush2.msra.mxu0 0.0
    %5203 = vmatprep.subr.mxu0 0.0
    %5204 = vmatpush2.msra.mxu0 0.0
    %5205 = vmatprep.subr.mxu0 0.0
    %5206 = vmatpush2.msra.mxu0 0.0
    %5207 = vmatprep.subr.mxu0 0.0
    %5208 = vmatpush2.msra.mxu0 0.0
    %5209 = vmatprep.subr.mxu0 0.0
    %5210 = vmatpush2.msra.mxu0 0.0
    %5211 = vmatprep.subr.mxu0 0.0
    %5212 = vmatpush2.msra.mxu0 0.0
    %5213 = vmatprep.subr.mxu0 0.0
    %5214 = vmatpush2.msra.mxu0 0.0
    %5215 = vmatprep.subr.mxu0 0.0
    %5216 = vmatpush2.msra.mxu0 0.0
    %5217 = vmatprep.subr.mxu0 0.0
    %5218 = vmatpush2.msra.mxu0 0.0
    %5219 = vmatprep.subr.mxu0 0.0
    %5220 = vmatpush2.msra.mxu0 0.0
    %5221 = vmatprep.subr.mxu0 0.0
    %5222 = vmatpush2.msra.mxu0 0.0
    %5223 = vmatprep.subr.mxu0 0.0
    %5224 = vmatpush2.msra.mxu0 0.0
    %5225 = vmatprep.mubr.f32.mxu0 0.0
    %5226 = vmatmul.mubr.f32.gmra.mxu0 %v5156
    %v5227 = vpop.f32.mrf.mxu0
    %v5228 = vadd.f32 0.0, %v5227
    %v5229 = vpop.f32.mrf.mxu0
    %5230 = vmatprep.mubr.f32.mxu0 0.0
    %5231 = vmatmul.mubr.f32.gmra.mxu0 %v5159
    %v5232 = vpop.f32.mrf.mxu0
    %v5233 = vadd.f32 0.0, %v5232
    %v5234 = vpop.f32.mrf.mxu0
    %5235 = vdwg.mxu0
    %v5237 = vsel %vm293, %v4967, 0
    %v5240 = vsel %vm293, %v4972, 0
    %5242 = vmatprep.subr.mxu0 0.0
    %5243 = vmatpush1.msra.mxu0 0.0
    %5244 = vmatprep.subr.mxu0 0.0
    %5245 = vmatpush1.msra.mxu0 0.0
    %5246 = vmatprep.subr.mxu0 0.0
    %5247 = vmatpush1.msra.mxu0 0.0
    %5248 = vmatprep.subr.mxu0 0.0
    %5249 = vmatpush1.msra.mxu0 0.0
    %5250 = vmatprep.subr.mxu0 0.0
    %5251 = vmatpush1.msra.mxu0 0.0
    %5252 = vmatprep.subr.mxu0 0.0
    %5253 = vmatpush1.msra.mxu0 0.0
    %5254 = vmatprep.subr.mxu0 0.0
    %5255 = vmatpush1.msra.mxu0 0.0
    %5256 = vmatprep.subr.mxu0 0.0
    %5257 = vmatpush1.msra.mxu0 0.0
    %5258 = vmatprep.subr.mxu0 0.0
    %5259 = vmatpush1.msra.mxu0 0.0
    %5260 = vmatprep.subr.mxu0 0.0
    %5261 = vmatpush1.msra.mxu0 0.0
    %5262 = vmatprep.subr.mxu0 0.0
    %5263 = vmatpush1.msra.mxu0 0.0
    %5264 = vmatprep.subr.mxu0 0.0
    %5265 = vmatpush1.msra.mxu0 0.0
    %5266 = vmatprep.subr.mxu0 0.0
    %5267 = vmatpush1.msra.mxu0 0.0
    %5268 = vmatprep.subr.mxu0 0.0
    %5269 = vmatpush1.msra.mxu0 0.0
    %5270 = vmatprep.subr.mxu0 0.0
    %5271 = vmatpush1.msra.mxu0 0.0
    %5272 = vmatprep.subr.mxu0 0.0
    %5273 = vmatpush1.msra.mxu0 %v3932
    %5274 = vmatprep.subr.mxu0 0.0
    %5275 = vmatpush2.msra.mxu0 0.0
    %5276 = vmatprep.subr.mxu0 0.0
    %5277 = vmatpush2.msra.mxu0 0.0
    %5278 = vmatprep.subr.mxu0 0.0
    %5279 = vmatpush2.msra.mxu0 0.0
    %5280 = vmatprep.subr.mxu0 0.0
    %5281 = vmatpush2.msra.mxu0 0.0
    %5282 = vmatprep.subr.mxu0 0.0
    %5283 = vmatpush2.msra.mxu0 0.0
    %5284 = vmatprep.subr.mxu0 0.0
    %5285 = vmatpush2.msra.mxu0 0.0
    %5286 = vmatprep.subr.mxu0 0.0
    %5287 = vmatpush2.msra.mxu0 0.0
    %5288 = vmatprep.subr.mxu0 0.0
    %5289 = vmatpush2.msra.mxu0 0.0
    %5290 = vmatprep.subr.mxu0 0.0
    %5291 = vmatpush2.msra.mxu0 0.0
    %5292 = vmatprep.subr.mxu0 0.0
    %5293 = vmatpush2.msra.mxu0 0.0
    %5294 = vmatprep.subr.mxu0 0.0
    %5295 = vmatpush2.msra.mxu0 0.0
    %5296 = vmatprep.subr.mxu0 0.0
    %5297 = vmatpush2.msra.mxu0 0.0
    %5298 = vmatprep.subr.mxu0 0.0
    %5299 = vmatpush2.msra.mxu0 0.0
    %5300 = vmatprep.subr.mxu0 0.0
    %5301 = vmatpush2.msra.mxu0 0.0
    %5302 = vmatprep.subr.mxu0 0.0
    %5303 = vmatpush2.msra.mxu0 0.0
    %5304 = vmatprep.subr.mxu0 0.0
    %5305 = vmatpush2.msra.mxu0 0.0
    %5306 = vmatprep.mubr.f32.mxu0 0.0
    %5307 = vmatmul.mubr.f32.gmra.mxu0 %v5237
    %v5308 = vpop.f32.mrf.mxu0
    %v5309 = vadd.f32 0.0, %v5308
    %v5310 = vpop.f32.mrf.mxu0
    %5311 = vmatprep.mubr.f32.mxu0 0.0
    %5312 = vmatmul.mubr.f32.gmra.mxu0 %v5240
    %v5313 = vpop.f32.mrf.mxu0
    %v5314 = vadd.f32 0.0, %v5313
    %v5315 = vpop.f32.mrf.mxu0
    %5316 = vdwg.mxu0
    %v5318 = vsel %vm293, %v5054, 0
    %v5321 = vsel %vm293, %v5059, 0
    %5323 = vmatprep.subr.mxu0 0.0
    %5324 = vmatpush1.msra.mxu0 0.0
    %5325 = vmatprep.subr.mxu0 0.0
    %5326 = vmatpush1.msra.mxu0 0.0
    %5327 = vmatprep.subr.mxu0 0.0
    %5328 = vmatpush1.msra.mxu0 0.0
    %5329 = vmatprep.subr.mxu0 0.0
    %5330 = vmatpush1.msra.mxu0 0.0
    %5331 = vmatprep.subr.mxu0 0.0
    %5332 = vmatpush1.msra.mxu0 0.0
    %5333 = vmatprep.subr.mxu0 0.0
    %5334 = vmatpush1.msra.mxu0 0.0
    %5335 = vmatprep.subr.mxu0 0.0
    %5336 = vmatpush1.msra.mxu0 0.0
    %5337 = vmatprep.subr.mxu0 0.0
    %5338 = vmatpush1.msra.mxu0 0.0
    %5339 = vmatprep.subr.mxu0 0.0
    %5340 = vmatpush1.msra.mxu0 0.0
    %5341 = vmatprep.subr.mxu0 0.0
    %5342 = vmatpush1.msra.mxu0 0.0
    %5343 = vmatprep.subr.mxu0 0.0
    %5344 = vmatpush1.msra.mxu0 0.0
    %5345 = vmatprep.subr.mxu0 0.0
    %5346 = vmatpush1.msra.mxu0 0.0
    %5347 = vmatprep.subr.mxu0 0.0
    %5348 = vmatpush1.msra.mxu0 0.0
    %5349 = vmatprep.subr.mxu0 0.0
    %5350 = vmatpush1.msra.mxu0 0.0
    %5351 = vmatprep.subr.mxu0 0.0
    %5352 = vmatpush1.msra.mxu0 0.0
    %5353 = vmatprep.subr.mxu0 0.0
    %5354 = vmatpush1.msra.mxu0 %v4017
    %5355 = vmatprep.subr.mxu0 0.0
    %5356 = vmatpush2.msra.mxu0 0.0
    %5357 = vmatprep.subr.mxu0 0.0
    %5358 = vmatpush2.msra.mxu0 0.0
    %5359 = vmatprep.subr.mxu0 0.0
    %5360 = vmatpush2.msra.mxu0 0.0
    %5361 = vmatprep.subr.mxu0 0.0
    %5362 = vmatpush2.msra.mxu0 0.0
    %5363 = vmatprep.subr.mxu0 0.0
    %5364 = vmatpush2.msra.mxu0 0.0
    %5365 = vmatprep.subr.mxu0 0.0
    %5366 = vmatpush2.msra.mxu0 0.0
    %5367 = vmatprep.subr.mxu0 0.0
    %5368 = vmatpush2.msra.mxu0 0.0
    %5369 = vmatprep.subr.mxu0 0.0
    %5370 = vmatpush2.msra.mxu0 0.0
    %5371 = vmatprep.subr.mxu0 0.0
    %5372 = vmatpush2.msra.mxu0 0.0
    %5373 = vmatprep.subr.mxu0 0.0
    %5374 = vmatpush2.msra.mxu0 0.0
    %5375 = vmatprep.subr.mxu0 0.0
    %5376 = vmatpush2.msra.mxu0 0.0
    %5377 = vmatprep.subr.mxu0 0.0
    %5378 = vmatpush2.msra.mxu0 0.0
    %5379 = vmatprep.subr.mxu0 0.0
    %5380 = vmatpush2.msra.mxu0 0.0
    %5381 = vmatprep.subr.mxu0 0.0
    %5382 = vmatpush2.msra.mxu0 0.0
    %5383 = vmatprep.subr.mxu0 0.0
    %5384 = vmatpush2.msra.mxu0 0.0
    %5385 = vmatprep.subr.mxu0 0.0
    %5386 = vmatpush2.msra.mxu0 0.0
    %5387 = vmatprep.mubr.f32.mxu0 0.0
    %5388 = vmatmul.mubr.f32.gmra.mxu0 %v5318
    %v5389 = vpop.f32.mrf.mxu0
    %v5390 = vadd.f32 0.0, %v5389
    %v5391 = vpop.f32.mrf.mxu0
    %5392 = vmatprep.mubr.f32.mxu0 0.0
    %5393 = vmatmul.mubr.f32.gmra.mxu0 %v5321
    %v5394 = vpop.f32.mrf.mxu0
    %v5395 = vadd.f32 0.0, %v5394
    %v5396 = vpop.f32.mrf.mxu0
    %5397 = vdwg.mxu0
    %v5399 = vsel %vm293, %v5141, 0
    %v5402 = vsel %vm293, %v5146, 0
    %5404 = vmatprep.subr.mxu0 0.0
    %5405 = vmatpush1.msra.mxu0 0.0
    %5406 = vmatprep.subr.mxu0 0.0
    %5407 = vmatpush1.msra.mxu0 0.0
    %5408 = vmatprep.subr.mxu0 0.0
    %5409 = vmatpush1.msra.mxu0 0.0
    %5410 = vmatprep.subr.mxu0 0.0
    %5411 = vmatpush1.msra.mxu0 0.0
    %5412 = vmatprep.subr.mxu0 0.0
    %5413 = vmatpush1.msra.mxu0 0.0
    %5414 = vmatprep.subr.mxu0 0.0
    %5415 = vmatpush1.msra.mxu0 0.0
    %5416 = vmatprep.subr.mxu0 0.0
    %5417 = vmatpush1.msra.mxu0 0.0
    %5418 = vmatprep.subr.mxu0 0.0
    %5419 = vmatpush1.msra.mxu0 0.0
    %5420 = vmatprep.subr.mxu0 0.0
    %5421 = vmatpush1.msra.mxu0 0.0
    %5422 = vmatprep.subr.mxu0 0.0
    %5423 = vmatpush1.msra.mxu0 0.0
    %5424 = vmatprep.subr.mxu0 0.0
    %5425 = vmatpush1.msra.mxu0 0.0
    %5426 = vmatprep.subr.mxu0 0.0
    %5427 = vmatpush1.msra.mxu0 0.0
    %5428 = vmatprep.subr.mxu0 0.0
    %5429 = vmatpush1.msra.mxu0 0.0
    %5430 = vmatprep.subr.mxu0 0.0
    %5431 = vmatpush1.msra.mxu0 0.0
    %5432 = vmatprep.subr.mxu0 0.0
    %5433 = vmatpush1.msra.mxu0 0.0
    %5434 = vmatprep.subr.mxu0 0.0
    %5435 = vmatpush1.msra.mxu0 %v4102
    %5436 = vmatprep.subr.mxu0 0.0
    %5437 = vmatpush2.msra.mxu0 0.0
    %5438 = vmatprep.subr.mxu0 0.0
    %5439 = vmatpush2.msra.mxu0 0.0
    %5440 = vmatprep.subr.mxu0 0.0
    %5441 = vmatpush2.msra.mxu0 0.0
    %5442 = vmatprep.subr.mxu0 0.0
    %5443 = vmatpush2.msra.mxu0 0.0
    %5444 = vmatprep.subr.mxu0 0.0
    %5445 = vmatpush2.msra.mxu0 0.0
    %5446 = vmatprep.subr.mxu0 0.0
    %5447 = vmatpush2.msra.mxu0 0.0
    %5448 = vmatprep.subr.mxu0 0.0
    %5449 = vmatpush2.msra.mxu0 0.0
    %5450 = vmatprep.subr.mxu0 0.0
    %5451 = vmatpush2.msra.mxu0 0.0
    %5452 = vmatprep.subr.mxu0 0.0
    %5453 = vmatpush2.msra.mxu0 0.0
    %5454 = vmatprep.subr.mxu0 0.0
    %5455 = vmatpush2.msra.mxu0 0.0
    %5456 = vmatprep.subr.mxu0 0.0
    %5457 = vmatpush2.msra.mxu0 0.0
    %5458 = vmatprep.subr.mxu0 0.0
    %5459 = vmatpush2.msra.mxu0 0.0
    %5460 = vmatprep.subr.mxu0 0.0
    %5461 = vmatpush2.msra.mxu0 0.0
    %5462 = vmatprep.subr.mxu0 0.0
    %5463 = vmatpush2.msra.mxu0 0.0
    %5464 = vmatprep.subr.mxu0 0.0
    %5465 = vmatpush2.msra.mxu0 0.0
    %5466 = vmatprep.subr.mxu0 0.0
    %5467 = vmatpush2.msra.mxu0 0.0
    %5468 = vmatprep.mubr.f32.mxu0 0.0
    %5469 = vmatmul.mubr.f32.gmra.mxu0 %v5399
    %v5470 = vpop.f32.mrf.mxu0
    %v5471 = vadd.f32 0.0, %v5470
    %v5472 = vpop.f32.mrf.mxu0
    %5473 = vmatprep.mubr.f32.mxu0 0.0
    %5474 = vmatmul.mubr.f32.gmra.mxu0 %v5402
    %v5475 = vpop.f32.mrf.mxu0
    %v5476 = vadd.f32 0.0, %v5475
    %v5477 = vpop.f32.mrf.mxu0
    %5478 = vdwg.mxu0
    %v5480 = vsel %vm293, %v5228, 0
    %v5483 = vsel %vm293, %v5233, 0
    %5485 = vmatprep.subr.mxu0 0.0
    %5486 = vmatpush1.msra.mxu0 0.0
    %5487 = vmatprep.subr.mxu0 0.0
    %5488 = vmatpush1.msra.mxu0 0.0
    %5489 = vmatprep.subr.mxu0 0.0
    %5490 = vmatpush1.msra.mxu0 0.0
    %5491 = vmatprep.subr.mxu0 0.0
    %5492 = vmatpush1.msra.mxu0 0.0
    %5493 = vmatprep.subr.mxu0 0.0
    %5494 = vmatpush1.msra.mxu0 0.0
    %5495 = vmatprep.subr.mxu0 0.0
    %5496 = vmatpush1.msra.mxu0 0.0
    %5497 = vmatprep.subr.mxu0 0.0
    %5498 = vmatpush1.msra.mxu0 0.0
    %5499 = vmatprep.subr.mxu0 0.0
    %5500 = vmatpush1.msra.mxu0 0.0
    %5501 = vmatprep.subr.mxu0 0.0
    %5502 = vmatpush1.msra.mxu0 0.0
    %5503 = vmatprep.subr.mxu0 0.0
    %5504 = vmatpush1.msra.mxu0 0.0
    %5505 = vmatprep.subr.mxu0 0.0
    %5506 = vmatpush1.msra.mxu0 0.0
    %5507 = vmatprep.subr.mxu0 0.0
    %5508 = vmatpush1.msra.mxu0 0.0
    %5509 = vmatprep.subr.mxu0 0.0
    %5510 = vmatpush1.msra.mxu0 0.0
    %5511 = vmatprep.subr.mxu0 0.0
    %5512 = vmatpush1.msra.mxu0 0.0
    %5513 = vmatprep.subr.mxu0 0.0
    %5514 = vmatpush1.msra.mxu0 0.0
    %5515 = vmatprep.subr.mxu0 0.0
    %5516 = vmatpush1.msra.mxu0 %v4187
    %5517 = vmatprep.subr.mxu0 0.0
    %5518 = vmatpush2.msra.mxu0 0.0
    %5519 = vmatprep.subr.mxu0 0.0
    %5520 = vmatpush2.msra.mxu0 0.0
    %5521 = vmatprep.subr.mxu0 0.0
    %5522 = vmatpush2.msra.mxu0 0.0
    %5523 = vmatprep.subr.mxu0 0.0
    %5524 = vmatpush2.msra.mxu0 0.0
    %5525 = vmatprep.subr.mxu0 0.0
    %5526 = vmatpush2.msra.mxu0 0.0
    %5527 = vmatprep.subr.mxu0 0.0
    %5528 = vmatpush2.msra.mxu0 0.0
    %5529 = vmatprep.subr.mxu0 0.0
    %5530 = vmatpush2.msra.mxu0 0.0
    %5531 = vmatprep.subr.mxu0 0.0
    %5532 = vmatpush2.msra.mxu0 0.0
    %5533 = vmatprep.subr.mxu0 0.0
    %5534 = vmatpush2.msra.mxu0 0.0
    %5535 = vmatprep.subr.mxu0 0.0
    %5536 = vmatpush2.msra.mxu0 0.0
    %5537 = vmatprep.subr.mxu0 0.0
    %5538 = vmatpush2.msra.mxu0 0.0
    %5539 = vmatprep.subr.mxu0 0.0
    %5540 = vmatpush2.msra.mxu0 0.0
    %5541 = vmatprep.subr.mxu0 0.0
    %5542 = vmatpush2.msra.mxu0 0.0
    %5543 = vmatprep.subr.mxu0 0.0
    %5544 = vmatpush2.msra.mxu0 0.0
    %5545 = vmatprep.subr.mxu0 0.0
    %5546 = vmatpush2.msra.mxu0 0.0
    %5547 = vmatprep.subr.mxu0 0.0
    %5548 = vmatpush2.msra.mxu0 0.0
    %5549 = vmatprep.mubr.f32.mxu0 0.0
    %5550 = vmatmul.mubr.f32.gmra.mxu0 %v5480
    %v5551 = vpop.f32.mrf.mxu0
    %v5552 = vadd.f32 0.0, %v5551
    %v5553 = vpop.f32.mrf.mxu0
    %5554 = vmatprep.mubr.f32.mxu0 0.0
    %5555 = vmatmul.mubr.f32.gmra.mxu0 %v5483
    %v5556 = vpop.f32.mrf.mxu0
    %v5557 = vadd.f32 0.0, %v5556
    %v5558 = vpop.f32.mrf.mxu0
    %5559 = vdwg.mxu0
    %v5560 = vsel %vm78, %v5309, 0.0
    %v5561 = vsel %vm78, %v5390, 0.0
    %v5562 = vadd.f32 %v5560, %v5561
    %v5563 = vsel %vm78, %v5471, 0.0
    %v5564 = vadd.f32 %v5562, %v5563
    %v5565 = vsel %vm78, %v5552, 0.0
    %v5566 = vadd.f32 %v5564, %v5565
    %v5567 = vsel %vm78, %v5314, 0.0
    %v5568 = vsel %vm78, %v5395, 0.0
    %v5569 = vadd.f32 %v5567, %v5568
    %v5570 = vsel %vm78, %v5476, 0.0
    %v5571 = vadd.f32 %v5569, %v5570
    %v5572 = vsel %vm78, %v5557, 0.0
    %v5573 = vadd.f32 %v5571, %v5572
    %v5574 = vadd.f32 %v5566, %v4287
    %v5575 = vadd.f32 %v5573, %v4287
    %v5576 = vld [vmem:[#allocation7 + $0xa5] sm:$0x1]
    %v5577 = vld [vmem:[#allocation7 + $0xa8] sm:$0x1]
    %v5578 = vsel %vm78, %v5574, 0.0
    %5579 = vadd.xlane.f32.xlu0 %v5578
    %v5580 = vpop.xlane.xlu0 %5579
    %v5581 = vsel %vm78, %v5575, 0.0
    %5582 = vadd.xlane.f32.xlu0 %v5581
    %v5583 = vpop.xlane.xlu0 %5582
    %v5584 = vmul.f32 %v5580, %v1459
    %v5585 = vmul.f32 %v5583, %v1459
    %v5586 = vsub.f32 %v5574, %v5584
    %v5587 = vsub.f32 %v5575, %v5585
    %v5588 = vmul.f32 %v5586, %v5586
    %v5589 = vmul.f32 %v5587, %v5587
    %v5590 = vsel %vm78, %v5588, 0.0
    %5591 = vadd.xlane.f32.xlu0 %v5590
    %v5592 = vpop.xlane.xlu0 %5591
    %v5593 = vsel %vm78, %v5589, 0.0
    %5594 = vadd.xlane.f32.xlu0 %v5593
    %v5595 = vpop.xlane.xlu0 %5594
    %v5596 = vmul.f32 %v5592, %v1459
    %v5597 = vmul.f32 %v5595, %v1459
    %v5598 = vadd.f32 %v5596, 1e-05
    %v5599 = vadd.f32 %v5597, 1e-05
    %v5600 = vrsqrt.pop %v5598
    %v5601 = vrsqrt.pop %v5599
    %v5602 = vmul.f32 %v5586, %v5600
    %v5603 = vmul.f32 %v5587, %v5601
    %v5604 = vlaneseq
    %v5605 = vshrl.u32 %v5604, 7
    %v5606 = vsub.s32 0, %v5605
    %v5607 = vrot.slane %v5576, %v5606
    %v5608 = vmul.f32 %v5602, %v5607
    %v5609 = vmul.f32 %v5603, %v5607
    %v5610 = vlaneseq
    %v5611 = vshrl.u32 %v5610, 7
    %v5612 = vsub.s32 0, %v5611
    %v5613 = vrot.slane %v5577, %v5612
    %v5614 = vadd.f32 %v5608, %v5613
    %v5615 = vadd.f32 %v5609, %v5613
    %v5616 = vadd.f32 %v4330, %v5614
    %v5617 = vadd.f32 %v4331, %v5615
    %v5618 = vlaneseq
    %v5619 = vshrl.u32 %v5618, 7
    %v5620 = vsub.s32 0, %v5619
    %v5621 = vrot.slane %v3025, %v5620
    %v5623 = vsel %vm78, %v5616, 0
    %v5626 = vsel %vm78, %v5617, 0
    %5628 = vmatprep.subr.mxu0 0.0
    %5629 = vmatpush1.msra.mxu0 0.0
    %5630 = vmatprep.subr.mxu0 0.0
    %5631 = vmatpush1.msra.mxu0 0.0
    %5632 = vmatprep.subr.mxu0 0.0
    %5633 = vmatpush1.msra.mxu0 0.0
    %5634 = vmatprep.subr.mxu0 0.0
    %5635 = vmatpush1.msra.mxu0 0.0
    %5636 = vmatprep.subr.mxu0 0.0
    %5637 = vmatpush1.msra.mxu0 0.0
    %5638 = vmatprep.subr.mxu0 0.0
    %5639 = vmatpush1.msra.mxu0 0.0
    %5640 = vmatprep.subr.mxu0 0.0
    %5641 = vmatpush1.msra.mxu0 0.0
    %5642 = vmatprep.subr.mxu0 0.0
    %5643 = vmatpush1.msra.mxu0 0.0
    %5644 = vmatprep.subr.mxu0 0.0
    %5645 = vmatpush1.msra.mxu0 0.0
    %5646 = vmatprep.subr.mxu0 0.0
    %5647 = vmatpush1.msra.mxu0 0.0
    %5648 = vmatprep.subr.mxu0 0.0
    %5649 = vmatpush1.msra.mxu0 0.0
    %5650 = vmatprep.subr.mxu0 0.0
    %5651 = vmatpush1.msra.mxu0 0.0
    %5652 = vmatprep.subr.mxu0 0.0
    %5653 = vmatpush1.msra.mxu0 %v3024
    %5654 = vmatprep.subr.mxu0 0.0
    %5655 = vmatpush1.msra.mxu0 %v3023
    %5656 = vmatprep.subr.mxu0 0.0
    %5657 = vmatpush1.msra.mxu0 %v3022
    %5658 = vmatprep.subr.mxu0 0.0
    %5659 = vmatpush1.msra.mxu0 %v3021
    %5660 = vmatprep.subr.mxu0 0.0
    %5661 = vmatpush2.msra.mxu0 0.0
    %5662 = vmatprep.subr.mxu0 0.0
    %5663 = vmatpush2.msra.mxu0 0.0
    %5664 = vmatprep.subr.mxu0 0.0
    %5665 = vmatpush2.msra.mxu0 0.0
    %5666 = vmatprep.subr.mxu0 0.0
    %5667 = vmatpush2.msra.mxu0 0.0
    %5668 = vmatprep.subr.mxu0 0.0
    %5669 = vmatpush2.msra.mxu0 0.0
    %5670 = vmatprep.subr.mxu0 0.0
    %5671 = vmatpush2.msra.mxu0 0.0
    %5672 = vmatprep.subr.mxu0 0.0
    %5673 = vmatpush2.msra.mxu0 0.0
    %5674 = vmatprep.subr.mxu0 0.0
    %5675 = vmatpush2.msra.mxu0 0.0
    %5676 = vmatprep.subr.mxu0 0.0
    %5677 = vmatpush2.msra.mxu0 0.0
    %5678 = vmatprep.subr.mxu0 0.0
    %5679 = vmatpush2.msra.mxu0 0.0
    %5680 = vmatprep.subr.mxu0 0.0
    %5681 = vmatpush2.msra.mxu0 0.0
    %5682 = vmatprep.subr.mxu0 0.0
    %5683 = vmatpush2.msra.mxu0 0.0
    %5684 = vmatprep.subr.mxu0 0.0
    %5685 = vmatpush2.msra.mxu0 0.0
    %5686 = vmatprep.subr.mxu0 0.0
    %5687 = vmatpush2.msra.mxu0 0.0
    %5688 = vmatprep.subr.mxu0 0.0
    %5689 = vmatpush2.msra.mxu0 0.0
    %5690 = vmatprep.subr.mxu0 0.0
    %5691 = vmatpush2.msra.mxu0 0.0
    %5692 = vmatprep.mubr.f32.mxu0 0.0
    %5693 = vmatmul.mubr.f32.gmra.mxu0 %v5623
    %v5694 = vpop.f32.mrf.mxu0
    %v5695 = vadd.f32 %v5621, %v5694
    %v5696 = vpop.f32.mrf.mxu0
    %5697 = vmatprep.mubr.f32.mxu0 0.0
    %5698 = vmatmul.mubr.f32.gmra.mxu0 %v5626
    %v5699 = vpop.f32.mrf.mxu0
    %v5700 = vadd.f32 %v5621, %v5699
    %v5701 = vpop.f32.mrf.mxu0
    %5702 = vdwg.mxu0
    %vm5703 = vcmp.ge.f32.partialorder %v5695, 0.0
    %vm5704 = vcmp.ge.f32.partialorder %v5700, 0.0
    %v5705 = vmul.f32 %v5695, 0.1
    %v5706 = vmul.f32 %v5700, 0.1
    %v5707 = vsel %vm5703, %v5695, %v5705
    %v5708 = vsel %vm5704, %v5700, %v5706
    %v5709 = vlaneseq
    %v5710 = vshrl.u32 %v5709, 7
    %v5711 = vsub.s32 0, %v5710
    %v5712 = vrot.slane %v3030, %v5711
    %5721 = vrot.lane.b32.xlu0 %v3021, 32
    %v5722 = vpop.permute.xlu0 %5721
    %5723 = vrot.lane.b32.xlu0 %v3022, 32
    %v5724 = vpop.permute.xlu0 %5723
    %5725 = vrot.lane.b32.xlu0 %v3023, 32
    %v5726 = vpop.permute.xlu0 %5725
    %5727 = vrot.lane.b32.xlu0 %v3024, 32
    %v5728 = vpop.permute.xlu0 %5727
    %5729 = vrot.lane.b32.xlu0 %v3026, 32
    %v5730 = vpop.permute.xlu0 %5729
    %5731 = vrot.lane.b32.xlu0 %v3027, 32
    %v5732 = vpop.permute.xlu0 %5731
    %5733 = vrot.lane.b32.xlu0 %v3028, 32
    %v5734 = vpop.permute.xlu0 %5733
    %5735 = vrot.lane.b32.xlu0 %v3029, 32
    %v5736 = vpop.permute.xlu0 %5735
    %v5746 = vsel %vm2891, %v5707, 0
    %v5749 = vsel %vm2891, %v5708, 0
    %5751 = vmatprep.subr.mxu0 0.0
    %5752 = vmatpush1.msra.mxu0 0.0
    %5753 = vmatprep.subr.mxu0 0.0
    %5754 = vmatpush1.msra.mxu0 0.0
    %5755 = vmatprep.subr.mxu0 0.0
    %5756 = vmatpush1.msra.mxu0 0.0
    %5757 = vmatprep.subr.mxu0 0.0
    %5758 = vmatpush1.msra.mxu0 0.0
    %5759 = vmatprep.subr.mxu0 0.0
    %5760 = vmatpush1.msra.mxu0 0.0
    %5761 = vmatprep.subr.mxu0 0.0
    %5762 = vmatpush1.msra.mxu0 0.0
    %5763 = vmatprep.subr.mxu0 0.0
    %5764 = vmatpush1.msra.mxu0 0.0
    %5765 = vmatprep.subr.mxu0 0.0
    %5766 = vmatpush1.msra.mxu0 0.0
    %5767 = vmatprep.subr.mxu0 0.0
    %5768 = vmatpush1.msra.mxu0 %v5736
    %5769 = vmatprep.subr.mxu0 0.0
    %5770 = vmatpush1.msra.mxu0 %v5734
    %5771 = vmatprep.subr.mxu0 0.0
    %5772 = vmatpush1.msra.mxu0 %v5732
    %5773 = vmatprep.subr.mxu0 0.0
    %5774 = vmatpush1.msra.mxu0 %v5730
    %5775 = vmatprep.subr.mxu0 0.0
    %5776 = vmatpush1.msra.mxu0 %v5728
    %5777 = vmatprep.subr.mxu0 0.0
    %5778 = vmatpush1.msra.mxu0 %v5726
    %5779 = vmatprep.subr.mxu0 0.0
    %5780 = vmatpush1.msra.mxu0 %v5724
    %5781 = vmatprep.subr.mxu0 0.0
    %5782 = vmatpush1.msra.mxu0 %v5722
    %5783 = vmatprep.subr.mxu0 0.0
    %5784 = vmatpush2.msra.mxu0 0.0
    %5785 = vmatprep.subr.mxu0 0.0
    %5786 = vmatpush2.msra.mxu0 0.0
    %5787 = vmatprep.subr.mxu0 0.0
    %5788 = vmatpush2.msra.mxu0 0.0
    %5789 = vmatprep.subr.mxu0 0.0
    %5790 = vmatpush2.msra.mxu0 0.0
    %5791 = vmatprep.subr.mxu0 0.0
    %5792 = vmatpush2.msra.mxu0 0.0
    %5793 = vmatprep.subr.mxu0 0.0
    %5794 = vmatpush2.msra.mxu0 0.0
    %5795 = vmatprep.subr.mxu0 0.0
    %5796 = vmatpush2.msra.mxu0 0.0
    %5797 = vmatprep.subr.mxu0 0.0
    %5798 = vmatpush2.msra.mxu0 0.0
    %5799 = vmatprep.subr.mxu0 0.0
    %5800 = vmatpush2.msra.mxu0 0.0
    %5801 = vmatprep.subr.mxu0 0.0
    %5802 = vmatpush2.msra.mxu0 0.0
    %5803 = vmatprep.subr.mxu0 0.0
    %5804 = vmatpush2.msra.mxu0 0.0
    %5805 = vmatprep.subr.mxu0 0.0
    %5806 = vmatpush2.msra.mxu0 0.0
    %5807 = vmatprep.subr.mxu0 0.0
    %5808 = vmatpush2.msra.mxu0 0.0
    %5809 = vmatprep.subr.mxu0 0.0
    %5810 = vmatpush2.msra.mxu0 0.0
    %5811 = vmatprep.subr.mxu0 0.0
    %5812 = vmatpush2.msra.mxu0 0.0
    %5813 = vmatprep.subr.mxu0 0.0
    %5814 = vmatpush2.msra.mxu0 0.0
    %5815 = vmatprep.mubr.f32.mxu0 0.0
    %5816 = vmatmul.mubr.f32.gmra.mxu0 %v5746
    %v5817 = vpop.f32.mrf.mxu0
    %v5818 = vadd.f32 %v5712, %v5817
    %v5819 = vpop.f32.mrf.mxu0
    %5820 = vmatprep.mubr.f32.mxu0 0.0
    %5821 = vmatmul.mubr.f32.gmra.mxu0 %v5749
    %v5822 = vpop.f32.mrf.mxu0
    %v5823 = vadd.f32 %v5712, %v5822
    %v5824 = vpop.f32.mrf.mxu0
    %5825 = vdwg.mxu0
    %v5826 = vld [vmem:[#allocation7 + $0xa6] sm:$0x1]
    %v5827 = vld [vmem:[#allocation7 + $0xa9] sm:$0x1]
    %v5828 = vsel %vm78, %v5818, 0.0
    %5829 = vadd.xlane.f32.xlu0 %v5828
    %v5830 = vpop.xlane.xlu0 %5829
    %v5831 = vsel %vm78, %v5823, 0.0
    %5832 = vadd.xlane.f32.xlu0 %v5831
    %v5833 = vpop.xlane.xlu0 %5832
    %v5834 = vmul.f32 %v5830, %v1459
    %v5835 = vmul.f32 %v5833, %v1459
    %v5836 = vsub.f32 %v5818, %v5834
    %v5837 = vsub.f32 %v5823, %v5835
    %v5838 = vmul.f32 %v5836, %v5836
    %v5839 = vmul.f32 %v5837, %v5837
    %v5840 = vsel %vm78, %v5838, 0.0
    %5841 = vadd.xlane.f32.xlu0 %v5840
    %v5842 = vpop.xlane.xlu0 %5841
    %v5843 = vsel %vm78, %v5839, 0.0
    %5844 = vadd.xlane.f32.xlu0 %v5843
    %v5845 = vpop.xlane.xlu0 %5844
    %v5846 = vmul.f32 %v5842, %v1459
    %v5847 = vmul.f32 %v5845, %v1459
    %v5848 = vadd.f32 %v5846, 1e-05
    %v5849 = vadd.f32 %v5847, 1e-05
    %v5850 = vrsqrt.pop %v5848
    %v5851 = vrsqrt.pop %v5849
    %v5852 = vmul.f32 %v5836, %v5850
    %v5853 = vmul.f32 %v5837, %v5851
    %v5854 = vlaneseq
    %v5855 = vshrl.u32 %v5854, 7
    %v5856 = vsub.s32 0, %v5855
    %v5857 = vrot.slane %v5826, %v5856
    %v5858 = vmul.f32 %v5852, %v5857
    %v5859 = vmul.f32 %v5853, %v5857
    %v5860 = vlaneseq
    %v5861 = vshrl.u32 %v5860, 7
    %v5862 = vsub.s32 0, %v5861
    %v5863 = vrot.slane %v5827, %v5862
    %v5864 = vadd.f32 %v5858, %v5863
    %v5865 = vadd.f32 %v5859, %v5863
    %v5866 = vadd.f32 %v5818, %v5864
    %v5867 = vadd.f32 %v5823, %v5865
    %5868 = vst.msk [vmem:[#allocation8] sm:$0xff] %vm78, %v5866
    %5869 = vst.msk [vmem:[#allocation8 + $0x8] sm:$0xff] %vm78, %v5867
    // Predicated region
    $region26: #{decoders_forward.1} parent=1 // pred_check
      _
    $region27: #{decoders_forward.1} parent=1 // pred_check_branch
      %5871 = sbr.rel (0) target = $region29
    $region28: #{decoders_forward.1} parent=1 // pred_region
      %s5873 = ssub.s32 256, 256
      %5874 = vsyncadd [#allocation4], %s5873
      %s5875 = sshll.u32 [#allocation8], 4
      %s5876 = int_to_ptr.vmem [resolvable:$true] %s5875
      %5881 = dma.vmem_to_hbm [thread:$0]  %s5876, 256, %s3, [#allocation4], 128, 128, 8
    $region29: #{decoders_forward.1} parent=1 // pred_fallthru
      _
    // Predicated region
    $region30: #{decoders_forward.1} parent=1 // pred_check
      _
    $region31: #{decoders_forward.1} parent=1 // pred_check_branch
      %5883 = sbr.rel (0) target = $region33
    $region32: #{decoders_forward.1} parent=1 // pred_region
      %5884 = dma.done [#allocation4], 256
    $region33: #{decoders_forward.1} parent=1 // pred_fallthru
      _
    %5885 = vsyncpa [#allocation3], 1
    %5886 = vsyncpa [#allocation6], 1
    %5887 = vsyncpa [#allocation4], 1

</llo_original>
